<compile_context>
chip_gen: v6e
topology: v6e:2x2x1
jax: 0.10.0
libtpu: 0.0.40
codegen_flags: <defaults>
</compile_context>

<pallas_src>
import jax
import jax.numpy as jnp
import numpy as np
from jax.experimental import pallas as pl
from jax.experimental.pallas import tpu as pltpu

# ---- module-implied sizes (hard-coded by the PyTorch module) ----
C = 512            # backbone feature channels
HW = 7             # spatial size required by the (1,7)/(7,1)/(7,7) kernels
MIP = 16           # max(8, 512 // 32) inside CoordAtt
NUM_HEAD = 2
SMIRK_DIM = 358    # Wash_Linear1 input
FUSE_IN = 1024     # 512 (smirk proj) + 512 (pooled features)
FUSE_HID = 2048
NUM_CLASS = 7
EPS = 1e-5
TH = 512           # tile along the 2048 hidden dim of the fusion MLP (4 steps)
BLOCK_N = 16       # samples per grid step in the CoordAtt kernel
TB_MAX = 128       # batch tile of the fusion MLP (parallel grid axis)


# ------------------------------------------------------------------
# Kernel 1: per-block (B samples) CoordAtt heads (x2), head max, x * att,
#           depthwise 7x7 "Linear" pooling -> (B, 512) flattened features.
#           Head maps + pooled features are stored in bfloat16 (HBM-writeback
#           bound kernel).
# ------------------------------------------------------------------
def coordatt_kernel(x_ref, wh_ref, ww_ref, bh_ref, bw_ref, w1_ref, b1_ref,
                    w2_ref, b2_ref, w3_ref, b3_ref, wl_ref, bl_ref,
                    heads_ref, feat_ref):
    x = x_ref[...]                                         # (B, 7, 7, 512) f32
    bb = x.shape[0]                                        # static block size
    m = bb * HW                                            # matmul rows per branch

    y = None
    for k in range(NUM_HEAD):                              # num_head static (=2)
        wh = wh_ref[k]                                     # (7, 512) depthwise (1,7), BN folded
        ww = ww_ref[k]                                     # (7, 512) depthwise (7,1), BN folded
        # Linear_h: depthwise conv over width  -> (B, 7, 512) indexed by h
        x_h = jnp.sum(x * wh[None, None, :, :], axis=2) + bh_ref[k]
        # Linear_w: depthwise conv over height -> (B, 7, 512) indexed by w
        x_w = jnp.sum(x * ww[None, :, None, :], axis=1) + bw_ref[k]

        # conv1 (1x1, 512->16) + bn1 (folded) + h_swish. 1x1 conv is pointwise,
        # so applying it independently to the h-branch and the w-branch is
        # identical to the PyTorch cat/conv/split sequence.
        def c1_swish(v):
            z = jnp.dot(v.reshape(m, C), w1_ref[k],
                        preferred_element_type=jnp.float32) + b1_ref[k]
            return z * (jnp.clip(z + 3.0, 0.0, 6.0) / 6.0)  # h_swish

        z_h = c1_swish(x_h)                                 # (m, 16)
        z_w = c1_swish(x_w)                                 # (m, 16)

        # conv2 / conv3 (1x1, 16->512) + sigmoid, one small dot per branch.
        att_h = jax.nn.sigmoid(
            jnp.dot(z_h, w2_ref[k], preferred_element_type=jnp.float32)
            + b2_ref[k]).reshape(bb, HW, C)                 # varies with h
        att_w = jax.nn.sigmoid(
            jnp.dot(z_w, w3_ref[k], preferred_element_type=jnp.float32)
            + b3_ref[k]).reshape(bb, HW, C)                 # varies with w

        a = att_h[:, :, None, :] * att_w[:, None, :, :]     # (B, 7, 7, 512) f32
        heads_ref[:, k] = a.astype(heads_ref.dtype)         # bf16 writeback
        y = a if y is None else jnp.maximum(y, a)           # torch.max over heads

    y = x * y                                               # x * attention (f32)

    # self.Linear: depthwise 7x7 conv (groups=512) + BN (folded) -> (B, 512)
    feat = jnp.sum(y * wl_ref[...][None], axis=(1, 2)) + bl_ref[...]
    feat_ref[...] = feat.astype(feat_ref.dtype)              # bf16


def coord_att_pool(x_nhwc, kernel_att_params, block_n=BLOCK_N):
    (wh, ww, bh, bw, w1, b1, w2, b2, w3, b3, wl, bl) = kernel_att_params
    n = x_nhwc.shape[0]
    # On v7x prefer n_pad//bb >= 2 so both TensorCores get a block.
    bb = min(block_n, n)
    n_pad = pl.cdiv(n, bb) * bb
    if n_pad != n:
        x_nhwc = jnp.pad(x_nhwc, ((0, n_pad - n), (0, 0), (0, 0), (0, 0)))

    w3map = lambda i: (0, 0, 0)
    heads, feat = pl.pallas_call(
        coordatt_kernel,
        out_shape=(
            jax.ShapeDtypeStruct((n_pad, NUM_HEAD, HW, HW, C), jnp.bfloat16),
            jax.ShapeDtypeStruct((n_pad, C), jnp.bfloat16),
        ),
        grid_spec=pltpu.PrefetchScalarGridSpec(
            num_scalar_prefetch=0,
            grid=(n_pad // bb,),
            in_specs=[
                pl.BlockSpec((bb, HW, HW, C), lambda i: (i, 0, 0, 0)),
                pl.BlockSpec((NUM_HEAD, HW, C), w3map),
                pl.BlockSpec((NUM_HEAD, HW, C), w3map),
                pl.BlockSpec((NUM_HEAD, 1, C), w3map),
                pl.BlockSpec((NUM_HEAD, 1, C), w3map),
                pl.BlockSpec((NUM_HEAD, C, MIP), w3map),
                pl.BlockSpec((NUM_HEAD, 1, MIP), w3map),
                pl.BlockSpec((NUM_HEAD, MIP, C), w3map),
                pl.BlockSpec((NUM_HEAD, 1, C), w3map),
                pl.BlockSpec((NUM_HEAD, MIP, C), w3map),
                pl.BlockSpec((NUM_HEAD, 1, C), w3map),
                pl.BlockSpec((HW, HW, C), lambda i: (0, 0, 0)),
                pl.BlockSpec((1, C), lambda i: (0, 0)),
            ],
            out_specs=[
                pl.BlockSpec((bb, NUM_HEAD, HW, HW, C),
                             lambda i: (i, 0, 0, 0, 0)),
                pl.BlockSpec((bb, C), lambda i: (i, 0)),
            ],
        ),
        compiler_params=pltpu.CompilerParams(
            dimension_semantics=("parallel",),
            vmem_limit_bytes=32 * 1024 * 1024),
    )(x_nhwc, wh, ww, bh, bw, w1, b1, w2, b2, w3, b3, wl, bl)

    if n_pad != n:
        heads = heads[:n]
        feat = feat[:n]
    return heads, feat


# ------------------------------------------------------------------
# Kernel 2: fused Wash_Linear1 + concat + linear_fusion (1024-2048-1024,
#           LeakyReLU 0.2) + out (1024 -> num_class).
#           Wash_Linear1 is folded offline into the first fusion matmul:
#             h1 = smirk @ (Wwash @ Wf1[:512]) + feat @ Wf1[512:]
#                  + (bf1 + bwash @ Wf1[:512])
#           Big weights stream as bf16; f32 MXU accumulation. Grid =
#           (batch tiles [parallel], hidden tiles [arbitrary reduction]) with
#           a (tb, 1024) f32 accumulator in VMEM scratch.
# ------------------------------------------------------------------
def mlp_kernel(smirk_ref, feat_ref, ws_ref, wf_ref, bf1_ref, wf2_ref,
               bf2_ref, wout_ref, bout_ref, out_ref, acc_scr):
    j = pl.program_id(1)                                   # hidden-reduction step

    @pl.when(j == 0)
    def _():
        acc_scr[...] = jnp.zeros_like(acc_scr)

    h1 = (jnp.dot(smirk_ref[...], ws_ref[...], preferred_element_type=jnp.float32)
          + jnp.dot(feat_ref[...], wf_ref[...], preferred_element_type=jnp.float32)
          + bf1_ref[...])
    h1 = jnp.where(h1 > 0, h1, 0.2 * h1)                   # LeakyReLU(0.2)
    acc_scr[...] += jnp.dot(h1.astype(jnp.bfloat16), wf2_ref[...],
                            preferred_element_type=jnp.float32)

    @pl.when(j == pl.num_programs(1) - 1)
    def _():
        h2 = acc_scr[...] + bf2_ref[...]
        h2 = jnp.where(h2 > 0, h2, 0.2 * h2)               # LeakyReLU(0.2)
        out_ref[...] = jnp.dot(h2, wout_ref[...],
                               preferred_element_type=jnp.float32) + bout_ref[...]


def fusion_mlp(smirk, feat, kernel_mlp_params, tb_max=TB_MAX):
    (ws, wf, bf1f, wf2, bf2, wout, bout) = kernel_mlp_params
    smirk = smirk.astype(jnp.bfloat16)                     # bf16 activations
    feat = feat.astype(jnp.bfloat16)
    n = smirk.shape[0]

    if n <= tb_max:
        tb, n_pad = n, n                                   # single batch block
    else:
        tb = tb_max
        n_pad = pl.cdiv(n, tb) * tb
        if n_pad != n:
            smirk = jnp.pad(smirk, ((0, n_pad - n), (0, 0)))
            feat = jnp.pad(feat, ((0, n_pad - n), (0, 0)))

    nsteps = FUSE_HID // TH
    out = pl.pallas_call(
        mlp_kernel,
        out_shape=jax.ShapeDtypeStruct((n_pad, NUM_CLASS), jnp.float32),
        grid_spec=pltpu.PrefetchScalarGridSpec(
            num_scalar_prefetch=0,
            grid=(n_pad // tb, nsteps),
            in_specs=[
                pl.BlockSpec((tb, SMIRK_DIM), lambda i, j: (i, 0)),
                pl.BlockSpec((tb, C), lambda i, j: (i, 0)),
                pl.BlockSpec((SMIRK_DIM, TH), lambda i, j: (0, j)),
                pl.BlockSpec((C, TH), lambda i, j: (0, j)),
                pl.BlockSpec((1, TH), lambda i, j: (0, j)),
                pl.BlockSpec((TH, FUSE_IN), lambda i, j: (j, 0)),
                pl.BlockSpec((1, FUSE_IN), lambda i, j: (0, 0)),
                pl.BlockSpec((FUSE_IN, NUM_CLASS), lambda i, j: (0, 0)),
                pl.BlockSpec((1, NUM_CLASS), lambda i, j: (0, 0)),
            ],
            out_specs=pl.BlockSpec((tb, NUM_CLASS), lambda i, j: (i, 0)),
            scratch_shapes=[pltpu.VMEM((tb, FUSE_IN), jnp.float32)],
        ),
        compiler_params=pltpu.CompilerParams(
            dimension_semantics=("parallel", "arbitrary")),
    )(smirk, feat, ws, wf, bf1f, wf2, bf2, wout, bout)
    return out[:n] if n_pad != n else out


# ------------------------------------------------------------------
# Deterministic synthetic parameters (BN folded into convs, eval mode).
# ------------------------------------------------------------------
def make_params(key):
    keys = list(jax.random.split(key, 80))
    it = iter(keys)

    def nrm(shape, scale):
        return (jax.random.normal(next(it), shape) * scale).astype(jnp.float32)

    def unif(shape, lo, hi):
        return jax.random.uniform(next(it), shape, minval=lo, maxval=hi).astype(jnp.float32)

    def bn_fold(c):
        gamma = unif((c,), 0.8, 1.2)
        beta = nrm((c,), 0.1)
        mean = nrm((c,), 0.1)
        var = unif((c,), 0.5, 1.5)
        a = gamma / jnp.sqrt(var + EPS)
        b = beta - mean * a
        return a, b

    wh_l, bh_l, ww_l, bw_l = [], [], [], []
    w1_l, b1_l, w2_l, b2_l, w3_l, b3_l = [], [], [], [], [], []
    for _ in range(NUM_HEAD):
        wh_raw = nrm((HW, C), 0.15)                  # depthwise (1,7) weight [kw, c]
        a, b = bn_fold(C)
        wh_l.append(wh_raw * a[None, :]); bh_l.append(b[None, :])

        ww_raw = nrm((HW, C), 0.15)                  # depthwise (7,1) weight [kh, c]
        a, b = bn_fold(C)
        ww_l.append(ww_raw * a[None, :]); bw_l.append(b[None, :])

        w1_raw = nrm((C, MIP), 0.05)                 # conv1 1x1 weight [c_in, c_out]
        b1_raw = nrm((MIP,), 0.05)
        a, b = bn_fold(MIP)                          # bn1 folded: a*(xW+b1)+b
        w1_l.append(w1_raw * a[None, :])
        b1_l.append((b1_raw * a + b)[None, :])

        w2_l.append(nrm((MIP, C), 0.3)); b2_l.append(nrm((C,), 0.1)[None, :])
        w3_l.append(nrm((MIP, C), 0.3)); b3_l.append(nrm((C,), 0.1)[None, :])

    att_params = (
        jnp.stack(wh_l), jnp.stack(bh_l), jnp.stack(ww_l), jnp.stack(bw_l),
        jnp.stack(w1_l), jnp.stack(b1_l), jnp.stack(w2_l), jnp.stack(b2_l),
        jnp.stack(w3_l), jnp.stack(b3_l),
    )

    wl_raw = nrm((HW, HW, C), 0.05)                  # depthwise 7x7 weight [kh, kw, c]
    a, b = bn_fold(C)
    wl = wl_raw * a[None, None, :]
    bl = b[None, :]
    att_params = att_params + (wl, bl)

    wwash = nrm((SMIRK_DIM, C), 0.05); bwash = nrm((C,), 0.05)[None, :]
    wf1 = nrm((FUSE_IN, FUSE_HID), 0.02); bf1 = nrm((FUSE_HID,), 0.02)[None, :]
    wf2 = nrm((FUSE_HID, FUSE_IN), 0.02); bf2 = nrm((FUSE_IN,), 0.02)[None, :]
    wout = nrm((FUSE_IN, NUM_CLASS), 0.05); bout = nrm((NUM_CLASS,), 0.05)[None, :]
    mlp_params = (wwash, bwash, wf1, bf1, wf2, bf2, wout, bout)
    return att_params, mlp_params


# ------------------------------------------------------------------
# One-time weight preparation (offline folding / dtype casts / reorder).
# ------------------------------------------------------------------
def prepare_att_params(att_params):
    wh, bh, ww, bw, w1, b1, w2, b2, w3, b3, wl, bl = att_params
    return (wh, ww, bh, bw, w1, b1, w2, b2, w3, b3, wl, bl)


def prepare_mlp_params(mlp_params):
    wwash, bwash, wf1, bf1, wf2, bf2, wout, bout = mlp_params
    # Fold Wash_Linear1 into the first fusion matmul (exact in real arithmetic).
    ws = (wwash @ wf1[:C]).astype(jnp.bfloat16)      # (358, 2048)
    wf = wf1[C:].astype(jnp.bfloat16)                # (512, 2048)
    bf1f = bf1 + bwash @ wf1[:C]                     # (1, 2048), f32
    return (ws, wf, bf1f, wf2.astype(jnp.bfloat16), bf2, wout, bout)


# ------------------------------------------------------------------
# Pure-JAX reference (unfolded f32 params, NHWC layout) for validation.
# ------------------------------------------------------------------
def reference(x_nhwc, smirk, ap, mp):
    wh, bh, ww, bw, w1, b1, w2, b2, w3, b3, wl, bl = ap
    heads = []
    for k in range(NUM_HEAD):
        x_h = jnp.einsum('nhwc,wc->nhc', x_nhwc, wh[k]) + bh[k]
        x_w = jnp.einsum('nhwc,hc->nwc', x_nhwc, ww[k]) + bw[k]

        def c1(v):
            z = jnp.einsum('npc,cm->npm', v, w1[k]) + b1[k]
            return z * (jnp.clip(z + 3.0, 0.0, 6.0) / 6.0)

        zh, zw = c1(x_h), c1(x_w)
        ah = jax.nn.sigmoid(jnp.einsum('npm,mc->npc', zh, w2[k]) + b2[k])
        aw = jax.nn.sigmoid(jnp.einsum('npm,mc->npc', zw, w3[k]) + b3[k])
        heads.append(ah[:, :, None, :] * aw[:, None, :, :])
    y = heads[0]
    for k in range(1, NUM_HEAD):
        y = jnp.maximum(y, heads[k])
    y = x_nhwc * y
    feat = jnp.sum(y * wl[None], axis=(1, 2)) + bl
    s = smirk @ mp[0] + mp[1]
    yy = jnp.concatenate([s, feat], axis=1)
    h1 = yy @ mp[2] + mp[3]
    h1 = jnp.where(h1 > 0, h1, 0.2 * h1)
    h2 = h1 @ mp[4] + mp[5]
    h2 = jnp.where(h2 > 0, h2, 0.2 * h2)
    out = h2 @ mp[6] + mp[7]
    return out, heads, feat


def rafdb_smirk_forward(x_in, smirk, kernel_att_params, kernel_mlp_params,
                        block_n=BLOCK_N, head_out_nchw=False, x_is_nhwc=False):
    """Forward pass. x_in: (N,512,7,7) backbone feature map (or NHWC if
    x_is_nhwc); smirk: (N,358)."""
    if x_is_nhwc:
        x_nhwc = x_in
    else:
        # glue: NCHW -> NHWC (prefer emitting NHWC upstream to avoid this pass)
        x_nhwc = jnp.transpose(x_in, (0, 2, 3, 1))
    heads, feat = coord_att_pool(x_nhwc, kernel_att_params, block_n=block_n)
    expression = fusion_mlp(smirk, feat, kernel_mlp_params)
    if head_out_nchw:
        # Only materialize PyTorch's NCHW convention when a consumer needs it;
        # default is the lane-dense bf16 NHWC layout (perf feedback).
        head_out = [jnp.transpose(heads[:, k], (0, 3, 1, 2)) for k in range(NUM_HEAD)]
    else:
        head_out = [heads[:, k] for k in range(NUM_HEAD)]
    return expression, head_out, heads, feat, x_nhwc


if __name__ == "__main__":
    key = jax.random.PRNGKey(0)
    k_x, k_s, k_p = jax.random.split(key, 3)
    N = 2
    # Stand-in for the MixedFeatureNet backbone output (see TODO above).
    x_nchw = jax.random.normal(k_x, (N, C, HW, HW), dtype=jnp.float32)
    # Stand-in for the stacked/concatenated smirk_feature dict (358 scalars/sample).
    smirk = jax.random.normal(k_s, (N, SMIRK_DIM), dtype=jnp.float32)

    att_params, mlp_params = make_params(k_p)
    kernel_att = prepare_att_params(att_params)
    kernel_mlp = prepare_mlp_params(mlp_params)

    expression, head_out, heads, feat, x_nhwc = rafdb_smirk_forward(
        x_nchw, smirk, kernel_att, kernel_mlp)
    expression, heads, feat = jax.block_until_ready((expression, heads, feat))

    # Validate against the pure-JAX (f32, unfolded) reference.
    ref_out, ref_heads, ref_feat = reference(x_nhwc, smirk, att_params, mlp_params)
    np.testing.assert_allclose(np.asarray(feat.astype(jnp.float32)),
                               np.asarray(ref_feat), rtol=2e-2, atol=2e-2)
    for k in range(NUM_HEAD):
        np.testing.assert_allclose(np.asarray(heads[:, k].astype(jnp.float32)),
                                   np.asarray(ref_heads[k]), rtol=2e-2, atol=2e-2)
    np.testing.assert_allclose(np.asarray(expression), np.asarray(ref_out),
                               rtol=2e-2, atol=2e-2)
    assert expression.shape == (N, NUM_CLASS)
    assert head_out[0].shape == (N, HW, HW, C)   # NHWC bf16 by default (perf feedback)

    # Exercise the batch-padding path (block_n not dividing N) once as well.
    N2 = 5
    x2 = jax.random.normal(jax.random.PRNGKey(1), (N2, C, HW, HW), dtype=jnp.float32)
    s2 = jax.random.normal(jax.random.PRNGKey(2), (N2, SMIRK_DIM), dtype=jnp.float32)
    e2, _, _, f2, x2_nhwc = rafdb_smirk_forward(x2, s2, kernel_att, kernel_mlp,
                                                block_n=2)
    e2 = jax.block_until_ready(e2)
    r2, _, _ = reference(x2_nhwc, s2, att_params, mlp_params)
    np.testing.assert_allclose(np.asarray(e2), np.asarray(r2), rtol=2e-2, atol=2e-2)
    assert e2.shape == (N2, NUM_CLASS)

    print("KERNEL_OK")
</pallas_src>

<mosaic_0001>
module attributes {stable_mosaic.version = 11 : i64} {
  func.func @coordatt_kernel(%arg0: i32, %arg1: memref<2x7x7x512xf32, #tpu.memory_space<vmem>>, %arg2: memref<2x7x512xf32, #tpu.memory_space<vmem>>, %arg3: memref<2x7x512xf32, #tpu.memory_space<vmem>>, %arg4: memref<2x1x512xf32, #tpu.memory_space<vmem>>, %arg5: memref<2x1x512xf32, #tpu.memory_space<vmem>>, %arg6: memref<2x512x16xf32, #tpu.memory_space<vmem>>, %arg7: memref<2x1x16xf32, #tpu.memory_space<vmem>>, %arg8: memref<2x16x512xf32, #tpu.memory_space<vmem>>, %arg9: memref<2x1x512xf32, #tpu.memory_space<vmem>>, %arg10: memref<2x16x512xf32, #tpu.memory_space<vmem>>, %arg11: memref<2x1x512xf32, #tpu.memory_space<vmem>>, %arg12: memref<7x7x512xf32, #tpu.memory_space<vmem>>, %arg13: memref<1x512xf32, #tpu.memory_space<vmem>>, %arg14: memref<2x2x7x7x512xbf16, #tpu.memory_space<vmem>>, %arg15: memref<2x512xbf16, #tpu.memory_space<vmem>>) attributes {dimension_semantics = [#tpu.dimension_semantics<parallel>], iteration_bounds = array<i64: 1>, scalar_prefetch = 0 : i64, scratch_operands = 0 : i64, tpu.core_type = #tpu.core_type<tc>, window_params = [{transform_indices = @transform_0, window_bounds = array<i64: 2, 7, 7, 512>}, {pipeline_mode = #tpu.pipeline_mode<synchronous>, transform_indices = @transform_1, window_bounds = array<i64: 2, 7, 512>}, {pipeline_mode = #tpu.pipeline_mode<synchronous>, transform_indices = @transform_2, window_bounds = array<i64: 2, 7, 512>}, {pipeline_mode = #tpu.pipeline_mode<synchronous>, transform_indices = @transform_3, window_bounds = array<i64: 2, 1, 512>}, {pipeline_mode = #tpu.pipeline_mode<synchronous>, transform_indices = @transform_4, window_bounds = array<i64: 2, 1, 512>}, {pipeline_mode = #tpu.pipeline_mode<synchronous>, transform_indices = @transform_5, window_bounds = array<i64: 2, 512, 16>}, {pipeline_mode = #tpu.pipeline_mode<synchronous>, transform_indices = @transform_6, window_bounds = array<i64: 2, 1, 16>}, {pipeline_mode = #tpu.pipeline_mode<synchronous>, transform_indices = @transform_7, window_bounds = array<i64: 2, 16, 512>}, {pipeline_mode = #tpu.pipeline_mode<synchronous>, transform_indices = @transform_8, window_bounds = array<i64: 2, 1, 512>}, {pipeline_mode = #tpu.pipeline_mode<synchronous>, transform_indices = @transform_9, window_bounds = array<i64: 2, 16, 512>}, {pipeline_mode = #tpu.pipeline_mode<synchronous>, transform_indices = @transform_10, window_bounds = array<i64: 2, 1, 512>}, {pipeline_mode = #tpu.pipeline_mode<synchronous>, transform_indices = @transform_11, window_bounds = array<i64: 7, 7, 512>}, {pipeline_mode = #tpu.pipeline_mode<synchronous>, transform_indices = @transform_12, window_bounds = array<i64: 1, 512>}, {transform_indices = @transform_13, window_bounds = array<i64: 2, 2, 7, 7, 512>}, {transform_indices = @transform_14, window_bounds = array<i64: 2, 512>}]} {
    %c0 = arith.constant 0 : index
    %c0_0 = arith.constant 0 : index
    %c0_1 = arith.constant 0 : index
    %c0_2 = arith.constant 0 : index
    %0 = vector.load %arg1[%c0, %c0_0, %c0_1, %c0_2] : memref<2x7x7x512xf32, #tpu.memory_space<vmem>>, vector<2x7x7x512xf32>
    %c0_3 = arith.constant 0 : index
    %c0_4 = arith.constant 0 : index
    %c0_5 = arith.constant 0 : index
    %1 = vector.load %arg2[%c0_3, %c0_4, %c0_5] : memref<2x7x512xf32, #tpu.memory_space<vmem>>, vector<1x7x512xf32>
    %2 = vector.shape_cast %1 : vector<1x7x512xf32> to vector<7x512xf32>
    %c0_6 = arith.constant 0 : index
    %c0_7 = arith.constant 0 : index
    %c0_8 = arith.constant 0 : index
    %3 = vector.load %arg3[%c0_6, %c0_7, %c0_8] : memref<2x7x512xf32, #tpu.memory_space<vmem>>, vector<1x7x512xf32>
    %4 = vector.shape_cast %3 : vector<1x7x512xf32> to vector<7x512xf32>
    %5 = vector.shape_cast %2 : vector<7x512xf32> to vector<1x1x7x512xf32>
    %6 = vector.broadcast %5 : vector<1x1x7x512xf32> to vector<2x7x7x512xf32>
    %7 = arith.mulf %0, %6 : vector<2x7x7x512xf32>
    %cst = arith.constant dense<0.000000e+00> : vector<2x7x512xf32>
    %8 = vector.multi_reduction <add>, %7, %cst [2] : vector<2x7x7x512xf32> to vector<2x7x512xf32>
    %c0_9 = arith.constant 0 : index
    %c0_10 = arith.constant 0 : index
    %c0_11 = arith.constant 0 : index
    %9 = vector.load %arg4[%c0_9, %c0_10, %c0_11] : memref<2x1x512xf32, #tpu.memory_space<vmem>>, vector<1x1x512xf32>
    %10 = vector.shape_cast %9 : vector<1x1x512xf32> to vector<1x512xf32>
    %11 = vector.shape_cast %10 : vector<1x512xf32> to vector<1x1x512xf32>
    %12 = vector.broadcast %11 : vector<1x1x512xf32> to vector<2x7x512xf32>
    %13 = arith.addf %8, %12 : vector<2x7x512xf32>
    %14 = vector.shape_cast %4 : vector<7x512xf32> to vector<1x7x1x512xf32>
    %15 = vector.broadcast %14 : vector<1x7x1x512xf32> to vector<2x7x7x512xf32>
    %16 = arith.mulf %0, %15 : vector<2x7x7x512xf32>
    %cst_12 = arith.constant dense<0.000000e+00> : vector<2x7x512xf32>
    %17 = vector.multi_reduction <add>, %16, %cst_12 [1] : vector<2x7x7x512xf32> to vector<2x7x512xf32>
    %c0_13 = arith.constant 0 : index
    %c0_14 = arith.constant 0 : index
    %c0_15 = arith.constant 0 : index
    %18 = vector.load %arg5[%c0_13, %c0_14, %c0_15] : memref<2x1x512xf32, #tpu.memory_space<vmem>>, vector<1x1x512xf32>
    %19 = vector.shape_cast %18 : vector<1x1x512xf32> to vector<1x512xf32>
    %20 = vector.shape_cast %19 : vector<1x512xf32> to vector<1x1x512xf32>
    %21 = vector.broadcast %20 : vector<1x1x512xf32> to vector<2x7x512xf32>
    %22 = arith.addf %17, %21 : vector<2x7x512xf32>
    %23 = vector.shape_cast %13 : vector<2x7x512xf32> to vector<14x512xf32>
    %c0_16 = arith.constant 0 : index
    %c0_17 = arith.constant 0 : index
    %c0_18 = arith.constant 0 : index
    %24 = vector.load %arg6[%c0_16, %c0_17, %c0_18] : memref<2x512x16xf32, #tpu.memory_space<vmem>>, vector<1x512x16xf32>
    %25 = vector.shape_cast %24 : vector<1x512x16xf32> to vector<512x16xf32>
    %cst_19 = arith.constant dense<0.000000e+00> : vector<14x16xf32>
    %26 = tpu.matmul %23, %25, %cst_19 {dimension_numbers = #tpu.dot_dimension_numbers<[1], [0], [0], [1], [0, 0, 1, 1], [], []>} : vector<14x512xf32>, vector<512x16xf32>, vector<14x16xf32> -> vector<14x16xf32>
    %c0_20 = arith.constant 0 : index
    %c0_21 = arith.constant 0 : index
    %c0_22 = arith.constant 0 : index
    %27 = vector.load %arg7[%c0_20, %c0_21, %c0_22] : memref<2x1x16xf32, #tpu.memory_space<vmem>>, vector<1x1x16xf32>
    %28 = vector.shape_cast %27 : vector<1x1x16xf32> to vector<1x16xf32>
    %29 = vector.broadcast %28 : vector<1x16xf32> to vector<14x16xf32>
    %30 = arith.addf %26, %29 : vector<14x16xf32>
    %cst_23 = arith.constant 3.000000e+00 : f32
    %31 = vector.broadcast %cst_23 : f32 to vector<14x16xf32>
    %32 = arith.addf %30, %31 : vector<14x16xf32>
    %cst_24 = arith.constant 0.000000e+00 : f32
    %cst_25 = arith.constant 6.000000e+00 : f32
    %33 = vector.broadcast %cst_24 : f32 to vector<14x16xf32>
    %34 = arith.maximumf %33, %32 : vector<14x16xf32>
    %35 = vector.broadcast %cst_25 : f32 to vector<14x16xf32>
    %36 = arith.minimumf %35, %34 : vector<14x16xf32>
    %cst_26 = arith.constant 6.000000e+00 : f32
    %37 = vector.broadcast %cst_26 : f32 to vector<14x16xf32>
    %38 = arith.divf %36, %37 : vector<14x16xf32>
    %39 = arith.mulf %30, %38 : vector<14x16xf32>
    %40 = vector.shape_cast %22 : vector<2x7x512xf32> to vector<14x512xf32>
    %c0_27 = arith.constant 0 : index
    %c0_28 = arith.constant 0 : index
    %c0_29 = arith.constant 0 : index
    %41 = vector.load %arg6[%c0_27, %c0_28, %c0_29] : memref<2x512x16xf32, #tpu.memory_space<vmem>>, vector<1x512x16xf32>
    %42 = vector.shape_cast %41 : vector<1x512x16xf32> to vector<512x16xf32>
    %cst_30 = arith.constant dense<0.000000e+00> : vector<14x16xf32>
    %43 = tpu.matmul %40, %42, %cst_30 {dimension_numbers = #tpu.dot_dimension_numbers<[1], [0], [0], [1], [0, 0, 1, 1], [], []>} : vector<14x512xf32>, vector<512x16xf32>, vector<14x16xf32> -> vector<14x16xf32>
    %c0_31 = arith.constant 0 : index
    %c0_32 = arith.constant 0 : index
    %c0_33 = arith.constant 0 : index
    %44 = vector.load %arg7[%c0_31, %c0_32, %c0_33] : memref<2x1x16xf32, #tpu.memory_space<vmem>>, vector<1x1x16xf32>
    %45 = vector.shape_cast %44 : vector<1x1x16xf32> to vector<1x16xf32>
    %46 = vector.broadcast %45 : vector<1x16xf32> to vector<14x16xf32>
    %47 = arith.addf %43, %46 : vector<14x16xf32>
    %cst_34 = arith.constant 3.000000e+00 : f32
    %48 = vector.broadcast %cst_34 : f32 to vector<14x16xf32>
    %49 = arith.addf %47, %48 : vector<14x16xf32>
    %cst_35 = arith.constant 0.000000e+00 : f32
    %cst_36 = arith.constant 6.000000e+00 : f32
    %50 = vector.broadcast %cst_35 : f32 to vector<14x16xf32>
    %51 = arith.maximumf %50, %49 : vector<14x16xf32>
    %52 = vector.broadcast %cst_36 : f32 to vector<14x16xf32>
    %53 = arith.minimumf %52, %51 : vector<14x16xf32>
    %cst_37 = arith.constant 6.000000e+00 : f32
    %54 = vector.broadcast %cst_37 : f32 to vector<14x16xf32>
    %55 = arith.divf %53, %54 : vector<14x16xf32>
    %56 = arith.mulf %47, %55 : vector<14x16xf32>
    %c0_38 = arith.constant 0 : index
    %c0_39 = arith.constant 0 : index
    %c0_40 = arith.constant 0 : index
    %57 = vector.load %arg8[%c0_38, %c0_39, %c0_40] : memref<2x16x512xf32, #tpu.memory_space<vmem>>, vector<1x16x512xf32>
    %58 = vector.shape_cast %57 : vector<1x16x512xf32> to vector<16x512xf32>
    %cst_41 = arith.constant dense<0.000000e+00> : vector<14x512xf32>
    %59 = tpu.matmul %39, %58, %cst_41 {dimension_numbers = #tpu.dot_dimension_numbers<[1], [0], [0], [1], [0, 0, 1, 1], [], []>} : vector<14x16xf32>, vector<16x512xf32>, vector<14x512xf32> -> vector<14x512xf32>
    %c0_42 = arith.constant 0 : index
    %c0_43 = arith.constant 0 : index
    %c0_44 = arith.constant 0 : index
    %60 = vector.load %arg9[%c0_42, %c0_43, %c0_44] : memref<2x1x512xf32, #tpu.memory_space<vmem>>, vector<1x1x512xf32>
    %61 = vector.shape_cast %60 : vector<1x1x512xf32> to vector<1x512xf32>
    %62 = vector.broadcast %61 : vector<1x512xf32> to vector<14x512xf32>
    %63 = arith.addf %59, %62 : vector<14x512xf32>
    %64 = arith.negf %63 : vector<14x512xf32>
    %65 = math.exp %64 : vector<14x512xf32>
    %cst_45 = arith.constant 1.000000e+00 : f32
    %66 = vector.broadcast %cst_45 : f32 to vector<14x512xf32>
    %67 = arith.addf %66, %65 : vector<14x512xf32>
    %68 = arith.divf %66, %67 : vector<14x512xf32>
    %69 = vector.shape_cast %68 : vector<14x512xf32> to vector<2x7x512xf32>
    %c0_46 = arith.constant 0 : index
    %c0_47 = arith.constant 0 : index
    %c0_48 = arith.constant 0 : index
    %70 = vector.load %arg10[%c0_46, %c0_47, %c0_48] : memref<2x16x512xf32, #tpu.memory_space<vmem>>, vector<1x16x512xf32>
    %71 = vector.shape_cast %70 : vector<1x16x512xf32> to vector<16x512xf32>
    %cst_49 = arith.constant dense<0.000000e+00> : vector<14x512xf32>
    %72 = tpu.matmul %56, %71, %cst_49 {dimension_numbers = #tpu.dot_dimension_numbers<[1], [0], [0], [1], [0, 0, 1, 1], [], []>} : vector<14x16xf32>, vector<16x512xf32>, vector<14x512xf32> -> vector<14x512xf32>
    %c0_50 = arith.constant 0 : index
    %c0_51 = arith.constant 0 : index
    %c0_52 = arith.constant 0 : index
    %73 = vector.load %arg11[%c0_50, %c0_51, %c0_52] : memref<2x1x512xf32, #tpu.memory_space<vmem>>, vector<1x1x512xf32>
    %74 = vector.shape_cast %73 : vector<1x1x512xf32> to vector<1x512xf32>
    %75 = vector.broadcast %74 : vector<1x512xf32> to vector<14x512xf32>
    %76 = arith.addf %72, %75 : vector<14x512xf32>
    %77 = arith.negf %76 : vector<14x512xf32>
    %78 = math.exp %77 : vector<14x512xf32>
    %cst_53 = arith.constant 1.000000e+00 : f32
    %79 = vector.broadcast %cst_53 : f32 to vector<14x512xf32>
    %80 = arith.addf %79, %78 : vector<14x512xf32>
    %81 = arith.divf %79, %80 : vector<14x512xf32>
    %82 = vector.shape_cast %81 : vector<14x512xf32> to vector<2x7x512xf32>
    %83 = vector.shape_cast %69 : vector<2x7x512xf32> to vector<2x7x1x512xf32>
    %84 = vector.shape_cast %82 : vector<2x7x512xf32> to vector<2x1x7x512xf32>
    %85 = vector.broadcast %83 : vector<2x7x1x512xf32> to vector<2x7x7x512xf32>
    %86 = vector.broadcast %84 : vector<2x1x7x512xf32> to vector<2x7x7x512xf32>
    %87 = arith.mulf %85, %86 : vector<2x7x7x512xf32>
    %88 = arith.truncf %87 : vector<2x7x7x512xf32> to vector<2x7x7x512xbf16>
    %c0_54 = arith.constant 0 : index
    %c0_55 = arith.constant 0 : index
    %c0_56 = arith.constant 0 : index
    %c0_57 = arith.constant 0 : index
    %c0_58 = arith.constant 0 : index
    %89 = vector.load %arg14[%c0_54, %c0_55, %c0_56, %c0_57, %c0_58] : memref<2x2x7x7x512xbf16, #tpu.memory_space<vmem>>, vector<2x1x7x7x512xbf16>
    %90 = vector.shape_cast %89 : vector<2x1x7x7x512xbf16> to vector<2x7x7x512xbf16>
    %91 = vector.shape_cast %88 : vector<2x7x7x512xbf16> to vector<2x1x7x7x512xbf16>
    tpu.vector_store %arg14[%c0_54, %c0_55, %c0_56, %c0_57, %c0_58], %91 {strides = array<i32>} : memref<2x2x7x7x512xbf16, #tpu.memory_space<vmem>>, vector<2x1x7x7x512xbf16>,
    %c1 = arith.constant 1 : index
    %c0_59 = arith.constant 0 : index
    %c0_60 = arith.constant 0 : index
    %92 = vector.load %arg2[%c1, %c0_59, %c0_60] : memref<2x7x512xf32, #tpu.memory_space<vmem>>, vector<1x7x512xf32>
    %93 = vector.shape_cast %92 : vector<1x7x512xf32> to vector<7x512xf32>
    %c1_61 = arith.constant 1 : index
    %c0_62 = arith.constant 0 : index
    %c0_63 = arith.constant 0 : index
    %94 = vector.load %arg3[%c1_61, %c0_62, %c0_63] : memref<2x7x512xf32, #tpu.memory_space<vmem>>, vector<1x7x512xf32>
    %95 = vector.shape_cast %94 : vector<1x7x512xf32> to vector<7x512xf32>
    %96 = vector.shape_cast %93 : vector<7x512xf32> to vector<1x1x7x512xf32>
    %97 = vector.broadcast %96 : vector<1x1x7x512xf32> to vector<2x7x7x512xf32>
    %98 = arith.mulf %0, %97 : vector<2x7x7x512xf32>
    %cst_64 = arith.constant dense<0.000000e+00> : vector<2x7x512xf32>
    %99 = vector.multi_reduction <add>, %98, %cst_64 [2] : vector<2x7x7x512xf32> to vector<2x7x512xf32>
    %c1_65 = arith.constant 1 : index
    %c0_66 = arith.constant 0 : index
    %c0_67 = arith.constant 0 : index
    %100 = vector.load %arg4[%c1_65, %c0_66, %c0_67] : memref<2x1x512xf32, #tpu.memory_space<vmem>>, vector<1x1x512xf32>
    %101 = vector.shape_cast %100 : vector<1x1x512xf32> to vector<1x512xf32>
    %102 = vector.shape_cast %101 : vector<1x512xf32> to vector<1x1x512xf32>
    %103 = vector.broadcast %102 : vector<1x1x512xf32> to vector<2x7x512xf32>
    %104 = arith.addf %99, %103 : vector<2x7x512xf32>
    %105 = vector.shape_cast %95 : vector<7x512xf32> to vector<1x7x1x512xf32>
    %106 = vector.broadcast %105 : vector<1x7x1x512xf32> to vector<2x7x7x512xf32>
    %107 = arith.mulf %0, %106 : vector<2x7x7x512xf32>
    %cst_68 = arith.constant dense<0.000000e+00> : vector<2x7x512xf32>
    %108 = vector.multi_reduction <add>, %107, %cst_68 [1] : vector<2x7x7x512xf32> to vector<2x7x512xf32>
    %c1_69 = arith.constant 1 : index
    %c0_70 = arith.constant 0 : index
    %c0_71 = arith.constant 0 : index
    %109 = vector.load %arg5[%c1_69, %c0_70, %c0_71] : memref<2x1x512xf32, #tpu.memory_space<vmem>>, vector<1x1x512xf32>
    %110 = vector.shape_cast %109 : vector<1x1x512xf32> to vector<1x512xf32>
    %111 = vector.shape_cast %110 : vector<1x512xf32> to vector<1x1x512xf32>
    %112 = vector.broadcast %111 : vector<1x1x512xf32> to vector<2x7x512xf32>
    %113 = arith.addf %108, %112 : vector<2x7x512xf32>
    %114 = vector.shape_cast %104 : vector<2x7x512xf32> to vector<14x512xf32>
    %c1_72 = arith.constant 1 : index
    %c0_73 = arith.constant 0 : index
    %c0_74 = arith.constant 0 : index
    %115 = vector.load %arg6[%c1_72, %c0_73, %c0_74] : memref<2x512x16xf32, #tpu.memory_space<vmem>>, vector<1x512x16xf32>
    %116 = vector.shape_cast %115 : vector<1x512x16xf32> to vector<512x16xf32>
    %cst_75 = arith.constant dense<0.000000e+00> : vector<14x16xf32>
    %117 = tpu.matmul %114, %116, %cst_75 {dimension_numbers = #tpu.dot_dimension_numbers<[1], [0], [0], [1], [0, 0, 1, 1], [], []>} : vector<14x512xf32>, vector<512x16xf32>, vector<14x16xf32> -> vector<14x16xf32>
    %c1_76 = arith.constant 1 : index
    %c0_77 = arith.constant 0 : index
    %c0_78 = arith.constant 0 : index
    %118 = vector.load %arg7[%c1_76, %c0_77, %c0_78] : memref<2x1x16xf32, #tpu.memory_space<vmem>>, vector<1x1x16xf32>
    %119 = vector.shape_cast %118 : vector<1x1x16xf32> to vector<1x16xf32>
    %120 = vector.broadcast %119 : vector<1x16xf32> to vector<14x16xf32>
    %121 = arith.addf %117, %120 : vector<14x16xf32>
    %cst_79 = arith.constant 3.000000e+00 : f32
    %122 = vector.broadcast %cst_79 : f32 to vector<14x16xf32>
    %123 = arith.addf %121, %122 : vector<14x16xf32>
    %cst_80 = arith.constant 0.000000e+00 : f32
    %cst_81 = arith.constant 6.000000e+00 : f32
    %124 = vector.broadcast %cst_80 : f32 to vector<14x16xf32>
    %125 = arith.maximumf %124, %123 : vector<14x16xf32>
    %126 = vector.broadcast %cst_81 : f32 to vector<14x16xf32>
    %127 = arith.minimumf %126, %125 : vector<14x16xf32>
    %cst_82 = arith.constant 6.000000e+00 : f32
    %128 = vector.broadcast %cst_82 : f32 to vector<14x16xf32>
    %129 = arith.divf %127, %128 : vector<14x16xf32>
    %130 = arith.mulf %121, %129 : vector<14x16xf32>
    %131 = vector.shape_cast %113 : vector<2x7x512xf32> to vector<14x512xf32>
    %c1_83 = arith.constant 1 : index
    %c0_84 = arith.constant 0 : index
    %c0_85 = arith.constant 0 : index
    %132 = vector.load %arg6[%c1_83, %c0_84, %c0_85] : memref<2x512x16xf32, #tpu.memory_space<vmem>>, vector<1x512x16xf32>
    %133 = vector.shape_cast %132 : vector<1x512x16xf32> to vector<512x16xf32>
    %cst_86 = arith.constant dense<0.000000e+00> : vector<14x16xf32>
    %134 = tpu.matmul %131, %133, %cst_86 {dimension_numbers = #tpu.dot_dimension_numbers<[1], [0], [0], [1], [0, 0, 1, 1], [], []>} : vector<14x512xf32>, vector<512x16xf32>, vector<14x16xf32> -> vector<14x16xf32>
    %c1_87 = arith.constant 1 : index
    %c0_88 = arith.constant 0 : index
    %c0_89 = arith.constant 0 : index
    %135 = vector.load %arg7[%c1_87, %c0_88, %c0_89] : memref<2x1x16xf32, #tpu.memory_space<vmem>>, vector<1x1x16xf32>
    %136 = vector.shape_cast %135 : vector<1x1x16xf32> to vector<1x16xf32>
    %137 = vector.broadcast %136 : vector<1x16xf32> to vector<14x16xf32>
    %138 = arith.addf %134, %137 : vector<14x16xf32>
    %cst_90 = arith.constant 3.000000e+00 : f32
    %139 = vector.broadcast %cst_90 : f32 to vector<14x16xf32>
    %140 = arith.addf %138, %139 : vector<14x16xf32>
    %cst_91 = arith.constant 0.000000e+00 : f32
    %cst_92 = arith.constant 6.000000e+00 : f32
    %141 = vector.broadcast %cst_91 : f32 to vector<14x16xf32>
    %142 = arith.maximumf %141, %140 : vector<14x16xf32>
    %143 = vector.broadcast %cst_92 : f32 to vector<14x16xf32>
    %144 = arith.minimumf %143, %142 : vector<14x16xf32>
    %cst_93 = arith.constant 6.000000e+00 : f32
    %145 = vector.broadcast %cst_93 : f32 to vector<14x16xf32>
    %146 = arith.divf %144, %145 : vector<14x16xf32>
    %147 = arith.mulf %138, %146 : vector<14x16xf32>
    %c1_94 = arith.constant 1 : index
    %c0_95 = arith.constant 0 : index
    %c0_96 = arith.constant 0 : index
    %148 = vector.load %arg8[%c1_94, %c0_95, %c0_96] : memref<2x16x512xf32, #tpu.memory_space<vmem>>, vector<1x16x512xf32>
    %149 = vector.shape_cast %148 : vector<1x16x512xf32> to vector<16x512xf32>
    %cst_97 = arith.constant dense<0.000000e+00> : vector<14x512xf32>
    %150 = tpu.matmul %130, %149, %cst_97 {dimension_numbers = #tpu.dot_dimension_numbers<[1], [0], [0], [1], [0, 0, 1, 1], [], []>} : vector<14x16xf32>, vector<16x512xf32>, vector<14x512xf32> -> vector<14x512xf32>
    %c1_98 = arith.constant 1 : index
    %c0_99 = arith.constant 0 : index
    %c0_100 = arith.constant 0 : index
    %151 = vector.load %arg9[%c1_98, %c0_99, %c0_100] : memref<2x1x512xf32, #tpu.memory_space<vmem>>, vector<1x1x512xf32>
    %152 = vector.shape_cast %151 : vector<1x1x512xf32> to vector<1x512xf32>
    %153 = vector.broadcast %152 : vector<1x512xf32> to vector<14x512xf32>
    %154 = arith.addf %150, %153 : vector<14x512xf32>
    %155 = arith.negf %154 : vector<14x512xf32>
    %156 = math.exp %155 : vector<14x512xf32>
    %cst_101 = arith.constant 1.000000e+00 : f32
    %157 = vector.broadcast %cst_101 : f32 to vector<14x512xf32>
    %158 = arith.addf %157, %156 : vector<14x512xf32>
    %159 = arith.divf %157, %158 : vector<14x512xf32>
    %160 = vector.shape_cast %159 : vector<14x512xf32> to vector<2x7x512xf32>
    %c1_102 = arith.constant 1 : index
    %c0_103 = arith.constant 0 : index
    %c0_104 = arith.constant 0 : index
    %161 = vector.load %arg10[%c1_102, %c0_103, %c0_104] : memref<2x16x512xf32, #tpu.memory_space<vmem>>, vector<1x16x512xf32>
    %162 = vector.shape_cast %161 : vector<1x16x512xf32> to vector<16x512xf32>
    %cst_105 = arith.constant dense<0.000000e+00> : vector<14x512xf32>
    %163 = tpu.matmul %147, %162, %cst_105 {dimension_numbers = #tpu.dot_dimension_numbers<[1], [0], [0], [1], [0, 0, 1, 1], [], []>} : vector<14x16xf32>, vector<16x512xf32>, vector<14x512xf32> -> vector<14x512xf32>
    %c1_106 = arith.constant 1 : index
    %c0_107 = arith.constant 0 : index
    %c0_108 = arith.constant 0 : index
    %164 = vector.load %arg11[%c1_106, %c0_107, %c0_108] : memref<2x1x512xf32, #tpu.memory_space<vmem>>, vector<1x1x512xf32>
    %165 = vector.shape_cast %164 : vector<1x1x512xf32> to vector<1x512xf32>
    %166 = vector.broadcast %165 : vector<1x512xf32> to vector<14x512xf32>
    %167 = arith.addf %163, %166 : vector<14x512xf32>
    %168 = arith.negf %167 : vector<14x512xf32>
    %169 = math.exp %168 : vector<14x512xf32>
    %cst_109 = arith.constant 1.000000e+00 : f32
    %170 = vector.broadcast %cst_109 : f32 to vector<14x512xf32>
    %171 = arith.addf %170, %169 : vector<14x512xf32>
    %172 = arith.divf %170, %171 : vector<14x512xf32>
    %173 = vector.shape_cast %172 : vector<14x512xf32> to vector<2x7x512xf32>
    %174 = vector.shape_cast %160 : vector<2x7x512xf32> to vector<2x7x1x512xf32>
    %175 = vector.shape_cast %173 : vector<2x7x512xf32> to vector<2x1x7x512xf32>
    %176 = vector.broadcast %174 : vector<2x7x1x512xf32> to vector<2x7x7x512xf32>
    %177 = vector.broadcast %175 : vector<2x1x7x512xf32> to vector<2x7x7x512xf32>
    %178 = arith.mulf %176, %177 : vector<2x7x7x512xf32>
    %179 = arith.truncf %178 : vector<2x7x7x512xf32> to vector<2x7x7x512xbf16>
    %c0_110 = arith.constant 0 : index
    %c1_111 = arith.constant 1 : index
    %c0_112 = arith.constant 0 : index
    %c0_113 = arith.constant 0 : index
    %c0_114 = arith.constant 0 : index
    %180 = vector.load %arg14[%c0_110, %c1_111, %c0_112, %c0_113, %c0_114] : memref<2x2x7x7x512xbf16, #tpu.memory_space<vmem>>, vector<2x1x7x7x512xbf16>
    %181 = vector.shape_cast %180 : vector<2x1x7x7x512xbf16> to vector<2x7x7x512xbf16>
    %182 = vector.shape_cast %179 : vector<2x7x7x512xbf16> to vector<2x1x7x7x512xbf16>
    tpu.vector_store %arg14[%c0_110, %c1_111, %c0_112, %c0_113, %c0_114], %182 {strides = array<i32>} : memref<2x2x7x7x512xbf16, #tpu.memory_space<vmem>>, vector<2x1x7x7x512xbf16>,
    %183 = arith.maximumf %87, %178 : vector<2x7x7x512xf32>
    %184 = arith.mulf %0, %183 : vector<2x7x7x512xf32>
    %c0_115 = arith.constant 0 : index
    %c0_116 = arith.constant 0 : index
    %c0_117 = arith.constant 0 : index
    %185 = vector.load %arg12[%c0_115, %c0_116, %c0_117] : memref<7x7x512xf32, #tpu.memory_space<vmem>>, vector<7x7x512xf32>
    %186 = vector.shape_cast %185 : vector<7x7x512xf32> to vector<1x7x7x512xf32>
    %187 = vector.broadcast %186 : vector<1x7x7x512xf32> to vector<2x7x7x512xf32>
    %188 = arith.mulf %184, %187 : vector<2x7x7x512xf32>
    %cst_118 = arith.constant dense<0.000000e+00> : vector<2x512xf32>
    %189 = vector.multi_reduction <add>, %188, %cst_118 [1, 2] : vector<2x7x7x512xf32> to vector<2x512xf32>
    %c0_119 = arith.constant 0 : index
    %c0_120 = arith.constant 0 : index
    %190 = vector.load %arg13[%c0_119, %c0_120] : memref<1x512xf32, #tpu.memory_space<vmem>>, vector<1x512xf32>
    %191 = vector.broadcast %190 : vector<1x512xf32> to vector<2x512xf32>
    %192 = arith.addf %189, %191 : vector<2x512xf32>
    %193 = arith.truncf %192 : vector<2x512xf32> to vector<2x512xbf16>
    %c0_121 = arith.constant 0 : index
    %c0_122 = arith.constant 0 : index
    %194 = vector.load %arg15[%c0_121, %c0_122] : memref<2x512xbf16, #tpu.memory_space<vmem>>, vector<2x512xbf16>
    tpu.vector_store %arg15[%c0_121, %c0_122], %193 {strides = array<i32>} : memref<2x512xbf16, #tpu.memory_space<vmem>>, vector<2x512xbf16>,
    return
  }
  func.func @transform_0(%arg0: i32) -> (i32, i32, i32, i32) {
    %c0_i32 = arith.constant 0 : i32
    %c0_i32_0 = arith.constant 0 : i32
    %c0_i32_1 = arith.constant 0 : i32
    %c0_i32_2 = arith.constant 0 : i32
    return %arg0, %c0_i32, %c0_i32_0, %c0_i32_1 : i32, i32, i32, i32
  }
  func.func @transform_1(%arg0: i32) -> (i32, i32, i32) {
    %c0_i32 = arith.constant 0 : i32
    %c0_i32_0 = arith.constant 0 : i32
    %c0_i32_1 = arith.constant 0 : i32
    %c0_i32_2 = arith.constant 0 : i32
    return %c0_i32, %c0_i32_0, %c0_i32_1 : i32, i32, i32
  }
  func.func @transform_2(%arg0: i32) -> (i32, i32, i32) {
    %c0_i32 = arith.constant 0 : i32
    %c0_i32_0 = arith.constant 0 : i32
    %c0_i32_1 = arith.constant 0 : i32
    %c0_i32_2 = arith.constant 0 : i32
    return %c0_i32, %c0_i32_0, %c0_i32_1 : i32, i32, i32
  }
  func.func @transform_3(%arg0: i32) -> (i32, i32, i32) {
    %c0_i32 = arith.constant 0 : i32
    %c0_i32_0 = arith.constant 0 : i32
    %c0_i32_1 = arith.constant 0 : i32
    %c0_i32_2 = arith.constant 0 : i32
    return %c0_i32, %c0_i32_0, %c0_i32_1 : i32, i32, i32
  }
  func.func @transform_4(%arg0: i32) -> (i32, i32, i32) {
    %c0_i32 = arith.constant 0 : i32
    %c0_i32_0 = arith.constant 0 : i32
    %c0_i32_1 = arith.constant 0 : i32
    %c0_i32_2 = arith.constant 0 : i32
    return %c0_i32, %c0_i32_0, %c0_i32_1 : i32, i32, i32
  }
  func.func @transform_5(%arg0: i32) -> (i32, i32, i32) {
    %c0_i32 = arith.constant 0 : i32
    %c0_i32_0 = arith.constant 0 : i32
    %c0_i32_1 = arith.constant 0 : i32
    %c0_i32_2 = arith.constant 0 : i32
    return %c0_i32, %c0_i32_0, %c0_i32_1 : i32, i32, i32
  }
  func.func @transform_6(%arg0: i32) -> (i32, i32, i32) {
    %c0_i32 = arith.constant 0 : i32
    %c0_i32_0 = arith.constant 0 : i32
    %c0_i32_1 = arith.constant 0 : i32
    %c0_i32_2 = arith.constant 0 : i32
    return %c0_i32, %c0_i32_0, %c0_i32_1 : i32, i32, i32
  }
  func.func @transform_7(%arg0: i32) -> (i32, i32, i32) {
    %c0_i32 = arith.constant 0 : i32
    %c0_i32_0 = arith.constant 0 : i32
    %c0_i32_1 = arith.constant 0 : i32
    %c0_i32_2 = arith.constant 0 : i32
    return %c0_i32, %c0_i32_0, %c0_i32_1 : i32, i32, i32
  }
  func.func @transform_8(%arg0: i32) -> (i32, i32, i32) {
    %c0_i32 = arith.constant 0 : i32
    %c0_i32_0 = arith.constant 0 : i32
    %c0_i32_1 = arith.constant 0 : i32
    %c0_i32_2 = arith.constant 0 : i32
    return %c0_i32, %c0_i32_0, %c0_i32_1 : i32, i32, i32
  }
  func.func @transform_9(%arg0: i32) -> (i32, i32, i32) {
    %c0_i32 = arith.constant 0 : i32
    %c0_i32_0 = arith.constant 0 : i32
    %c0_i32_1 = arith.constant 0 : i32
    %c0_i32_2 = arith.constant 0 : i32
    return %c0_i32, %c0_i32_0, %c0_i32_1 : i32, i32, i32
  }
  func.func @transform_10(%arg0: i32) -> (i32, i32, i32) {
    %c0_i32 = arith.constant 0 : i32
    %c0_i32_0 = arith.constant 0 : i32
    %c0_i32_1 = arith.constant 0 : i32
    %c0_i32_2 = arith.constant 0 : i32
    return %c0_i32, %c0_i32_0, %c0_i32_1 : i32, i32, i32
  }
  func.func @transform_11(%arg0: i32) -> (i32, i32, i32) {
    %c0_i32 = arith.constant 0 : i32
    %c0_i32_0 = arith.constant 0 : i32
    %c0_i32_1 = arith.constant 0 : i32
    %c0_i32_2 = arith.constant 0 : i32
    return %c0_i32, %c0_i32_0, %c0_i32_1 : i32, i32, i32
  }
  func.func @transform_12(%arg0: i32) -> (i32, i32) {
    %c0_i32 = arith.constant 0 : i32
    %c0_i32_0 = arith.constant 0 : i32
    %c0_i32_1 = arith.constant 0 : i32
    return %c0_i32, %c0_i32_0 : i32, i32
  }
  func.func @transform_13(%arg0: i32) -> (i32, i32, i32, i32, i32) {
    %c0_i32 = arith.constant 0 : i32
    %c0_i32_0 = arith.constant 0 : i32
    %c0_i32_1 = arith.constant 0 : i32
    %c0_i32_2 = arith.constant 0 : i32
    %c0_i32_3 = arith.constant 0 : i32
    return %arg0, %c0_i32, %c0_i32_0, %c0_i32_1, %c0_i32_2 : i32, i32, i32, i32, i32
  }
  func.func @transform_14(%arg0: i32) -> (i32, i32) {
    %c0_i32 = arith.constant 0 : i32
    %c0_i32_0 = arith.constant 0 : i32
    return %arg0, %c0_i32 : i32, i32
  }
}

</mosaic_0001>

<llo_original>
// kernel: tpu_custom_call.1
$region0: #{tpu_custom_call.1}
  #allocation0 [shape = 'u32[]', space=smem, size = 0x4, offset = 0x4, fixed_abs, tag = 'smem constant byte address 0x4 - core index']
  #allocation1 [shape = 'u32[144,128]{1,0:T(1,128)}', space=vmem, size = 0x12000, scoped, tag = 'internal scratch']
  %s0 = inlined_call_operand.vmem [shape: f32[2,7,7,512], index: 0, kind: input, shape index: {}]
  %s1 = inlined_call_operand.vmem [shape: f32[2,7,512], index: 1, kind: input, shape index: {}]
  %s2 = inlined_call_operand.vmem [shape: f32[2,7,512], index: 2, kind: input, shape index: {}]
  %s3 = inlined_call_operand.vmem [shape: f32[2,1,512], index: 3, kind: input, shape index: {}]
  %s4 = inlined_call_operand.vmem [shape: f32[2,1,512], index: 4, kind: input, shape index: {}]
  %s5 = inlined_call_operand.vmem [shape: f32[2,512,16], index: 5, kind: input, shape index: {}]
  %s6 = inlined_call_operand.vmem [shape: f32[2,1,16], index: 6, kind: input, shape index: {}]
  %s7 = inlined_call_operand.vmem [shape: f32[2,16,512], index: 7, kind: input, shape index: {}]
  %s8 = inlined_call_operand.vmem [shape: f32[2,1,512], index: 8, kind: input, shape index: {}]
  %s9 = inlined_call_operand.vmem [shape: f32[2,16,512], index: 9, kind: input, shape index: {}]
  %s10 = inlined_call_operand.vmem [shape: f32[2,1,512], index: 10, kind: input, shape index: {}]
  %s11 = inlined_call_operand.vmem [shape: f32[7,7,512], index: 11, kind: input, shape index: {}]
  %s12 = inlined_call_operand.vmem [shape: f32[1,512], index: 12, kind: input, shape index: {}]
  %s13 = inlined_call_operand.vmem [shape: bf16[2,2,7,7,512], index: 13, kind: output, shape index: {0}]
  %s14 = inlined_call_operand.hbm [shape: bf16[2,512], index: 14, kind: output, shape index: {1}]
  %15 = xla_tuple %s13, %s14
  %s16 = sld [smem:[#allocation0]]
  $region70: #{tpu_custom_call.1} parent=0
    _
  %s18 = ssub.s32 1, %s16
  %s19 = scalar_select 0, %s18, %s16
  $region1: #{tpu_custom_call.1} parent=0
    #allocation2 [shape = 'u8[2048]{0}', space=vmem, size = 0x800, scoped, tag = 'output window, operand 1, single buffered']
    #allocation3 [shape = 's32[1]{0}', space=sflag, size = 0x4, scoped, tag = 'scoped memory for tpu_custom_call.1']
    %20 = vsyncpa [#allocation3], 0
    // Predicated region
    $region2: #{tpu_custom_call.1} parent=1 // pred_check
      _
    $region3: #{tpu_custom_call.1} parent=1 // pred_check_branch
      %22 = sbr.rel (0) target = $region5
    $region4: #{tpu_custom_call.1} parent=1 // pred_region
      _
    $region5: #{tpu_custom_call.1} parent=1 // pred_fallthru
      _
    // Predicated region
    $region6: #{tpu_custom_call.1} parent=1 // pred_check
      _
    $region7: #{tpu_custom_call.1} parent=1 // pred_check_branch
      %24 = sbr.rel (0) target = $region9
    $region8: #{tpu_custom_call.1} parent=1 // pred_region
      _
    $region9: #{tpu_custom_call.1} parent=1 // pred_fallthru
      _
    // Predicated region
    $region10: #{tpu_custom_call.1} parent=1 // pred_check
      _
    $region11: #{tpu_custom_call.1} parent=1 // pred_check_branch
      %26 = sbr.rel (0) target = $region13
    $region12: #{tpu_custom_call.1} parent=1 // pred_region
      _
    $region13: #{tpu_custom_call.1} parent=1 // pred_fallthru
      _
    // Predicated region
    $region14: #{tpu_custom_call.1} parent=1 // pred_check
      _
    $region15: #{tpu_custom_call.1} parent=1 // pred_check_branch
      %28 = sbr.rel (0) target = $region17
    $region16: #{tpu_custom_call.1} parent=1 // pred_region
      _
    $region17: #{tpu_custom_call.1} parent=1 // pred_fallthru
      _
    // Predicated region
    $region18: #{tpu_custom_call.1} parent=1 // pred_check
      _
    $region19: #{tpu_custom_call.1} parent=1 // pred_check_branch
      %30 = sbr.rel (0) target = $region21
    $region20: #{tpu_custom_call.1} parent=1 // pred_region
      _
    $region21: #{tpu_custom_call.1} parent=1 // pred_fallthru
      _
    // Predicated region
    $region22: #{tpu_custom_call.1} parent=1 // pred_check
      _
    $region23: #{tpu_custom_call.1} parent=1 // pred_check_branch
      %32 = sbr.rel (0) target = $region25
    $region24: #{tpu_custom_call.1} parent=1 // pred_region
      _
    $region25: #{tpu_custom_call.1} parent=1 // pred_fallthru
      _
    // Predicated region
    $region26: #{tpu_custom_call.1} parent=1 // pred_check
      _
    $region27: #{tpu_custom_call.1} parent=1 // pred_check_branch
      %34 = sbr.rel (0) target = $region29
    $region28: #{tpu_custom_call.1} parent=1 // pred_region
      _
    $region29: #{tpu_custom_call.1} parent=1 // pred_fallthru
      _
    // Predicated region
    $region30: #{tpu_custom_call.1} parent=1 // pred_check
      _
    $region31: #{tpu_custom_call.1} parent=1 // pred_check_branch
      %36 = sbr.rel (0) target = $region33
    $region32: #{tpu_custom_call.1} parent=1 // pred_region
      _
    $region33: #{tpu_custom_call.1} parent=1 // pred_fallthru
      _
    // Predicated region
    $region34: #{tpu_custom_call.1} parent=1 // pred_check
      _
    $region35: #{tpu_custom_call.1} parent=1 // pred_check_branch
      %38 = sbr.rel (0) target = $region37
    $region36: #{tpu_custom_call.1} parent=1 // pred_region
      _
    $region37: #{tpu_custom_call.1} parent=1 // pred_fallthru
      _
    // Predicated region
    $region38: #{tpu_custom_call.1} parent=1 // pred_check
      _
    $region39: #{tpu_custom_call.1} parent=1 // pred_check_branch
      %40 = sbr.rel (0) target = $region41
    $region40: #{tpu_custom_call.1} parent=1 // pred_region
      _
    $region41: #{tpu_custom_call.1} parent=1 // pred_fallthru
      _
    // Predicated region
    $region42: #{tpu_custom_call.1} parent=1 // pred_check
      _
    $region43: #{tpu_custom_call.1} parent=1 // pred_check_branch
      %42 = sbr.rel (0) target = $region45
    $region44: #{tpu_custom_call.1} parent=1 // pred_region
      _
    $region45: #{tpu_custom_call.1} parent=1 // pred_fallthru
      _
    // Predicated region
    $region46: #{tpu_custom_call.1} parent=1 // pred_check
      _
    $region47: #{tpu_custom_call.1} parent=1 // pred_check_branch
      %44 = sbr.rel (0) target = $region49
    $region48: #{tpu_custom_call.1} parent=1 // pred_region
      _
    $region49: #{tpu_custom_call.1} parent=1 // pred_fallthru
      _
    // Predicated region
    $region50: #{tpu_custom_call.1} parent=1 // pred_check
      _
    $region51: #{tpu_custom_call.1} parent=1 // pred_check_branch
      %46 = sbr.rel (0) target = $region53
    $region52: #{tpu_custom_call.1} parent=1 // pred_region
      _
    $region53: #{tpu_custom_call.1} parent=1 // pred_fallthru
      _
    %v47 = vld [vmem:[%s0] sm:$0x7f]
    %v48 = vld [vmem:[%s0 + $0x8] sm:$0x7f]
    %v49 = vld [vmem:[%s0 + $0x10] sm:$0x7f]
    %v50 = vld [vmem:[%s0 + $0x18] sm:$0x7f]
    %v51 = vld [vmem:[%s0 + $0x20] sm:$0x7f]
    %v52 = vld [vmem:[%s0 + $0x28] sm:$0x7f]
    %v53 = vld [vmem:[%s0 + $0x30] sm:$0x7f]
    %v54 = vld [vmem:[%s0 + $0x38] sm:$0x7f]
    %v55 = vld [vmem:[%s0 + $0x40] sm:$0x7f]
    %v56 = vld [vmem:[%s0 + $0x48] sm:$0x7f]
    %v57 = vld [vmem:[%s0 + $0x50] sm:$0x7f]
    %v58 = vld [vmem:[%s0 + $0x58] sm:$0x7f]
    %v59 = vld [vmem:[%s0 + $0x60] sm:$0x7f]
    %v60 = vld [vmem:[%s0 + $0x68] sm:$0x7f]
    %v61 = vld [vmem:[%s0 + $0x70] sm:$0x7f]
    %v62 = vld [vmem:[%s0 + $0x78] sm:$0x7f]
    %v63 = vld [vmem:[%s0 + $0x80] sm:$0x7f]
    %v64 = vld [vmem:[%s0 + $0x88] sm:$0x7f]
    %v65 = vld [vmem:[%s0 + $0x90] sm:$0x7f]
    %v66 = vld [vmem:[%s0 + $0x98] sm:$0x7f]
    %v67 = vld [vmem:[%s0 + $0xa0] sm:$0x7f]
    %v68 = vld [vmem:[%s0 + $0xa8] sm:$0x7f]
    %v69 = vld [vmem:[%s0 + $0xb0] sm:$0x7f]
    %v70 = vld [vmem:[%s0 + $0xb8] sm:$0x7f]
    %v71 = vld [vmem:[%s0 + $0xc0] sm:$0x7f]
    %v72 = vld [vmem:[%s0 + $0xc8] sm:$0x7f]
    %v73 = vld [vmem:[%s0 + $0xd0] sm:$0x7f]
    %v74 = vld [vmem:[%s0 + $0xd8] sm:$0x7f]
    %v75 = vld [vmem:[%s0 + $0xe0] sm:$0x7f]
    %v76 = vld [vmem:[%s0 + $0xe8] sm:$0x7f]
    %v77 = vld [vmem:[%s0 + $0xf0] sm:$0x7f]
    %v78 = vld [vmem:[%s0 + $0xf8] sm:$0x7f]
    %v79 = vld [vmem:[%s0 + $0x100] sm:$0x7f]
    %v80 = vld [vmem:[%s0 + $0x108] sm:$0x7f]
    %v81 = vld [vmem:[%s0 + $0x110] sm:$0x7f]
    %v82 = vld [vmem:[%s0 + $0x118] sm:$0x7f]
    %v83 = vld [vmem:[%s0 + $0x120] sm:$0x7f]
    %v84 = vld [vmem:[%s0 + $0x128] sm:$0x7f]
    %v85 = vld [vmem:[%s0 + $0x130] sm:$0x7f]
    %v86 = vld [vmem:[%s0 + $0x138] sm:$0x7f]
    %v87 = vld [vmem:[%s0 + $0x140] sm:$0x7f]
    %v88 = vld [vmem:[%s0 + $0x148] sm:$0x7f]
    %v89 = vld [vmem:[%s0 + $0x150] sm:$0x7f]
    %v90 = vld [vmem:[%s0 + $0x158] sm:$0x7f]
    %v91 = vld [vmem:[%s0 + $0x160] sm:$0x7f]
    %v92 = vld [vmem:[%s0 + $0x168] sm:$0x7f]
    %v93 = vld [vmem:[%s0 + $0x170] sm:$0x7f]
    %v94 = vld [vmem:[%s0 + $0x178] sm:$0x7f]
    %v95 = vld [vmem:[%s0 + $0x180] sm:$0x7f]
    %v96 = vld [vmem:[%s0 + $0x188] sm:$0x7f]
    %v97 = vld [vmem:[%s0 + $0x190] sm:$0x7f]
    %v98 = vld [vmem:[%s0 + $0x198] sm:$0x7f]
    %v99 = vld [vmem:[%s0 + $0x1a0] sm:$0x7f]
    %v100 = vld [vmem:[%s0 + $0x1a8] sm:$0x7f]
    %v101 = vld [vmem:[%s0 + $0x1b0] sm:$0x7f]
    %v102 = vld [vmem:[%s0 + $0x1b8] sm:$0x7f]
    %v103 = vld [vmem:[%s1] sm:$0x7f]
    %v104 = vld [vmem:[%s1 + $0x8] sm:$0x7f]
    %v105 = vld [vmem:[%s1 + $0x10] sm:$0x7f]
    %v106 = vld [vmem:[%s1 + $0x18] sm:$0x7f]
    %v107 = vld [vmem:[%s2] sm:$0x7f]
    %v108 = vld [vmem:[%s2 + $0x8] sm:$0x7f]
    %v109 = vld [vmem:[%s2 + $0x10] sm:$0x7f]
    %v110 = vld [vmem:[%s2 + $0x18] sm:$0x7f]
    %v111 = vmul.f32 %v47, %v103
    %v112 = vmul.f32 %v48, %v104
    %v113 = vmul.f32 %v49, %v105
    %v114 = vmul.f32 %v50, %v106
    %v115 = vmul.f32 %v51, %v103
    %v116 = vmul.f32 %v52, %v104
    %v117 = vmul.f32 %v53, %v105
    %v118 = vmul.f32 %v54, %v106
    %v119 = vmul.f32 %v55, %v103
    %v120 = vmul.f32 %v56, %v104
    %v121 = vmul.f32 %v57, %v105
    %v122 = vmul.f32 %v58, %v106
    %v123 = vmul.f32 %v59, %v103
    %v124 = vmul.f32 %v60, %v104
    %v125 = vmul.f32 %v61, %v105
    %v126 = vmul.f32 %v62, %v106
    %v127 = vmul.f32 %v63, %v103
    %v128 = vmul.f32 %v64, %v104
    %v129 = vmul.f32 %v65, %v105
    %v130 = vmul.f32 %v66, %v106
    %v131 = vmul.f32 %v67, %v103
    %v132 = vmul.f32 %v68, %v104
    %v133 = vmul.f32 %v69, %v105
    %v134 = vmul.f32 %v70, %v106
    %v135 = vmul.f32 %v71, %v103
    %v136 = vmul.f32 %v72, %v104
    %v137 = vmul.f32 %v73, %v105
    %v138 = vmul.f32 %v74, %v106
    %v139 = vmul.f32 %v75, %v103
    %v140 = vmul.f32 %v76, %v104
    %v141 = vmul.f32 %v77, %v105
    %v142 = vmul.f32 %v78, %v106
    %v143 = vmul.f32 %v79, %v103
    %v144 = vmul.f32 %v80, %v104
    %v145 = vmul.f32 %v81, %v105
    %v146 = vmul.f32 %v82, %v106
    %v147 = vmul.f32 %v83, %v103
    %v148 = vmul.f32 %v84, %v104
    %v149 = vmul.f32 %v85, %v105
    %v150 = vmul.f32 %v86, %v106
    %v151 = vmul.f32 %v87, %v103
    %v152 = vmul.f32 %v88, %v104
    %v153 = vmul.f32 %v89, %v105
    %v154 = vmul.f32 %v90, %v106
    %v155 = vmul.f32 %v91, %v103
    %v156 = vmul.f32 %v92, %v104
    %v157 = vmul.f32 %v93, %v105
    %v158 = vmul.f32 %v94, %v106
    %v159 = vmul.f32 %v95, %v103
    %v160 = vmul.f32 %v96, %v104
    %v161 = vmul.f32 %v97, %v105
    %v162 = vmul.f32 %v98, %v106
    %v163 = vmul.f32 %v99, %v103
    %v164 = vmul.f32 %v100, %v104
    %v165 = vmul.f32 %v101, %v105
    %v166 = vmul.f32 %v102, %v106
    %vm167 = vcmask 1046528
    %v168 = vsel %vm167, %v111, 0.0
    %v169 = vrot.slane %v168, 4
    %v170 = vadd.f32 %v168, %v169
    %v171 = vrot.slane %v170, 2
    %v172 = vadd.f32 %v170, %v171
    %v173 = vrot.slane %v172, 1
    %v174 = vadd.f32 %v172, %v173
    %v175 = vsel %vm167, %v112, 0.0
    %v176 = vrot.slane %v175, 4
    %v177 = vadd.f32 %v175, %v176
    %v178 = vrot.slane %v177, 2
    %v179 = vadd.f32 %v177, %v178
    %v180 = vrot.slane %v179, 1
    %v181 = vadd.f32 %v179, %v180
    %v182 = vsel %vm167, %v113, 0.0
    %v183 = vrot.slane %v182, 4
    %v184 = vadd.f32 %v182, %v183
    %v185 = vrot.slane %v184, 2
    %v186 = vadd.f32 %v184, %v185
    %v187 = vrot.slane %v186, 1
    %v188 = vadd.f32 %v186, %v187
    %v189 = vsel %vm167, %v114, 0.0
    %v190 = vrot.slane %v189, 4
    %v191 = vadd.f32 %v189, %v190
    %v192 = vrot.slane %v191, 2
    %v193 = vadd.f32 %v191, %v192
    %v194 = vrot.slane %v193, 1
    %v195 = vadd.f32 %v193, %v194
    %v196 = vsel %vm167, %v115, 0.0
    %v197 = vrot.slane %v196, 4
    %v198 = vadd.f32 %v196, %v197
    %v199 = vrot.slane %v198, 2
    %v200 = vadd.f32 %v198, %v199
    %v201 = vrot.slane %v200, 1
    %v202 = vadd.f32 %v200, %v201
    %v203 = vsel %vm167, %v116, 0.0
    %v204 = vrot.slane %v203, 4
    %v205 = vadd.f32 %v203, %v204
    %v206 = vrot.slane %v205, 2
    %v207 = vadd.f32 %v205, %v206
    %v208 = vrot.slane %v207, 1
    %v209 = vadd.f32 %v207, %v208
    %v210 = vsel %vm167, %v117, 0.0
    %v211 = vrot.slane %v210, 4
    %v212 = vadd.f32 %v210, %v211
    %v213 = vrot.slane %v212, 2
    %v214 = vadd.f32 %v212, %v213
    %v215 = vrot.slane %v214, 1
    %v216 = vadd.f32 %v214, %v215
    %v217 = vsel %vm167, %v118, 0.0
    %v218 = vrot.slane %v217, 4
    %v219 = vadd.f32 %v217, %v218
    %v220 = vrot.slane %v219, 2
    %v221 = vadd.f32 %v219, %v220
    %v222 = vrot.slane %v221, 1
    %v223 = vadd.f32 %v221, %v222
    %v224 = vsel %vm167, %v119, 0.0
    %v225 = vrot.slane %v224, 4
    %v226 = vadd.f32 %v224, %v225
    %v227 = vrot.slane %v226, 2
    %v228 = vadd.f32 %v226, %v227
    %v229 = vrot.slane %v228, 1
    %v230 = vadd.f32 %v228, %v229
    %v231 = vsel %vm167, %v120, 0.0
    %v232 = vrot.slane %v231, 4
    %v233 = vadd.f32 %v231, %v232
    %v234 = vrot.slane %v233, 2
    %v235 = vadd.f32 %v233, %v234
    %v236 = vrot.slane %v235, 1
    %v237 = vadd.f32 %v235, %v236
    %v238 = vsel %vm167, %v121, 0.0
    %v239 = vrot.slane %v238, 4
    %v240 = vadd.f32 %v238, %v239
    %v241 = vrot.slane %v240, 2
    %v242 = vadd.f32 %v240, %v241
    %v243 = vrot.slane %v242, 1
    %v244 = vadd.f32 %v242, %v243
    %v245 = vsel %vm167, %v122, 0.0
    %v246 = vrot.slane %v245, 4
    %v247 = vadd.f32 %v245, %v246
    %v248 = vrot.slane %v247, 2
    %v249 = vadd.f32 %v247, %v248
    %v250 = vrot.slane %v249, 1
    %v251 = vadd.f32 %v249, %v250
    %v252 = vsel %vm167, %v123, 0.0
    %v253 = vrot.slane %v252, 4
    %v254 = vadd.f32 %v252, %v253
    %v255 = vrot.slane %v254, 2
    %v256 = vadd.f32 %v254, %v255
    %v257 = vrot.slane %v256, 1
    %v258 = vadd.f32 %v256, %v257
    %v259 = vsel %vm167, %v124, 0.0
    %v260 = vrot.slane %v259, 4
    %v261 = vadd.f32 %v259, %v260
    %v262 = vrot.slane %v261, 2
    %v263 = vadd.f32 %v261, %v262
    %v264 = vrot.slane %v263, 1
    %v265 = vadd.f32 %v263, %v264
    %v266 = vsel %vm167, %v125, 0.0
    %v267 = vrot.slane %v266, 4
    %v268 = vadd.f32 %v266, %v267
    %v269 = vrot.slane %v268, 2
    %v270 = vadd.f32 %v268, %v269
    %v271 = vrot.slane %v270, 1
    %v272 = vadd.f32 %v270, %v271
    %v273 = vsel %vm167, %v126, 0.0
    %v274 = vrot.slane %v273, 4
    %v275 = vadd.f32 %v273, %v274
    %v276 = vrot.slane %v275, 2
    %v277 = vadd.f32 %v275, %v276
    %v278 = vrot.slane %v277, 1
    %v279 = vadd.f32 %v277, %v278
    %v280 = vsel %vm167, %v127, 0.0
    %v281 = vrot.slane %v280, 4
    %v282 = vadd.f32 %v280, %v281
    %v283 = vrot.slane %v282, 2
    %v284 = vadd.f32 %v282, %v283
    %v285 = vrot.slane %v284, 1
    %v286 = vadd.f32 %v284, %v285
    %v287 = vsel %vm167, %v128, 0.0
    %v288 = vrot.slane %v287, 4
    %v289 = vadd.f32 %v287, %v288
    %v290 = vrot.slane %v289, 2
    %v291 = vadd.f32 %v289, %v290
    %v292 = vrot.slane %v291, 1
    %v293 = vadd.f32 %v291, %v292
    %v294 = vsel %vm167, %v129, 0.0
    %v295 = vrot.slane %v294, 4
    %v296 = vadd.f32 %v294, %v295
    %v297 = vrot.slane %v296, 2
    %v298 = vadd.f32 %v296, %v297
    %v299 = vrot.slane %v298, 1
    %v300 = vadd.f32 %v298, %v299
    %v301 = vsel %vm167, %v130, 0.0
    %v302 = vrot.slane %v301, 4
    %v303 = vadd.f32 %v301, %v302
    %v304 = vrot.slane %v303, 2
    %v305 = vadd.f32 %v303, %v304
    %v306 = vrot.slane %v305, 1
    %v307 = vadd.f32 %v305, %v306
    %v308 = vsel %vm167, %v131, 0.0
    %v309 = vrot.slane %v308, 4
    %v310 = vadd.f32 %v308, %v309
    %v311 = vrot.slane %v310, 2
    %v312 = vadd.f32 %v310, %v311
    %v313 = vrot.slane %v312, 1
    %v314 = vadd.f32 %v312, %v313
    %v315 = vsel %vm167, %v132, 0.0
    %v316 = vrot.slane %v315, 4
    %v317 = vadd.f32 %v315, %v316
    %v318 = vrot.slane %v317, 2
    %v319 = vadd.f32 %v317, %v318
    %v320 = vrot.slane %v319, 1
    %v321 = vadd.f32 %v319, %v320
    %v322 = vsel %vm167, %v133, 0.0
    %v323 = vrot.slane %v322, 4
    %v324 = vadd.f32 %v322, %v323
    %v325 = vrot.slane %v324, 2
    %v326 = vadd.f32 %v324, %v325
    %v327 = vrot.slane %v326, 1
    %v328 = vadd.f32 %v326, %v327
    %v329 = vsel %vm167, %v134, 0.0
    %v330 = vrot.slane %v329, 4
    %v331 = vadd.f32 %v329, %v330
    %v332 = vrot.slane %v331, 2
    %v333 = vadd.f32 %v331, %v332
    %v334 = vrot.slane %v333, 1
    %v335 = vadd.f32 %v333, %v334
    %v336 = vsel %vm167, %v135, 0.0
    %v337 = vrot.slane %v336, 4
    %v338 = vadd.f32 %v336, %v337
    %v339 = vrot.slane %v338, 2
    %v340 = vadd.f32 %v338, %v339
    %v341 = vrot.slane %v340, 1
    %v342 = vadd.f32 %v340, %v341
    %v343 = vsel %vm167, %v136, 0.0
    %v344 = vrot.slane %v343, 4
    %v345 = vadd.f32 %v343, %v344
    %v346 = vrot.slane %v345, 2
    %v347 = vadd.f32 %v345, %v346
    %v348 = vrot.slane %v347, 1
    %v349 = vadd.f32 %v347, %v348
    %v350 = vsel %vm167, %v137, 0.0
    %v351 = vrot.slane %v350, 4
    %v352 = vadd.f32 %v350, %v351
    %v353 = vrot.slane %v352, 2
    %v354 = vadd.f32 %v352, %v353
    %v355 = vrot.slane %v354, 1
    %v356 = vadd.f32 %v354, %v355
    %v357 = vsel %vm167, %v138, 0.0
    %v358 = vrot.slane %v357, 4
    %v359 = vadd.f32 %v357, %v358
    %v360 = vrot.slane %v359, 2
    %v361 = vadd.f32 %v359, %v360
    %v362 = vrot.slane %v361, 1
    %v363 = vadd.f32 %v361, %v362
    %v364 = vsel %vm167, %v139, 0.0
    %v365 = vrot.slane %v364, 4
    %v366 = vadd.f32 %v364, %v365
    %v367 = vrot.slane %v366, 2
    %v368 = vadd.f32 %v366, %v367
    %v369 = vrot.slane %v368, 1
    %v370 = vadd.f32 %v368, %v369
    %v371 = vsel %vm167, %v140, 0.0
    %v372 = vrot.slane %v371, 4
    %v373 = vadd.f32 %v371, %v372
    %v374 = vrot.slane %v373, 2
    %v375 = vadd.f32 %v373, %v374
    %v376 = vrot.slane %v375, 1
    %v377 = vadd.f32 %v375, %v376
    %v378 = vsel %vm167, %v141, 0.0
    %v379 = vrot.slane %v378, 4
    %v380 = vadd.f32 %v378, %v379
    %v381 = vrot.slane %v380, 2
    %v382 = vadd.f32 %v380, %v381
    %v383 = vrot.slane %v382, 1
    %v384 = vadd.f32 %v382, %v383
    %v385 = vsel %vm167, %v142, 0.0
    %v386 = vrot.slane %v385, 4
    %v387 = vadd.f32 %v385, %v386
    %v388 = vrot.slane %v387, 2
    %v389 = vadd.f32 %v387, %v388
    %v390 = vrot.slane %v389, 1
    %v391 = vadd.f32 %v389, %v390
    %v392 = vsel %vm167, %v143, 0.0
    %v393 = vrot.slane %v392, 4
    %v394 = vadd.f32 %v392, %v393
    %v395 = vrot.slane %v394, 2
    %v396 = vadd.f32 %v394, %v395
    %v397 = vrot.slane %v396, 1
    %v398 = vadd.f32 %v396, %v397
    %v399 = vsel %vm167, %v144, 0.0
    %v400 = vrot.slane %v399, 4
    %v401 = vadd.f32 %v399, %v400
    %v402 = vrot.slane %v401, 2
    %v403 = vadd.f32 %v401, %v402
    %v404 = vrot.slane %v403, 1
    %v405 = vadd.f32 %v403, %v404
    %v406 = vsel %vm167, %v145, 0.0
    %v407 = vrot.slane %v406, 4
    %v408 = vadd.f32 %v406, %v407
    %v409 = vrot.slane %v408, 2
    %v410 = vadd.f32 %v408, %v409
    %v411 = vrot.slane %v410, 1
    %v412 = vadd.f32 %v410, %v411
    %v413 = vsel %vm167, %v146, 0.0
    %v414 = vrot.slane %v413, 4
    %v415 = vadd.f32 %v413, %v414
    %v416 = vrot.slane %v415, 2
    %v417 = vadd.f32 %v415, %v416
    %v418 = vrot.slane %v417, 1
    %v419 = vadd.f32 %v417, %v418
    %v420 = vsel %vm167, %v147, 0.0
    %v421 = vrot.slane %v420, 4
    %v422 = vadd.f32 %v420, %v421
    %v423 = vrot.slane %v422, 2
    %v424 = vadd.f32 %v422, %v423
    %v425 = vrot.slane %v424, 1
    %v426 = vadd.f32 %v424, %v425
    %v427 = vsel %vm167, %v148, 0.0
    %v428 = vrot.slane %v427, 4
    %v429 = vadd.f32 %v427, %v428
    %v430 = vrot.slane %v429, 2
    %v431 = vadd.f32 %v429, %v430
    %v432 = vrot.slane %v431, 1
    %v433 = vadd.f32 %v431, %v432
    %v434 = vsel %vm167, %v149, 0.0
    %v435 = vrot.slane %v434, 4
    %v436 = vadd.f32 %v434, %v435
    %v437 = vrot.slane %v436, 2
    %v438 = vadd.f32 %v436, %v437
    %v439 = vrot.slane %v438, 1
    %v440 = vadd.f32 %v438, %v439
    %v441 = vsel %vm167, %v150, 0.0
    %v442 = vrot.slane %v441, 4
    %v443 = vadd.f32 %v441, %v442
    %v444 = vrot.slane %v443, 2
    %v445 = vadd.f32 %v443, %v444
    %v446 = vrot.slane %v445, 1
    %v447 = vadd.f32 %v445, %v446
    %v448 = vsel %vm167, %v151, 0.0
    %v449 = vrot.slane %v448, 4
    %v450 = vadd.f32 %v448, %v449
    %v451 = vrot.slane %v450, 2
    %v452 = vadd.f32 %v450, %v451
    %v453 = vrot.slane %v452, 1
    %v454 = vadd.f32 %v452, %v453
    %v455 = vsel %vm167, %v152, 0.0
    %v456 = vrot.slane %v455, 4
    %v457 = vadd.f32 %v455, %v456
    %v458 = vrot.slane %v457, 2
    %v459 = vadd.f32 %v457, %v458
    %v460 = vrot.slane %v459, 1
    %v461 = vadd.f32 %v459, %v460
    %v462 = vsel %vm167, %v153, 0.0
    %v463 = vrot.slane %v462, 4
    %v464 = vadd.f32 %v462, %v463
    %v465 = vrot.slane %v464, 2
    %v466 = vadd.f32 %v464, %v465
    %v467 = vrot.slane %v466, 1
    %v468 = vadd.f32 %v466, %v467
    %v469 = vsel %vm167, %v154, 0.0
    %v470 = vrot.slane %v469, 4
    %v471 = vadd.f32 %v469, %v470
    %v472 = vrot.slane %v471, 2
    %v473 = vadd.f32 %v471, %v472
    %v474 = vrot.slane %v473, 1
    %v475 = vadd.f32 %v473, %v474
    %v476 = vsel %vm167, %v155, 0.0
    %v477 = vrot.slane %v476, 4
    %v478 = vadd.f32 %v476, %v477
    %v479 = vrot.slane %v478, 2
    %v480 = vadd.f32 %v478, %v479
    %v481 = vrot.slane %v480, 1
    %v482 = vadd.f32 %v480, %v481
    %v483 = vsel %vm167, %v156, 0.0
    %v484 = vrot.slane %v483, 4
    %v485 = vadd.f32 %v483, %v484
    %v486 = vrot.slane %v485, 2
    %v487 = vadd.f32 %v485, %v486
    %v488 = vrot.slane %v487, 1
    %v489 = vadd.f32 %v487, %v488
    %v490 = vsel %vm167, %v157, 0.0
    %v491 = vrot.slane %v490, 4
    %v492 = vadd.f32 %v490, %v491
    %v493 = vrot.slane %v492, 2
    %v494 = vadd.f32 %v492, %v493
    %v495 = vrot.slane %v494, 1
    %v496 = vadd.f32 %v494, %v495
    %v497 = vsel %vm167, %v158, 0.0
    %v498 = vrot.slane %v497, 4
    %v499 = vadd.f32 %v497, %v498
    %v500 = vrot.slane %v499, 2
    %v501 = vadd.f32 %v499, %v500
    %v502 = vrot.slane %v501, 1
    %v503 = vadd.f32 %v501, %v502
    %v504 = vsel %vm167, %v159, 0.0
    %v505 = vrot.slane %v504, 4
    %v506 = vadd.f32 %v504, %v505
    %v507 = vrot.slane %v506, 2
    %v508 = vadd.f32 %v506, %v507
    %v509 = vrot.slane %v508, 1
    %v510 = vadd.f32 %v508, %v509
    %v511 = vsel %vm167, %v160, 0.0
    %v512 = vrot.slane %v511, 4
    %v513 = vadd.f32 %v511, %v512
    %v514 = vrot.slane %v513, 2
    %v515 = vadd.f32 %v513, %v514
    %v516 = vrot.slane %v515, 1
    %v517 = vadd.f32 %v515, %v516
    %v518 = vsel %vm167, %v161, 0.0
    %v519 = vrot.slane %v518, 4
    %v520 = vadd.f32 %v518, %v519
    %v521 = vrot.slane %v520, 2
    %v522 = vadd.f32 %v520, %v521
    %v523 = vrot.slane %v522, 1
    %v524 = vadd.f32 %v522, %v523
    %v525 = vsel %vm167, %v162, 0.0
    %v526 = vrot.slane %v525, 4
    %v527 = vadd.f32 %v525, %v526
    %v528 = vrot.slane %v527, 2
    %v529 = vadd.f32 %v527, %v528
    %v530 = vrot.slane %v529, 1
    %v531 = vadd.f32 %v529, %v530
    %v532 = vsel %vm167, %v163, 0.0
    %v533 = vrot.slane %v532, 4
    %v534 = vadd.f32 %v532, %v533
    %v535 = vrot.slane %v534, 2
    %v536 = vadd.f32 %v534, %v535
    %v537 = vrot.slane %v536, 1
    %v538 = vadd.f32 %v536, %v537
    %v539 = vsel %vm167, %v164, 0.0
    %v540 = vrot.slane %v539, 4
    %v541 = vadd.f32 %v539, %v540
    %v542 = vrot.slane %v541, 2
    %v543 = vadd.f32 %v541, %v542
    %v544 = vrot.slane %v543, 1
    %v545 = vadd.f32 %v543, %v544
    %v546 = vsel %vm167, %v165, 0.0
    %v547 = vrot.slane %v546, 4
    %v548 = vadd.f32 %v546, %v547
    %v549 = vrot.slane %v548, 2
    %v550 = vadd.f32 %v548, %v549
    %v551 = vrot.slane %v550, 1
    %v552 = vadd.f32 %v550, %v551
    %v553 = vsel %vm167, %v166, 0.0
    %v554 = vrot.slane %v553, 4
    %v555 = vadd.f32 %v553, %v554
    %v556 = vrot.slane %v555, 2
    %v557 = vadd.f32 %v555, %v556
    %v558 = vrot.slane %v557, 1
    %v559 = vadd.f32 %v557, %v558
    %v560 = vld [vmem:[%s3] sm:$0xf]
    %v562 = vlaneseq
    %v563 = vshrl.u32 %v562, 7
    %v564 = vsub.s32 0, %v563
    %v565 = vrot.slane %v560, %v564
    %v566 = vlaneseq
    %v567 = vshrl.u32 %v566, 7
    %v568 = vsub.s32 1, %v567
    %v569 = vrot.slane %v560, %v568
    %v570 = vlaneseq
    %v571 = vshrl.u32 %v570, 7
    %v572 = vsub.s32 2, %v571
    %v573 = vrot.slane %v560, %v572
    %v574 = vlaneseq
    %v575 = vshrl.u32 %v574, 7
    %v576 = vsub.s32 3, %v575
    %v577 = vrot.slane %v560, %v576
    %v582 = vadd.f32 %v174, %v565
    %v583 = vadd.f32 %v181, %v569
    %v584 = vadd.f32 %v188, %v573
    %v585 = vadd.f32 %v195, %v577
    %v586 = vadd.f32 %v202, %v565
    %v587 = vadd.f32 %v209, %v569
    %v588 = vadd.f32 %v216, %v573
    %v589 = vadd.f32 %v223, %v577
    %v590 = vadd.f32 %v230, %v565
    %v591 = vadd.f32 %v237, %v569
    %v592 = vadd.f32 %v244, %v573
    %v593 = vadd.f32 %v251, %v577
    %v594 = vadd.f32 %v258, %v565
    %v595 = vadd.f32 %v265, %v569
    %v596 = vadd.f32 %v272, %v573
    %v597 = vadd.f32 %v279, %v577
    %v598 = vadd.f32 %v286, %v565
    %v599 = vadd.f32 %v293, %v569
    %v600 = vadd.f32 %v300, %v573
    %v601 = vadd.f32 %v307, %v577
    %v602 = vadd.f32 %v314, %v565
    %v603 = vadd.f32 %v321, %v569
    %v604 = vadd.f32 %v328, %v573
    %v605 = vadd.f32 %v335, %v577
    %v606 = vadd.f32 %v342, %v565
    %v607 = vadd.f32 %v349, %v569
    %v608 = vadd.f32 %v356, %v573
    %v609 = vadd.f32 %v363, %v577
    %v610 = vadd.f32 %v370, %v565
    %v611 = vadd.f32 %v377, %v569
    %v612 = vadd.f32 %v384, %v573
    %v613 = vadd.f32 %v391, %v577
    %v614 = vadd.f32 %v398, %v565
    %v615 = vadd.f32 %v405, %v569
    %v616 = vadd.f32 %v412, %v573
    %v617 = vadd.f32 %v419, %v577
    %v618 = vadd.f32 %v426, %v565
    %v619 = vadd.f32 %v433, %v569
    %v620 = vadd.f32 %v440, %v573
    %v621 = vadd.f32 %v447, %v577
    %v622 = vadd.f32 %v454, %v565
    %v623 = vadd.f32 %v461, %v569
    %v624 = vadd.f32 %v468, %v573
    %v625 = vadd.f32 %v475, %v577
    %v626 = vadd.f32 %v482, %v565
    %v627 = vadd.f32 %v489, %v569
    %v628 = vadd.f32 %v496, %v573
    %v629 = vadd.f32 %v503, %v577
    %v630 = vadd.f32 %v510, %v565
    %v631 = vadd.f32 %v517, %v569
    %v632 = vadd.f32 %v524, %v573
    %v633 = vadd.f32 %v531, %v577
    %v634 = vadd.f32 %v538, %v565
    %v635 = vadd.f32 %v545, %v569
    %v636 = vadd.f32 %v552, %v573
    %v637 = vadd.f32 %v559, %v577
    %v642 = vcombine.low %v107, %v108
    %v643 = vcombine.high %v107, %v108
    %v644 = vcombine.low %v109, %v110
    %v645 = vcombine.high %v109, %v110
    %v647 = vunpack.c.l.s4 1966171168
    %v648 = vunpack.c.0.s8 %v647
    %v649 = vlaneseq
    %v650 = vshrl.u32 %v649, 7
    %v651 = vsub.s32 %v648, %v650
    %v652 = vrot.slane %v642, %v651
    %v654 = vunpack.c.l.s4 1966171168
    %v655 = vunpack.c.0.s8 %v654
    %v656 = vlaneseq
    %v657 = vshrl.u32 %v656, 7
    %v658 = vsub.s32 %v655, %v657
    %v659 = vrot.slane %v643, %v658
    %v661 = vunpack.c.l.s4 1966171168
    %v662 = vunpack.c.0.s8 %v661
    %v663 = vlaneseq
    %v664 = vshrl.u32 %v663, 7
    %v665 = vsub.s32 %v662, %v664
    %v666 = vrot.slane %v644, %v665
    %v668 = vunpack.c.l.s4 1966171168
    %v669 = vunpack.c.0.s8 %v668
    %v670 = vlaneseq
    %v671 = vshrl.u32 %v670, 7
    %v672 = vsub.s32 %v669, %v671
    %v673 = vrot.slane %v645, %v672
    %v674 = vcombine.low %v652, %v666
    %v675 = vcombine.high %v652, %v666
    %v676 = vcombine.low %v659, %v673
    %v677 = vcombine.high %v659, %v673
    %v679 = vunpack.c.l.s4 1966171168
    %v680 = vunpack.c.0.s8 %v679
    %v681 = vlaneseq
    %v682 = vshrl.u32 %v681, 7
    %v683 = vsub.s32 %v680, %v682
    %v684 = vrot.slane %v674, %v683
    %v686 = vunpack.c.l.s4 1966171168
    %v687 = vunpack.c.0.s8 %v686
    %v688 = vlaneseq
    %v689 = vshrl.u32 %v688, 7
    %v690 = vsub.s32 %v687, %v689
    %v691 = vrot.slane %v676, %v690
    %v693 = vunpack.c.l.s4 1966171168
    %v694 = vunpack.c.0.s8 %v693
    %v695 = vlaneseq
    %v696 = vshrl.u32 %v695, 7
    %v697 = vsub.s32 %v694, %v696
    %v698 = vrot.slane %v675, %v697
    %v700 = vunpack.c.l.s4 1966171168
    %v701 = vunpack.c.0.s8 %v700
    %v702 = vlaneseq
    %v703 = vshrl.u32 %v702, 7
    %v704 = vsub.s32 %v701, %v703
    %v705 = vrot.slane %v677, %v704
    %v706 = vcombine.high %v684, %v684
    %v707 = vcombine.high %v691, %v691
    %v708 = vcombine.high %v698, %v698
    %v709 = vlaneseq
    %v710 = vshrl.u32 %v709, 7
    %v711 = vsub.s32 0, %v710
    %v712 = vrot.slane %v684, %v711
    %v713 = vlaneseq
    %v714 = vshrl.u32 %v713, 7
    %v715 = vsub.s32 1, %v714
    %v716 = vrot.slane %v684, %v715
    %v717 = vlaneseq
    %v718 = vshrl.u32 %v717, 7
    %v719 = vsub.s32 2, %v718
    %v720 = vrot.slane %v684, %v719
    %v721 = vlaneseq
    %v722 = vshrl.u32 %v721, 7
    %v723 = vsub.s32 3, %v722
    %v724 = vrot.slane %v684, %v723
    %v725 = vlaneseq
    %v726 = vshrl.u32 %v725, 7
    %v727 = vsub.s32 0, %v726
    %v728 = vrot.slane %v698, %v727
    %v729 = vlaneseq
    %v730 = vshrl.u32 %v729, 7
    %v731 = vsub.s32 1, %v730
    %v732 = vrot.slane %v698, %v731
    %v733 = vlaneseq
    %v734 = vshrl.u32 %v733, 7
    %v735 = vsub.s32 2, %v734
    %v736 = vrot.slane %v698, %v735
    %v737 = vlaneseq
    %v738 = vshrl.u32 %v737, 7
    %v739 = vsub.s32 3, %v738
    %v740 = vrot.slane %v698, %v739
    %v741 = vlaneseq
    %v742 = vshrl.u32 %v741, 7
    %v743 = vsub.s32 0, %v742
    %v744 = vrot.slane %v706, %v743
    %v745 = vlaneseq
    %v746 = vshrl.u32 %v745, 7
    %v747 = vsub.s32 1, %v746
    %v748 = vrot.slane %v706, %v747
    %v749 = vlaneseq
    %v750 = vshrl.u32 %v749, 7
    %v751 = vsub.s32 2, %v750
    %v752 = vrot.slane %v706, %v751
    %v753 = vlaneseq
    %v754 = vshrl.u32 %v753, 7
    %v755 = vsub.s32 3, %v754
    %v756 = vrot.slane %v706, %v755
    %v757 = vlaneseq
    %v758 = vshrl.u32 %v757, 7
    %v759 = vsub.s32 0, %v758
    %v760 = vrot.slane %v708, %v759
    %v761 = vlaneseq
    %v762 = vshrl.u32 %v761, 7
    %v763 = vsub.s32 1, %v762
    %v764 = vrot.slane %v708, %v763
    %v765 = vlaneseq
    %v766 = vshrl.u32 %v765, 7
    %v767 = vsub.s32 2, %v766
    %v768 = vrot.slane %v708, %v767
    %v769 = vlaneseq
    %v770 = vshrl.u32 %v769, 7
    %v771 = vsub.s32 3, %v770
    %v772 = vrot.slane %v708, %v771
    %v773 = vlaneseq
    %v774 = vshrl.u32 %v773, 7
    %v775 = vsub.s32 0, %v774
    %v776 = vrot.slane %v691, %v775
    %v777 = vlaneseq
    %v778 = vshrl.u32 %v777, 7
    %v779 = vsub.s32 1, %v778
    %v780 = vrot.slane %v691, %v779
    %v781 = vlaneseq
    %v782 = vshrl.u32 %v781, 7
    %v783 = vsub.s32 2, %v782
    %v784 = vrot.slane %v691, %v783
    %v785 = vlaneseq
    %v786 = vshrl.u32 %v785, 7
    %v787 = vsub.s32 3, %v786
    %v788 = vrot.slane %v691, %v787
    %v789 = vlaneseq
    %v790 = vshrl.u32 %v789, 7
    %v791 = vsub.s32 0, %v790
    %v792 = vrot.slane %v705, %v791
    %v793 = vlaneseq
    %v794 = vshrl.u32 %v793, 7
    %v795 = vsub.s32 1, %v794
    %v796 = vrot.slane %v705, %v795
    %v797 = vlaneseq
    %v798 = vshrl.u32 %v797, 7
    %v799 = vsub.s32 2, %v798
    %v800 = vrot.slane %v705, %v799
    %v801 = vlaneseq
    %v802 = vshrl.u32 %v801, 7
    %v803 = vsub.s32 3, %v802
    %v804 = vrot.slane %v705, %v803
    %v805 = vlaneseq
    %v806 = vshrl.u32 %v805, 7
    %v807 = vsub.s32 0, %v806
    %v808 = vrot.slane %v707, %v807
    %v809 = vlaneseq
    %v810 = vshrl.u32 %v809, 7
    %v811 = vsub.s32 1, %v810
    %v812 = vrot.slane %v707, %v811
    %v813 = vlaneseq
    %v814 = vshrl.u32 %v813, 7
    %v815 = vsub.s32 2, %v814
    %v816 = vrot.slane %v707, %v815
    %v817 = vlaneseq
    %v818 = vshrl.u32 %v817, 7
    %v819 = vsub.s32 3, %v818
    %v820 = vrot.slane %v707, %v819
    %v849 = vmul.f32 %v47, %v712
    %v850 = vmul.f32 %v48, %v716
    %v851 = vmul.f32 %v49, %v720
    %v852 = vmul.f32 %v50, %v724
    %v853 = vmul.f32 %v51, %v728
    %v854 = vmul.f32 %v52, %v732
    %v855 = vmul.f32 %v53, %v736
    %v856 = vmul.f32 %v54, %v740
    %v857 = vmul.f32 %v55, %v744
    %v858 = vmul.f32 %v56, %v748
    %v859 = vmul.f32 %v57, %v752
    %v860 = vmul.f32 %v58, %v756
    %v861 = vmul.f32 %v59, %v760
    %v862 = vmul.f32 %v60, %v764
    %v863 = vmul.f32 %v61, %v768
    %v864 = vmul.f32 %v62, %v772
    %v865 = vmul.f32 %v63, %v776
    %v866 = vmul.f32 %v64, %v780
    %v867 = vmul.f32 %v65, %v784
    %v868 = vmul.f32 %v66, %v788
    %v869 = vmul.f32 %v67, %v792
    %v870 = vmul.f32 %v68, %v796
    %v871 = vmul.f32 %v69, %v800
    %v872 = vmul.f32 %v70, %v804
    %v873 = vmul.f32 %v71, %v808
    %v874 = vmul.f32 %v72, %v812
    %v875 = vmul.f32 %v73, %v816
    %v876 = vmul.f32 %v74, %v820
    %v877 = vmul.f32 %v75, %v712
    %v878 = vmul.f32 %v76, %v716
    %v879 = vmul.f32 %v77, %v720
    %v880 = vmul.f32 %v78, %v724
    %v881 = vmul.f32 %v79, %v728
    %v882 = vmul.f32 %v80, %v732
    %v883 = vmul.f32 %v81, %v736
    %v884 = vmul.f32 %v82, %v740
    %v885 = vmul.f32 %v83, %v744
    %v886 = vmul.f32 %v84, %v748
    %v887 = vmul.f32 %v85, %v752
    %v888 = vmul.f32 %v86, %v756
    %v889 = vmul.f32 %v87, %v760
    %v890 = vmul.f32 %v88, %v764
    %v891 = vmul.f32 %v89, %v768
    %v892 = vmul.f32 %v90, %v772
    %v893 = vmul.f32 %v91, %v776
    %v894 = vmul.f32 %v92, %v780
    %v895 = vmul.f32 %v93, %v784
    %v896 = vmul.f32 %v94, %v788
    %v897 = vmul.f32 %v95, %v792
    %v898 = vmul.f32 %v96, %v796
    %v899 = vmul.f32 %v97, %v800
    %v900 = vmul.f32 %v98, %v804
    %v901 = vmul.f32 %v99, %v808
    %v902 = vmul.f32 %v100, %v812
    %v903 = vmul.f32 %v101, %v816
    %v904 = vmul.f32 %v102, %v820
    %v905 = vsel %vm167, %v849, 0.0
    %v906 = vsel %vm167, %v853, 0.0
    %v907 = vadd.f32 %v905, %v906
    %v908 = vsel %vm167, %v857, 0.0
    %v909 = vadd.f32 %v907, %v908
    %v910 = vsel %vm167, %v861, 0.0
    %v911 = vadd.f32 %v909, %v910
    %v912 = vsel %vm167, %v865, 0.0
    %v913 = vadd.f32 %v911, %v912
    %v914 = vsel %vm167, %v869, 0.0
    %v915 = vadd.f32 %v913, %v914
    %v916 = vsel %vm167, %v873, 0.0
    %v917 = vadd.f32 %v915, %v916
    %v918 = vsel %vm167, %v850, 0.0
    %v919 = vsel %vm167, %v854, 0.0
    %v920 = vadd.f32 %v918, %v919
    %v921 = vsel %vm167, %v858, 0.0
    %v922 = vadd.f32 %v920, %v921
    %v923 = vsel %vm167, %v862, 0.0
    %v924 = vadd.f32 %v922, %v923
    %v925 = vsel %vm167, %v866, 0.0
    %v926 = vadd.f32 %v924, %v925
    %v927 = vsel %vm167, %v870, 0.0
    %v928 = vadd.f32 %v926, %v927
    %v929 = vsel %vm167, %v874, 0.0
    %v930 = vadd.f32 %v928, %v929
    %v931 = vsel %vm167, %v851, 0.0
    %v932 = vsel %vm167, %v855, 0.0
    %v933 = vadd.f32 %v931, %v932
    %v934 = vsel %vm167, %v859, 0.0
    %v935 = vadd.f32 %v933, %v934
    %v936 = vsel %vm167, %v863, 0.0
    %v937 = vadd.f32 %v935, %v936
    %v938 = vsel %vm167, %v867, 0.0
    %v939 = vadd.f32 %v937, %v938
    %v940 = vsel %vm167, %v871, 0.0
    %v941 = vadd.f32 %v939, %v940
    %v942 = vsel %vm167, %v875, 0.0
    %v943 = vadd.f32 %v941, %v942
    %v944 = vsel %vm167, %v852, 0.0
    %v945 = vsel %vm167, %v856, 0.0
    %v946 = vadd.f32 %v944, %v945
    %v947 = vsel %vm167, %v860, 0.0
    %v948 = vadd.f32 %v946, %v947
    %v949 = vsel %vm167, %v864, 0.0
    %v950 = vadd.f32 %v948, %v949
    %v951 = vsel %vm167, %v868, 0.0
    %v952 = vadd.f32 %v950, %v951
    %v953 = vsel %vm167, %v872, 0.0
    %v954 = vadd.f32 %v952, %v953
    %v955 = vsel %vm167, %v876, 0.0
    %v956 = vadd.f32 %v954, %v955
    %v957 = vsel %vm167, %v877, 0.0
    %v958 = vsel %vm167, %v881, 0.0
    %v959 = vadd.f32 %v957, %v958
    %v960 = vsel %vm167, %v885, 0.0
    %v961 = vadd.f32 %v959, %v960
    %v962 = vsel %vm167, %v889, 0.0
    %v963 = vadd.f32 %v961, %v962
    %v964 = vsel %vm167, %v893, 0.0
    %v965 = vadd.f32 %v963, %v964
    %v966 = vsel %vm167, %v897, 0.0
    %v967 = vadd.f32 %v965, %v966
    %v968 = vsel %vm167, %v901, 0.0
    %v969 = vadd.f32 %v967, %v968
    %v970 = vsel %vm167, %v878, 0.0
    %v971 = vsel %vm167, %v882, 0.0
    %v972 = vadd.f32 %v970, %v971
    %v973 = vsel %vm167, %v886, 0.0
    %v974 = vadd.f32 %v972, %v973
    %v975 = vsel %vm167, %v890, 0.0
    %v976 = vadd.f32 %v974, %v975
    %v977 = vsel %vm167, %v894, 0.0
    %v978 = vadd.f32 %v976, %v977
    %v979 = vsel %vm167, %v898, 0.0
    %v980 = vadd.f32 %v978, %v979
    %v981 = vsel %vm167, %v902, 0.0
    %v982 = vadd.f32 %v980, %v981
    %v983 = vsel %vm167, %v879, 0.0
    %v984 = vsel %vm167, %v883, 0.0
    %v985 = vadd.f32 %v983, %v984
    %v986 = vsel %vm167, %v887, 0.0
    %v987 = vadd.f32 %v985, %v986
    %v988 = vsel %vm167, %v891, 0.0
    %v989 = vadd.f32 %v987, %v988
    %v990 = vsel %vm167, %v895, 0.0
    %v991 = vadd.f32 %v989, %v990
    %v992 = vsel %vm167, %v899, 0.0
    %v993 = vadd.f32 %v991, %v992
    %v994 = vsel %vm167, %v903, 0.0
    %v995 = vadd.f32 %v993, %v994
    %v996 = vsel %vm167, %v880, 0.0
    %v997 = vsel %vm167, %v884, 0.0
    %v998 = vadd.f32 %v996, %v997
    %v999 = vsel %vm167, %v888, 0.0
    %v1000 = vadd.f32 %v998, %v999
    %v1001 = vsel %vm167, %v892, 0.0
    %v1002 = vadd.f32 %v1000, %v1001
    %v1003 = vsel %vm167, %v896, 0.0
    %v1004 = vadd.f32 %v1002, %v1003
    %v1005 = vsel %vm167, %v900, 0.0
    %v1006 = vadd.f32 %v1004, %v1005
    %v1007 = vsel %vm167, %v904, 0.0
    %v1008 = vadd.f32 %v1006, %v1007
    %v1009 = vld [vmem:[%s4] sm:$0xf]
    %v1011 = vlaneseq
    %v1012 = vshrl.u32 %v1011, 7
    %v1013 = vsub.s32 0, %v1012
    %v1014 = vrot.slane %v1009, %v1013
    %v1015 = vlaneseq
    %v1016 = vshrl.u32 %v1015, 7
    %v1017 = vsub.s32 1, %v1016
    %v1018 = vrot.slane %v1009, %v1017
    %v1019 = vlaneseq
    %v1020 = vshrl.u32 %v1019, 7
    %v1021 = vsub.s32 2, %v1020
    %v1022 = vrot.slane %v1009, %v1021
    %v1023 = vlaneseq
    %v1024 = vshrl.u32 %v1023, 7
    %v1025 = vsub.s32 3, %v1024
    %v1026 = vrot.slane %v1009, %v1025
    %v1031 = vadd.f32 %v917, %v1014
    %v1032 = vadd.f32 %v930, %v1018
    %v1033 = vadd.f32 %v943, %v1022
    %v1034 = vadd.f32 %v956, %v1026
    %v1035 = vadd.f32 %v969, %v1014
    %v1036 = vadd.f32 %v982, %v1018
    %v1037 = vadd.f32 %v995, %v1022
    %v1038 = vadd.f32 %v1008, %v1026
    %v1039 = vld [vmem:[%s5] sm:$0xff]
    %v1040 = vld [vmem:[%s5 + $0x8] sm:$0xff]
    %v1041 = vld [vmem:[%s5 + $0x10] sm:$0xff]
    %v1042 = vld [vmem:[%s5 + $0x18] sm:$0xff]
    %v1043 = vld [vmem:[%s5 + $0x20] sm:$0xff]
    %v1044 = vld [vmem:[%s5 + $0x28] sm:$0xff]
    %v1045 = vld [vmem:[%s5 + $0x30] sm:$0xff]
    %v1046 = vld [vmem:[%s5 + $0x38] sm:$0xff]
    %v1047 = vld [vmem:[%s5 + $0x40] sm:$0xff]
    %v1048 = vld [vmem:[%s5 + $0x48] sm:$0xff]
    %v1049 = vld [vmem:[%s5 + $0x50] sm:$0xff]
    %v1050 = vld [vmem:[%s5 + $0x58] sm:$0xff]
    %v1051 = vld [vmem:[%s5 + $0x60] sm:$0xff]
    %v1052 = vld [vmem:[%s5 + $0x68] sm:$0xff]
    %v1053 = vld [vmem:[%s5 + $0x70] sm:$0xff]
    %v1054 = vld [vmem:[%s5 + $0x78] sm:$0xff]
    %v1055 = vld [vmem:[%s5 + $0x80] sm:$0xff]
    %v1056 = vld [vmem:[%s5 + $0x88] sm:$0xff]
    %v1057 = vld [vmem:[%s5 + $0x90] sm:$0xff]
    %v1058 = vld [vmem:[%s5 + $0x98] sm:$0xff]
    %v1059 = vld [vmem:[%s5 + $0xa0] sm:$0xff]
    %v1060 = vld [vmem:[%s5 + $0xa8] sm:$0xff]
    %v1061 = vld [vmem:[%s5 + $0xb0] sm:$0xff]
    %v1062 = vld [vmem:[%s5 + $0xb8] sm:$0xff]
    %v1063 = vld [vmem:[%s5 + $0xc0] sm:$0xff]
    %v1064 = vld [vmem:[%s5 + $0xc8] sm:$0xff]
    %v1065 = vld [vmem:[%s5 + $0xd0] sm:$0xff]
    %v1066 = vld [vmem:[%s5 + $0xd8] sm:$0xff]
    %v1067 = vld [vmem:[%s5 + $0xe0] sm:$0xff]
    %v1068 = vld [vmem:[%s5 + $0xe8] sm:$0xff]
    %v1069 = vld [vmem:[%s5 + $0xf0] sm:$0xff]
    %v1070 = vld [vmem:[%s5 + $0xf8] sm:$0xff]
    %v1071 = vld [vmem:[%s5 + $0x100] sm:$0xff]
    %v1072 = vld [vmem:[%s5 + $0x108] sm:$0xff]
    %v1073 = vld [vmem:[%s5 + $0x110] sm:$0xff]
    %v1074 = vld [vmem:[%s5 + $0x118] sm:$0xff]
    %v1075 = vld [vmem:[%s5 + $0x120] sm:$0xff]
    %v1076 = vld [vmem:[%s5 + $0x128] sm:$0xff]
    %v1077 = vld [vmem:[%s5 + $0x130] sm:$0xff]
    %v1078 = vld [vmem:[%s5 + $0x138] sm:$0xff]
    %v1079 = vld [vmem:[%s5 + $0x140] sm:$0xff]
    %v1080 = vld [vmem:[%s5 + $0x148] sm:$0xff]
    %v1081 = vld [vmem:[%s5 + $0x150] sm:$0xff]
    %v1082 = vld [vmem:[%s5 + $0x158] sm:$0xff]
    %v1083 = vld [vmem:[%s5 + $0x160] sm:$0xff]
    %v1084 = vld [vmem:[%s5 + $0x168] sm:$0xff]
    %v1085 = vld [vmem:[%s5 + $0x170] sm:$0xff]
    %v1086 = vld [vmem:[%s5 + $0x178] sm:$0xff]
    %v1087 = vld [vmem:[%s5 + $0x180] sm:$0xff]
    %v1088 = vld [vmem:[%s5 + $0x188] sm:$0xff]
    %v1089 = vld [vmem:[%s5 + $0x190] sm:$0xff]
    %v1090 = vld [vmem:[%s5 + $0x198] sm:$0xff]
    %v1091 = vld [vmem:[%s5 + $0x1a0] sm:$0xff]
    %v1092 = vld [vmem:[%s5 + $0x1a8] sm:$0xff]
    %v1093 = vld [vmem:[%s5 + $0x1b0] sm:$0xff]
    %v1094 = vld [vmem:[%s5 + $0x1b8] sm:$0xff]
    %v1095 = vld [vmem:[%s5 + $0x1c0] sm:$0xff]
    %v1096 = vld [vmem:[%s5 + $0x1c8] sm:$0xff]
    %v1097 = vld [vmem:[%s5 + $0x1d0] sm:$0xff]
    %v1098 = vld [vmem:[%s5 + $0x1d8] sm:$0xff]
    %v1099 = vld [vmem:[%s5 + $0x1e0] sm:$0xff]
    %v1100 = vld [vmem:[%s5 + $0x1e8] sm:$0xff]
    %v1101 = vld [vmem:[%s5 + $0x1f0] sm:$0xff]
    %v1102 = vld [vmem:[%s5 + $0x1f8] sm:$0xff]
    %v1103 = vld [vmem:[%s6] sm:$0x1]
    %v1105 = vlaneseq
    %v1106 = vshrl.u32 %v1105, 7
    %v1107 = vsub.s32 0, %v1106
    %v1108 = vrot.slane %v1103, %v1107
    %v1166 = vrot.slane %v586, 7
    %vm1167 = vcmask 1041409
    %v1168 = vsel %vm1167, %v1166, %v582
    %v1169 = vrot.slane %v590, 6
    %vm1170 = vcmask 1042434
    %v1171 = vsel %vm1170, %v1169, %v1168
    %v1172 = vrot.slane %v594, 5
    %vm1173 = vcmask 1043459
    %v1174 = vsel %vm1173, %v1172, %v1171
    %v1175 = vrot.slane %v598, 4
    %vm1176 = vcmask 1044484
    %v1177 = vsel %vm1176, %v1175, %v1174
    %v1178 = vrot.slane %v602, 3
    %vm1179 = vcmask 1045509
    %v1180 = vsel %vm1179, %v1178, %v1177
    %v1181 = vrot.slane %v606, 2
    %vm1182 = vcmask 1046534
    %v1183 = vsel %vm1182, %v1181, %v1180
    %v1184 = vrot.slane %v610, 1
    %vm1185 = vcmask 1047559
    %v1186 = vsel %vm1185, %v1184, %v1183
    %v1187 = vrot.slane %v587, 7
    %v1188 = vsel %vm1167, %v1187, %v583
    %v1189 = vrot.slane %v591, 6
    %v1190 = vsel %vm1170, %v1189, %v1188
    %v1191 = vrot.slane %v595, 5
    %v1192 = vsel %vm1173, %v1191, %v1190
    %v1193 = vrot.slane %v599, 4
    %v1194 = vsel %vm1176, %v1193, %v1192
    %v1195 = vrot.slane %v603, 3
    %v1196 = vsel %vm1179, %v1195, %v1194
    %v1197 = vrot.slane %v607, 2
    %v1198 = vsel %vm1182, %v1197, %v1196
    %v1199 = vrot.slane %v611, 1
    %v1200 = vsel %vm1185, %v1199, %v1198
    %v1201 = vrot.slane %v588, 7
    %v1202 = vsel %vm1167, %v1201, %v584
    %v1203 = vrot.slane %v592, 6
    %v1204 = vsel %vm1170, %v1203, %v1202
    %v1205 = vrot.slane %v596, 5
    %v1206 = vsel %vm1173, %v1205, %v1204
    %v1207 = vrot.slane %v600, 4
    %v1208 = vsel %vm1176, %v1207, %v1206
    %v1209 = vrot.slane %v604, 3
    %v1210 = vsel %vm1179, %v1209, %v1208
    %v1211 = vrot.slane %v608, 2
    %v1212 = vsel %vm1182, %v1211, %v1210
    %v1213 = vrot.slane %v612, 1
    %v1214 = vsel %vm1185, %v1213, %v1212
    %v1215 = vrot.slane %v589, 7
    %v1216 = vsel %vm1167, %v1215, %v585
    %v1217 = vrot.slane %v593, 6
    %v1218 = vsel %vm1170, %v1217, %v1216
    %v1219 = vrot.slane %v597, 5
    %v1220 = vsel %vm1173, %v1219, %v1218
    %v1221 = vrot.slane %v601, 4
    %v1222 = vsel %vm1176, %v1221, %v1220
    %v1223 = vrot.slane %v605, 3
    %v1224 = vsel %vm1179, %v1223, %v1222
    %v1225 = vrot.slane %v609, 2
    %v1226 = vsel %vm1182, %v1225, %v1224
    %v1227 = vrot.slane %v613, 1
    %v1228 = vsel %vm1185, %v1227, %v1226
    %v1229 = vrot.slane %v618, 7
    %v1230 = vsel %vm1167, %v1229, %v614
    %v1231 = vrot.slane %v622, 6
    %v1232 = vsel %vm1170, %v1231, %v1230
    %v1233 = vrot.slane %v626, 5
    %v1234 = vsel %vm1173, %v1233, %v1232
    %v1235 = vrot.slane %v630, 4
    %v1236 = vsel %vm1176, %v1235, %v1234
    %v1237 = vrot.slane %v634, 3
    %v1238 = vsel %vm1179, %v1237, %v1236
    %v1239 = vrot.slane %v619, 7
    %v1240 = vsel %vm1167, %v1239, %v615
    %v1241 = vrot.slane %v623, 6
    %v1242 = vsel %vm1170, %v1241, %v1240
    %v1243 = vrot.slane %v627, 5
    %v1244 = vsel %vm1173, %v1243, %v1242
    %v1245 = vrot.slane %v631, 4
    %v1246 = vsel %vm1176, %v1245, %v1244
    %v1247 = vrot.slane %v635, 3
    %v1248 = vsel %vm1179, %v1247, %v1246
    %v1249 = vrot.slane %v620, 7
    %v1250 = vsel %vm1167, %v1249, %v616
    %v1251 = vrot.slane %v624, 6
    %v1252 = vsel %vm1170, %v1251, %v1250
    %v1253 = vrot.slane %v628, 5
    %v1254 = vsel %vm1173, %v1253, %v1252
    %v1255 = vrot.slane %v632, 4
    %v1256 = vsel %vm1176, %v1255, %v1254
    %v1257 = vrot.slane %v636, 3
    %v1258 = vsel %vm1179, %v1257, %v1256
    %v1259 = vrot.slane %v621, 7
    %v1260 = vsel %vm1167, %v1259, %v617
    %v1261 = vrot.slane %v625, 6
    %v1262 = vsel %vm1170, %v1261, %v1260
    %v1263 = vrot.slane %v629, 5
    %v1264 = vsel %vm1173, %v1263, %v1262
    %v1265 = vrot.slane %v633, 4
    %v1266 = vsel %vm1176, %v1265, %v1264
    %v1267 = vrot.slane %v637, 3
    %v1268 = vsel %vm1179, %v1267, %v1266
    %1277 = vmatprep.subr.mxu0 0.0
    %1278 = vmatpush1.msra.mxu0 %v1054
    %1279 = vmatprep.subr.mxu0 0.0
    %1280 = vmatpush1.msra.mxu0 %v1053
    %1281 = vmatprep.subr.mxu0 0.0
    %1282 = vmatpush1.msra.mxu0 %v1052
    %1283 = vmatprep.subr.mxu0 0.0
    %1284 = vmatpush1.msra.mxu0 %v1051
    %1285 = vmatprep.subr.mxu0 0.0
    %1286 = vmatpush1.msra.mxu0 %v1050
    %1287 = vmatprep.subr.mxu0 0.0
    %1288 = vmatpush1.msra.mxu0 %v1049
    %1289 = vmatprep.subr.mxu0 0.0
    %1290 = vmatpush1.msra.mxu0 %v1048
    %1291 = vmatprep.subr.mxu0 0.0
    %1292 = vmatpush1.msra.mxu0 %v1047
    %1293 = vmatprep.subr.mxu0 0.0
    %1294 = vmatpush1.msra.mxu0 %v1046
    %1295 = vmatprep.subr.mxu0 0.0
    %1296 = vmatpush1.msra.mxu0 %v1045
    %1297 = vmatprep.subr.mxu0 0.0
    %1298 = vmatpush1.msra.mxu0 %v1044
    %1299 = vmatprep.subr.mxu0 0.0
    %1300 = vmatpush1.msra.mxu0 %v1043
    %1301 = vmatprep.subr.mxu0 0.0
    %1302 = vmatpush1.msra.mxu0 %v1042
    %1303 = vmatprep.subr.mxu0 0.0
    %1304 = vmatpush1.msra.mxu0 %v1041
    %1305 = vmatprep.subr.mxu0 0.0
    %1306 = vmatpush1.msra.mxu0 %v1040
    %1307 = vmatprep.subr.mxu0 0.0
    %1308 = vmatpush1.msra.mxu0 %v1039
    %1309 = vmatprep.subr.mxu0 0.0
    %1310 = vmatpush2.msra.mxu0 %v1070
    %1311 = vmatprep.subr.mxu0 0.0
    %1312 = vmatpush2.msra.mxu0 %v1069
    %1313 = vmatprep.subr.mxu0 0.0
    %1314 = vmatpush2.msra.mxu0 %v1068
    %1315 = vmatprep.subr.mxu0 0.0
    %1316 = vmatpush2.msra.mxu0 %v1067
    %1317 = vmatprep.subr.mxu0 0.0
    %1318 = vmatpush2.msra.mxu0 %v1066
    %1319 = vmatprep.subr.mxu0 0.0
    %1320 = vmatpush2.msra.mxu0 %v1065
    %1321 = vmatprep.subr.mxu0 0.0
    %1322 = vmatpush2.msra.mxu0 %v1064
    %1323 = vmatprep.subr.mxu0 0.0
    %1324 = vmatpush2.msra.mxu0 %v1063
    %1325 = vmatprep.subr.mxu0 0.0
    %1326 = vmatpush2.msra.mxu0 %v1062
    %1327 = vmatprep.subr.mxu0 0.0
    %1328 = vmatpush2.msra.mxu0 %v1061
    %1329 = vmatprep.subr.mxu0 0.0
    %1330 = vmatpush2.msra.mxu0 %v1060
    %1331 = vmatprep.subr.mxu0 0.0
    %1332 = vmatpush2.msra.mxu0 %v1059
    %1333 = vmatprep.subr.mxu0 0.0
    %1334 = vmatpush2.msra.mxu0 %v1058
    %1335 = vmatprep.subr.mxu0 0.0
    %1336 = vmatpush2.msra.mxu0 %v1057
    %1337 = vmatprep.subr.mxu0 0.0
    %1338 = vmatpush2.msra.mxu0 %v1056
    %1339 = vmatprep.subr.mxu0 0.0
    %1340 = vmatpush2.msra.mxu0 %v1055
    %1341 = vmatprep.mubr.f32.mxu0 %v1200
    %1342 = vmatmul.mubr.f32.gmra.mxu0 %v1186
    %v1343 = vpop.f32.mrf.mxu0
    %v1344 = vadd.f32 %v1108, %v1343
    %v1345 = vpop.f32.mrf.mxu0
    %1346 = vmatprep.mubr.f32.mxu0 %v1248
    %1347 = vmatmul.mubr.f32.gmra.mxu0 %v1238
    %v1348 = vpop.f32.mrf.mxu0
    %v1349 = vadd.f32 %v1108, %v1348
    %v1350 = vpop.f32.mrf.mxu0
    %1351 = vdwg.mxu0
    %1352 = vmatprep.subr.mxu0 0.0
    %1353 = vmatpush1.msra.mxu0 %v1086
    %1354 = vmatprep.subr.mxu0 0.0
    %1355 = vmatpush1.msra.mxu0 %v1085
    %1356 = vmatprep.subr.mxu0 0.0
    %1357 = vmatpush1.msra.mxu0 %v1084
    %1358 = vmatprep.subr.mxu0 0.0
    %1359 = vmatpush1.msra.mxu0 %v1083
    %1360 = vmatprep.subr.mxu0 0.0
    %1361 = vmatpush1.msra.mxu0 %v1082
    %1362 = vmatprep.subr.mxu0 0.0
    %1363 = vmatpush1.msra.mxu0 %v1081
    %1364 = vmatprep.subr.mxu0 0.0
    %1365 = vmatpush1.msra.mxu0 %v1080
    %1366 = vmatprep.subr.mxu0 0.0
    %1367 = vmatpush1.msra.mxu0 %v1079
    %1368 = vmatprep.subr.mxu0 0.0
    %1369 = vmatpush1.msra.mxu0 %v1078
    %1370 = vmatprep.subr.mxu0 0.0
    %1371 = vmatpush1.msra.mxu0 %v1077
    %1372 = vmatprep.subr.mxu0 0.0
    %1373 = vmatpush1.msra.mxu0 %v1076
    %1374 = vmatprep.subr.mxu0 0.0
    %1375 = vmatpush1.msra.mxu0 %v1075
    %1376 = vmatprep.subr.mxu0 0.0
    %1377 = vmatpush1.msra.mxu0 %v1074
    %1378 = vmatprep.subr.mxu0 0.0
    %1379 = vmatpush1.msra.mxu0 %v1073
    %1380 = vmatprep.subr.mxu0 0.0
    %1381 = vmatpush1.msra.mxu0 %v1072
    %1382 = vmatprep.subr.mxu0 0.0
    %1383 = vmatpush1.msra.mxu0 %v1071
    %1384 = vmatprep.subr.mxu0 0.0
    %1385 = vmatpush2.msra.mxu0 %v1102
    %1386 = vmatprep.subr.mxu0 0.0
    %1387 = vmatpush2.msra.mxu0 %v1101
    %1388 = vmatprep.subr.mxu0 0.0
    %1389 = vmatpush2.msra.mxu0 %v1100
    %1390 = vmatprep.subr.mxu0 0.0
    %1391 = vmatpush2.msra.mxu0 %v1099
    %1392 = vmatprep.subr.mxu0 0.0
    %1393 = vmatpush2.msra.mxu0 %v1098
    %1394 = vmatprep.subr.mxu0 0.0
    %1395 = vmatpush2.msra.mxu0 %v1097
    %1396 = vmatprep.subr.mxu0 0.0
    %1397 = vmatpush2.msra.mxu0 %v1096
    %1398 = vmatprep.subr.mxu0 0.0
    %1399 = vmatpush2.msra.mxu0 %v1095
    %1400 = vmatprep.subr.mxu0 0.0
    %1401 = vmatpush2.msra.mxu0 %v1094
    %1402 = vmatprep.subr.mxu0 0.0
    %1403 = vmatpush2.msra.mxu0 %v1093
    %1404 = vmatprep.subr.mxu0 0.0
    %1405 = vmatpush2.msra.mxu0 %v1092
    %1406 = vmatprep.subr.mxu0 0.0
    %1407 = vmatpush2.msra.mxu0 %v1091
    %1408 = vmatprep.subr.mxu0 0.0
    %1409 = vmatpush2.msra.mxu0 %v1090
    %1410 = vmatprep.subr.mxu0 0.0
    %1411 = vmatpush2.msra.mxu0 %v1089
    %1412 = vmatprep.subr.mxu0 0.0
    %1413 = vmatpush2.msra.mxu0 %v1088
    %1414 = vmatprep.subr.mxu0 0.0
    %1415 = vmatpush2.msra.mxu0 %v1087
    %1416 = vmatprep.mubr.f32.mxu0 %v1228
    %1417 = vmatmul.mubr.f32.gmra.mxu0 %v1214
    %v1418 = vpop.f32.mrf.mxu0
    %v1419 = vadd.f32 %v1344, %v1418
    %v1420 = vpop.f32.mrf.mxu0
    %1421 = vmatprep.mubr.f32.mxu0 %v1268
    %1422 = vmatmul.mubr.f32.gmra.mxu0 %v1258
    %v1423 = vpop.f32.mrf.mxu0
    %v1424 = vadd.f32 %v1349, %v1423
    %v1425 = vpop.f32.mrf.mxu0
    %1426 = vdwg.mxu0
    %v1427 = vadd.f32 %v1419, 3.0
    %v1428 = vadd.f32 %v1424, 3.0
    %v1429 = vmax.f32 %v1427, 0.0
    %v1430 = vmax.f32 %v1428, 0.0
    %v1431 = vmin.f32 %v1429, 6.0
    %v1432 = vmin.f32 %v1430, 6.0
    %v1433 = vrcp.pop 6.0
    %v1434 = vmul.f32 %v1431, %v1433
    %v1435 = vmul.f32 %v1432, %v1433
    %v1436 = vmul.f32 %v1419, %v1434
    %v1437 = vmul.f32 %v1424, %v1435
    %v1446 = vcombine.low %v1031, %v1032
    %v1447 = vcombine.high %v1031, %v1032
    %v1448 = vcombine.low %v1033, %v1034
    %v1449 = vcombine.high %v1033, %v1034
    %v1451 = vunpack.c.l.s4 1966171168
    %v1452 = vunpack.c.0.s8 %v1451
    %v1453 = vlaneseq
    %v1454 = vshrl.u32 %v1453, 7
    %v1455 = vsub.s32 %v1452, %v1454
    %v1456 = vrot.slane %v1446, %v1455
    %v1458 = vunpack.c.l.s4 1966171168
    %v1459 = vunpack.c.0.s8 %v1458
    %v1460 = vlaneseq
    %v1461 = vshrl.u32 %v1460, 7
    %v1462 = vsub.s32 %v1459, %v1461
    %v1463 = vrot.slane %v1447, %v1462
    %v1465 = vunpack.c.l.s4 1966171168
    %v1466 = vunpack.c.0.s8 %v1465
    %v1467 = vlaneseq
    %v1468 = vshrl.u32 %v1467, 7
    %v1469 = vsub.s32 %v1466, %v1468
    %v1470 = vrot.slane %v1448, %v1469
    %v1472 = vunpack.c.l.s4 1966171168
    %v1473 = vunpack.c.0.s8 %v1472
    %v1474 = vlaneseq
    %v1475 = vshrl.u32 %v1474, 7
    %v1476 = vsub.s32 %v1473, %v1475
    %v1477 = vrot.slane %v1449, %v1476
    %v1478 = vcombine.low %v1456, %v1470
    %v1479 = vcombine.high %v1456, %v1470
    %v1480 = vcombine.low %v1463, %v1477
    %v1481 = vcombine.high %v1463, %v1477
    %v1483 = vunpack.c.l.s4 1966171168
    %v1484 = vunpack.c.0.s8 %v1483
    %v1485 = vlaneseq
    %v1486 = vshrl.u32 %v1485, 7
    %v1487 = vsub.s32 %v1484, %v1486
    %v1488 = vrot.slane %v1478, %v1487
    %v1490 = vunpack.c.l.s4 1966171168
    %v1491 = vunpack.c.0.s8 %v1490
    %v1492 = vlaneseq
    %v1493 = vshrl.u32 %v1492, 7
    %v1494 = vsub.s32 %v1491, %v1493
    %v1495 = vrot.slane %v1480, %v1494
    %v1497 = vunpack.c.l.s4 1966171168
    %v1498 = vunpack.c.0.s8 %v1497
    %v1499 = vlaneseq
    %v1500 = vshrl.u32 %v1499, 7
    %v1501 = vsub.s32 %v1498, %v1500
    %v1502 = vrot.slane %v1479, %v1501
    %v1504 = vunpack.c.l.s4 1966171168
    %v1505 = vunpack.c.0.s8 %v1504
    %v1506 = vlaneseq
    %v1507 = vshrl.u32 %v1506, 7
    %v1508 = vsub.s32 %v1505, %v1507
    %v1509 = vrot.slane %v1481, %v1508
    %v1510 = vcombine.high %v1488, %v1488
    %v1511 = vcombine.high %v1495, %v1495
    %v1512 = vcombine.high %v1502, %v1502
    %v1513 = vcombine.low %v1035, %v1036
    %v1514 = vcombine.high %v1035, %v1036
    %v1515 = vcombine.low %v1037, %v1038
    %v1516 = vcombine.high %v1037, %v1038
    %v1518 = vunpack.c.l.s4 1966171168
    %v1519 = vunpack.c.0.s8 %v1518
    %v1520 = vlaneseq
    %v1521 = vshrl.u32 %v1520, 7
    %v1522 = vsub.s32 %v1519, %v1521
    %v1523 = vrot.slane %v1513, %v1522
    %v1525 = vunpack.c.l.s4 1966171168
    %v1526 = vunpack.c.0.s8 %v1525
    %v1527 = vlaneseq
    %v1528 = vshrl.u32 %v1527, 7
    %v1529 = vsub.s32 %v1526, %v1528
    %v1530 = vrot.slane %v1514, %v1529
    %v1532 = vunpack.c.l.s4 1966171168
    %v1533 = vunpack.c.0.s8 %v1532
    %v1534 = vlaneseq
    %v1535 = vshrl.u32 %v1534, 7
    %v1536 = vsub.s32 %v1533, %v1535
    %v1537 = vrot.slane %v1515, %v1536
    %v1539 = vunpack.c.l.s4 1966171168
    %v1540 = vunpack.c.0.s8 %v1539
    %v1541 = vlaneseq
    %v1542 = vshrl.u32 %v1541, 7
    %v1543 = vsub.s32 %v1540, %v1542
    %v1544 = vrot.slane %v1516, %v1543
    %v1545 = vcombine.low %v1523, %v1537
    %v1546 = vcombine.high %v1523, %v1537
    %v1547 = vcombine.low %v1530, %v1544
    %v1548 = vcombine.high %v1530, %v1544
    %v1550 = vunpack.c.l.s4 1966171168
    %v1551 = vunpack.c.0.s8 %v1550
    %v1552 = vlaneseq
    %v1553 = vshrl.u32 %v1552, 7
    %v1554 = vsub.s32 %v1551, %v1553
    %v1555 = vrot.slane %v1545, %v1554
    %v1557 = vunpack.c.l.s4 1966171168
    %v1558 = vunpack.c.0.s8 %v1557
    %v1559 = vlaneseq
    %v1560 = vshrl.u32 %v1559, 7
    %v1561 = vsub.s32 %v1558, %v1560
    %v1562 = vrot.slane %v1547, %v1561
    %v1564 = vunpack.c.l.s4 1966171168
    %v1565 = vunpack.c.0.s8 %v1564
    %v1566 = vlaneseq
    %v1567 = vshrl.u32 %v1566, 7
    %v1568 = vsub.s32 %v1565, %v1567
    %v1569 = vrot.slane %v1546, %v1568
    %v1571 = vunpack.c.l.s4 1966171168
    %v1572 = vunpack.c.0.s8 %v1571
    %v1573 = vlaneseq
    %v1574 = vshrl.u32 %v1573, 7
    %v1575 = vsub.s32 %v1572, %v1574
    %v1576 = vrot.slane %v1548, %v1575
    %v1577 = vcombine.high %v1555, %v1555
    %v1578 = vcombine.high %v1562, %v1562
    %v1579 = vcombine.high %v1569, %v1569
    %v1580 = vcombine.low %v1488, %v1502
    %v1581 = vcombine.low %v1510, %v1512
    %v1582 = vcombine.low %v1495, %v1509
    %v1583 = vcombine.low %v1511, %v1555
    %v1585 = vunpack.c.l.s4 1966171168
    %v1586 = vunpack.c.0.s8 %v1585
    %v1587 = vlaneseq
    %v1588 = vshrl.u32 %v1587, 7
    %v1589 = vsub.s32 %v1586, %v1588
    %v1590 = vrot.slane %v1580, %v1589
    %v1592 = vunpack.c.l.s4 1966171168
    %v1593 = vunpack.c.0.s8 %v1592
    %v1594 = vlaneseq
    %v1595 = vshrl.u32 %v1594, 7
    %v1596 = vsub.s32 %v1593, %v1595
    %v1597 = vrot.slane %v1581, %v1596
    %v1599 = vunpack.c.l.s4 1966171168
    %v1600 = vunpack.c.0.s8 %v1599
    %v1601 = vlaneseq
    %v1602 = vshrl.u32 %v1601, 7
    %v1603 = vsub.s32 %v1600, %v1602
    %v1604 = vrot.slane %v1582, %v1603
    %v1606 = vunpack.c.l.s4 1966171168
    %v1607 = vunpack.c.0.s8 %v1606
    %v1608 = vlaneseq
    %v1609 = vshrl.u32 %v1608, 7
    %v1610 = vsub.s32 %v1607, %v1609
    %v1611 = vrot.slane %v1583, %v1610
    %v1612 = vcombine.low %v1590, %v1597
    %v1613 = vcombine.high %v1590, %v1597
    %v1614 = vcombine.low %v1604, %v1611
    %v1615 = vcombine.high %v1604, %v1611
    %v1617 = vunpack.c.l.s4 1966171168
    %v1618 = vunpack.c.0.s8 %v1617
    %v1619 = vlaneseq
    %v1620 = vshrl.u32 %v1619, 7
    %v1621 = vsub.s32 %v1618, %v1620
    %v1622 = vrot.slane %v1612, %v1621
    %v1624 = vunpack.c.l.s4 1966171168
    %v1625 = vunpack.c.0.s8 %v1624
    %v1626 = vlaneseq
    %v1627 = vshrl.u32 %v1626, 7
    %v1628 = vsub.s32 %v1625, %v1627
    %v1629 = vrot.slane %v1613, %v1628
    %v1631 = vunpack.c.l.s4 1966171168
    %v1632 = vunpack.c.0.s8 %v1631
    %v1633 = vlaneseq
    %v1634 = vshrl.u32 %v1633, 7
    %v1635 = vsub.s32 %v1632, %v1634
    %v1636 = vrot.slane %v1614, %v1635
    %v1638 = vunpack.c.l.s4 1966171168
    %v1639 = vunpack.c.0.s8 %v1638
    %v1640 = vlaneseq
    %v1641 = vshrl.u32 %v1640, 7
    %v1642 = vsub.s32 %v1639, %v1641
    %v1643 = vrot.slane %v1615, %v1642
    %v1644 = vcombine.low %v1622, %v1636
    %v1645 = vcombine.high %v1622, %v1636
    %v1646 = vcombine.low %v1629, %v1643
    %v1647 = vcombine.high %v1629, %v1643
    %v1648 = vcombine.low %v1569, %v1577
    %v1649 = vcombine.low %v1579, %v1562
    %v1650 = vcombine.low %v1576, %v1578
    %v1652 = vunpack.c.l.s4 1966171168
    %v1653 = vunpack.c.0.s8 %v1652
    %v1654 = vlaneseq
    %v1655 = vshrl.u32 %v1654, 7
    %v1656 = vsub.s32 %v1653, %v1655
    %v1657 = vrot.slane %v1648, %v1656
    %v1659 = vunpack.c.l.s4 1966171168
    %v1660 = vunpack.c.0.s8 %v1659
    %v1661 = vlaneseq
    %v1662 = vshrl.u32 %v1661, 7
    %v1663 = vsub.s32 %v1660, %v1662
    %v1664 = vrot.slane %v1649, %v1663
    %v1666 = vunpack.c.l.s4 1966171168
    %v1667 = vunpack.c.0.s8 %v1666
    %v1668 = vlaneseq
    %v1669 = vshrl.u32 %v1668, 7
    %v1670 = vsub.s32 %v1667, %v1669
    %v1671 = vrot.slane %v1650, %v1670
    %v1672 = vcombine.low %v1657, %v1664
    %v1673 = vcombine.high %v1657, %v1664
    %v1674 = vcombine.high %v1671, %v1671
    %v1676 = vunpack.c.l.s4 1966171168
    %v1677 = vunpack.c.0.s8 %v1676
    %v1678 = vlaneseq
    %v1679 = vshrl.u32 %v1678, 7
    %v1680 = vsub.s32 %v1677, %v1679
    %v1681 = vrot.slane %v1672, %v1680
    %v1683 = vunpack.c.l.s4 1966171168
    %v1684 = vunpack.c.0.s8 %v1683
    %v1685 = vlaneseq
    %v1686 = vshrl.u32 %v1685, 7
    %v1687 = vsub.s32 %v1684, %v1686
    %v1688 = vrot.slane %v1673, %v1687
    %v1690 = vunpack.c.l.s4 1966171168
    %v1691 = vunpack.c.0.s8 %v1690
    %v1692 = vlaneseq
    %v1693 = vshrl.u32 %v1692, 7
    %v1694 = vsub.s32 %v1691, %v1693
    %v1695 = vrot.slane %v1671, %v1694
    %v1697 = vunpack.c.l.s4 1966171168
    %v1698 = vunpack.c.0.s8 %v1697
    %v1699 = vlaneseq
    %v1700 = vshrl.u32 %v1699, 7
    %v1701 = vsub.s32 %v1698, %v1700
    %v1702 = vrot.slane %v1674, %v1701
    %v1703 = vcombine.low %v1681, %v1695
    %v1704 = vcombine.high %v1681, %v1695
    %v1705 = vcombine.low %v1688, %v1702
    %v1706 = vcombine.high %v1688, %v1702
    %1715 = vmatprep.subr.mxu0 0.0
    %1716 = vmatpush1.msra.mxu0 %v1054
    %1717 = vmatprep.subr.mxu0 0.0
    %1718 = vmatpush1.msra.mxu0 %v1053
    %1719 = vmatprep.subr.mxu0 0.0
    %1720 = vmatpush1.msra.mxu0 %v1052
    %1721 = vmatprep.subr.mxu0 0.0
    %1722 = vmatpush1.msra.mxu0 %v1051
    %1723 = vmatprep.subr.mxu0 0.0
    %1724 = vmatpush1.msra.mxu0 %v1050
    %1725 = vmatprep.subr.mxu0 0.0
    %1726 = vmatpush1.msra.mxu0 %v1049
    %1727 = vmatprep.subr.mxu0 0.0
    %1728 = vmatpush1.msra.mxu0 %v1048
    %1729 = vmatprep.subr.mxu0 0.0
    %1730 = vmatpush1.msra.mxu0 %v1047
    %1731 = vmatprep.subr.mxu0 0.0
    %1732 = vmatpush1.msra.mxu0 %v1046
    %1733 = vmatprep.subr.mxu0 0.0
    %1734 = vmatpush1.msra.mxu0 %v1045
    %1735 = vmatprep.subr.mxu0 0.0
    %1736 = vmatpush1.msra.mxu0 %v1044
    %1737 = vmatprep.subr.mxu0 0.0
    %1738 = vmatpush1.msra.mxu0 %v1043
    %1739 = vmatprep.subr.mxu0 0.0
    %1740 = vmatpush1.msra.mxu0 %v1042
    %1741 = vmatprep.subr.mxu0 0.0
    %1742 = vmatpush1.msra.mxu0 %v1041
    %1743 = vmatprep.subr.mxu0 0.0
    %1744 = vmatpush1.msra.mxu0 %v1040
    %1745 = vmatprep.subr.mxu0 0.0
    %1746 = vmatpush1.msra.mxu0 %v1039
    %1747 = vmatprep.subr.mxu0 0.0
    %1748 = vmatpush2.msra.mxu0 %v1070
    %1749 = vmatprep.subr.mxu0 0.0
    %1750 = vmatpush2.msra.mxu0 %v1069
    %1751 = vmatprep.subr.mxu0 0.0
    %1752 = vmatpush2.msra.mxu0 %v1068
    %1753 = vmatprep.subr.mxu0 0.0
    %1754 = vmatpush2.msra.mxu0 %v1067
    %1755 = vmatprep.subr.mxu0 0.0
    %1756 = vmatpush2.msra.mxu0 %v1066
    %1757 = vmatprep.subr.mxu0 0.0
    %1758 = vmatpush2.msra.mxu0 %v1065
    %1759 = vmatprep.subr.mxu0 0.0
    %1760 = vmatpush2.msra.mxu0 %v1064
    %1761 = vmatprep.subr.mxu0 0.0
    %1762 = vmatpush2.msra.mxu0 %v1063
    %1763 = vmatprep.subr.mxu0 0.0
    %1764 = vmatpush2.msra.mxu0 %v1062
    %1765 = vmatprep.subr.mxu0 0.0
    %1766 = vmatpush2.msra.mxu0 %v1061
    %1767 = vmatprep.subr.mxu0 0.0
    %1768 = vmatpush2.msra.mxu0 %v1060
    %1769 = vmatprep.subr.mxu0 0.0
    %1770 = vmatpush2.msra.mxu0 %v1059
    %1771 = vmatprep.subr.mxu0 0.0
    %1772 = vmatpush2.msra.mxu0 %v1058
    %1773 = vmatprep.subr.mxu0 0.0
    %1774 = vmatpush2.msra.mxu0 %v1057
    %1775 = vmatprep.subr.mxu0 0.0
    %1776 = vmatpush2.msra.mxu0 %v1056
    %1777 = vmatprep.subr.mxu0 0.0
    %1778 = vmatpush2.msra.mxu0 %v1055
    %1779 = vmatprep.mubr.f32.mxu0 %v1646
    %1780 = vmatmul.mubr.f32.gmra.mxu0 %v1644
    %v1781 = vpop.f32.mrf.mxu0
    %v1782 = vadd.f32 %v1108, %v1781
    %v1783 = vpop.f32.mrf.mxu0
    %1784 = vmatprep.mubr.f32.mxu0 %v1705
    %1785 = vmatmul.mubr.f32.gmra.mxu0 %v1703
    %v1786 = vpop.f32.mrf.mxu0
    %v1787 = vadd.f32 %v1108, %v1786
    %v1788 = vpop.f32.mrf.mxu0
    %1789 = vdwg.mxu0
    %1790 = vmatprep.subr.mxu0 0.0
    %1791 = vmatpush1.msra.mxu0 %v1086
    %1792 = vmatprep.subr.mxu0 0.0
    %1793 = vmatpush1.msra.mxu0 %v1085
    %1794 = vmatprep.subr.mxu0 0.0
    %1795 = vmatpush1.msra.mxu0 %v1084
    %1796 = vmatprep.subr.mxu0 0.0
    %1797 = vmatpush1.msra.mxu0 %v1083
    %1798 = vmatprep.subr.mxu0 0.0
    %1799 = vmatpush1.msra.mxu0 %v1082
    %1800 = vmatprep.subr.mxu0 0.0
    %1801 = vmatpush1.msra.mxu0 %v1081
    %1802 = vmatprep.subr.mxu0 0.0
    %1803 = vmatpush1.msra.mxu0 %v1080
    %1804 = vmatprep.subr.mxu0 0.0
    %1805 = vmatpush1.msra.mxu0 %v1079
    %1806 = vmatprep.subr.mxu0 0.0
    %1807 = vmatpush1.msra.mxu0 %v1078
    %1808 = vmatprep.subr.mxu0 0.0
    %1809 = vmatpush1.msra.mxu0 %v1077
    %1810 = vmatprep.subr.mxu0 0.0
    %1811 = vmatpush1.msra.mxu0 %v1076
    %1812 = vmatprep.subr.mxu0 0.0
    %1813 = vmatpush1.msra.mxu0 %v1075
    %1814 = vmatprep.subr.mxu0 0.0
    %1815 = vmatpush1.msra.mxu0 %v1074
    %1816 = vmatprep.subr.mxu0 0.0
    %1817 = vmatpush1.msra.mxu0 %v1073
    %1818 = vmatprep.subr.mxu0 0.0
    %1819 = vmatpush1.msra.mxu0 %v1072
    %1820 = vmatprep.subr.mxu0 0.0
    %1821 = vmatpush1.msra.mxu0 %v1071
    %1822 = vmatprep.subr.mxu0 0.0
    %1823 = vmatpush2.msra.mxu0 %v1102
    %1824 = vmatprep.subr.mxu0 0.0
    %1825 = vmatpush2.msra.mxu0 %v1101
    %1826 = vmatprep.subr.mxu0 0.0
    %1827 = vmatpush2.msra.mxu0 %v1100
    %1828 = vmatprep.subr.mxu0 0.0
    %1829 = vmatpush2.msra.mxu0 %v1099
    %1830 = vmatprep.subr.mxu0 0.0
    %1831 = vmatpush2.msra.mxu0 %v1098
    %1832 = vmatprep.subr.mxu0 0.0
    %1833 = vmatpush2.msra.mxu0 %v1097
    %1834 = vmatprep.subr.mxu0 0.0
    %1835 = vmatpush2.msra.mxu0 %v1096
    %1836 = vmatprep.subr.mxu0 0.0
    %1837 = vmatpush2.msra.mxu0 %v1095
    %1838 = vmatprep.subr.mxu0 0.0
    %1839 = vmatpush2.msra.mxu0 %v1094
    %1840 = vmatprep.subr.mxu0 0.0
    %1841 = vmatpush2.msra.mxu0 %v1093
    %1842 = vmatprep.subr.mxu0 0.0
    %1843 = vmatpush2.msra.mxu0 %v1092
    %1844 = vmatprep.subr.mxu0 0.0
    %1845 = vmatpush2.msra.mxu0 %v1091
    %1846 = vmatprep.subr.mxu0 0.0
    %1847 = vmatpush2.msra.mxu0 %v1090
    %1848 = vmatprep.subr.mxu0 0.0
    %1849 = vmatpush2.msra.mxu0 %v1089
    %1850 = vmatprep.subr.mxu0 0.0
    %1851 = vmatpush2.msra.mxu0 %v1088
    %1852 = vmatprep.subr.mxu0 0.0
    %1853 = vmatpush2.msra.mxu0 %v1087
    %1854 = vmatprep.mubr.f32.mxu0 %v1647
    %1855 = vmatmul.mubr.f32.gmra.mxu0 %v1645
    %v1856 = vpop.f32.mrf.mxu0
    %v1857 = vadd.f32 %v1782, %v1856
    %v1858 = vpop.f32.mrf.mxu0
    %1859 = vmatprep.mubr.f32.mxu0 %v1706
    %1860 = vmatmul.mubr.f32.gmra.mxu0 %v1704
    %v1861 = vpop.f32.mrf.mxu0
    %v1862 = vadd.f32 %v1787, %v1861
    %v1863 = vpop.f32.mrf.mxu0
    %1864 = vdwg.mxu0
    %v1865 = vadd.f32 %v1857, 3.0
    %v1866 = vadd.f32 %v1862, 3.0
    %v1867 = vmax.f32 %v1865, 0.0
    %v1868 = vmax.f32 %v1866, 0.0
    %v1869 = vmin.f32 %v1867, 6.0
    %v1870 = vmin.f32 %v1868, 6.0
    %v1871 = vmul.f32 %v1869, %v1433
    %v1872 = vmul.f32 %v1870, %v1433
    %v1873 = vmul.f32 %v1857, %v1871
    %v1874 = vmul.f32 %v1862, %v1872
    %v1875 = vld [vmem:[%s7] sm:$0xff]
    %v1876 = vld [vmem:[%s7 + $0x8] sm:$0xff]
    %v1877 = vld [vmem:[%s7 + $0x10] sm:$0xff]
    %v1878 = vld [vmem:[%s7 + $0x18] sm:$0xff]
    %v1879 = vld [vmem:[%s7 + $0x20] sm:$0xff]
    %v1880 = vld [vmem:[%s7 + $0x28] sm:$0xff]
    %v1881 = vld [vmem:[%s7 + $0x30] sm:$0xff]
    %v1882 = vld [vmem:[%s7 + $0x38] sm:$0xff]
    %v1883 = vld [vmem:[%s8] sm:$0xf]
    %v1885 = vlaneseq
    %v1886 = vshrl.u32 %v1885, 7
    %v1887 = vsub.s32 0, %v1886
    %v1888 = vrot.slane %v1883, %v1887
    %v1889 = vlaneseq
    %v1890 = vshrl.u32 %v1889, 7
    %v1891 = vsub.s32 1, %v1890
    %v1892 = vrot.slane %v1883, %v1891
    %v1893 = vlaneseq
    %v1894 = vshrl.u32 %v1893, 7
    %v1895 = vsub.s32 2, %v1894
    %v1896 = vrot.slane %v1883, %v1895
    %v1897 = vlaneseq
    %v1898 = vshrl.u32 %v1897, 7
    %v1899 = vsub.s32 3, %v1898
    %v1900 = vrot.slane %v1883, %v1899
    %vm1905 = vcmask 130048
    %v1907 = vsel %vm1905, %v1436, 0
    %v1910 = vsel %vm1905, %v1437, 0
    %1912 = vmatprep.subr.mxu0 0.0
    %1913 = vmatpush1.msra.mxu0 0.0
    %1914 = vmatprep.subr.mxu0 0.0
    %1915 = vmatpush1.msra.mxu0 0.0
    %1916 = vmatprep.subr.mxu0 0.0
    %1917 = vmatpush1.msra.mxu0 0.0
    %1918 = vmatprep.subr.mxu0 0.0
    %1919 = vmatpush1.msra.mxu0 0.0
    %1920 = vmatprep.subr.mxu0 0.0
    %1921 = vmatpush1.msra.mxu0 0.0
    %1922 = vmatprep.subr.mxu0 0.0
    %1923 = vmatpush1.msra.mxu0 0.0
    %1924 = vmatprep.subr.mxu0 0.0
    %1925 = vmatpush1.msra.mxu0 0.0
    %1926 = vmatprep.subr.mxu0 0.0
    %1927 = vmatpush1.msra.mxu0 0.0
    %1928 = vmatprep.subr.mxu0 0.0
    %1929 = vmatpush1.msra.mxu0 0.0
    %1930 = vmatprep.subr.mxu0 0.0
    %1931 = vmatpush1.msra.mxu0 0.0
    %1932 = vmatprep.subr.mxu0 0.0
    %1933 = vmatpush1.msra.mxu0 0.0
    %1934 = vmatprep.subr.mxu0 0.0
    %1935 = vmatpush1.msra.mxu0 0.0
    %1936 = vmatprep.subr.mxu0 0.0
    %1937 = vmatpush1.msra.mxu0 0.0
    %1938 = vmatprep.subr.mxu0 0.0
    %1939 = vmatpush1.msra.mxu0 0.0
    %1940 = vmatprep.subr.mxu0 %v1880
    %1941 = vmatpush1.msra.mxu0 %v1879
    %1942 = vmatprep.subr.mxu0 %v1876
    %1943 = vmatpush1.msra.mxu0 %v1875
    %1944 = vmatprep.subr.mxu0 0.0
    %1945 = vmatpush2.msra.mxu0 0.0
    %1946 = vmatprep.subr.mxu0 0.0
    %1947 = vmatpush2.msra.mxu0 0.0
    %1948 = vmatprep.subr.mxu0 0.0
    %1949 = vmatpush2.msra.mxu0 0.0
    %1950 = vmatprep.subr.mxu0 0.0
    %1951 = vmatpush2.msra.mxu0 0.0
    %1952 = vmatprep.subr.mxu0 0.0
    %1953 = vmatpush2.msra.mxu0 0.0
    %1954 = vmatprep.subr.mxu0 0.0
    %1955 = vmatpush2.msra.mxu0 0.0
    %1956 = vmatprep.subr.mxu0 0.0
    %1957 = vmatpush2.msra.mxu0 0.0
    %1958 = vmatprep.subr.mxu0 0.0
    %1959 = vmatpush2.msra.mxu0 0.0
    %1960 = vmatprep.subr.mxu0 0.0
    %1961 = vmatpush2.msra.mxu0 0.0
    %1962 = vmatprep.subr.mxu0 0.0
    %1963 = vmatpush2.msra.mxu0 0.0
    %1964 = vmatprep.subr.mxu0 0.0
    %1965 = vmatpush2.msra.mxu0 0.0
    %1966 = vmatprep.subr.mxu0 0.0
    %1967 = vmatpush2.msra.mxu0 0.0
    %1968 = vmatprep.subr.mxu0 0.0
    %1969 = vmatpush2.msra.mxu0 0.0
    %1970 = vmatprep.subr.mxu0 0.0
    %1971 = vmatpush2.msra.mxu0 0.0
    %1972 = vmatprep.subr.mxu0 0.0
    %1973 = vmatpush2.msra.mxu0 0.0
    %1974 = vmatprep.subr.mxu0 0.0
    %1975 = vmatpush2.msra.mxu0 0.0
    %1976 = vmatprep.mubr.f32.mxu0 0.0
    %1977 = vmatmul.mubr.f32.gmra.mxu0 %v1907
    %v1978 = vpop.f32.mrf.mxu0
    %v1979 = vadd.f32 %v1888, %v1978
    %v1980 = vpop.f32.mrf.mxu0
    %v1981 = vadd.f32 %v1892, %v1980
    %1982 = vmatprep.mubr.f32.mxu0 0.0
    %1983 = vmatmul.mubr.f32.gmra.mxu0 %v1910
    %v1984 = vpop.f32.mrf.mxu0
    %v1985 = vadd.f32 %v1888, %v1984
    %v1986 = vpop.f32.mrf.mxu0
    %v1987 = vadd.f32 %v1892, %v1986
    %1988 = vdwg.mxu0
    %1989 = vmatprep.subr.mxu0 0.0
    %1990 = vmatpush1.msra.mxu0 0.0
    %1991 = vmatprep.subr.mxu0 0.0
    %1992 = vmatpush1.msra.mxu0 0.0
    %1993 = vmatprep.subr.mxu0 0.0
    %1994 = vmatpush1.msra.mxu0 0.0
    %1995 = vmatprep.subr.mxu0 0.0
    %1996 = vmatpush1.msra.mxu0 0.0
    %1997 = vmatprep.subr.mxu0 0.0
    %1998 = vmatpush1.msra.mxu0 0.0
    %1999 = vmatprep.subr.mxu0 0.0
    %2000 = vmatpush1.msra.mxu0 0.0
    %2001 = vmatprep.subr.mxu0 0.0
    %2002 = vmatpush1.msra.mxu0 0.0
    %2003 = vmatprep.subr.mxu0 0.0
    %2004 = vmatpush1.msra.mxu0 0.0
    %2005 = vmatprep.subr.mxu0 0.0
    %2006 = vmatpush1.msra.mxu0 0.0
    %2007 = vmatprep.subr.mxu0 0.0
    %2008 = vmatpush1.msra.mxu0 0.0
    %2009 = vmatprep.subr.mxu0 0.0
    %2010 = vmatpush1.msra.mxu0 0.0
    %2011 = vmatprep.subr.mxu0 0.0
    %2012 = vmatpush1.msra.mxu0 0.0
    %2013 = vmatprep.subr.mxu0 0.0
    %2014 = vmatpush1.msra.mxu0 0.0
    %2015 = vmatprep.subr.mxu0 0.0
    %2016 = vmatpush1.msra.mxu0 0.0
    %2017 = vmatprep.subr.mxu0 %v1882
    %2018 = vmatpush1.msra.mxu0 %v1881
    %2019 = vmatprep.subr.mxu0 %v1878
    %2020 = vmatpush1.msra.mxu0 %v1877
    %2021 = vmatprep.subr.mxu0 0.0
    %2022 = vmatpush2.msra.mxu0 0.0
    %2023 = vmatprep.subr.mxu0 0.0
    %2024 = vmatpush2.msra.mxu0 0.0
    %2025 = vmatprep.subr.mxu0 0.0
    %2026 = vmatpush2.msra.mxu0 0.0
    %2027 = vmatprep.subr.mxu0 0.0
    %2028 = vmatpush2.msra.mxu0 0.0
    %2029 = vmatprep.subr.mxu0 0.0
    %2030 = vmatpush2.msra.mxu0 0.0
    %2031 = vmatprep.subr.mxu0 0.0
    %2032 = vmatpush2.msra.mxu0 0.0
    %2033 = vmatprep.subr.mxu0 0.0
    %2034 = vmatpush2.msra.mxu0 0.0
    %2035 = vmatprep.subr.mxu0 0.0
    %2036 = vmatpush2.msra.mxu0 0.0
    %2037 = vmatprep.subr.mxu0 0.0
    %2038 = vmatpush2.msra.mxu0 0.0
    %2039 = vmatprep.subr.mxu0 0.0
    %2040 = vmatpush2.msra.mxu0 0.0
    %2041 = vmatprep.subr.mxu0 0.0
    %2042 = vmatpush2.msra.mxu0 0.0
    %2043 = vmatprep.subr.mxu0 0.0
    %2044 = vmatpush2.msra.mxu0 0.0
    %2045 = vmatprep.subr.mxu0 0.0
    %2046 = vmatpush2.msra.mxu0 0.0
    %2047 = vmatprep.subr.mxu0 0.0
    %2048 = vmatpush2.msra.mxu0 0.0
    %2049 = vmatprep.subr.mxu0 0.0
    %2050 = vmatpush2.msra.mxu0 0.0
    %2051 = vmatprep.subr.mxu0 0.0
    %2052 = vmatpush2.msra.mxu0 0.0
    %2053 = vmatprep.mubr.f32.mxu0 0.0
    %2054 = vmatmul.mubr.f32.gmra.mxu0 %v1907
    %v2055 = vpop.f32.mrf.mxu0
    %v2056 = vadd.f32 %v1896, %v2055
    %v2057 = vpop.f32.mrf.mxu0
    %v2058 = vadd.f32 %v1900, %v2057
    %2059 = vmatprep.mubr.f32.mxu0 0.0
    %2060 = vmatmul.mubr.f32.gmra.mxu0 %v1910
    %v2061 = vpop.f32.mrf.mxu0
    %v2062 = vadd.f32 %v1896, %v2061
    %v2063 = vpop.f32.mrf.mxu0
    %v2064 = vadd.f32 %v1900, %v2063
    %2065 = vdwg.mxu0
    %v2066 = vxor.u32 %v1979, 2147483648
    %v2067 = vxor.u32 %v1981, 2147483648
    %v2068 = vxor.u32 %v2056, 2147483648
    %v2069 = vxor.u32 %v2058, 2147483648
    %v2070 = vxor.u32 %v1985, 2147483648
    %v2071 = vxor.u32 %v1987, 2147483648
    %v2072 = vxor.u32 %v2062, 2147483648
    %v2073 = vxor.u32 %v2064, 2147483648
    %v2074 = vmul.f32 %v2066, 1.442695
    %v2075 = vpow.pop %v2074
    %v2076 = vmul.f32 %v2067, 1.442695
    %v2077 = vpow.pop %v2076
    %v2078 = vmul.f32 %v2068, 1.442695
    %v2079 = vpow.pop %v2078
    %v2080 = vmul.f32 %v2069, 1.442695
    %v2081 = vpow.pop %v2080
    %v2082 = vmul.f32 %v2070, 1.442695
    %v2083 = vpow.pop %v2082
    %v2084 = vmul.f32 %v2071, 1.442695
    %v2085 = vpow.pop %v2084
    %v2086 = vmul.f32 %v2072, 1.442695
    %v2087 = vpow.pop %v2086
    %v2088 = vmul.f32 %v2073, 1.442695
    %v2089 = vpow.pop %v2088
    %v2090 = vadd.f32 %v2075, 1.0
    %v2091 = vadd.f32 %v2077, 1.0
    %v2092 = vadd.f32 %v2079, 1.0
    %v2093 = vadd.f32 %v2081, 1.0
    %v2094 = vadd.f32 %v2083, 1.0
    %v2095 = vadd.f32 %v2085, 1.0
    %v2096 = vadd.f32 %v2087, 1.0
    %v2097 = vadd.f32 %v2089, 1.0
    %v2098 = vrcp.pop %v2090
    %v2099 = vmul.f32 1.0, %v2098
    %v2100 = vrcp.pop %v2091
    %v2101 = vmul.f32 1.0, %v2100
    %v2102 = vrcp.pop %v2092
    %v2103 = vmul.f32 1.0, %v2102
    %v2104 = vrcp.pop %v2093
    %v2105 = vmul.f32 1.0, %v2104
    %v2106 = vrcp.pop %v2094
    %v2107 = vmul.f32 1.0, %v2106
    %v2108 = vrcp.pop %v2095
    %v2109 = vmul.f32 1.0, %v2108
    %v2110 = vrcp.pop %v2096
    %v2111 = vmul.f32 1.0, %v2110
    %v2112 = vrcp.pop %v2097
    %v2113 = vmul.f32 1.0, %v2112
    %v2114 = vld [vmem:[%s9] sm:$0xff]
    %v2115 = vld [vmem:[%s9 + $0x8] sm:$0xff]
    %v2116 = vld [vmem:[%s9 + $0x10] sm:$0xff]
    %v2117 = vld [vmem:[%s9 + $0x18] sm:$0xff]
    %v2118 = vld [vmem:[%s9 + $0x20] sm:$0xff]
    %v2119 = vld [vmem:[%s9 + $0x28] sm:$0xff]
    %v2120 = vld [vmem:[%s9 + $0x30] sm:$0xff]
    %v2121 = vld [vmem:[%s9 + $0x38] sm:$0xff]
    %v2122 = vld [vmem:[%s10] sm:$0xf]
    %v2124 = vlaneseq
    %v2125 = vshrl.u32 %v2124, 7
    %v2126 = vsub.s32 0, %v2125
    %v2127 = vrot.slane %v2122, %v2126
    %v2128 = vlaneseq
    %v2129 = vshrl.u32 %v2128, 7
    %v2130 = vsub.s32 1, %v2129
    %v2131 = vrot.slane %v2122, %v2130
    %v2132 = vlaneseq
    %v2133 = vshrl.u32 %v2132, 7
    %v2134 = vsub.s32 2, %v2133
    %v2135 = vrot.slane %v2122, %v2134
    %v2136 = vlaneseq
    %v2137 = vshrl.u32 %v2136, 7
    %v2138 = vsub.s32 3, %v2137
    %v2139 = vrot.slane %v2122, %v2138
    %v2145 = vsel %vm1905, %v1873, 0
    %v2148 = vsel %vm1905, %v1874, 0
    %2150 = vmatprep.subr.mxu0 0.0
    %2151 = vmatpush1.msra.mxu0 0.0
    %2152 = vmatprep.subr.mxu0 0.0
    %2153 = vmatpush1.msra.mxu0 0.0
    %2154 = vmatprep.subr.mxu0 0.0
    %2155 = vmatpush1.msra.mxu0 0.0
    %2156 = vmatprep.subr.mxu0 0.0
    %2157 = vmatpush1.msra.mxu0 0.0
    %2158 = vmatprep.subr.mxu0 0.0
    %2159 = vmatpush1.msra.mxu0 0.0
    %2160 = vmatprep.subr.mxu0 0.0
    %2161 = vmatpush1.msra.mxu0 0.0
    %2162 = vmatprep.subr.mxu0 0.0
    %2163 = vmatpush1.msra.mxu0 0.0
    %2164 = vmatprep.subr.mxu0 0.0
    %2165 = vmatpush1.msra.mxu0 0.0
    %2166 = vmatprep.subr.mxu0 0.0
    %2167 = vmatpush1.msra.mxu0 0.0
    %2168 = vmatprep.subr.mxu0 0.0
    %2169 = vmatpush1.msra.mxu0 0.0
    %2170 = vmatprep.subr.mxu0 0.0
    %2171 = vmatpush1.msra.mxu0 0.0
    %2172 = vmatprep.subr.mxu0 0.0
    %2173 = vmatpush1.msra.mxu0 0.0
    %2174 = vmatprep.subr.mxu0 0.0
    %2175 = vmatpush1.msra.mxu0 0.0
    %2176 = vmatprep.subr.mxu0 0.0
    %2177 = vmatpush1.msra.mxu0 0.0
    %2178 = vmatprep.subr.mxu0 %v2119
    %2179 = vmatpush1.msra.mxu0 %v2118
    %2180 = vmatprep.subr.mxu0 %v2115
    %2181 = vmatpush1.msra.mxu0 %v2114
    %2182 = vmatprep.subr.mxu0 0.0
    %2183 = vmatpush2.msra.mxu0 0.0
    %2184 = vmatprep.subr.mxu0 0.0
    %2185 = vmatpush2.msra.mxu0 0.0
    %2186 = vmatprep.subr.mxu0 0.0
    %2187 = vmatpush2.msra.mxu0 0.0
    %2188 = vmatprep.subr.mxu0 0.0
    %2189 = vmatpush2.msra.mxu0 0.0
    %2190 = vmatprep.subr.mxu0 0.0
    %2191 = vmatpush2.msra.mxu0 0.0
    %2192 = vmatprep.subr.mxu0 0.0
    %2193 = vmatpush2.msra.mxu0 0.0
    %2194 = vmatprep.subr.mxu0 0.0
    %2195 = vmatpush2.msra.mxu0 0.0
    %2196 = vmatprep.subr.mxu0 0.0
    %2197 = vmatpush2.msra.mxu0 0.0
    %2198 = vmatprep.subr.mxu0 0.0
    %2199 = vmatpush2.msra.mxu0 0.0
    %2200 = vmatprep.subr.mxu0 0.0
    %2201 = vmatpush2.msra.mxu0 0.0
    %2202 = vmatprep.subr.mxu0 0.0
    %2203 = vmatpush2.msra.mxu0 0.0
    %2204 = vmatprep.subr.mxu0 0.0
    %2205 = vmatpush2.msra.mxu0 0.0
    %2206 = vmatprep.subr.mxu0 0.0
    %2207 = vmatpush2.msra.mxu0 0.0
    %2208 = vmatprep.subr.mxu0 0.0
    %2209 = vmatpush2.msra.mxu0 0.0
    %2210 = vmatprep.subr.mxu0 0.0
    %2211 = vmatpush2.msra.mxu0 0.0
    %2212 = vmatprep.subr.mxu0 0.0
    %2213 = vmatpush2.msra.mxu0 0.0
    %2214 = vmatprep.mubr.f32.mxu0 0.0
    %2215 = vmatmul.mubr.f32.gmra.mxu0 %v2145
    %v2216 = vpop.f32.mrf.mxu0
    %v2217 = vadd.f32 %v2127, %v2216
    %v2218 = vpop.f32.mrf.mxu0
    %v2219 = vadd.f32 %v2131, %v2218
    %2220 = vmatprep.mubr.f32.mxu0 0.0
    %2221 = vmatmul.mubr.f32.gmra.mxu0 %v2148
    %v2222 = vpop.f32.mrf.mxu0
    %v2223 = vadd.f32 %v2127, %v2222
    %v2224 = vpop.f32.mrf.mxu0
    %v2225 = vadd.f32 %v2131, %v2224
    %2226 = vdwg.mxu0
    %2227 = vmatprep.subr.mxu0 0.0
    %2228 = vmatpush1.msra.mxu0 0.0
    %2229 = vmatprep.subr.mxu0 0.0
    %2230 = vmatpush1.msra.mxu0 0.0
    %2231 = vmatprep.subr.mxu0 0.0
    %2232 = vmatpush1.msra.mxu0 0.0
    %2233 = vmatprep.subr.mxu0 0.0
    %2234 = vmatpush1.msra.mxu0 0.0
    %2235 = vmatprep.subr.mxu0 0.0
    %2236 = vmatpush1.msra.mxu0 0.0
    %2237 = vmatprep.subr.mxu0 0.0
    %2238 = vmatpush1.msra.mxu0 0.0
    %2239 = vmatprep.subr.mxu0 0.0
    %2240 = vmatpush1.msra.mxu0 0.0
    %2241 = vmatprep.subr.mxu0 0.0
    %2242 = vmatpush1.msra.mxu0 0.0
    %2243 = vmatprep.subr.mxu0 0.0
    %2244 = vmatpush1.msra.mxu0 0.0
    %2245 = vmatprep.subr.mxu0 0.0
    %2246 = vmatpush1.msra.mxu0 0.0
    %2247 = vmatprep.subr.mxu0 0.0
    %2248 = vmatpush1.msra.mxu0 0.0
    %2249 = vmatprep.subr.mxu0 0.0
    %2250 = vmatpush1.msra.mxu0 0.0
    %2251 = vmatprep.subr.mxu0 0.0
    %2252 = vmatpush1.msra.mxu0 0.0
    %2253 = vmatprep.subr.mxu0 0.0
    %2254 = vmatpush1.msra.mxu0 0.0
    %2255 = vmatprep.subr.mxu0 %v2121
    %2256 = vmatpush1.msra.mxu0 %v2120
    %2257 = vmatprep.subr.mxu0 %v2117
    %2258 = vmatpush1.msra.mxu0 %v2116
    %2259 = vmatprep.subr.mxu0 0.0
    %2260 = vmatpush2.msra.mxu0 0.0
    %2261 = vmatprep.subr.mxu0 0.0
    %2262 = vmatpush2.msra.mxu0 0.0
    %2263 = vmatprep.subr.mxu0 0.0
    %2264 = vmatpush2.msra.mxu0 0.0
    %2265 = vmatprep.subr.mxu0 0.0
    %2266 = vmatpush2.msra.mxu0 0.0
    %2267 = vmatprep.subr.mxu0 0.0
    %2268 = vmatpush2.msra.mxu0 0.0
    %2269 = vmatprep.subr.mxu0 0.0
    %2270 = vmatpush2.msra.mxu0 0.0
    %2271 = vmatprep.subr.mxu0 0.0
    %2272 = vmatpush2.msra.mxu0 0.0
    %2273 = vmatprep.subr.mxu0 0.0
    %2274 = vmatpush2.msra.mxu0 0.0
    %2275 = vmatprep.subr.mxu0 0.0
    %2276 = vmatpush2.msra.mxu0 0.0
    %2277 = vmatprep.subr.mxu0 0.0
    %2278 = vmatpush2.msra.mxu0 0.0
    %2279 = vmatprep.subr.mxu0 0.0
    %2280 = vmatpush2.msra.mxu0 0.0
    %2281 = vmatprep.subr.mxu0 0.0
    %2282 = vmatpush2.msra.mxu0 0.0
    %2283 = vmatprep.subr.mxu0 0.0
    %2284 = vmatpush2.msra.mxu0 0.0
    %2285 = vmatprep.subr.mxu0 0.0
    %2286 = vmatpush2.msra.mxu0 0.0
    %2287 = vmatprep.subr.mxu0 0.0
    %2288 = vmatpush2.msra.mxu0 0.0
    %2289 = vmatprep.subr.mxu0 0.0
    %2290 = vmatpush2.msra.mxu0 0.0
    %2291 = vmatprep.mubr.f32.mxu0 0.0
    %2292 = vmatmul.mubr.f32.gmra.mxu0 %v2145
    %v2293 = vpop.f32.mrf.mxu0
    %v2294 = vadd.f32 %v2135, %v2293
    %v2295 = vpop.f32.mrf.mxu0
    %v2296 = vadd.f32 %v2139, %v2295
    %2297 = vmatprep.mubr.f32.mxu0 0.0
    %2298 = vmatmul.mubr.f32.gmra.mxu0 %v2148
    %v2299 = vpop.f32.mrf.mxu0
    %v2300 = vadd.f32 %v2135, %v2299
    %v2301 = vpop.f32.mrf.mxu0
    %v2302 = vadd.f32 %v2139, %v2301
    %2303 = vdwg.mxu0
    %v2304 = vxor.u32 %v2217, 2147483648
    %v2305 = vxor.u32 %v2219, 2147483648
    %v2306 = vxor.u32 %v2294, 2147483648
    %v2307 = vxor.u32 %v2296, 2147483648
    %v2308 = vxor.u32 %v2223, 2147483648
    %v2309 = vxor.u32 %v2225, 2147483648
    %v2310 = vxor.u32 %v2300, 2147483648
    %v2311 = vxor.u32 %v2302, 2147483648
    %v2312 = vmul.f32 %v2304, 1.442695
    %v2313 = vpow.pop %v2312
    %v2314 = vmul.f32 %v2305, 1.442695
    %v2315 = vpow.pop %v2314
    %v2316 = vmul.f32 %v2306, 1.442695
    %v2317 = vpow.pop %v2316
    %v2318 = vmul.f32 %v2307, 1.442695
    %v2319 = vpow.pop %v2318
    %v2320 = vmul.f32 %v2308, 1.442695
    %v2321 = vpow.pop %v2320
    %v2322 = vmul.f32 %v2309, 1.442695
    %v2323 = vpow.pop %v2322
    %v2324 = vmul.f32 %v2310, 1.442695
    %v2325 = vpow.pop %v2324
    %v2326 = vmul.f32 %v2311, 1.442695
    %v2327 = vpow.pop %v2326
    %v2328 = vadd.f32 %v2313, 1.0
    %v2329 = vadd.f32 %v2315, 1.0
    %v2330 = vadd.f32 %v2317, 1.0
    %v2331 = vadd.f32 %v2319, 1.0
    %v2332 = vadd.f32 %v2321, 1.0
    %v2333 = vadd.f32 %v2323, 1.0
    %v2334 = vadd.f32 %v2325, 1.0
    %v2335 = vadd.f32 %v2327, 1.0
    %v2336 = vrcp.pop %v2328
    %v2337 = vmul.f32 1.0, %v2336
    %v2338 = vrcp.pop %v2329
    %v2339 = vmul.f32 1.0, %v2338
    %v2340 = vrcp.pop %v2330
    %v2341 = vmul.f32 1.0, %v2340
    %v2342 = vrcp.pop %v2331
    %v2343 = vmul.f32 1.0, %v2342
    %v2344 = vrcp.pop %v2332
    %v2345 = vmul.f32 1.0, %v2344
    %v2346 = vrcp.pop %v2333
    %v2347 = vmul.f32 1.0, %v2346
    %v2348 = vrcp.pop %v2334
    %v2349 = vmul.f32 1.0, %v2348
    %v2350 = vrcp.pop %v2335
    %v2351 = vmul.f32 1.0, %v2350
    %v2360 = vcombine.low %v2099, %v2101
    %v2361 = vcombine.high %v2099, %v2101
    %v2362 = vcombine.low %v2103, %v2105
    %v2363 = vcombine.high %v2103, %v2105
    %v2365 = vunpack.c.l.s4 1966171168
    %v2366 = vunpack.c.0.s8 %v2365
    %v2367 = vlaneseq
    %v2368 = vshrl.u32 %v2367, 7
    %v2369 = vsub.s32 %v2366, %v2368
    %v2370 = vrot.slane %v2360, %v2369
    %v2372 = vunpack.c.l.s4 1966171168
    %v2373 = vunpack.c.0.s8 %v2372
    %v2374 = vlaneseq
    %v2375 = vshrl.u32 %v2374, 7
    %v2376 = vsub.s32 %v2373, %v2375
    %v2377 = vrot.slane %v2361, %v2376
    %v2379 = vunpack.c.l.s4 1966171168
    %v2380 = vunpack.c.0.s8 %v2379
    %v2381 = vlaneseq
    %v2382 = vshrl.u32 %v2381, 7
    %v2383 = vsub.s32 %v2380, %v2382
    %v2384 = vrot.slane %v2362, %v2383
    %v2386 = vunpack.c.l.s4 1966171168
    %v2387 = vunpack.c.0.s8 %v2386
    %v2388 = vlaneseq
    %v2389 = vshrl.u32 %v2388, 7
    %v2390 = vsub.s32 %v2387, %v2389
    %v2391 = vrot.slane %v2363, %v2390
    %v2392 = vcombine.low %v2370, %v2384
    %v2393 = vcombine.high %v2370, %v2384
    %v2394 = vcombine.low %v2377, %v2391
    %v2395 = vcombine.high %v2377, %v2391
    %v2397 = vunpack.c.l.s4 1966171168
    %v2398 = vunpack.c.0.s8 %v2397
    %v2399 = vlaneseq
    %v2400 = vshrl.u32 %v2399, 7
    %v2401 = vsub.s32 %v2398, %v2400
    %v2402 = vrot.slane %v2392, %v2401
    %v2404 = vunpack.c.l.s4 1966171168
    %v2405 = vunpack.c.0.s8 %v2404
    %v2406 = vlaneseq
    %v2407 = vshrl.u32 %v2406, 7
    %v2408 = vsub.s32 %v2405, %v2407
    %v2409 = vrot.slane %v2394, %v2408
    %v2411 = vunpack.c.l.s4 1966171168
    %v2412 = vunpack.c.0.s8 %v2411
    %v2413 = vlaneseq
    %v2414 = vshrl.u32 %v2413, 7
    %v2415 = vsub.s32 %v2412, %v2414
    %v2416 = vrot.slane %v2393, %v2415
    %v2418 = vunpack.c.l.s4 1966171168
    %v2419 = vunpack.c.0.s8 %v2418
    %v2420 = vlaneseq
    %v2421 = vshrl.u32 %v2420, 7
    %v2422 = vsub.s32 %v2419, %v2421
    %v2423 = vrot.slane %v2395, %v2422
    %v2424 = vcombine.high %v2402, %v2402
    %v2425 = vcombine.high %v2409, %v2409
    %v2426 = vcombine.high %v2416, %v2416
    %v2427 = vcombine.high %v2423, %v2423
    %v2428 = vcombine.low %v2107, %v2109
    %v2429 = vcombine.high %v2107, %v2109
    %v2430 = vcombine.low %v2111, %v2113
    %v2431 = vcombine.high %v2111, %v2113
    %v2433 = vunpack.c.l.s4 1966171168
    %v2434 = vunpack.c.0.s8 %v2433
    %v2435 = vlaneseq
    %v2436 = vshrl.u32 %v2435, 7
    %v2437 = vsub.s32 %v2434, %v2436
    %v2438 = vrot.slane %v2428, %v2437
    %v2440 = vunpack.c.l.s4 1966171168
    %v2441 = vunpack.c.0.s8 %v2440
    %v2442 = vlaneseq
    %v2443 = vshrl.u32 %v2442, 7
    %v2444 = vsub.s32 %v2441, %v2443
    %v2445 = vrot.slane %v2429, %v2444
    %v2447 = vunpack.c.l.s4 1966171168
    %v2448 = vunpack.c.0.s8 %v2447
    %v2449 = vlaneseq
    %v2450 = vshrl.u32 %v2449, 7
    %v2451 = vsub.s32 %v2448, %v2450
    %v2452 = vrot.slane %v2430, %v2451
    %v2454 = vunpack.c.l.s4 1966171168
    %v2455 = vunpack.c.0.s8 %v2454
    %v2456 = vlaneseq
    %v2457 = vshrl.u32 %v2456, 7
    %v2458 = vsub.s32 %v2455, %v2457
    %v2459 = vrot.slane %v2431, %v2458
    %v2460 = vcombine.low %v2438, %v2452
    %v2461 = vcombine.high %v2438, %v2452
    %v2462 = vcombine.low %v2445, %v2459
    %v2463 = vcombine.high %v2445, %v2459
    %v2465 = vunpack.c.l.s4 1966171168
    %v2466 = vunpack.c.0.s8 %v2465
    %v2467 = vlaneseq
    %v2468 = vshrl.u32 %v2467, 7
    %v2469 = vsub.s32 %v2466, %v2468
    %v2470 = vrot.slane %v2460, %v2469
    %v2472 = vunpack.c.l.s4 1966171168
    %v2473 = vunpack.c.0.s8 %v2472
    %v2474 = vlaneseq
    %v2475 = vshrl.u32 %v2474, 7
    %v2476 = vsub.s32 %v2473, %v2475
    %v2477 = vrot.slane %v2462, %v2476
    %v2479 = vunpack.c.l.s4 1966171168
    %v2480 = vunpack.c.0.s8 %v2479
    %v2481 = vlaneseq
    %v2482 = vshrl.u32 %v2481, 7
    %v2483 = vsub.s32 %v2480, %v2482
    %v2484 = vrot.slane %v2461, %v2483
    %v2486 = vunpack.c.l.s4 1966171168
    %v2487 = vunpack.c.0.s8 %v2486
    %v2488 = vlaneseq
    %v2489 = vshrl.u32 %v2488, 7
    %v2490 = vsub.s32 %v2487, %v2489
    %v2491 = vrot.slane %v2463, %v2490
    %v2492 = vcombine.high %v2470, %v2470
    %v2493 = vcombine.high %v2484, %v2484
    %v2502 = vcombine.low %v2337, %v2339
    %v2503 = vcombine.high %v2337, %v2339
    %v2504 = vcombine.low %v2341, %v2343
    %v2505 = vcombine.high %v2341, %v2343
    %v2507 = vunpack.c.l.s4 1966171168
    %v2508 = vunpack.c.0.s8 %v2507
    %v2509 = vlaneseq
    %v2510 = vshrl.u32 %v2509, 7
    %v2511 = vsub.s32 %v2508, %v2510
    %v2512 = vrot.slane %v2502, %v2511
    %v2514 = vunpack.c.l.s4 1966171168
    %v2515 = vunpack.c.0.s8 %v2514
    %v2516 = vlaneseq
    %v2517 = vshrl.u32 %v2516, 7
    %v2518 = vsub.s32 %v2515, %v2517
    %v2519 = vrot.slane %v2503, %v2518
    %v2521 = vunpack.c.l.s4 1966171168
    %v2522 = vunpack.c.0.s8 %v2521
    %v2523 = vlaneseq
    %v2524 = vshrl.u32 %v2523, 7
    %v2525 = vsub.s32 %v2522, %v2524
    %v2526 = vrot.slane %v2504, %v2525
    %v2528 = vunpack.c.l.s4 1966171168
    %v2529 = vunpack.c.0.s8 %v2528
    %v2530 = vlaneseq
    %v2531 = vshrl.u32 %v2530, 7
    %v2532 = vsub.s32 %v2529, %v2531
    %v2533 = vrot.slane %v2505, %v2532
    %v2534 = vcombine.low %v2512, %v2526
    %v2535 = vcombine.high %v2512, %v2526
    %v2536 = vcombine.low %v2519, %v2533
    %v2537 = vcombine.high %v2519, %v2533
    %v2539 = vunpack.c.l.s4 1966171168
    %v2540 = vunpack.c.0.s8 %v2539
    %v2541 = vlaneseq
    %v2542 = vshrl.u32 %v2541, 7
    %v2543 = vsub.s32 %v2540, %v2542
    %v2544 = vrot.slane %v2534, %v2543
    %v2546 = vunpack.c.l.s4 1966171168
    %v2547 = vunpack.c.0.s8 %v2546
    %v2548 = vlaneseq
    %v2549 = vshrl.u32 %v2548, 7
    %v2550 = vsub.s32 %v2547, %v2549
    %v2551 = vrot.slane %v2536, %v2550
    %v2553 = vunpack.c.l.s4 1966171168
    %v2554 = vunpack.c.0.s8 %v2553
    %v2555 = vlaneseq
    %v2556 = vshrl.u32 %v2555, 7
    %v2557 = vsub.s32 %v2554, %v2556
    %v2558 = vrot.slane %v2535, %v2557
    %v2560 = vunpack.c.l.s4 1966171168
    %v2561 = vunpack.c.0.s8 %v2560
    %v2562 = vlaneseq
    %v2563 = vshrl.u32 %v2562, 7
    %v2564 = vsub.s32 %v2561, %v2563
    %v2565 = vrot.slane %v2537, %v2564
    %v2566 = vcombine.high %v2544, %v2544
    %v2567 = vcombine.high %v2551, %v2551
    %v2568 = vcombine.high %v2558, %v2558
    %v2569 = vcombine.high %v2565, %v2565
    %v2570 = vcombine.low %v2345, %v2347
    %v2571 = vcombine.high %v2345, %v2347
    %v2572 = vcombine.low %v2349, %v2351
    %v2573 = vcombine.high %v2349, %v2351
    %v2575 = vunpack.c.l.s4 1966171168
    %v2576 = vunpack.c.0.s8 %v2575
    %v2577 = vlaneseq
    %v2578 = vshrl.u32 %v2577, 7
    %v2579 = vsub.s32 %v2576, %v2578
    %v2580 = vrot.slane %v2570, %v2579
    %v2582 = vunpack.c.l.s4 1966171168
    %v2583 = vunpack.c.0.s8 %v2582
    %v2584 = vlaneseq
    %v2585 = vshrl.u32 %v2584, 7
    %v2586 = vsub.s32 %v2583, %v2585
    %v2587 = vrot.slane %v2571, %v2586
    %v2589 = vunpack.c.l.s4 1966171168
    %v2590 = vunpack.c.0.s8 %v2589
    %v2591 = vlaneseq
    %v2592 = vshrl.u32 %v2591, 7
    %v2593 = vsub.s32 %v2590, %v2592
    %v2594 = vrot.slane %v2572, %v2593
    %v2596 = vunpack.c.l.s4 1966171168
    %v2597 = vunpack.c.0.s8 %v2596
    %v2598 = vlaneseq
    %v2599 = vshrl.u32 %v2598, 7
    %v2600 = vsub.s32 %v2597, %v2599
    %v2601 = vrot.slane %v2573, %v2600
    %v2602 = vcombine.low %v2580, %v2594
    %v2603 = vcombine.high %v2580, %v2594
    %v2604 = vcombine.low %v2587, %v2601
    %v2605 = vcombine.high %v2587, %v2601
    %v2607 = vunpack.c.l.s4 1966171168
    %v2608 = vunpack.c.0.s8 %v2607
    %v2609 = vlaneseq
    %v2610 = vshrl.u32 %v2609, 7
    %v2611 = vsub.s32 %v2608, %v2610
    %v2612 = vrot.slane %v2602, %v2611
    %v2614 = vunpack.c.l.s4 1966171168
    %v2615 = vunpack.c.0.s8 %v2614
    %v2616 = vlaneseq
    %v2617 = vshrl.u32 %v2616, 7
    %v2618 = vsub.s32 %v2615, %v2617
    %v2619 = vrot.slane %v2604, %v2618
    %v2621 = vunpack.c.l.s4 1966171168
    %v2622 = vunpack.c.0.s8 %v2621
    %v2623 = vlaneseq
    %v2624 = vshrl.u32 %v2623, 7
    %v2625 = vsub.s32 %v2622, %v2624
    %v2626 = vrot.slane %v2603, %v2625
    %v2628 = vunpack.c.l.s4 1966171168
    %v2629 = vunpack.c.0.s8 %v2628
    %v2630 = vlaneseq
    %v2631 = vshrl.u32 %v2630, 7
    %v2632 = vsub.s32 %v2629, %v2631
    %v2633 = vrot.slane %v2605, %v2632
    %v2634 = vcombine.high %v2612, %v2612
    %v2635 = vcombine.high %v2626, %v2626
    %v2636 = vlaneseq
    %v2637 = vshrl.u32 %v2636, 7
    %v2638 = vsub.s32 0, %v2637
    %v2639 = vrot.slane %v2402, %v2638
    %v2640 = vlaneseq
    %v2641 = vshrl.u32 %v2640, 7
    %v2642 = vsub.s32 1, %v2641
    %v2643 = vrot.slane %v2402, %v2642
    %v2644 = vlaneseq
    %v2645 = vshrl.u32 %v2644, 7
    %v2646 = vsub.s32 2, %v2645
    %v2647 = vrot.slane %v2402, %v2646
    %v2648 = vlaneseq
    %v2649 = vshrl.u32 %v2648, 7
    %v2650 = vsub.s32 3, %v2649
    %v2651 = vrot.slane %v2402, %v2650
    %v2652 = vlaneseq
    %v2653 = vshrl.u32 %v2652, 7
    %v2654 = vsub.s32 0, %v2653
    %v2655 = vrot.slane %v2416, %v2654
    %v2656 = vlaneseq
    %v2657 = vshrl.u32 %v2656, 7
    %v2658 = vsub.s32 1, %v2657
    %v2659 = vrot.slane %v2416, %v2658
    %v2660 = vlaneseq
    %v2661 = vshrl.u32 %v2660, 7
    %v2662 = vsub.s32 2, %v2661
    %v2663 = vrot.slane %v2416, %v2662
    %v2664 = vlaneseq
    %v2665 = vshrl.u32 %v2664, 7
    %v2666 = vsub.s32 3, %v2665
    %v2667 = vrot.slane %v2416, %v2666
    %v2668 = vlaneseq
    %v2669 = vshrl.u32 %v2668, 7
    %v2670 = vsub.s32 0, %v2669
    %v2671 = vrot.slane %v2424, %v2670
    %v2672 = vlaneseq
    %v2673 = vshrl.u32 %v2672, 7
    %v2674 = vsub.s32 1, %v2673
    %v2675 = vrot.slane %v2424, %v2674
    %v2676 = vlaneseq
    %v2677 = vshrl.u32 %v2676, 7
    %v2678 = vsub.s32 2, %v2677
    %v2679 = vrot.slane %v2424, %v2678
    %v2680 = vlaneseq
    %v2681 = vshrl.u32 %v2680, 7
    %v2682 = vsub.s32 3, %v2681
    %v2683 = vrot.slane %v2424, %v2682
    %v2684 = vlaneseq
    %v2685 = vshrl.u32 %v2684, 7
    %v2686 = vsub.s32 0, %v2685
    %v2687 = vrot.slane %v2426, %v2686
    %v2688 = vlaneseq
    %v2689 = vshrl.u32 %v2688, 7
    %v2690 = vsub.s32 1, %v2689
    %v2691 = vrot.slane %v2426, %v2690
    %v2692 = vlaneseq
    %v2693 = vshrl.u32 %v2692, 7
    %v2694 = vsub.s32 2, %v2693
    %v2695 = vrot.slane %v2426, %v2694
    %v2696 = vlaneseq
    %v2697 = vshrl.u32 %v2696, 7
    %v2698 = vsub.s32 3, %v2697
    %v2699 = vrot.slane %v2426, %v2698
    %v2700 = vlaneseq
    %v2701 = vshrl.u32 %v2700, 7
    %v2702 = vsub.s32 0, %v2701
    %v2703 = vrot.slane %v2409, %v2702
    %v2704 = vlaneseq
    %v2705 = vshrl.u32 %v2704, 7
    %v2706 = vsub.s32 1, %v2705
    %v2707 = vrot.slane %v2409, %v2706
    %v2708 = vlaneseq
    %v2709 = vshrl.u32 %v2708, 7
    %v2710 = vsub.s32 2, %v2709
    %v2711 = vrot.slane %v2409, %v2710
    %v2712 = vlaneseq
    %v2713 = vshrl.u32 %v2712, 7
    %v2714 = vsub.s32 3, %v2713
    %v2715 = vrot.slane %v2409, %v2714
    %v2716 = vlaneseq
    %v2717 = vshrl.u32 %v2716, 7
    %v2718 = vsub.s32 0, %v2717
    %v2719 = vrot.slane %v2423, %v2718
    %v2720 = vlaneseq
    %v2721 = vshrl.u32 %v2720, 7
    %v2722 = vsub.s32 1, %v2721
    %v2723 = vrot.slane %v2423, %v2722
    %v2724 = vlaneseq
    %v2725 = vshrl.u32 %v2724, 7
    %v2726 = vsub.s32 2, %v2725
    %v2727 = vrot.slane %v2423, %v2726
    %v2728 = vlaneseq
    %v2729 = vshrl.u32 %v2728, 7
    %v2730 = vsub.s32 3, %v2729
    %v2731 = vrot.slane %v2423, %v2730
    %v2732 = vlaneseq
    %v2733 = vshrl.u32 %v2732, 7
    %v2734 = vsub.s32 0, %v2733
    %v2735 = vrot.slane %v2425, %v2734
    %v2736 = vlaneseq
    %v2737 = vshrl.u32 %v2736, 7
    %v2738 = vsub.s32 1, %v2737
    %v2739 = vrot.slane %v2425, %v2738
    %v2740 = vlaneseq
    %v2741 = vshrl.u32 %v2740, 7
    %v2742 = vsub.s32 2, %v2741
    %v2743 = vrot.slane %v2425, %v2742
    %v2744 = vlaneseq
    %v2745 = vshrl.u32 %v2744, 7
    %v2746 = vsub.s32 3, %v2745
    %v2747 = vrot.slane %v2425, %v2746
    %v2748 = vlaneseq
    %v2749 = vshrl.u32 %v2748, 7
    %v2750 = vsub.s32 0, %v2749
    %v2751 = vrot.slane %v2427, %v2750
    %v2752 = vlaneseq
    %v2753 = vshrl.u32 %v2752, 7
    %v2754 = vsub.s32 1, %v2753
    %v2755 = vrot.slane %v2427, %v2754
    %v2756 = vlaneseq
    %v2757 = vshrl.u32 %v2756, 7
    %v2758 = vsub.s32 2, %v2757
    %v2759 = vrot.slane %v2427, %v2758
    %v2760 = vlaneseq
    %v2761 = vshrl.u32 %v2760, 7
    %v2762 = vsub.s32 3, %v2761
    %v2763 = vrot.slane %v2427, %v2762
    %v2764 = vlaneseq
    %v2765 = vshrl.u32 %v2764, 7
    %v2766 = vsub.s32 0, %v2765
    %v2767 = vrot.slane %v2470, %v2766
    %v2768 = vlaneseq
    %v2769 = vshrl.u32 %v2768, 7
    %v2770 = vsub.s32 1, %v2769
    %v2771 = vrot.slane %v2470, %v2770
    %v2772 = vlaneseq
    %v2773 = vshrl.u32 %v2772, 7
    %v2774 = vsub.s32 2, %v2773
    %v2775 = vrot.slane %v2470, %v2774
    %v2776 = vlaneseq
    %v2777 = vshrl.u32 %v2776, 7
    %v2778 = vsub.s32 3, %v2777
    %v2779 = vrot.slane %v2470, %v2778
    %v2780 = vlaneseq
    %v2781 = vshrl.u32 %v2780, 7
    %v2782 = vsub.s32 0, %v2781
    %v2783 = vrot.slane %v2484, %v2782
    %v2784 = vlaneseq
    %v2785 = vshrl.u32 %v2784, 7
    %v2786 = vsub.s32 1, %v2785
    %v2787 = vrot.slane %v2484, %v2786
    %v2788 = vlaneseq
    %v2789 = vshrl.u32 %v2788, 7
    %v2790 = vsub.s32 2, %v2789
    %v2791 = vrot.slane %v2484, %v2790
    %v2792 = vlaneseq
    %v2793 = vshrl.u32 %v2792, 7
    %v2794 = vsub.s32 3, %v2793
    %v2795 = vrot.slane %v2484, %v2794
    %v2796 = vlaneseq
    %v2797 = vshrl.u32 %v2796, 7
    %v2798 = vsub.s32 0, %v2797
    %v2799 = vrot.slane %v2492, %v2798
    %v2800 = vlaneseq
    %v2801 = vshrl.u32 %v2800, 7
    %v2802 = vsub.s32 1, %v2801
    %v2803 = vrot.slane %v2492, %v2802
    %v2804 = vlaneseq
    %v2805 = vshrl.u32 %v2804, 7
    %v2806 = vsub.s32 2, %v2805
    %v2807 = vrot.slane %v2492, %v2806
    %v2808 = vlaneseq
    %v2809 = vshrl.u32 %v2808, 7
    %v2810 = vsub.s32 3, %v2809
    %v2811 = vrot.slane %v2492, %v2810
    %v2812 = vlaneseq
    %v2813 = vshrl.u32 %v2812, 7
    %v2814 = vsub.s32 0, %v2813
    %v2815 = vrot.slane %v2493, %v2814
    %v2816 = vlaneseq
    %v2817 = vshrl.u32 %v2816, 7
    %v2818 = vsub.s32 1, %v2817
    %v2819 = vrot.slane %v2493, %v2818
    %v2820 = vlaneseq
    %v2821 = vshrl.u32 %v2820, 7
    %v2822 = vsub.s32 2, %v2821
    %v2823 = vrot.slane %v2493, %v2822
    %v2824 = vlaneseq
    %v2825 = vshrl.u32 %v2824, 7
    %v2826 = vsub.s32 3, %v2825
    %v2827 = vrot.slane %v2493, %v2826
    %v2828 = vlaneseq
    %v2829 = vshrl.u32 %v2828, 7
    %v2830 = vsub.s32 0, %v2829
    %v2831 = vrot.slane %v2477, %v2830
    %v2832 = vlaneseq
    %v2833 = vshrl.u32 %v2832, 7
    %v2834 = vsub.s32 1, %v2833
    %v2835 = vrot.slane %v2477, %v2834
    %v2836 = vlaneseq
    %v2837 = vshrl.u32 %v2836, 7
    %v2838 = vsub.s32 2, %v2837
    %v2839 = vrot.slane %v2477, %v2838
    %v2840 = vlaneseq
    %v2841 = vshrl.u32 %v2840, 7
    %v2842 = vsub.s32 3, %v2841
    %v2843 = vrot.slane %v2477, %v2842
    %v2844 = vlaneseq
    %v2845 = vshrl.u32 %v2844, 7
    %v2846 = vsub.s32 0, %v2845
    %v2847 = vrot.slane %v2491, %v2846
    %v2848 = vlaneseq
    %v2849 = vshrl.u32 %v2848, 7
    %v2850 = vsub.s32 1, %v2849
    %v2851 = vrot.slane %v2491, %v2850
    %v2852 = vlaneseq
    %v2853 = vshrl.u32 %v2852, 7
    %v2854 = vsub.s32 2, %v2853
    %v2855 = vrot.slane %v2491, %v2854
    %v2856 = vlaneseq
    %v2857 = vshrl.u32 %v2856, 7
    %v2858 = vsub.s32 3, %v2857
    %v2859 = vrot.slane %v2491, %v2858
    %v2916 = vcombine.low %v2544, %v2558
    %v2917 = vcombine.low %v2566, %v2568
    %v2918 = vcombine.low %v2551, %v2565
    %v2920 = vunpack.c.l.s4 1966171168
    %v2921 = vunpack.c.0.s8 %v2920
    %v2922 = vlaneseq
    %v2923 = vshrl.u32 %v2922, 7
    %v2924 = vsub.s32 %v2921, %v2923
    %v2925 = vrot.slane %v2916, %v2924
    %v2927 = vunpack.c.l.s4 1966171168
    %v2928 = vunpack.c.0.s8 %v2927
    %v2929 = vlaneseq
    %v2930 = vshrl.u32 %v2929, 7
    %v2931 = vsub.s32 %v2928, %v2930
    %v2932 = vrot.slane %v2917, %v2931
    %v2934 = vunpack.c.l.s4 1966171168
    %v2935 = vunpack.c.0.s8 %v2934
    %v2936 = vlaneseq
    %v2937 = vshrl.u32 %v2936, 7
    %v2938 = vsub.s32 %v2935, %v2937
    %v2939 = vrot.slane %v2918, %v2938
    %v2941 = vunpack.c.l.s4 1966171168
    %v2942 = vunpack.c.0.s8 %v2941
    %v2943 = vlaneseq
    %v2944 = vshrl.u32 %v2943, 7
    %v2945 = vsub.s32 %v2942, %v2944
    %v2946 = vrot.slane %v2567, %v2945
    %v2947 = vcombine.low %v2925, %v2932
    %v2948 = vcombine.high %v2925, %v2932
    %v2949 = vcombine.low %v2939, %v2946
    %v2950 = vcombine.high %v2939, %v2946
    %v2952 = vunpack.c.l.s4 1966171168
    %v2953 = vunpack.c.0.s8 %v2952
    %v2954 = vlaneseq
    %v2955 = vshrl.u32 %v2954, 7
    %v2956 = vsub.s32 %v2953, %v2955
    %v2957 = vrot.slane %v2947, %v2956
    %v2959 = vunpack.c.l.s4 1966171168
    %v2960 = vunpack.c.0.s8 %v2959
    %v2961 = vlaneseq
    %v2962 = vshrl.u32 %v2961, 7
    %v2963 = vsub.s32 %v2960, %v2962
    %v2964 = vrot.slane %v2948, %v2963
    %v2966 = vunpack.c.l.s4 1966171168
    %v2967 = vunpack.c.0.s8 %v2966
    %v2968 = vlaneseq
    %v2969 = vshrl.u32 %v2968, 7
    %v2970 = vsub.s32 %v2967, %v2969
    %v2971 = vrot.slane %v2949, %v2970
    %v2973 = vunpack.c.l.s4 1966171168
    %v2974 = vunpack.c.0.s8 %v2973
    %v2975 = vlaneseq
    %v2976 = vshrl.u32 %v2975, 7
    %v2977 = vsub.s32 %v2974, %v2976
    %v2978 = vrot.slane %v2950, %v2977
    %v2979 = vcombine.low %v2957, %v2971
    %v2980 = vcombine.high %v2957, %v2971
    %v2981 = vcombine.low %v2964, %v2978
    %v2982 = vcombine.high %v2964, %v2978
    %v2983 = vcombine.low %v2569, %v2612
    %v2984 = vcombine.low %v2626, %v2634
    %v2985 = vcombine.low %v2635, %v2619
    %v2987 = vunpack.c.l.s4 1966171168
    %v2988 = vunpack.c.0.s8 %v2987
    %v2989 = vlaneseq
    %v2990 = vshrl.u32 %v2989, 7
    %v2991 = vsub.s32 %v2988, %v2990
    %v2992 = vrot.slane %v2983, %v2991
    %v2994 = vunpack.c.l.s4 1966171168
    %v2995 = vunpack.c.0.s8 %v2994
    %v2996 = vlaneseq
    %v2997 = vshrl.u32 %v2996, 7
    %v2998 = vsub.s32 %v2995, %v2997
    %v2999 = vrot.slane %v2984, %v2998
    %v3001 = vunpack.c.l.s4 1966171168
    %v3002 = vunpack.c.0.s8 %v3001
    %v3003 = vlaneseq
    %v3004 = vshrl.u32 %v3003, 7
    %v3005 = vsub.s32 %v3002, %v3004
    %v3006 = vrot.slane %v2985, %v3005
    %v3008 = vunpack.c.l.s4 1966171168
    %v3009 = vunpack.c.0.s8 %v3008
    %v3010 = vlaneseq
    %v3011 = vshrl.u32 %v3010, 7
    %v3012 = vsub.s32 %v3009, %v3011
    %v3013 = vrot.slane %v2633, %v3012
    %v3014 = vcombine.low %v2992, %v2999
    %v3015 = vcombine.high %v2992, %v2999
    %v3016 = vcombine.low %v3006, %v3013
    %v3017 = vcombine.high %v3006, %v3013
    %v3019 = vunpack.c.l.s4 1966171168
    %v3020 = vunpack.c.0.s8 %v3019
    %v3021 = vlaneseq
    %v3022 = vshrl.u32 %v3021, 7
    %v3023 = vsub.s32 %v3020, %v3022
    %v3024 = vrot.slane %v3014, %v3023
    %v3026 = vunpack.c.l.s4 1966171168
    %v3027 = vunpack.c.0.s8 %v3026
    %v3028 = vlaneseq
    %v3029 = vshrl.u32 %v3028, 7
    %v3030 = vsub.s32 %v3027, %v3029
    %v3031 = vrot.slane %v3015, %v3030
    %v3033 = vunpack.c.l.s4 1966171168
    %v3034 = vunpack.c.0.s8 %v3033
    %v3035 = vlaneseq
    %v3036 = vshrl.u32 %v3035, 7
    %v3037 = vsub.s32 %v3034, %v3036
    %v3038 = vrot.slane %v3016, %v3037
    %v3040 = vunpack.c.l.s4 1966171168
    %v3041 = vunpack.c.0.s8 %v3040
    %v3042 = vlaneseq
    %v3043 = vshrl.u32 %v3042, 7
    %v3044 = vsub.s32 %v3041, %v3043
    %v3045 = vrot.slane %v3017, %v3044
    %v3046 = vcombine.low %v3024, %v3038
    %v3047 = vcombine.high %v3024, %v3038
    %v3048 = vcombine.low %v3031, %v3045
    %v3049 = vcombine.high %v3031, %v3045
    %v3058 = vmul.f32 %v2639, %v2979
    %v3059 = vmul.f32 %v2643, %v2981
    %v3060 = vmul.f32 %v2647, %v2980
    %v3061 = vmul.f32 %v2651, %v2982
    %v3062 = vmul.f32 %v2655, %v2979
    %v3063 = vmul.f32 %v2659, %v2981
    %v3064 = vmul.f32 %v2663, %v2980
    %v3065 = vmul.f32 %v2667, %v2982
    %v3066 = vmul.f32 %v2671, %v2979
    %v3067 = vmul.f32 %v2675, %v2981
    %v3068 = vmul.f32 %v2679, %v2980
    %v3069 = vmul.f32 %v2683, %v2982
    %v3070 = vmul.f32 %v2687, %v2979
    %v3071 = vmul.f32 %v2691, %v2981
    %v3072 = vmul.f32 %v2695, %v2980
    %v3073 = vmul.f32 %v2699, %v2982
    %v3074 = vmul.f32 %v2703, %v2979
    %v3075 = vmul.f32 %v2707, %v2981
    %v3076 = vmul.f32 %v2711, %v2980
    %v3077 = vmul.f32 %v2715, %v2982
    %v3078 = vmul.f32 %v2719, %v2979
    %v3079 = vmul.f32 %v2723, %v2981
    %v3080 = vmul.f32 %v2727, %v2980
    %v3081 = vmul.f32 %v2731, %v2982
    %v3082 = vmul.f32 %v2735, %v2979
    %v3083 = vmul.f32 %v2739, %v2981
    %v3084 = vmul.f32 %v2743, %v2980
    %v3085 = vmul.f32 %v2747, %v2982
    %v3086 = vmul.f32 %v2751, %v3046
    %v3087 = vmul.f32 %v2755, %v3048
    %v3088 = vmul.f32 %v2759, %v3047
    %v3089 = vmul.f32 %v2763, %v3049
    %v3090 = vmul.f32 %v2767, %v3046
    %v3091 = vmul.f32 %v2771, %v3048
    %v3092 = vmul.f32 %v2775, %v3047
    %v3093 = vmul.f32 %v2779, %v3049
    %v3094 = vmul.f32 %v2783, %v3046
    %v3095 = vmul.f32 %v2787, %v3048
    %v3096 = vmul.f32 %v2791, %v3047
    %v3097 = vmul.f32 %v2795, %v3049
    %v3098 = vmul.f32 %v2799, %v3046
    %v3099 = vmul.f32 %v2803, %v3048
    %v3100 = vmul.f32 %v2807, %v3047
    %v3101 = vmul.f32 %v2811, %v3049
    %v3102 = vmul.f32 %v2815, %v3046
    %v3103 = vmul.f32 %v2819, %v3048
    %v3104 = vmul.f32 %v2823, %v3047
    %v3105 = vmul.f32 %v2827, %v3049
    %v3106 = vmul.f32 %v2831, %v3046
    %v3107 = vmul.f32 %v2835, %v3048
    %v3108 = vmul.f32 %v2839, %v3047
    %v3109 = vmul.f32 %v2843, %v3049
    %v3110 = vmul.f32 %v2847, %v3046
    %v3111 = vmul.f32 %v2851, %v3048
    %v3112 = vmul.f32 %v2855, %v3047
    %v3113 = vmul.f32 %v2859, %v3049
    %v3114 = vpack.c.bf16 %v3058, %v3058
    %v3115 = vpack.c.bf16 %v3059, %v3059
    %v3116 = vpack.c.bf16 %v3060, %v3060
    %v3117 = vpack.c.bf16 %v3061, %v3061
    %v3118 = vpack.c.bf16 %v3062, %v3062
    %v3119 = vpack.c.bf16 %v3063, %v3063
    %v3120 = vpack.c.bf16 %v3064, %v3064
    %v3121 = vpack.c.bf16 %v3065, %v3065
    %v3122 = vpack.c.bf16 %v3066, %v3066
    %v3123 = vpack.c.bf16 %v3067, %v3067
    %v3124 = vpack.c.bf16 %v3068, %v3068
    %v3125 = vpack.c.bf16 %v3069, %v3069
    %v3126 = vpack.c.bf16 %v3070, %v3070
    %v3127 = vpack.c.bf16 %v3071, %v3071
    %v3128 = vpack.c.bf16 %v3072, %v3072
    %v3129 = vpack.c.bf16 %v3073, %v3073
    %v3130 = vpack.c.bf16 %v3074, %v3074
    %v3131 = vpack.c.bf16 %v3075, %v3075
    %v3132 = vpack.c.bf16 %v3076, %v3076
    %v3133 = vpack.c.bf16 %v3077, %v3077
    %v3134 = vpack.c.bf16 %v3078, %v3078
    %v3135 = vpack.c.bf16 %v3079, %v3079
    %v3136 = vpack.c.bf16 %v3080, %v3080
    %v3137 = vpack.c.bf16 %v3081, %v3081
    %v3138 = vpack.c.bf16 %v3082, %v3082
    %v3139 = vpack.c.bf16 %v3083, %v3083
    %v3140 = vpack.c.bf16 %v3084, %v3084
    %v3141 = vpack.c.bf16 %v3085, %v3085
    %v3142 = vpack.c.bf16 %v3086, %v3086
    %v3143 = vpack.c.bf16 %v3087, %v3087
    %v3144 = vpack.c.bf16 %v3088, %v3088
    %v3145 = vpack.c.bf16 %v3089, %v3089
    %v3146 = vpack.c.bf16 %v3090, %v3090
    %v3147 = vpack.c.bf16 %v3091, %v3091
    %v3148 = vpack.c.bf16 %v3092, %v3092
    %v3149 = vpack.c.bf16 %v3093, %v3093
    %v3150 = vpack.c.bf16 %v3094, %v3094
    %v3151 = vpack.c.bf16 %v3095, %v3095
    %v3152 = vpack.c.bf16 %v3096, %v3096
    %v3153 = vpack.c.bf16 %v3097, %v3097
    %v3154 = vpack.c.bf16 %v3098, %v3098
    %v3155 = vpack.c.bf16 %v3099, %v3099
    %v3156 = vpack.c.bf16 %v3100, %v3100
    %v3157 = vpack.c.bf16 %v3101, %v3101
    %v3158 = vpack.c.bf16 %v3102, %v3102
    %v3159 = vpack.c.bf16 %v3103, %v3103
    %v3160 = vpack.c.bf16 %v3104, %v3104
    %v3161 = vpack.c.bf16 %v3105, %v3105
    %v3162 = vpack.c.bf16 %v3106, %v3106
    %v3163 = vpack.c.bf16 %v3107, %v3107
    %v3164 = vpack.c.bf16 %v3108, %v3108
    %v3165 = vpack.c.bf16 %v3109, %v3109
    %v3166 = vpack.c.bf16 %v3110, %v3110
    %v3167 = vpack.c.bf16 %v3111, %v3111
    %v3168 = vpack.c.bf16 %v3112, %v3112
    %v3169 = vpack.c.bf16 %v3113, %v3113
    %v3226 = vunpack.c.l.b16 %v3114
    %v3227 = vunpack.c.l.b16 %v3115
    %v3228 = vunpack.c.l.b16 %v3116
    %v3229 = vunpack.c.l.b16 %v3117
    %v3230 = vunpack.c.l.b16 %v3118
    %v3231 = vunpack.c.l.b16 %v3119
    %v3232 = vunpack.c.l.b16 %v3120
    %v3233 = vunpack.c.l.b16 %v3121
    %v3234 = vunpack.c.l.b16 %v3122
    %v3235 = vunpack.c.l.b16 %v3123
    %v3236 = vunpack.c.l.b16 %v3124
    %v3237 = vunpack.c.l.b16 %v3125
    %v3238 = vunpack.c.l.b16 %v3126
    %v3239 = vunpack.c.l.b16 %v3127
    %v3240 = vunpack.c.l.b16 %v3128
    %v3241 = vunpack.c.l.b16 %v3129
    %v3242 = vunpack.c.l.b16 %v3130
    %v3243 = vunpack.c.l.b16 %v3131
    %v3244 = vunpack.c.l.b16 %v3132
    %v3245 = vunpack.c.l.b16 %v3133
    %v3246 = vunpack.c.l.b16 %v3134
    %v3247 = vunpack.c.l.b16 %v3135
    %v3248 = vunpack.c.l.b16 %v3136
    %v3249 = vunpack.c.l.b16 %v3137
    %v3250 = vunpack.c.l.b16 %v3138
    %v3251 = vunpack.c.l.b16 %v3139
    %v3252 = vunpack.c.l.b16 %v3140
    %v3253 = vunpack.c.l.b16 %v3141
    %v3254 = vunpack.c.l.b16 %v3142
    %v3255 = vunpack.c.l.b16 %v3143
    %v3256 = vunpack.c.l.b16 %v3144
    %v3257 = vunpack.c.l.b16 %v3145
    %v3258 = vunpack.c.l.b16 %v3146
    %v3259 = vunpack.c.l.b16 %v3147
    %v3260 = vunpack.c.l.b16 %v3148
    %v3261 = vunpack.c.l.b16 %v3149
    %v3262 = vunpack.c.l.b16 %v3150
    %v3263 = vunpack.c.l.b16 %v3151
    %v3264 = vunpack.c.l.b16 %v3152
    %v3265 = vunpack.c.l.b16 %v3153
    %v3266 = vunpack.c.l.b16 %v3154
    %v3267 = vunpack.c.l.b16 %v3155
    %v3268 = vunpack.c.l.b16 %v3156
    %v3269 = vunpack.c.l.b16 %v3157
    %v3270 = vunpack.c.l.b16 %v3158
    %v3271 = vunpack.c.l.b16 %v3159
    %v3272 = vunpack.c.l.b16 %v3160
    %v3273 = vunpack.c.l.b16 %v3161
    %v3274 = vunpack.c.l.b16 %v3162
    %v3275 = vunpack.c.l.b16 %v3163
    %v3276 = vunpack.c.l.b16 %v3164
    %v3277 = vunpack.c.l.b16 %v3165
    %v3278 = vunpack.c.l.b16 %v3166
    %v3279 = vunpack.c.l.b16 %v3167
    %v3280 = vunpack.c.l.b16 %v3168
    %v3281 = vunpack.c.l.b16 %v3169
    %v3282 = vpack.c.b16 %v3227, %v3226
    %v3283 = vpack.c.b16 %v3229, %v3228
    %v3284 = vpack.c.b16 %v3231, %v3230
    %v3285 = vpack.c.b16 %v3233, %v3232
    %v3286 = vpack.c.b16 %v3235, %v3234
    %v3287 = vpack.c.b16 %v3237, %v3236
    %v3288 = vpack.c.b16 %v3239, %v3238
    %v3289 = vpack.c.b16 %v3241, %v3240
    %v3290 = vpack.c.b16 %v3243, %v3242
    %v3291 = vpack.c.b16 %v3245, %v3244
    %v3292 = vpack.c.b16 %v3247, %v3246
    %v3293 = vpack.c.b16 %v3249, %v3248
    %v3294 = vpack.c.b16 %v3251, %v3250
    %v3295 = vpack.c.b16 %v3253, %v3252
    %v3296 = vpack.c.b16 %v3255, %v3254
    %v3297 = vpack.c.b16 %v3257, %v3256
    %v3298 = vpack.c.b16 %v3259, %v3258
    %v3299 = vpack.c.b16 %v3261, %v3260
    %v3300 = vpack.c.b16 %v3263, %v3262
    %v3301 = vpack.c.b16 %v3265, %v3264
    %v3302 = vpack.c.b16 %v3267, %v3266
    %v3303 = vpack.c.b16 %v3269, %v3268
    %v3304 = vpack.c.b16 %v3271, %v3270
    %v3305 = vpack.c.b16 %v3273, %v3272
    %v3306 = vpack.c.b16 %v3275, %v3274
    %v3307 = vpack.c.b16 %v3277, %v3276
    %v3308 = vpack.c.b16 %v3279, %v3278
    %v3309 = vpack.c.b16 %v3281, %v3280
    %vm3338 = vcmask 1043456
    %vm3339 = vsmask.f32 3328
    %vm3340 = vmand %vm3338, %vm3339
    %vm3341 = vcmask 1047556
    %vm3342 = vsmask.f32 7424
    %vm3343 = vmand %vm3341, %vm3342
    %vm3344 = vmor %vm3343, %vm3340
    %v3345 = vld [vmem:[%s13] sm:$0xff]
    %v3346 = vsel %vm3344, %v3282, %v3345
    %3347 = vst [vmem:[%s13] sm:$0xff] %v3346
    %v3348 = vld [vmem:[%s13 + $0x8] sm:$0xff]
    %v3349 = vsel %vm3344, %v3283, %v3348
    %3350 = vst [vmem:[%s13 + $0x8] sm:$0xff] %v3349
    %v3351 = vld [vmem:[%s13 + $0x10] sm:$0xff]
    %v3352 = vsel %vm3344, %v3284, %v3351
    %3353 = vst [vmem:[%s13 + $0x10] sm:$0xff] %v3352
    %v3354 = vld [vmem:[%s13 + $0x18] sm:$0xff]
    %v3355 = vsel %vm3344, %v3285, %v3354
    %3356 = vst [vmem:[%s13 + $0x18] sm:$0xff] %v3355
    %v3357 = vld [vmem:[%s13 + $0x20] sm:$0xff]
    %v3358 = vsel %vm3344, %v3286, %v3357
    %3359 = vst [vmem:[%s13 + $0x20] sm:$0xff] %v3358
    %v3360 = vld [vmem:[%s13 + $0x28] sm:$0xff]
    %v3361 = vsel %vm3344, %v3287, %v3360
    %3362 = vst [vmem:[%s13 + $0x28] sm:$0xff] %v3361
    %v3363 = vld [vmem:[%s13 + $0x30] sm:$0xff]
    %v3364 = vsel %vm3344, %v3288, %v3363
    %3365 = vst [vmem:[%s13 + $0x30] sm:$0xff] %v3364
    %v3366 = vld [vmem:[%s13 + $0x38] sm:$0xff]
    %v3367 = vsel %vm3344, %v3289, %v3366
    %3368 = vst [vmem:[%s13 + $0x38] sm:$0xff] %v3367
    %v3369 = vld [vmem:[%s13 + $0x40] sm:$0xff]
    %v3370 = vsel %vm3344, %v3290, %v3369
    %3371 = vst [vmem:[%s13 + $0x40] sm:$0xff] %v3370
    %v3372 = vld [vmem:[%s13 + $0x48] sm:$0xff]
    %v3373 = vsel %vm3344, %v3291, %v3372
    %3374 = vst [vmem:[%s13 + $0x48] sm:$0xff] %v3373
    %v3375 = vld [vmem:[%s13 + $0x50] sm:$0xff]
    %v3376 = vsel %vm3344, %v3292, %v3375
    %3377 = vst [vmem:[%s13 + $0x50] sm:$0xff] %v3376
    %v3378 = vld [vmem:[%s13 + $0x58] sm:$0xff]
    %v3379 = vsel %vm3344, %v3293, %v3378
    %3380 = vst [vmem:[%s13 + $0x58] sm:$0xff] %v3379
    %v3381 = vld [vmem:[%s13 + $0x60] sm:$0xff]
    %v3382 = vsel %vm3344, %v3294, %v3381
    %3383 = vst [vmem:[%s13 + $0x60] sm:$0xff] %v3382
    %v3384 = vld [vmem:[%s13 + $0x68] sm:$0xff]
    %v3385 = vsel %vm3344, %v3295, %v3384
    %3386 = vst [vmem:[%s13 + $0x68] sm:$0xff] %v3385
    %v3387 = vld [vmem:[%s13 + $0xe0] sm:$0xff]
    %v3388 = vsel %vm3344, %v3296, %v3387
    %3389 = vst [vmem:[%s13 + $0xe0] sm:$0xff] %v3388
    %v3390 = vld [vmem:[%s13 + $0xe8] sm:$0xff]
    %v3391 = vsel %vm3344, %v3297, %v3390
    %3392 = vst [vmem:[%s13 + $0xe8] sm:$0xff] %v3391
    %v3393 = vld [vmem:[%s13 + $0xf0] sm:$0xff]
    %v3394 = vsel %vm3344, %v3298, %v3393
    %3395 = vst [vmem:[%s13 + $0xf0] sm:$0xff] %v3394
    %v3396 = vld [vmem:[%s13 + $0xf8] sm:$0xff]
    %v3397 = vsel %vm3344, %v3299, %v3396
    %3398 = vst [vmem:[%s13 + $0xf8] sm:$0xff] %v3397
    %v3399 = vld [vmem:[%s13 + $0x100] sm:$0xff]
    %v3400 = vsel %vm3344, %v3300, %v3399
    %3401 = vst [vmem:[%s13 + $0x100] sm:$0xff] %v3400
    %v3402 = vld [vmem:[%s13 + $0x108] sm:$0xff]
    %v3403 = vsel %vm3344, %v3301, %v3402
    %3404 = vst [vmem:[%s13 + $0x108] sm:$0xff] %v3403
    %v3405 = vld [vmem:[%s13 + $0x110] sm:$0xff]
    %v3406 = vsel %vm3344, %v3302, %v3405
    %3407 = vst [vmem:[%s13 + $0x110] sm:$0xff] %v3406
    %v3408 = vld [vmem:[%s13 + $0x118] sm:$0xff]
    %v3409 = vsel %vm3344, %v3303, %v3408
    %3410 = vst [vmem:[%s13 + $0x118] sm:$0xff] %v3409
    %v3411 = vld [vmem:[%s13 + $0x120] sm:$0xff]
    %v3412 = vsel %vm3344, %v3304, %v3411
    %3413 = vst [vmem:[%s13 + $0x120] sm:$0xff] %v3412
    %v3414 = vld [vmem:[%s13 + $0x128] sm:$0xff]
    %v3415 = vsel %vm3344, %v3305, %v3414
    %3416 = vst [vmem:[%s13 + $0x128] sm:$0xff] %v3415
    %v3417 = vld [vmem:[%s13 + $0x130] sm:$0xff]
    %v3418 = vsel %vm3344, %v3306, %v3417
    %3419 = vst [vmem:[%s13 + $0x130] sm:$0xff] %v3418
    %v3420 = vld [vmem:[%s13 + $0x138] sm:$0xff]
    %v3421 = vsel %vm3344, %v3307, %v3420
    %3422 = vst [vmem:[%s13 + $0x138] sm:$0xff] %v3421
    %v3423 = vld [vmem:[%s13 + $0x140] sm:$0xff]
    %v3424 = vsel %vm3344, %v3308, %v3423
    %3425 = vst [vmem:[%s13 + $0x140] sm:$0xff] %v3424
    %v3426 = vld [vmem:[%s13 + $0x148] sm:$0xff]
    %v3427 = vsel %vm3344, %v3309, %v3426
    %3428 = vst [vmem:[%s13 + $0x148] sm:$0xff] %v3427
    %s3429 = scalar_lea.vmem %s1, 32
    %v3430 = vld [vmem:[%s3429] sm:$0x7f]
    %v3431 = vld [vmem:[%s3429 + $0x8] sm:$0x7f]
    %v3432 = vld [vmem:[%s3429 + $0x10] sm:$0x7f]
    %v3433 = vld [vmem:[%s3429 + $0x18] sm:$0x7f]
    %s3434 = scalar_lea.vmem %s2, 32
    %v3435 = vld [vmem:[%s3434] sm:$0x7f]
    %v3436 = vld [vmem:[%s3434 + $0x8] sm:$0x7f]
    %v3437 = vld [vmem:[%s3434 + $0x10] sm:$0x7f]
    %v3438 = vld [vmem:[%s3434 + $0x18] sm:$0x7f]
    %v3439 = vmul.f32 %v47, %v3430
    %v3440 = vmul.f32 %v48, %v3431
    %v3441 = vmul.f32 %v49, %v3432
    %v3442 = vmul.f32 %v50, %v3433
    %v3443 = vmul.f32 %v51, %v3430
    %v3444 = vmul.f32 %v52, %v3431
    %v3445 = vmul.f32 %v53, %v3432
    %v3446 = vmul.f32 %v54, %v3433
    %v3447 = vmul.f32 %v55, %v3430
    %v3448 = vmul.f32 %v56, %v3431
    %v3449 = vmul.f32 %v57, %v3432
    %v3450 = vmul.f32 %v58, %v3433
    %v3451 = vmul.f32 %v59, %v3430
    %v3452 = vmul.f32 %v60, %v3431
    %v3453 = vmul.f32 %v61, %v3432
    %v3454 = vmul.f32 %v62, %v3433
    %v3455 = vmul.f32 %v63, %v3430
    %v3456 = vmul.f32 %v64, %v3431
    %v3457 = vmul.f32 %v65, %v3432
    %v3458 = vmul.f32 %v66, %v3433
    %v3459 = vmul.f32 %v67, %v3430
    %v3460 = vmul.f32 %v68, %v3431
    %v3461 = vmul.f32 %v69, %v3432
    %v3462 = vmul.f32 %v70, %v3433
    %v3463 = vmul.f32 %v71, %v3430
    %v3464 = vmul.f32 %v72, %v3431
    %v3465 = vmul.f32 %v73, %v3432
    %v3466 = vmul.f32 %v74, %v3433
    %v3467 = vmul.f32 %v75, %v3430
    %v3468 = vmul.f32 %v76, %v3431
    %v3469 = vmul.f32 %v77, %v3432
    %v3470 = vmul.f32 %v78, %v3433
    %v3471 = vmul.f32 %v79, %v3430
    %v3472 = vmul.f32 %v80, %v3431
    %v3473 = vmul.f32 %v81, %v3432
    %v3474 = vmul.f32 %v82, %v3433
    %v3475 = vmul.f32 %v83, %v3430
    %v3476 = vmul.f32 %v84, %v3431
    %v3477 = vmul.f32 %v85, %v3432
    %v3478 = vmul.f32 %v86, %v3433
    %v3479 = vmul.f32 %v87, %v3430
    %v3480 = vmul.f32 %v88, %v3431
    %v3481 = vmul.f32 %v89, %v3432
    %v3482 = vmul.f32 %v90, %v3433
    %v3483 = vmul.f32 %v91, %v3430
    %v3484 = vmul.f32 %v92, %v3431
    %v3485 = vmul.f32 %v93, %v3432
    %v3486 = vmul.f32 %v94, %v3433
    %v3487 = vmul.f32 %v95, %v3430
    %v3488 = vmul.f32 %v96, %v3431
    %v3489 = vmul.f32 %v97, %v3432
    %v3490 = vmul.f32 %v98, %v3433
    %v3491 = vmul.f32 %v99, %v3430
    %v3492 = vmul.f32 %v100, %v3431
    %v3493 = vmul.f32 %v101, %v3432
    %v3494 = vmul.f32 %v102, %v3433
    %v3495 = vsel %vm167, %v3439, 0.0
    %v3496 = vrot.slane %v3495, 4
    %v3497 = vadd.f32 %v3495, %v3496
    %v3498 = vrot.slane %v3497, 2
    %v3499 = vadd.f32 %v3497, %v3498
    %v3500 = vrot.slane %v3499, 1
    %v3501 = vadd.f32 %v3499, %v3500
    %v3502 = vsel %vm167, %v3440, 0.0
    %v3503 = vrot.slane %v3502, 4
    %v3504 = vadd.f32 %v3502, %v3503
    %v3505 = vrot.slane %v3504, 2
    %v3506 = vadd.f32 %v3504, %v3505
    %v3507 = vrot.slane %v3506, 1
    %v3508 = vadd.f32 %v3506, %v3507
    %v3509 = vsel %vm167, %v3441, 0.0
    %v3510 = vrot.slane %v3509, 4
    %v3511 = vadd.f32 %v3509, %v3510
    %v3512 = vrot.slane %v3511, 2
    %v3513 = vadd.f32 %v3511, %v3512
    %v3514 = vrot.slane %v3513, 1
    %v3515 = vadd.f32 %v3513, %v3514
    %v3516 = vsel %vm167, %v3442, 0.0
    %v3517 = vrot.slane %v3516, 4
    %v3518 = vadd.f32 %v3516, %v3517
    %v3519 = vrot.slane %v3518, 2
    %v3520 = vadd.f32 %v3518, %v3519
    %v3521 = vrot.slane %v3520, 1
    %v3522 = vadd.f32 %v3520, %v3521
    %v3523 = vsel %vm167, %v3443, 0.0
    %v3524 = vrot.slane %v3523, 4
    %v3525 = vadd.f32 %v3523, %v3524
    %v3526 = vrot.slane %v3525, 2
    %v3527 = vadd.f32 %v3525, %v3526
    %v3528 = vrot.slane %v3527, 1
    %v3529 = vadd.f32 %v3527, %v3528
    %v3530 = vsel %vm167, %v3444, 0.0
    %v3531 = vrot.slane %v3530, 4
    %v3532 = vadd.f32 %v3530, %v3531
    %v3533 = vrot.slane %v3532, 2
    %v3534 = vadd.f32 %v3532, %v3533
    %v3535 = vrot.slane %v3534, 1
    %v3536 = vadd.f32 %v3534, %v3535
    %v3537 = vsel %vm167, %v3445, 0.0
    %v3538 = vrot.slane %v3537, 4
    %v3539 = vadd.f32 %v3537, %v3538
    %v3540 = vrot.slane %v3539, 2
    %v3541 = vadd.f32 %v3539, %v3540
    %v3542 = vrot.slane %v3541, 1
    %v3543 = vadd.f32 %v3541, %v3542
    %v3544 = vsel %vm167, %v3446, 0.0
    %v3545 = vrot.slane %v3544, 4
    %v3546 = vadd.f32 %v3544, %v3545
    %v3547 = vrot.slane %v3546, 2
    %v3548 = vadd.f32 %v3546, %v3547
    %v3549 = vrot.slane %v3548, 1
    %v3550 = vadd.f32 %v3548, %v3549
    %v3551 = vsel %vm167, %v3447, 0.0
    %v3552 = vrot.slane %v3551, 4
    %v3553 = vadd.f32 %v3551, %v3552
    %v3554 = vrot.slane %v3553, 2
    %v3555 = vadd.f32 %v3553, %v3554
    %v3556 = vrot.slane %v3555, 1
    %v3557 = vadd.f32 %v3555, %v3556
    %v3558 = vsel %vm167, %v3448, 0.0
    %v3559 = vrot.slane %v3558, 4
    %v3560 = vadd.f32 %v3558, %v3559
    %v3561 = vrot.slane %v3560, 2
    %v3562 = vadd.f32 %v3560, %v3561
    %v3563 = vrot.slane %v3562, 1
    %v3564 = vadd.f32 %v3562, %v3563
    %v3565 = vsel %vm167, %v3449, 0.0
    %v3566 = vrot.slane %v3565, 4
    %v3567 = vadd.f32 %v3565, %v3566
    %v3568 = vrot.slane %v3567, 2
    %v3569 = vadd.f32 %v3567, %v3568
    %v3570 = vrot.slane %v3569, 1
    %v3571 = vadd.f32 %v3569, %v3570
    %v3572 = vsel %vm167, %v3450, 0.0
    %v3573 = vrot.slane %v3572, 4
    %v3574 = vadd.f32 %v3572, %v3573
    %v3575 = vrot.slane %v3574, 2
    %v3576 = vadd.f32 %v3574, %v3575
    %v3577 = vrot.slane %v3576, 1
    %v3578 = vadd.f32 %v3576, %v3577
    %v3579 = vsel %vm167, %v3451, 0.0
    %v3580 = vrot.slane %v3579, 4
    %v3581 = vadd.f32 %v3579, %v3580
    %v3582 = vrot.slane %v3581, 2
    %v3583 = vadd.f32 %v3581, %v3582
    %v3584 = vrot.slane %v3583, 1
    %v3585 = vadd.f32 %v3583, %v3584
    %v3586 = vsel %vm167, %v3452, 0.0
    %v3587 = vrot.slane %v3586, 4
    %v3588 = vadd.f32 %v3586, %v3587
    %v3589 = vrot.slane %v3588, 2
    %v3590 = vadd.f32 %v3588, %v3589
    %v3591 = vrot.slane %v3590, 1
    %v3592 = vadd.f32 %v3590, %v3591
    %v3593 = vsel %vm167, %v3453, 0.0
    %v3594 = vrot.slane %v3593, 4
    %v3595 = vadd.f32 %v3593, %v3594
    %v3596 = vrot.slane %v3595, 2
    %v3597 = vadd.f32 %v3595, %v3596
    %v3598 = vrot.slane %v3597, 1
    %v3599 = vadd.f32 %v3597, %v3598
    %v3600 = vsel %vm167, %v3454, 0.0
    %v3601 = vrot.slane %v3600, 4
    %v3602 = vadd.f32 %v3600, %v3601
    %v3603 = vrot.slane %v3602, 2
    %v3604 = vadd.f32 %v3602, %v3603
    %v3605 = vrot.slane %v3604, 1
    %v3606 = vadd.f32 %v3604, %v3605
    %v3607 = vsel %vm167, %v3455, 0.0
    %v3608 = vrot.slane %v3607, 4
    %v3609 = vadd.f32 %v3607, %v3608
    %v3610 = vrot.slane %v3609, 2
    %v3611 = vadd.f32 %v3609, %v3610
    %v3612 = vrot.slane %v3611, 1
    %v3613 = vadd.f32 %v3611, %v3612
    %v3614 = vsel %vm167, %v3456, 0.0
    %v3615 = vrot.slane %v3614, 4
    %v3616 = vadd.f32 %v3614, %v3615
    %v3617 = vrot.slane %v3616, 2
    %v3618 = vadd.f32 %v3616, %v3617
    %v3619 = vrot.slane %v3618, 1
    %v3620 = vadd.f32 %v3618, %v3619
    %v3621 = vsel %vm167, %v3457, 0.0
    %v3622 = vrot.slane %v3621, 4
    %v3623 = vadd.f32 %v3621, %v3622
    %v3624 = vrot.slane %v3623, 2
    %v3625 = vadd.f32 %v3623, %v3624
    %v3626 = vrot.slane %v3625, 1
    %v3627 = vadd.f32 %v3625, %v3626
    %v3628 = vsel %vm167, %v3458, 0.0
    %v3629 = vrot.slane %v3628, 4
    %v3630 = vadd.f32 %v3628, %v3629
    %v3631 = vrot.slane %v3630, 2
    %v3632 = vadd.f32 %v3630, %v3631
    %v3633 = vrot.slane %v3632, 1
    %v3634 = vadd.f32 %v3632, %v3633
    %v3635 = vsel %vm167, %v3459, 0.0
    %v3636 = vrot.slane %v3635, 4
    %v3637 = vadd.f32 %v3635, %v3636
    %v3638 = vrot.slane %v3637, 2
    %v3639 = vadd.f32 %v3637, %v3638
    %v3640 = vrot.slane %v3639, 1
    %v3641 = vadd.f32 %v3639, %v3640
    %v3642 = vsel %vm167, %v3460, 0.0
    %v3643 = vrot.slane %v3642, 4
    %v3644 = vadd.f32 %v3642, %v3643
    %v3645 = vrot.slane %v3644, 2
    %v3646 = vadd.f32 %v3644, %v3645
    %v3647 = vrot.slane %v3646, 1
    %v3648 = vadd.f32 %v3646, %v3647
    %v3649 = vsel %vm167, %v3461, 0.0
    %v3650 = vrot.slane %v3649, 4
    %v3651 = vadd.f32 %v3649, %v3650
    %v3652 = vrot.slane %v3651, 2
    %v3653 = vadd.f32 %v3651, %v3652
    %v3654 = vrot.slane %v3653, 1
    %v3655 = vadd.f32 %v3653, %v3654
    %v3656 = vsel %vm167, %v3462, 0.0
    %v3657 = vrot.slane %v3656, 4
    %v3658 = vadd.f32 %v3656, %v3657
    %v3659 = vrot.slane %v3658, 2
    %v3660 = vadd.f32 %v3658, %v3659
    %v3661 = vrot.slane %v3660, 1
    %v3662 = vadd.f32 %v3660, %v3661
    %v3663 = vsel %vm167, %v3463, 0.0
    %v3664 = vrot.slane %v3663, 4
    %v3665 = vadd.f32 %v3663, %v3664
    %v3666 = vrot.slane %v3665, 2
    %v3667 = vadd.f32 %v3665, %v3666
    %v3668 = vrot.slane %v3667, 1
    %v3669 = vadd.f32 %v3667, %v3668
    %v3670 = vsel %vm167, %v3464, 0.0
    %v3671 = vrot.slane %v3670, 4
    %v3672 = vadd.f32 %v3670, %v3671
    %v3673 = vrot.slane %v3672, 2
    %v3674 = vadd.f32 %v3672, %v3673
    %v3675 = vrot.slane %v3674, 1
    %v3676 = vadd.f32 %v3674, %v3675
    %v3677 = vsel %vm167, %v3465, 0.0
    %v3678 = vrot.slane %v3677, 4
    %v3679 = vadd.f32 %v3677, %v3678
    %v3680 = vrot.slane %v3679, 2
    %v3681 = vadd.f32 %v3679, %v3680
    %v3682 = vrot.slane %v3681, 1
    %v3683 = vadd.f32 %v3681, %v3682
    %v3684 = vsel %vm167, %v3466, 0.0
    %v3685 = vrot.slane %v3684, 4
    %v3686 = vadd.f32 %v3684, %v3685
    %v3687 = vrot.slane %v3686, 2
    %v3688 = vadd.f32 %v3686, %v3687
    %v3689 = vrot.slane %v3688, 1
    %v3690 = vadd.f32 %v3688, %v3689
    %v3691 = vsel %vm167, %v3467, 0.0
    %v3692 = vrot.slane %v3691, 4
    %v3693 = vadd.f32 %v3691, %v3692
    %v3694 = vrot.slane %v3693, 2
    %v3695 = vadd.f32 %v3693, %v3694
    %v3696 = vrot.slane %v3695, 1
    %v3697 = vadd.f32 %v3695, %v3696
    %v3698 = vsel %vm167, %v3468, 0.0
    %v3699 = vrot.slane %v3698, 4
    %v3700 = vadd.f32 %v3698, %v3699
    %v3701 = vrot.slane %v3700, 2
    %v3702 = vadd.f32 %v3700, %v3701
    %v3703 = vrot.slane %v3702, 1
    %v3704 = vadd.f32 %v3702, %v3703
    %v3705 = vsel %vm167, %v3469, 0.0
    %v3706 = vrot.slane %v3705, 4
    %v3707 = vadd.f32 %v3705, %v3706
    %v3708 = vrot.slane %v3707, 2
    %v3709 = vadd.f32 %v3707, %v3708
    %v3710 = vrot.slane %v3709, 1
    %v3711 = vadd.f32 %v3709, %v3710
    %v3712 = vsel %vm167, %v3470, 0.0
    %v3713 = vrot.slane %v3712, 4
    %v3714 = vadd.f32 %v3712, %v3713
    %v3715 = vrot.slane %v3714, 2
    %v3716 = vadd.f32 %v3714, %v3715
    %v3717 = vrot.slane %v3716, 1
    %v3718 = vadd.f32 %v3716, %v3717
    %v3719 = vsel %vm167, %v3471, 0.0
    %v3720 = vrot.slane %v3719, 4
    %v3721 = vadd.f32 %v3719, %v3720
    %v3722 = vrot.slane %v3721, 2
    %v3723 = vadd.f32 %v3721, %v3722
    %v3724 = vrot.slane %v3723, 1
    %v3725 = vadd.f32 %v3723, %v3724
    %v3726 = vsel %vm167, %v3472, 0.0
    %v3727 = vrot.slane %v3726, 4
    %v3728 = vadd.f32 %v3726, %v3727
    %v3729 = vrot.slane %v3728, 2
    %v3730 = vadd.f32 %v3728, %v3729
    %v3731 = vrot.slane %v3730, 1
    %v3732 = vadd.f32 %v3730, %v3731
    %v3733 = vsel %vm167, %v3473, 0.0
    %v3734 = vrot.slane %v3733, 4
    %v3735 = vadd.f32 %v3733, %v3734
    %v3736 = vrot.slane %v3735, 2
    %v3737 = vadd.f32 %v3735, %v3736
    %v3738 = vrot.slane %v3737, 1
    %v3739 = vadd.f32 %v3737, %v3738
    %v3740 = vsel %vm167, %v3474, 0.0
    %v3741 = vrot.slane %v3740, 4
    %v3742 = vadd.f32 %v3740, %v3741
    %v3743 = vrot.slane %v3742, 2
    %v3744 = vadd.f32 %v3742, %v3743
    %v3745 = vrot.slane %v3744, 1
    %v3746 = vadd.f32 %v3744, %v3745
    %v3747 = vsel %vm167, %v3475, 0.0
    %v3748 = vrot.slane %v3747, 4
    %v3749 = vadd.f32 %v3747, %v3748
    %v3750 = vrot.slane %v3749, 2
    %v3751 = vadd.f32 %v3749, %v3750
    %v3752 = vrot.slane %v3751, 1
    %v3753 = vadd.f32 %v3751, %v3752
    %v3754 = vsel %vm167, %v3476, 0.0
    %v3755 = vrot.slane %v3754, 4
    %v3756 = vadd.f32 %v3754, %v3755
    %v3757 = vrot.slane %v3756, 2
    %v3758 = vadd.f32 %v3756, %v3757
    %v3759 = vrot.slane %v3758, 1
    %v3760 = vadd.f32 %v3758, %v3759
    %v3761 = vsel %vm167, %v3477, 0.0
    %v3762 = vrot.slane %v3761, 4
    %v3763 = vadd.f32 %v3761, %v3762
    %v3764 = vrot.slane %v3763, 2
    %v3765 = vadd.f32 %v3763, %v3764
    %v3766 = vrot.slane %v3765, 1
    %v3767 = vadd.f32 %v3765, %v3766
    %v3768 = vsel %vm167, %v3478, 0.0
    %v3769 = vrot.slane %v3768, 4
    %v3770 = vadd.f32 %v3768, %v3769
    %v3771 = vrot.slane %v3770, 2
    %v3772 = vadd.f32 %v3770, %v3771
    %v3773 = vrot.slane %v3772, 1
    %v3774 = vadd.f32 %v3772, %v3773
    %v3775 = vsel %vm167, %v3479, 0.0
    %v3776 = vrot.slane %v3775, 4
    %v3777 = vadd.f32 %v3775, %v3776
    %v3778 = vrot.slane %v3777, 2
    %v3779 = vadd.f32 %v3777, %v3778
    %v3780 = vrot.slane %v3779, 1
    %v3781 = vadd.f32 %v3779, %v3780
    %v3782 = vsel %vm167, %v3480, 0.0
    %v3783 = vrot.slane %v3782, 4
    %v3784 = vadd.f32 %v3782, %v3783
    %v3785 = vrot.slane %v3784, 2
    %v3786 = vadd.f32 %v3784, %v3785
    %v3787 = vrot.slane %v3786, 1
    %v3788 = vadd.f32 %v3786, %v3787
    %v3789 = vsel %vm167, %v3481, 0.0
    %v3790 = vrot.slane %v3789, 4
    %v3791 = vadd.f32 %v3789, %v3790
    %v3792 = vrot.slane %v3791, 2
    %v3793 = vadd.f32 %v3791, %v3792
    %v3794 = vrot.slane %v3793, 1
    %v3795 = vadd.f32 %v3793, %v3794
    %v3796 = vsel %vm167, %v3482, 0.0
    %v3797 = vrot.slane %v3796, 4
    %v3798 = vadd.f32 %v3796, %v3797
    %v3799 = vrot.slane %v3798, 2
    %v3800 = vadd.f32 %v3798, %v3799
    %v3801 = vrot.slane %v3800, 1
    %v3802 = vadd.f32 %v3800, %v3801
    %v3803 = vsel %vm167, %v3483, 0.0
    %v3804 = vrot.slane %v3803, 4
    %v3805 = vadd.f32 %v3803, %v3804
    %v3806 = vrot.slane %v3805, 2
    %v3807 = vadd.f32 %v3805, %v3806
    %v3808 = vrot.slane %v3807, 1
    %v3809 = vadd.f32 %v3807, %v3808
    %v3810 = vsel %vm167, %v3484, 0.0
    %v3811 = vrot.slane %v3810, 4
    %v3812 = vadd.f32 %v3810, %v3811
    %v3813 = vrot.slane %v3812, 2
    %v3814 = vadd.f32 %v3812, %v3813
    %v3815 = vrot.slane %v3814, 1
    %v3816 = vadd.f32 %v3814, %v3815
    %v3817 = vsel %vm167, %v3485, 0.0
    %v3818 = vrot.slane %v3817, 4
    %v3819 = vadd.f32 %v3817, %v3818
    %v3820 = vrot.slane %v3819, 2
    %v3821 = vadd.f32 %v3819, %v3820
    %v3822 = vrot.slane %v3821, 1
    %v3823 = vadd.f32 %v3821, %v3822
    %v3824 = vsel %vm167, %v3486, 0.0
    %v3825 = vrot.slane %v3824, 4
    %v3826 = vadd.f32 %v3824, %v3825
    %v3827 = vrot.slane %v3826, 2
    %v3828 = vadd.f32 %v3826, %v3827
    %v3829 = vrot.slane %v3828, 1
    %v3830 = vadd.f32 %v3828, %v3829
    %v3831 = vsel %vm167, %v3487, 0.0
    %v3832 = vrot.slane %v3831, 4
    %v3833 = vadd.f32 %v3831, %v3832
    %v3834 = vrot.slane %v3833, 2
    %v3835 = vadd.f32 %v3833, %v3834
    %v3836 = vrot.slane %v3835, 1
    %v3837 = vadd.f32 %v3835, %v3836
    %v3838 = vsel %vm167, %v3488, 0.0
    %v3839 = vrot.slane %v3838, 4
    %v3840 = vadd.f32 %v3838, %v3839
    %v3841 = vrot.slane %v3840, 2
    %v3842 = vadd.f32 %v3840, %v3841
    %v3843 = vrot.slane %v3842, 1
    %v3844 = vadd.f32 %v3842, %v3843
    %v3845 = vsel %vm167, %v3489, 0.0
    %v3846 = vrot.slane %v3845, 4
    %v3847 = vadd.f32 %v3845, %v3846
    %v3848 = vrot.slane %v3847, 2
    %v3849 = vadd.f32 %v3847, %v3848
    %v3850 = vrot.slane %v3849, 1
    %v3851 = vadd.f32 %v3849, %v3850
    %v3852 = vsel %vm167, %v3490, 0.0
    %v3853 = vrot.slane %v3852, 4
    %v3854 = vadd.f32 %v3852, %v3853
    %v3855 = vrot.slane %v3854, 2
    %v3856 = vadd.f32 %v3854, %v3855
    %v3857 = vrot.slane %v3856, 1
    %v3858 = vadd.f32 %v3856, %v3857
    %v3859 = vsel %vm167, %v3491, 0.0
    %v3860 = vrot.slane %v3859, 4
    %v3861 = vadd.f32 %v3859, %v3860
    %v3862 = vrot.slane %v3861, 2
    %v3863 = vadd.f32 %v3861, %v3862
    %v3864 = vrot.slane %v3863, 1
    %v3865 = vadd.f32 %v3863, %v3864
    %v3866 = vsel %vm167, %v3492, 0.0
    %v3867 = vrot.slane %v3866, 4
    %v3868 = vadd.f32 %v3866, %v3867
    %v3869 = vrot.slane %v3868, 2
    %v3870 = vadd.f32 %v3868, %v3869
    %v3871 = vrot.slane %v3870, 1
    %v3872 = vadd.f32 %v3870, %v3871
    %v3873 = vsel %vm167, %v3493, 0.0
    %v3874 = vrot.slane %v3873, 4
    %v3875 = vadd.f32 %v3873, %v3874
    %v3876 = vrot.slane %v3875, 2
    %v3877 = vadd.f32 %v3875, %v3876
    %v3878 = vrot.slane %v3877, 1
    %v3879 = vadd.f32 %v3877, %v3878
    %v3880 = vsel %vm167, %v3494, 0.0
    %v3881 = vrot.slane %v3880, 4
    %v3882 = vadd.f32 %v3880, %v3881
    %v3883 = vrot.slane %v3882, 2
    %v3884 = vadd.f32 %v3882, %v3883
    %v3885 = vrot.slane %v3884, 1
    %v3886 = vadd.f32 %v3884, %v3885
    %s3887 = scalar_lea.vmem %s3, 4
    %v3888 = vld [vmem:[%s3887] sm:$0xf]
    %v3890 = vlaneseq
    %v3891 = vshrl.u32 %v3890, 7
    %v3892 = vsub.s32 0, %v3891
    %v3893 = vrot.slane %v3888, %v3892
    %v3894 = vlaneseq
    %v3895 = vshrl.u32 %v3894, 7
    %v3896 = vsub.s32 1, %v3895
    %v3897 = vrot.slane %v3888, %v3896
    %v3898 = vlaneseq
    %v3899 = vshrl.u32 %v3898, 7
    %v3900 = vsub.s32 2, %v3899
    %v3901 = vrot.slane %v3888, %v3900
    %v3902 = vlaneseq
    %v3903 = vshrl.u32 %v3902, 7
    %v3904 = vsub.s32 3, %v3903
    %v3905 = vrot.slane %v3888, %v3904
    %v3910 = vadd.f32 %v3501, %v3893
    %v3911 = vadd.f32 %v3508, %v3897
    %v3912 = vadd.f32 %v3515, %v3901
    %v3913 = vadd.f32 %v3522, %v3905
    %v3914 = vadd.f32 %v3529, %v3893
    %v3915 = vadd.f32 %v3536, %v3897
    %v3916 = vadd.f32 %v3543, %v3901
    %v3917 = vadd.f32 %v3550, %v3905
    %v3918 = vadd.f32 %v3557, %v3893
    %v3919 = vadd.f32 %v3564, %v3897
    %v3920 = vadd.f32 %v3571, %v3901
    %v3921 = vadd.f32 %v3578, %v3905
    %v3922 = vadd.f32 %v3585, %v3893
    %v3923 = vadd.f32 %v3592, %v3897
    %v3924 = vadd.f32 %v3599, %v3901
    %v3925 = vadd.f32 %v3606, %v3905
    %v3926 = vadd.f32 %v3613, %v3893
    %v3927 = vadd.f32 %v3620, %v3897
    %v3928 = vadd.f32 %v3627, %v3901
    %v3929 = vadd.f32 %v3634, %v3905
    %v3930 = vadd.f32 %v3641, %v3893
    %v3931 = vadd.f32 %v3648, %v3897
    %v3932 = vadd.f32 %v3655, %v3901
    %v3933 = vadd.f32 %v3662, %v3905
    %v3934 = vadd.f32 %v3669, %v3893
    %v3935 = vadd.f32 %v3676, %v3897
    %v3936 = vadd.f32 %v3683, %v3901
    %v3937 = vadd.f32 %v3690, %v3905
    %v3938 = vadd.f32 %v3697, %v3893
    %v3939 = vadd.f32 %v3704, %v3897
    %v3940 = vadd.f32 %v3711, %v3901
    %v3941 = vadd.f32 %v3718, %v3905
    %v3942 = vadd.f32 %v3725, %v3893
    %v3943 = vadd.f32 %v3732, %v3897
    %v3944 = vadd.f32 %v3739, %v3901
    %v3945 = vadd.f32 %v3746, %v3905
    %v3946 = vadd.f32 %v3753, %v3893
    %v3947 = vadd.f32 %v3760, %v3897
    %v3948 = vadd.f32 %v3767, %v3901
    %v3949 = vadd.f32 %v3774, %v3905
    %v3950 = vadd.f32 %v3781, %v3893
    %v3951 = vadd.f32 %v3788, %v3897
    %v3952 = vadd.f32 %v3795, %v3901
    %v3953 = vadd.f32 %v3802, %v3905
    %v3954 = vadd.f32 %v3809, %v3893
    %v3955 = vadd.f32 %v3816, %v3897
    %v3956 = vadd.f32 %v3823, %v3901
    %v3957 = vadd.f32 %v3830, %v3905
    %v3958 = vadd.f32 %v3837, %v3893
    %v3959 = vadd.f32 %v3844, %v3897
    %v3960 = vadd.f32 %v3851, %v3901
    %v3961 = vadd.f32 %v3858, %v3905
    %v3962 = vadd.f32 %v3865, %v3893
    %v3963 = vadd.f32 %v3872, %v3897
    %v3964 = vadd.f32 %v3879, %v3901
    %v3965 = vadd.f32 %v3886, %v3905
    %v3970 = vcombine.low %v3435, %v3436
    %v3971 = vcombine.high %v3435, %v3436
    %v3972 = vcombine.low %v3437, %v3438
    %v3973 = vcombine.high %v3437, %v3438
    %v3975 = vunpack.c.l.s4 1966171168
    %v3976 = vunpack.c.0.s8 %v3975
    %v3977 = vlaneseq
    %v3978 = vshrl.u32 %v3977, 7
    %v3979 = vsub.s32 %v3976, %v3978
    %v3980 = vrot.slane %v3970, %v3979
    %v3982 = vunpack.c.l.s4 1966171168
    %v3983 = vunpack.c.0.s8 %v3982
    %v3984 = vlaneseq
    %v3985 = vshrl.u32 %v3984, 7
    %v3986 = vsub.s32 %v3983, %v3985
    %v3987 = vrot.slane %v3971, %v3986
    %v3989 = vunpack.c.l.s4 1966171168
    %v3990 = vunpack.c.0.s8 %v3989
    %v3991 = vlaneseq
    %v3992 = vshrl.u32 %v3991, 7
    %v3993 = vsub.s32 %v3990, %v3992
    %v3994 = vrot.slane %v3972, %v3993
    %v3996 = vunpack.c.l.s4 1966171168
    %v3997 = vunpack.c.0.s8 %v3996
    %v3998 = vlaneseq
    %v3999 = vshrl.u32 %v3998, 7
    %v4000 = vsub.s32 %v3997, %v3999
    %v4001 = vrot.slane %v3973, %v4000
    %v4002 = vcombine.low %v3980, %v3994
    %v4003 = vcombine.high %v3980, %v3994
    %v4004 = vcombine.low %v3987, %v4001
    %v4005 = vcombine.high %v3987, %v4001
    %v4007 = vunpack.c.l.s4 1966171168
    %v4008 = vunpack.c.0.s8 %v4007
    %v4009 = vlaneseq
    %v4010 = vshrl.u32 %v4009, 7
    %v4011 = vsub.s32 %v4008, %v4010
    %v4012 = vrot.slane %v4002, %v4011
    %v4014 = vunpack.c.l.s4 1966171168
    %v4015 = vunpack.c.0.s8 %v4014
    %v4016 = vlaneseq
    %v4017 = vshrl.u32 %v4016, 7
    %v4018 = vsub.s32 %v4015, %v4017
    %v4019 = vrot.slane %v4004, %v4018
    %v4021 = vunpack.c.l.s4 1966171168
    %v4022 = vunpack.c.0.s8 %v4021
    %v4023 = vlaneseq
    %v4024 = vshrl.u32 %v4023, 7
    %v4025 = vsub.s32 %v4022, %v4024
    %v4026 = vrot.slane %v4003, %v4025
    %v4028 = vunpack.c.l.s4 1966171168
    %v4029 = vunpack.c.0.s8 %v4028
    %v4030 = vlaneseq
    %v4031 = vshrl.u32 %v4030, 7
    %v4032 = vsub.s32 %v4029, %v4031
    %v4033 = vrot.slane %v4005, %v4032
    %v4034 = vcombine.high %v4012, %v4012
    %v4035 = vcombine.high %v4019, %v4019
    %v4036 = vcombine.high %v4026, %v4026
    %v4037 = vlaneseq
    %v4038 = vshrl.u32 %v4037, 7
    %v4039 = vsub.s32 0, %v4038
    %v4040 = vrot.slane %v4012, %v4039
    %v4041 = vlaneseq
    %v4042 = vshrl.u32 %v4041, 7
    %v4043 = vsub.s32 1, %v4042
    %v4044 = vrot.slane %v4012, %v4043
    %v4045 = vlaneseq
    %v4046 = vshrl.u32 %v4045, 7
    %v4047 = vsub.s32 2, %v4046
    %v4048 = vrot.slane %v4012, %v4047
    %v4049 = vlaneseq
    %v4050 = vshrl.u32 %v4049, 7
    %v4051 = vsub.s32 3, %v4050
    %v4052 = vrot.slane %v4012, %v4051
    %v4053 = vlaneseq
    %v4054 = vshrl.u32 %v4053, 7
    %v4055 = vsub.s32 0, %v4054
    %v4056 = vrot.slane %v4026, %v4055
    %v4057 = vlaneseq
    %v4058 = vshrl.u32 %v4057, 7
    %v4059 = vsub.s32 1, %v4058
    %v4060 = vrot.slane %v4026, %v4059
    %v4061 = vlaneseq
    %v4062 = vshrl.u32 %v4061, 7
    %v4063 = vsub.s32 2, %v4062
    %v4064 = vrot.slane %v4026, %v4063
    %v4065 = vlaneseq
    %v4066 = vshrl.u32 %v4065, 7
    %v4067 = vsub.s32 3, %v4066
    %v4068 = vrot.slane %v4026, %v4067
    %v4069 = vlaneseq
    %v4070 = vshrl.u32 %v4069, 7
    %v4071 = vsub.s32 0, %v4070
    %v4072 = vrot.slane %v4034, %v4071
    %v4073 = vlaneseq
    %v4074 = vshrl.u32 %v4073, 7
    %v4075 = vsub.s32 1, %v4074
    %v4076 = vrot.slane %v4034, %v4075
    %v4077 = vlaneseq
    %v4078 = vshrl.u32 %v4077, 7
    %v4079 = vsub.s32 2, %v4078
    %v4080 = vrot.slane %v4034, %v4079
    %v4081 = vlaneseq
    %v4082 = vshrl.u32 %v4081, 7
    %v4083 = vsub.s32 3, %v4082
    %v4084 = vrot.slane %v4034, %v4083
    %v4085 = vlaneseq
    %v4086 = vshrl.u32 %v4085, 7
    %v4087 = vsub.s32 0, %v4086
    %v4088 = vrot.slane %v4036, %v4087
    %v4089 = vlaneseq
    %v4090 = vshrl.u32 %v4089, 7
    %v4091 = vsub.s32 1, %v4090
    %v4092 = vrot.slane %v4036, %v4091
    %v4093 = vlaneseq
    %v4094 = vshrl.u32 %v4093, 7
    %v4095 = vsub.s32 2, %v4094
    %v4096 = vrot.slane %v4036, %v4095
    %v4097 = vlaneseq
    %v4098 = vshrl.u32 %v4097, 7
    %v4099 = vsub.s32 3, %v4098
    %v4100 = vrot.slane %v4036, %v4099
    %v4101 = vlaneseq
    %v4102 = vshrl.u32 %v4101, 7
    %v4103 = vsub.s32 0, %v4102
    %v4104 = vrot.slane %v4019, %v4103
    %v4105 = vlaneseq
    %v4106 = vshrl.u32 %v4105, 7
    %v4107 = vsub.s32 1, %v4106
    %v4108 = vrot.slane %v4019, %v4107
    %v4109 = vlaneseq
    %v4110 = vshrl.u32 %v4109, 7
    %v4111 = vsub.s32 2, %v4110
    %v4112 = vrot.slane %v4019, %v4111
    %v4113 = vlaneseq
    %v4114 = vshrl.u32 %v4113, 7
    %v4115 = vsub.s32 3, %v4114
    %v4116 = vrot.slane %v4019, %v4115
    %v4117 = vlaneseq
    %v4118 = vshrl.u32 %v4117, 7
    %v4119 = vsub.s32 0, %v4118
    %v4120 = vrot.slane %v4033, %v4119
    %v4121 = vlaneseq
    %v4122 = vshrl.u32 %v4121, 7
    %v4123 = vsub.s32 1, %v4122
    %v4124 = vrot.slane %v4033, %v4123
    %v4125 = vlaneseq
    %v4126 = vshrl.u32 %v4125, 7
    %v4127 = vsub.s32 2, %v4126
    %v4128 = vrot.slane %v4033, %v4127
    %v4129 = vlaneseq
    %v4130 = vshrl.u32 %v4129, 7
    %v4131 = vsub.s32 3, %v4130
    %v4132 = vrot.slane %v4033, %v4131
    %v4133 = vlaneseq
    %v4134 = vshrl.u32 %v4133, 7
    %v4135 = vsub.s32 0, %v4134
    %v4136 = vrot.slane %v4035, %v4135
    %v4137 = vlaneseq
    %v4138 = vshrl.u32 %v4137, 7
    %v4139 = vsub.s32 1, %v4138
    %v4140 = vrot.slane %v4035, %v4139
    %v4141 = vlaneseq
    %v4142 = vshrl.u32 %v4141, 7
    %v4143 = vsub.s32 2, %v4142
    %v4144 = vrot.slane %v4035, %v4143
    %v4145 = vlaneseq
    %v4146 = vshrl.u32 %v4145, 7
    %v4147 = vsub.s32 3, %v4146
    %v4148 = vrot.slane %v4035, %v4147
    %v4177 = vmul.f32 %v47, %v4040
    %v4178 = vmul.f32 %v48, %v4044
    %v4179 = vmul.f32 %v49, %v4048
    %v4180 = vmul.f32 %v50, %v4052
    %v4181 = vmul.f32 %v51, %v4056
    %v4182 = vmul.f32 %v52, %v4060
    %v4183 = vmul.f32 %v53, %v4064
    %v4184 = vmul.f32 %v54, %v4068
    %v4185 = vmul.f32 %v55, %v4072
    %v4186 = vmul.f32 %v56, %v4076
    %v4187 = vmul.f32 %v57, %v4080
    %v4188 = vmul.f32 %v58, %v4084
    %v4189 = vmul.f32 %v59, %v4088
    %v4190 = vmul.f32 %v60, %v4092
    %v4191 = vmul.f32 %v61, %v4096
    %v4192 = vmul.f32 %v62, %v4100
    %v4193 = vmul.f32 %v63, %v4104
    %v4194 = vmul.f32 %v64, %v4108
    %v4195 = vmul.f32 %v65, %v4112
    %v4196 = vmul.f32 %v66, %v4116
    %v4197 = vmul.f32 %v67, %v4120
    %v4198 = vmul.f32 %v68, %v4124
    %v4199 = vmul.f32 %v69, %v4128
    %v4200 = vmul.f32 %v70, %v4132
    %v4201 = vmul.f32 %v71, %v4136
    %v4202 = vmul.f32 %v72, %v4140
    %v4203 = vmul.f32 %v73, %v4144
    %v4204 = vmul.f32 %v74, %v4148
    %v4205 = vmul.f32 %v75, %v4040
    %v4206 = vmul.f32 %v76, %v4044
    %v4207 = vmul.f32 %v77, %v4048
    %v4208 = vmul.f32 %v78, %v4052
    %v4209 = vmul.f32 %v79, %v4056
    %v4210 = vmul.f32 %v80, %v4060
    %v4211 = vmul.f32 %v81, %v4064
    %v4212 = vmul.f32 %v82, %v4068
    %v4213 = vmul.f32 %v83, %v4072
    %v4214 = vmul.f32 %v84, %v4076
    %v4215 = vmul.f32 %v85, %v4080
    %v4216 = vmul.f32 %v86, %v4084
    %v4217 = vmul.f32 %v87, %v4088
    %v4218 = vmul.f32 %v88, %v4092
    %v4219 = vmul.f32 %v89, %v4096
    %v4220 = vmul.f32 %v90, %v4100
    %v4221 = vmul.f32 %v91, %v4104
    %v4222 = vmul.f32 %v92, %v4108
    %v4223 = vmul.f32 %v93, %v4112
    %v4224 = vmul.f32 %v94, %v4116
    %v4225 = vmul.f32 %v95, %v4120
    %v4226 = vmul.f32 %v96, %v4124
    %v4227 = vmul.f32 %v97, %v4128
    %v4228 = vmul.f32 %v98, %v4132
    %v4229 = vmul.f32 %v99, %v4136
    %v4230 = vmul.f32 %v100, %v4140
    %v4231 = vmul.f32 %v101, %v4144
    %v4232 = vmul.f32 %v102, %v4148
    %v4233 = vsel %vm167, %v4177, 0.0
    %v4234 = vsel %vm167, %v4181, 0.0
    %v4235 = vadd.f32 %v4233, %v4234
    %v4236 = vsel %vm167, %v4185, 0.0
    %v4237 = vadd.f32 %v4235, %v4236
    %v4238 = vsel %vm167, %v4189, 0.0
    %v4239 = vadd.f32 %v4237, %v4238
    %v4240 = vsel %vm167, %v4193, 0.0
    %v4241 = vadd.f32 %v4239, %v4240
    %v4242 = vsel %vm167, %v4197, 0.0
    %v4243 = vadd.f32 %v4241, %v4242
    %v4244 = vsel %vm167, %v4201, 0.0
    %v4245 = vadd.f32 %v4243, %v4244
    %v4246 = vsel %vm167, %v4178, 0.0
    %v4247 = vsel %vm167, %v4182, 0.0
    %v4248 = vadd.f32 %v4246, %v4247
    %v4249 = vsel %vm167, %v4186, 0.0
    %v4250 = vadd.f32 %v4248, %v4249
    %v4251 = vsel %vm167, %v4190, 0.0
    %v4252 = vadd.f32 %v4250, %v4251
    %v4253 = vsel %vm167, %v4194, 0.0
    %v4254 = vadd.f32 %v4252, %v4253
    %v4255 = vsel %vm167, %v4198, 0.0
    %v4256 = vadd.f32 %v4254, %v4255
    %v4257 = vsel %vm167, %v4202, 0.0
    %v4258 = vadd.f32 %v4256, %v4257
    %v4259 = vsel %vm167, %v4179, 0.0
    %v4260 = vsel %vm167, %v4183, 0.0
    %v4261 = vadd.f32 %v4259, %v4260
    %v4262 = vsel %vm167, %v4187, 0.0
    %v4263 = vadd.f32 %v4261, %v4262
    %v4264 = vsel %vm167, %v4191, 0.0
    %v4265 = vadd.f32 %v4263, %v4264
    %v4266 = vsel %vm167, %v4195, 0.0
    %v4267 = vadd.f32 %v4265, %v4266
    %v4268 = vsel %vm167, %v4199, 0.0
    %v4269 = vadd.f32 %v4267, %v4268
    %v4270 = vsel %vm167, %v4203, 0.0
    %v4271 = vadd.f32 %v4269, %v4270
    %v4272 = vsel %vm167, %v4180, 0.0
    %v4273 = vsel %vm167, %v4184, 0.0
    %v4274 = vadd.f32 %v4272, %v4273
    %v4275 = vsel %vm167, %v4188, 0.0
    %v4276 = vadd.f32 %v4274, %v4275
    %v4277 = vsel %vm167, %v4192, 0.0
    %v4278 = vadd.f32 %v4276, %v4277
    %v4279 = vsel %vm167, %v4196, 0.0
    %v4280 = vadd.f32 %v4278, %v4279
    %v4281 = vsel %vm167, %v4200, 0.0
    %v4282 = vadd.f32 %v4280, %v4281
    %v4283 = vsel %vm167, %v4204, 0.0
    %v4284 = vadd.f32 %v4282, %v4283
    %v4285 = vsel %vm167, %v4205, 0.0
    %v4286 = vsel %vm167, %v4209, 0.0
    %v4287 = vadd.f32 %v4285, %v4286
    %v4288 = vsel %vm167, %v4213, 0.0
    %v4289 = vadd.f32 %v4287, %v4288
    %v4290 = vsel %vm167, %v4217, 0.0
    %v4291 = vadd.f32 %v4289, %v4290
    %v4292 = vsel %vm167, %v4221, 0.0
    %v4293 = vadd.f32 %v4291, %v4292
    %v4294 = vsel %vm167, %v4225, 0.0
    %v4295 = vadd.f32 %v4293, %v4294
    %v4296 = vsel %vm167, %v4229, 0.0
    %v4297 = vadd.f32 %v4295, %v4296
    %v4298 = vsel %vm167, %v4206, 0.0
    %v4299 = vsel %vm167, %v4210, 0.0
    %v4300 = vadd.f32 %v4298, %v4299
    %v4301 = vsel %vm167, %v4214, 0.0
    %v4302 = vadd.f32 %v4300, %v4301
    %v4303 = vsel %vm167, %v4218, 0.0
    %v4304 = vadd.f32 %v4302, %v4303
    %v4305 = vsel %vm167, %v4222, 0.0
    %v4306 = vadd.f32 %v4304, %v4305
    %v4307 = vsel %vm167, %v4226, 0.0
    %v4308 = vadd.f32 %v4306, %v4307
    %v4309 = vsel %vm167, %v4230, 0.0
    %v4310 = vadd.f32 %v4308, %v4309
    %v4311 = vsel %vm167, %v4207, 0.0
    %v4312 = vsel %vm167, %v4211, 0.0
    %v4313 = vadd.f32 %v4311, %v4312
    %v4314 = vsel %vm167, %v4215, 0.0
    %v4315 = vadd.f32 %v4313, %v4314
    %v4316 = vsel %vm167, %v4219, 0.0
    %v4317 = vadd.f32 %v4315, %v4316
    %v4318 = vsel %vm167, %v4223, 0.0
    %v4319 = vadd.f32 %v4317, %v4318
    %v4320 = vsel %vm167, %v4227, 0.0
    %v4321 = vadd.f32 %v4319, %v4320
    %v4322 = vsel %vm167, %v4231, 0.0
    %v4323 = vadd.f32 %v4321, %v4322
    %v4324 = vsel %vm167, %v4208, 0.0
    %v4325 = vsel %vm167, %v4212, 0.0
    %v4326 = vadd.f32 %v4324, %v4325
    %v4327 = vsel %vm167, %v4216, 0.0
    %v4328 = vadd.f32 %v4326, %v4327
    %v4329 = vsel %vm167, %v4220, 0.0
    %v4330 = vadd.f32 %v4328, %v4329
    %v4331 = vsel %vm167, %v4224, 0.0
    %v4332 = vadd.f32 %v4330, %v4331
    %v4333 = vsel %vm167, %v4228, 0.0
    %v4334 = vadd.f32 %v4332, %v4333
    %v4335 = vsel %vm167, %v4232, 0.0
    %v4336 = vadd.f32 %v4334, %v4335
    %s4337 = scalar_lea.vmem %s4, 4
    %v4338 = vld [vmem:[%s4337] sm:$0xf]
    %v4340 = vlaneseq
    %v4341 = vshrl.u32 %v4340, 7
    %v4342 = vsub.s32 0, %v4341
    %v4343 = vrot.slane %v4338, %v4342
    %v4344 = vlaneseq
    %v4345 = vshrl.u32 %v4344, 7
    %v4346 = vsub.s32 1, %v4345
    %v4347 = vrot.slane %v4338, %v4346
    %v4348 = vlaneseq
    %v4349 = vshrl.u32 %v4348, 7
    %v4350 = vsub.s32 2, %v4349
    %v4351 = vrot.slane %v4338, %v4350
    %v4352 = vlaneseq
    %v4353 = vshrl.u32 %v4352, 7
    %v4354 = vsub.s32 3, %v4353
    %v4355 = vrot.slane %v4338, %v4354
    %v4360 = vadd.f32 %v4245, %v4343
    %v4361 = vadd.f32 %v4258, %v4347
    %v4362 = vadd.f32 %v4271, %v4351
    %v4363 = vadd.f32 %v4284, %v4355
    %v4364 = vadd.f32 %v4297, %v4343
    %v4365 = vadd.f32 %v4310, %v4347
    %v4366 = vadd.f32 %v4323, %v4351
    %v4367 = vadd.f32 %v4336, %v4355
    %s4368 = scalar_lea.vmem %s5, 512
    %v4369 = vld [vmem:[%s4368] sm:$0xff]
    %v4370 = vld [vmem:[%s4368 + $0x8] sm:$0xff]
    %v4371 = vld [vmem:[%s4368 + $0x10] sm:$0xff]
    %v4372 = vld [vmem:[%s4368 + $0x18] sm:$0xff]
    %v4373 = vld [vmem:[%s4368 + $0x20] sm:$0xff]
    %v4374 = vld [vmem:[%s4368 + $0x28] sm:$0xff]
    %v4375 = vld [vmem:[%s4368 + $0x30] sm:$0xff]
    %v4376 = vld [vmem:[%s4368 + $0x38] sm:$0xff]
    %v4377 = vld [vmem:[%s4368 + $0x40] sm:$0xff]
    %v4378 = vld [vmem:[%s4368 + $0x48] sm:$0xff]
    %v4379 = vld [vmem:[%s4368 + $0x50] sm:$0xff]
    %v4380 = vld [vmem:[%s4368 + $0x58] sm:$0xff]
    %v4381 = vld [vmem:[%s4368 + $0x60] sm:$0xff]
    %v4382 = vld [vmem:[%s4368 + $0x68] sm:$0xff]
    %v4383 = vld [vmem:[%s4368 + $0x70] sm:$0xff]
    %v4384 = vld [vmem:[%s4368 + $0x78] sm:$0xff]
    %v4385 = vld [vmem:[%s4368 + $0x80] sm:$0xff]
    %v4386 = vld [vmem:[%s4368 + $0x88] sm:$0xff]
    %v4387 = vld [vmem:[%s4368 + $0x90] sm:$0xff]
    %v4388 = vld [vmem:[%s4368 + $0x98] sm:$0xff]
    %v4389 = vld [vmem:[%s4368 + $0xa0] sm:$0xff]
    %v4390 = vld [vmem:[%s4368 + $0xa8] sm:$0xff]
    %v4391 = vld [vmem:[%s4368 + $0xb0] sm:$0xff]
    %v4392 = vld [vmem:[%s4368 + $0xb8] sm:$0xff]
    %v4393 = vld [vmem:[%s4368 + $0xc0] sm:$0xff]
    %v4394 = vld [vmem:[%s4368 + $0xc8] sm:$0xff]
    %v4395 = vld [vmem:[%s4368 + $0xd0] sm:$0xff]
    %v4396 = vld [vmem:[%s4368 + $0xd8] sm:$0xff]
    %v4397 = vld [vmem:[%s4368 + $0xe0] sm:$0xff]
    %v4398 = vld [vmem:[%s4368 + $0xe8] sm:$0xff]
    %v4399 = vld [vmem:[%s4368 + $0xf0] sm:$0xff]
    %v4400 = vld [vmem:[%s4368 + $0xf8] sm:$0xff]
    %v4401 = vld [vmem:[%s4368 + $0x100] sm:$0xff]
    %v4402 = vld [vmem:[%s4368 + $0x108] sm:$0xff]
    %v4403 = vld [vmem:[%s4368 + $0x110] sm:$0xff]
    %v4404 = vld [vmem:[%s4368 + $0x118] sm:$0xff]
    %v4405 = vld [vmem:[%s4368 + $0x120] sm:$0xff]
    %v4406 = vld [vmem:[%s4368 + $0x128] sm:$0xff]
    %v4407 = vld [vmem:[%s4368 + $0x130] sm:$0xff]
    %v4408 = vld [vmem:[%s4368 + $0x138] sm:$0xff]
    %v4409 = vld [vmem:[%s4368 + $0x140] sm:$0xff]
    %v4410 = vld [vmem:[%s4368 + $0x148] sm:$0xff]
    %v4411 = vld [vmem:[%s4368 + $0x150] sm:$0xff]
    %v4412 = vld [vmem:[%s4368 + $0x158] sm:$0xff]
    %v4413 = vld [vmem:[%s4368 + $0x160] sm:$0xff]
    %v4414 = vld [vmem:[%s4368 + $0x168] sm:$0xff]
    %v4415 = vld [vmem:[%s4368 + $0x170] sm:$0xff]
    %v4416 = vld [vmem:[%s4368 + $0x178] sm:$0xff]
    %v4417 = vld [vmem:[%s4368 + $0x180] sm:$0xff]
    %v4418 = vld [vmem:[%s4368 + $0x188] sm:$0xff]
    %v4419 = vld [vmem:[%s4368 + $0x190] sm:$0xff]
    %v4420 = vld [vmem:[%s4368 + $0x198] sm:$0xff]
    %v4421 = vld [vmem:[%s4368 + $0x1a0] sm:$0xff]
    %v4422 = vld [vmem:[%s4368 + $0x1a8] sm:$0xff]
    %v4423 = vld [vmem:[%s4368 + $0x1b0] sm:$0xff]
    %v4424 = vld [vmem:[%s4368 + $0x1b8] sm:$0xff]
    %v4425 = vld [vmem:[%s4368 + $0x1c0] sm:$0xff]
    %v4426 = vld [vmem:[%s4368 + $0x1c8] sm:$0xff]
    %v4427 = vld [vmem:[%s4368 + $0x1d0] sm:$0xff]
    %v4428 = vld [vmem:[%s4368 + $0x1d8] sm:$0xff]
    %v4429 = vld [vmem:[%s4368 + $0x1e0] sm:$0xff]
    %v4430 = vld [vmem:[%s4368 + $0x1e8] sm:$0xff]
    %v4431 = vld [vmem:[%s4368 + $0x1f0] sm:$0xff]
    %v4432 = vld [vmem:[%s4368 + $0x1f8] sm:$0xff]
    %s4433 = scalar_lea.vmem %s6, 1
    %v4434 = vld [vmem:[%s4433] sm:$0x1]
    %v4436 = vlaneseq
    %v4437 = vshrl.u32 %v4436, 7
    %v4438 = vsub.s32 0, %v4437
    %v4439 = vrot.slane %v4434, %v4438
    %v4497 = vrot.slane %v3914, 7
    %v4498 = vsel %vm1167, %v4497, %v3910
    %v4499 = vrot.slane %v3918, 6
    %v4500 = vsel %vm1170, %v4499, %v4498
    %v4501 = vrot.slane %v3922, 5
    %v4502 = vsel %vm1173, %v4501, %v4500
    %v4503 = vrot.slane %v3926, 4
    %v4504 = vsel %vm1176, %v4503, %v4502
    %v4505 = vrot.slane %v3930, 3
    %v4506 = vsel %vm1179, %v4505, %v4504
    %v4507 = vrot.slane %v3934, 2
    %v4508 = vsel %vm1182, %v4507, %v4506
    %v4509 = vrot.slane %v3938, 1
    %v4510 = vsel %vm1185, %v4509, %v4508
    %v4511 = vrot.slane %v3915, 7
    %v4512 = vsel %vm1167, %v4511, %v3911
    %v4513 = vrot.slane %v3919, 6
    %v4514 = vsel %vm1170, %v4513, %v4512
    %v4515 = vrot.slane %v3923, 5
    %v4516 = vsel %vm1173, %v4515, %v4514
    %v4517 = vrot.slane %v3927, 4
    %v4518 = vsel %vm1176, %v4517, %v4516
    %v4519 = vrot.slane %v3931, 3
    %v4520 = vsel %vm1179, %v4519, %v4518
    %v4521 = vrot.slane %v3935, 2
    %v4522 = vsel %vm1182, %v4521, %v4520
    %v4523 = vrot.slane %v3939, 1
    %v4524 = vsel %vm1185, %v4523, %v4522
    %v4525 = vrot.slane %v3916, 7
    %v4526 = vsel %vm1167, %v4525, %v3912
    %v4527 = vrot.slane %v3920, 6
    %v4528 = vsel %vm1170, %v4527, %v4526
    %v4529 = vrot.slane %v3924, 5
    %v4530 = vsel %vm1173, %v4529, %v4528
    %v4531 = vrot.slane %v3928, 4
    %v4532 = vsel %vm1176, %v4531, %v4530
    %v4533 = vrot.slane %v3932, 3
    %v4534 = vsel %vm1179, %v4533, %v4532
    %v4535 = vrot.slane %v3936, 2
    %v4536 = vsel %vm1182, %v4535, %v4534
    %v4537 = vrot.slane %v3940, 1
    %v4538 = vsel %vm1185, %v4537, %v4536
    %v4539 = vrot.slane %v3917, 7
    %v4540 = vsel %vm1167, %v4539, %v3913
    %v4541 = vrot.slane %v3921, 6
    %v4542 = vsel %vm1170, %v4541, %v4540
    %v4543 = vrot.slane %v3925, 5
    %v4544 = vsel %vm1173, %v4543, %v4542
    %v4545 = vrot.slane %v3929, 4
    %v4546 = vsel %vm1176, %v4545, %v4544
    %v4547 = vrot.slane %v3933, 3
    %v4548 = vsel %vm1179, %v4547, %v4546
    %v4549 = vrot.slane %v3937, 2
    %v4550 = vsel %vm1182, %v4549, %v4548
    %v4551 = vrot.slane %v3941, 1
    %v4552 = vsel %vm1185, %v4551, %v4550
    %v4553 = vrot.slane %v3946, 7
    %v4554 = vsel %vm1167, %v4553, %v3942
    %v4555 = vrot.slane %v3950, 6
    %v4556 = vsel %vm1170, %v4555, %v4554
    %v4557 = vrot.slane %v3954, 5
    %v4558 = vsel %vm1173, %v4557, %v4556
    %v4559 = vrot.slane %v3958, 4
    %v4560 = vsel %vm1176, %v4559, %v4558
    %v4561 = vrot.slane %v3962, 3
    %v4562 = vsel %vm1179, %v4561, %v4560
    %v4563 = vrot.slane %v3947, 7
    %v4564 = vsel %vm1167, %v4563, %v3943
    %v4565 = vrot.slane %v3951, 6
    %v4566 = vsel %vm1170, %v4565, %v4564
    %v4567 = vrot.slane %v3955, 5
    %v4568 = vsel %vm1173, %v4567, %v4566
    %v4569 = vrot.slane %v3959, 4
    %v4570 = vsel %vm1176, %v4569, %v4568
    %v4571 = vrot.slane %v3963, 3
    %v4572 = vsel %vm1179, %v4571, %v4570
    %v4573 = vrot.slane %v3948, 7
    %v4574 = vsel %vm1167, %v4573, %v3944
    %v4575 = vrot.slane %v3952, 6
    %v4576 = vsel %vm1170, %v4575, %v4574
    %v4577 = vrot.slane %v3956, 5
    %v4578 = vsel %vm1173, %v4577, %v4576
    %v4579 = vrot.slane %v3960, 4
    %v4580 = vsel %vm1176, %v4579, %v4578
    %v4581 = vrot.slane %v3964, 3
    %v4582 = vsel %vm1179, %v4581, %v4580
    %v4583 = vrot.slane %v3949, 7
    %v4584 = vsel %vm1167, %v4583, %v3945
    %v4585 = vrot.slane %v3953, 6
    %v4586 = vsel %vm1170, %v4585, %v4584
    %v4587 = vrot.slane %v3957, 5
    %v4588 = vsel %vm1173, %v4587, %v4586
    %v4589 = vrot.slane %v3961, 4
    %v4590 = vsel %vm1176, %v4589, %v4588
    %v4591 = vrot.slane %v3965, 3
    %v4592 = vsel %vm1179, %v4591, %v4590
    %4601 = vmatprep.subr.mxu0 0.0
    %4602 = vmatpush1.msra.mxu0 %v4384
    %4603 = vmatprep.subr.mxu0 0.0
    %4604 = vmatpush1.msra.mxu0 %v4383
    %4605 = vmatprep.subr.mxu0 0.0
    %4606 = vmatpush1.msra.mxu0 %v4382
    %4607 = vmatprep.subr.mxu0 0.0
    %4608 = vmatpush1.msra.mxu0 %v4381
    %4609 = vmatprep.subr.mxu0 0.0
    %4610 = vmatpush1.msra.mxu0 %v4380
    %4611 = vmatprep.subr.mxu0 0.0
    %4612 = vmatpush1.msra.mxu0 %v4379
    %4613 = vmatprep.subr.mxu0 0.0
    %4614 = vmatpush1.msra.mxu0 %v4378
    %4615 = vmatprep.subr.mxu0 0.0
    %4616 = vmatpush1.msra.mxu0 %v4377
    %4617 = vmatprep.subr.mxu0 0.0
    %4618 = vmatpush1.msra.mxu0 %v4376
    %4619 = vmatprep.subr.mxu0 0.0
    %4620 = vmatpush1.msra.mxu0 %v4375
    %4621 = vmatprep.subr.mxu0 0.0
    %4622 = vmatpush1.msra.mxu0 %v4374
    %4623 = vmatprep.subr.mxu0 0.0
    %4624 = vmatpush1.msra.mxu0 %v4373
    %4625 = vmatprep.subr.mxu0 0.0
    %4626 = vmatpush1.msra.mxu0 %v4372
    %4627 = vmatprep.subr.mxu0 0.0
    %4628 = vmatpush1.msra.mxu0 %v4371
    %4629 = vmatprep.subr.mxu0 0.0
    %4630 = vmatpush1.msra.mxu0 %v4370
    %4631 = vmatprep.subr.mxu0 0.0
    %4632 = vmatpush1.msra.mxu0 %v4369
    %4633 = vmatprep.subr.mxu0 0.0
    %4634 = vmatpush2.msra.mxu0 %v4400
    %4635 = vmatprep.subr.mxu0 0.0
    %4636 = vmatpush2.msra.mxu0 %v4399
    %4637 = vmatprep.subr.mxu0 0.0
    %4638 = vmatpush2.msra.mxu0 %v4398
    %4639 = vmatprep.subr.mxu0 0.0
    %4640 = vmatpush2.msra.mxu0 %v4397
    %4641 = vmatprep.subr.mxu0 0.0
    %4642 = vmatpush2.msra.mxu0 %v4396
    %4643 = vmatprep.subr.mxu0 0.0
    %4644 = vmatpush2.msra.mxu0 %v4395
    %4645 = vmatprep.subr.mxu0 0.0
    %4646 = vmatpush2.msra.mxu0 %v4394
    %4647 = vmatprep.subr.mxu0 0.0
    %4648 = vmatpush2.msra.mxu0 %v4393
    %4649 = vmatprep.subr.mxu0 0.0
    %4650 = vmatpush2.msra.mxu0 %v4392
    %4651 = vmatprep.subr.mxu0 0.0
    %4652 = vmatpush2.msra.mxu0 %v4391
    %4653 = vmatprep.subr.mxu0 0.0
    %4654 = vmatpush2.msra.mxu0 %v4390
    %4655 = vmatprep.subr.mxu0 0.0
    %4656 = vmatpush2.msra.mxu0 %v4389
    %4657 = vmatprep.subr.mxu0 0.0
    %4658 = vmatpush2.msra.mxu0 %v4388
    %4659 = vmatprep.subr.mxu0 0.0
    %4660 = vmatpush2.msra.mxu0 %v4387
    %4661 = vmatprep.subr.mxu0 0.0
    %4662 = vmatpush2.msra.mxu0 %v4386
    %4663 = vmatprep.subr.mxu0 0.0
    %4664 = vmatpush2.msra.mxu0 %v4385
    %4665 = vmatprep.mubr.f32.mxu0 %v4524
    %4666 = vmatmul.mubr.f32.gmra.mxu0 %v4510
    %v4667 = vpop.f32.mrf.mxu0
    %v4668 = vadd.f32 %v4439, %v4667
    %v4669 = vpop.f32.mrf.mxu0
    %4670 = vmatprep.mubr.f32.mxu0 %v4572
    %4671 = vmatmul.mubr.f32.gmra.mxu0 %v4562
    %v4672 = vpop.f32.mrf.mxu0
    %v4673 = vadd.f32 %v4439, %v4672
    %v4674 = vpop.f32.mrf.mxu0
    %4675 = vdwg.mxu0
    %4676 = vmatprep.subr.mxu0 0.0
    %4677 = vmatpush1.msra.mxu0 %v4416
    %4678 = vmatprep.subr.mxu0 0.0
    %4679 = vmatpush1.msra.mxu0 %v4415
    %4680 = vmatprep.subr.mxu0 0.0
    %4681 = vmatpush1.msra.mxu0 %v4414
    %4682 = vmatprep.subr.mxu0 0.0
    %4683 = vmatpush1.msra.mxu0 %v4413
    %4684 = vmatprep.subr.mxu0 0.0
    %4685 = vmatpush1.msra.mxu0 %v4412
    %4686 = vmatprep.subr.mxu0 0.0
    %4687 = vmatpush1.msra.mxu0 %v4411
    %4688 = vmatprep.subr.mxu0 0.0
    %4689 = vmatpush1.msra.mxu0 %v4410
    %4690 = vmatprep.subr.mxu0 0.0
    %4691 = vmatpush1.msra.mxu0 %v4409
    %4692 = vmatprep.subr.mxu0 0.0
    %4693 = vmatpush1.msra.mxu0 %v4408
    %4694 = vmatprep.subr.mxu0 0.0
    %4695 = vmatpush1.msra.mxu0 %v4407
    %4696 = vmatprep.subr.mxu0 0.0
    %4697 = vmatpush1.msra.mxu0 %v4406
    %4698 = vmatprep.subr.mxu0 0.0
    %4699 = vmatpush1.msra.mxu0 %v4405
    %4700 = vmatprep.subr.mxu0 0.0
    %4701 = vmatpush1.msra.mxu0 %v4404
    %4702 = vmatprep.subr.mxu0 0.0
    %4703 = vmatpush1.msra.mxu0 %v4403
    %4704 = vmatprep.subr.mxu0 0.0
    %4705 = vmatpush1.msra.mxu0 %v4402
    %4706 = vmatprep.subr.mxu0 0.0
    %4707 = vmatpush1.msra.mxu0 %v4401
    %4708 = vmatprep.subr.mxu0 0.0
    %4709 = vmatpush2.msra.mxu0 %v4432
    %4710 = vmatprep.subr.mxu0 0.0
    %4711 = vmatpush2.msra.mxu0 %v4431
    %4712 = vmatprep.subr.mxu0 0.0
    %4713 = vmatpush2.msra.mxu0 %v4430
    %4714 = vmatprep.subr.mxu0 0.0
    %4715 = vmatpush2.msra.mxu0 %v4429
    %4716 = vmatprep.subr.mxu0 0.0
    %4717 = vmatpush2.msra.mxu0 %v4428
    %4718 = vmatprep.subr.mxu0 0.0
    %4719 = vmatpush2.msra.mxu0 %v4427
    %4720 = vmatprep.subr.mxu0 0.0
    %4721 = vmatpush2.msra.mxu0 %v4426
    %4722 = vmatprep.subr.mxu0 0.0
    %4723 = vmatpush2.msra.mxu0 %v4425
    %4724 = vmatprep.subr.mxu0 0.0
    %4725 = vmatpush2.msra.mxu0 %v4424
    %4726 = vmatprep.subr.mxu0 0.0
    %4727 = vmatpush2.msra.mxu0 %v4423
    %4728 = vmatprep.subr.mxu0 0.0
    %4729 = vmatpush2.msra.mxu0 %v4422
    %4730 = vmatprep.subr.mxu0 0.0
    %4731 = vmatpush2.msra.mxu0 %v4421
    %4732 = vmatprep.subr.mxu0 0.0
    %4733 = vmatpush2.msra.mxu0 %v4420
    %4734 = vmatprep.subr.mxu0 0.0
    %4735 = vmatpush2.msra.mxu0 %v4419
    %4736 = vmatprep.subr.mxu0 0.0
    %4737 = vmatpush2.msra.mxu0 %v4418
    %4738 = vmatprep.subr.mxu0 0.0
    %4739 = vmatpush2.msra.mxu0 %v4417
    %4740 = vmatprep.mubr.f32.mxu0 %v4552
    %4741 = vmatmul.mubr.f32.gmra.mxu0 %v4538
    %v4742 = vpop.f32.mrf.mxu0
    %v4743 = vadd.f32 %v4668, %v4742
    %v4744 = vpop.f32.mrf.mxu0
    %4745 = vmatprep.mubr.f32.mxu0 %v4592
    %4746 = vmatmul.mubr.f32.gmra.mxu0 %v4582
    %v4747 = vpop.f32.mrf.mxu0
    %v4748 = vadd.f32 %v4673, %v4747
    %v4749 = vpop.f32.mrf.mxu0
    %4750 = vdwg.mxu0
    %v4751 = vadd.f32 %v4743, 3.0
    %v4752 = vadd.f32 %v4748, 3.0
    %v4753 = vmax.f32 %v4751, 0.0
    %v4754 = vmax.f32 %v4752, 0.0
    %v4755 = vmin.f32 %v4753, 6.0
    %v4756 = vmin.f32 %v4754, 6.0
    %v4757 = vmul.f32 %v4755, %v1433
    %v4758 = vmul.f32 %v4756, %v1433
    %v4759 = vmul.f32 %v4743, %v4757
    %v4760 = vmul.f32 %v4748, %v4758
    %v4769 = vcombine.low %v4360, %v4361
    %v4770 = vcombine.high %v4360, %v4361
    %v4771 = vcombine.low %v4362, %v4363
    %v4772 = vcombine.high %v4362, %v4363
    %v4774 = vunpack.c.l.s4 1966171168
    %v4775 = vunpack.c.0.s8 %v4774
    %v4776 = vlaneseq
    %v4777 = vshrl.u32 %v4776, 7
    %v4778 = vsub.s32 %v4775, %v4777
    %v4779 = vrot.slane %v4769, %v4778
    %v4781 = vunpack.c.l.s4 1966171168
    %v4782 = vunpack.c.0.s8 %v4781
    %v4783 = vlaneseq
    %v4784 = vshrl.u32 %v4783, 7
    %v4785 = vsub.s32 %v4782, %v4784
    %v4786 = vrot.slane %v4770, %v4785
    %v4788 = vunpack.c.l.s4 1966171168
    %v4789 = vunpack.c.0.s8 %v4788
    %v4790 = vlaneseq
    %v4791 = vshrl.u32 %v4790, 7
    %v4792 = vsub.s32 %v4789, %v4791
    %v4793 = vrot.slane %v4771, %v4792
    %v4795 = vunpack.c.l.s4 1966171168
    %v4796 = vunpack.c.0.s8 %v4795
    %v4797 = vlaneseq
    %v4798 = vshrl.u32 %v4797, 7
    %v4799 = vsub.s32 %v4796, %v4798
    %v4800 = vrot.slane %v4772, %v4799
    %v4801 = vcombine.low %v4779, %v4793
    %v4802 = vcombine.high %v4779, %v4793
    %v4803 = vcombine.low %v4786, %v4800
    %v4804 = vcombine.high %v4786, %v4800
    %v4806 = vunpack.c.l.s4 1966171168
    %v4807 = vunpack.c.0.s8 %v4806
    %v4808 = vlaneseq
    %v4809 = vshrl.u32 %v4808, 7
    %v4810 = vsub.s32 %v4807, %v4809
    %v4811 = vrot.slane %v4801, %v4810
    %v4813 = vunpack.c.l.s4 1966171168
    %v4814 = vunpack.c.0.s8 %v4813
    %v4815 = vlaneseq
    %v4816 = vshrl.u32 %v4815, 7
    %v4817 = vsub.s32 %v4814, %v4816
    %v4818 = vrot.slane %v4803, %v4817
    %v4820 = vunpack.c.l.s4 1966171168
    %v4821 = vunpack.c.0.s8 %v4820
    %v4822 = vlaneseq
    %v4823 = vshrl.u32 %v4822, 7
    %v4824 = vsub.s32 %v4821, %v4823
    %v4825 = vrot.slane %v4802, %v4824
    %v4827 = vunpack.c.l.s4 1966171168
    %v4828 = vunpack.c.0.s8 %v4827
    %v4829 = vlaneseq
    %v4830 = vshrl.u32 %v4829, 7
    %v4831 = vsub.s32 %v4828, %v4830
    %v4832 = vrot.slane %v4804, %v4831
    %v4833 = vcombine.high %v4811, %v4811
    %v4834 = vcombine.high %v4818, %v4818
    %v4835 = vcombine.high %v4825, %v4825
    %v4836 = vcombine.low %v4364, %v4365
    %v4837 = vcombine.high %v4364, %v4365
    %v4838 = vcombine.low %v4366, %v4367
    %v4839 = vcombine.high %v4366, %v4367
    %v4841 = vunpack.c.l.s4 1966171168
    %v4842 = vunpack.c.0.s8 %v4841
    %v4843 = vlaneseq
    %v4844 = vshrl.u32 %v4843, 7
    %v4845 = vsub.s32 %v4842, %v4844
    %v4846 = vrot.slane %v4836, %v4845
    %v4848 = vunpack.c.l.s4 1966171168
    %v4849 = vunpack.c.0.s8 %v4848
    %v4850 = vlaneseq
    %v4851 = vshrl.u32 %v4850, 7
    %v4852 = vsub.s32 %v4849, %v4851
    %v4853 = vrot.slane %v4837, %v4852
    %v4855 = vunpack.c.l.s4 1966171168
    %v4856 = vunpack.c.0.s8 %v4855
    %v4857 = vlaneseq
    %v4858 = vshrl.u32 %v4857, 7
    %v4859 = vsub.s32 %v4856, %v4858
    %v4860 = vrot.slane %v4838, %v4859
    %v4862 = vunpack.c.l.s4 1966171168
    %v4863 = vunpack.c.0.s8 %v4862
    %v4864 = vlaneseq
    %v4865 = vshrl.u32 %v4864, 7
    %v4866 = vsub.s32 %v4863, %v4865
    %v4867 = vrot.slane %v4839, %v4866
    %v4868 = vcombine.low %v4846, %v4860
    %v4869 = vcombine.high %v4846, %v4860
    %v4870 = vcombine.low %v4853, %v4867
    %v4871 = vcombine.high %v4853, %v4867
    %v4873 = vunpack.c.l.s4 1966171168
    %v4874 = vunpack.c.0.s8 %v4873
    %v4875 = vlaneseq
    %v4876 = vshrl.u32 %v4875, 7
    %v4877 = vsub.s32 %v4874, %v4876
    %v4878 = vrot.slane %v4868, %v4877
    %v4880 = vunpack.c.l.s4 1966171168
    %v4881 = vunpack.c.0.s8 %v4880
    %v4882 = vlaneseq
    %v4883 = vshrl.u32 %v4882, 7
    %v4884 = vsub.s32 %v4881, %v4883
    %v4885 = vrot.slane %v4870, %v4884
    %v4887 = vunpack.c.l.s4 1966171168
    %v4888 = vunpack.c.0.s8 %v4887
    %v4889 = vlaneseq
    %v4890 = vshrl.u32 %v4889, 7
    %v4891 = vsub.s32 %v4888, %v4890
    %v4892 = vrot.slane %v4869, %v4891
    %v4894 = vunpack.c.l.s4 1966171168
    %v4895 = vunpack.c.0.s8 %v4894
    %v4896 = vlaneseq
    %v4897 = vshrl.u32 %v4896, 7
    %v4898 = vsub.s32 %v4895, %v4897
    %v4899 = vrot.slane %v4871, %v4898
    %v4900 = vcombine.high %v4878, %v4878
    %v4901 = vcombine.high %v4885, %v4885
    %v4902 = vcombine.high %v4892, %v4892
    %v4903 = vcombine.low %v4811, %v4825
    %v4904 = vcombine.low %v4833, %v4835
    %v4905 = vcombine.low %v4818, %v4832
    %v4906 = vcombine.low %v4834, %v4878
    %v4908 = vunpack.c.l.s4 1966171168
    %v4909 = vunpack.c.0.s8 %v4908
    %v4910 = vlaneseq
    %v4911 = vshrl.u32 %v4910, 7
    %v4912 = vsub.s32 %v4909, %v4911
    %v4913 = vrot.slane %v4903, %v4912
    %v4915 = vunpack.c.l.s4 1966171168
    %v4916 = vunpack.c.0.s8 %v4915
    %v4917 = vlaneseq
    %v4918 = vshrl.u32 %v4917, 7
    %v4919 = vsub.s32 %v4916, %v4918
    %v4920 = vrot.slane %v4904, %v4919
    %v4922 = vunpack.c.l.s4 1966171168
    %v4923 = vunpack.c.0.s8 %v4922
    %v4924 = vlaneseq
    %v4925 = vshrl.u32 %v4924, 7
    %v4926 = vsub.s32 %v4923, %v4925
    %v4927 = vrot.slane %v4905, %v4926
    %v4929 = vunpack.c.l.s4 1966171168
    %v4930 = vunpack.c.0.s8 %v4929
    %v4931 = vlaneseq
    %v4932 = vshrl.u32 %v4931, 7
    %v4933 = vsub.s32 %v4930, %v4932
    %v4934 = vrot.slane %v4906, %v4933
    %v4935 = vcombine.low %v4913, %v4920
    %v4936 = vcombine.high %v4913, %v4920
    %v4937 = vcombine.low %v4927, %v4934
    %v4938 = vcombine.high %v4927, %v4934
    %v4940 = vunpack.c.l.s4 1966171168
    %v4941 = vunpack.c.0.s8 %v4940
    %v4942 = vlaneseq
    %v4943 = vshrl.u32 %v4942, 7
    %v4944 = vsub.s32 %v4941, %v4943
    %v4945 = vrot.slane %v4935, %v4944
    %v4947 = vunpack.c.l.s4 1966171168
    %v4948 = vunpack.c.0.s8 %v4947
    %v4949 = vlaneseq
    %v4950 = vshrl.u32 %v4949, 7
    %v4951 = vsub.s32 %v4948, %v4950
    %v4952 = vrot.slane %v4936, %v4951
    %v4954 = vunpack.c.l.s4 1966171168
    %v4955 = vunpack.c.0.s8 %v4954
    %v4956 = vlaneseq
    %v4957 = vshrl.u32 %v4956, 7
    %v4958 = vsub.s32 %v4955, %v4957
    %v4959 = vrot.slane %v4937, %v4958
    %v4961 = vunpack.c.l.s4 1966171168
    %v4962 = vunpack.c.0.s8 %v4961
    %v4963 = vlaneseq
    %v4964 = vshrl.u32 %v4963, 7
    %v4965 = vsub.s32 %v4962, %v4964
    %v4966 = vrot.slane %v4938, %v4965
    %v4967 = vcombine.low %v4945, %v4959
    %v4968 = vcombine.high %v4945, %v4959
    %v4969 = vcombine.low %v4952, %v4966
    %v4970 = vcombine.high %v4952, %v4966
    %v4971 = vcombine.low %v4892, %v4900
    %v4972 = vcombine.low %v4902, %v4885
    %v4973 = vcombine.low %v4899, %v4901
    %v4975 = vunpack.c.l.s4 1966171168
    %v4976 = vunpack.c.0.s8 %v4975
    %v4977 = vlaneseq
    %v4978 = vshrl.u32 %v4977, 7
    %v4979 = vsub.s32 %v4976, %v4978
    %v4980 = vrot.slane %v4971, %v4979
    %v4982 = vunpack.c.l.s4 1966171168
    %v4983 = vunpack.c.0.s8 %v4982
    %v4984 = vlaneseq
    %v4985 = vshrl.u32 %v4984, 7
    %v4986 = vsub.s32 %v4983, %v4985
    %v4987 = vrot.slane %v4972, %v4986
    %v4989 = vunpack.c.l.s4 1966171168
    %v4990 = vunpack.c.0.s8 %v4989
    %v4991 = vlaneseq
    %v4992 = vshrl.u32 %v4991, 7
    %v4993 = vsub.s32 %v4990, %v4992
    %v4994 = vrot.slane %v4973, %v4993
    %v4995 = vcombine.low %v4980, %v4987
    %v4996 = vcombine.high %v4980, %v4987
    %v4997 = vcombine.high %v4994, %v4994
    %v4999 = vunpack.c.l.s4 1966171168
    %v5000 = vunpack.c.0.s8 %v4999
    %v5001 = vlaneseq
    %v5002 = vshrl.u32 %v5001, 7
    %v5003 = vsub.s32 %v5000, %v5002
    %v5004 = vrot.slane %v4995, %v5003
    %v5006 = vunpack.c.l.s4 1966171168
    %v5007 = vunpack.c.0.s8 %v5006
    %v5008 = vlaneseq
    %v5009 = vshrl.u32 %v5008, 7
    %v5010 = vsub.s32 %v5007, %v5009
    %v5011 = vrot.slane %v4996, %v5010
    %v5013 = vunpack.c.l.s4 1966171168
    %v5014 = vunpack.c.0.s8 %v5013
    %v5015 = vlaneseq
    %v5016 = vshrl.u32 %v5015, 7
    %v5017 = vsub.s32 %v5014, %v5016
    %v5018 = vrot.slane %v4994, %v5017
    %v5020 = vunpack.c.l.s4 1966171168
    %v5021 = vunpack.c.0.s8 %v5020
    %v5022 = vlaneseq
    %v5023 = vshrl.u32 %v5022, 7
    %v5024 = vsub.s32 %v5021, %v5023
    %v5025 = vrot.slane %v4997, %v5024
    %v5026 = vcombine.low %v5004, %v5018
    %v5027 = vcombine.high %v5004, %v5018
    %v5028 = vcombine.low %v5011, %v5025
    %v5029 = vcombine.high %v5011, %v5025
    %5038 = vmatprep.subr.mxu0 0.0
    %5039 = vmatpush1.msra.mxu0 %v4384
    %5040 = vmatprep.subr.mxu0 0.0
    %5041 = vmatpush1.msra.mxu0 %v4383
    %5042 = vmatprep.subr.mxu0 0.0
    %5043 = vmatpush1.msra.mxu0 %v4382
    %5044 = vmatprep.subr.mxu0 0.0
    %5045 = vmatpush1.msra.mxu0 %v4381
    %5046 = vmatprep.subr.mxu0 0.0
    %5047 = vmatpush1.msra.mxu0 %v4380
    %5048 = vmatprep.subr.mxu0 0.0
    %5049 = vmatpush1.msra.mxu0 %v4379
    %5050 = vmatprep.subr.mxu0 0.0
    %5051 = vmatpush1.msra.mxu0 %v4378
    %5052 = vmatprep.subr.mxu0 0.0
    %5053 = vmatpush1.msra.mxu0 %v4377
    %5054 = vmatprep.subr.mxu0 0.0
    %5055 = vmatpush1.msra.mxu0 %v4376
    %5056 = vmatprep.subr.mxu0 0.0
    %5057 = vmatpush1.msra.mxu0 %v4375
    %5058 = vmatprep.subr.mxu0 0.0
    %5059 = vmatpush1.msra.mxu0 %v4374
    %5060 = vmatprep.subr.mxu0 0.0
    %5061 = vmatpush1.msra.mxu0 %v4373
    %5062 = vmatprep.subr.mxu0 0.0
    %5063 = vmatpush1.msra.mxu0 %v4372
    %5064 = vmatprep.subr.mxu0 0.0
    %5065 = vmatpush1.msra.mxu0 %v4371
    %5066 = vmatprep.subr.mxu0 0.0
    %5067 = vmatpush1.msra.mxu0 %v4370
    %5068 = vmatprep.subr.mxu0 0.0
    %5069 = vmatpush1.msra.mxu0 %v4369
    %5070 = vmatprep.subr.mxu0 0.0
    %5071 = vmatpush2.msra.mxu0 %v4400
    %5072 = vmatprep.subr.mxu0 0.0
    %5073 = vmatpush2.msra.mxu0 %v4399
    %5074 = vmatprep.subr.mxu0 0.0
    %5075 = vmatpush2.msra.mxu0 %v4398
    %5076 = vmatprep.subr.mxu0 0.0
    %5077 = vmatpush2.msra.mxu0 %v4397
    %5078 = vmatprep.subr.mxu0 0.0
    %5079 = vmatpush2.msra.mxu0 %v4396
    %5080 = vmatprep.subr.mxu0 0.0
    %5081 = vmatpush2.msra.mxu0 %v4395
    %5082 = vmatprep.subr.mxu0 0.0
    %5083 = vmatpush2.msra.mxu0 %v4394
    %5084 = vmatprep.subr.mxu0 0.0
    %5085 = vmatpush2.msra.mxu0 %v4393
    %5086 = vmatprep.subr.mxu0 0.0
    %5087 = vmatpush2.msra.mxu0 %v4392
    %5088 = vmatprep.subr.mxu0 0.0
    %5089 = vmatpush2.msra.mxu0 %v4391
    %5090 = vmatprep.subr.mxu0 0.0
    %5091 = vmatpush2.msra.mxu0 %v4390
    %5092 = vmatprep.subr.mxu0 0.0
    %5093 = vmatpush2.msra.mxu0 %v4389
    %5094 = vmatprep.subr.mxu0 0.0
    %5095 = vmatpush2.msra.mxu0 %v4388
    %5096 = vmatprep.subr.mxu0 0.0
    %5097 = vmatpush2.msra.mxu0 %v4387
    %5098 = vmatprep.subr.mxu0 0.0
    %5099 = vmatpush2.msra.mxu0 %v4386
    %5100 = vmatprep.subr.mxu0 0.0
    %5101 = vmatpush2.msra.mxu0 %v4385
    %5102 = vmatprep.mubr.f32.mxu0 %v4969
    %5103 = vmatmul.mubr.f32.gmra.mxu0 %v4967
    %v5104 = vpop.f32.mrf.mxu0
    %v5105 = vadd.f32 %v4439, %v5104
    %v5106 = vpop.f32.mrf.mxu0
    %5107 = vmatprep.mubr.f32.mxu0 %v5028
    %5108 = vmatmul.mubr.f32.gmra.mxu0 %v5026
    %v5109 = vpop.f32.mrf.mxu0
    %v5110 = vadd.f32 %v4439, %v5109
    %v5111 = vpop.f32.mrf.mxu0
    %5112 = vdwg.mxu0
    %5113 = vmatprep.subr.mxu0 0.0
    %5114 = vmatpush1.msra.mxu0 %v4416
    %5115 = vmatprep.subr.mxu0 0.0
    %5116 = vmatpush1.msra.mxu0 %v4415
    %5117 = vmatprep.subr.mxu0 0.0
    %5118 = vmatpush1.msra.mxu0 %v4414
    %5119 = vmatprep.subr.mxu0 0.0
    %5120 = vmatpush1.msra.mxu0 %v4413
    %5121 = vmatprep.subr.mxu0 0.0
    %5122 = vmatpush1.msra.mxu0 %v4412
    %5123 = vmatprep.subr.mxu0 0.0
    %5124 = vmatpush1.msra.mxu0 %v4411
    %5125 = vmatprep.subr.mxu0 0.0
    %5126 = vmatpush1.msra.mxu0 %v4410
    %5127 = vmatprep.subr.mxu0 0.0
    %5128 = vmatpush1.msra.mxu0 %v4409
    %5129 = vmatprep.subr.mxu0 0.0
    %5130 = vmatpush1.msra.mxu0 %v4408
    %5131 = vmatprep.subr.mxu0 0.0
    %5132 = vmatpush1.msra.mxu0 %v4407
    %5133 = vmatprep.subr.mxu0 0.0
    %5134 = vmatpush1.msra.mxu0 %v4406
    %5135 = vmatprep.subr.mxu0 0.0
    %5136 = vmatpush1.msra.mxu0 %v4405
    %5137 = vmatprep.subr.mxu0 0.0
    %5138 = vmatpush1.msra.mxu0 %v4404
    %5139 = vmatprep.subr.mxu0 0.0
    %5140 = vmatpush1.msra.mxu0 %v4403
    %5141 = vmatprep.subr.mxu0 0.0
    %5142 = vmatpush1.msra.mxu0 %v4402
    %5143 = vmatprep.subr.mxu0 0.0
    %5144 = vmatpush1.msra.mxu0 %v4401
    %5145 = vmatprep.subr.mxu0 0.0
    %5146 = vmatpush2.msra.mxu0 %v4432
    %5147 = vmatprep.subr.mxu0 0.0
    %5148 = vmatpush2.msra.mxu0 %v4431
    %5149 = vmatprep.subr.mxu0 0.0
    %5150 = vmatpush2.msra.mxu0 %v4430
    %5151 = vmatprep.subr.mxu0 0.0
    %5152 = vmatpush2.msra.mxu0 %v4429
    %5153 = vmatprep.subr.mxu0 0.0
    %5154 = vmatpush2.msra.mxu0 %v4428
    %5155 = vmatprep.subr.mxu0 0.0
    %5156 = vmatpush2.msra.mxu0 %v4427
    %5157 = vmatprep.subr.mxu0 0.0
    %5158 = vmatpush2.msra.mxu0 %v4426
    %5159 = vmatprep.subr.mxu0 0.0
    %5160 = vmatpush2.msra.mxu0 %v4425
    %5161 = vmatprep.subr.mxu0 0.0
    %5162 = vmatpush2.msra.mxu0 %v4424
    %5163 = vmatprep.subr.mxu0 0.0
    %5164 = vmatpush2.msra.mxu0 %v4423
    %5165 = vmatprep.subr.mxu0 0.0
    %5166 = vmatpush2.msra.mxu0 %v4422
    %5167 = vmatprep.subr.mxu0 0.0
    %5168 = vmatpush2.msra.mxu0 %v4421
    %5169 = vmatprep.subr.mxu0 0.0
    %5170 = vmatpush2.msra.mxu0 %v4420
    %5171 = vmatprep.subr.mxu0 0.0
    %5172 = vmatpush2.msra.mxu0 %v4419
    %5173 = vmatprep.subr.mxu0 0.0
    %5174 = vmatpush2.msra.mxu0 %v4418
    %5175 = vmatprep.subr.mxu0 0.0
    %5176 = vmatpush2.msra.mxu0 %v4417
    %5177 = vmatprep.mubr.f32.mxu0 %v4970
    %5178 = vmatmul.mubr.f32.gmra.mxu0 %v4968
    %v5179 = vpop.f32.mrf.mxu0
    %v5180 = vadd.f32 %v5105, %v5179
    %v5181 = vpop.f32.mrf.mxu0
    %5182 = vmatprep.mubr.f32.mxu0 %v5029
    %5183 = vmatmul.mubr.f32.gmra.mxu0 %v5027
    %v5184 = vpop.f32.mrf.mxu0
    %v5185 = vadd.f32 %v5110, %v5184
    %v5186 = vpop.f32.mrf.mxu0
    %5187 = vdwg.mxu0
    %v5188 = vadd.f32 %v5180, 3.0
    %v5189 = vadd.f32 %v5185, 3.0
    %v5190 = vmax.f32 %v5188, 0.0
    %v5191 = vmax.f32 %v5189, 0.0
    %v5192 = vmin.f32 %v5190, 6.0
    %v5193 = vmin.f32 %v5191, 6.0
    %v5194 = vmul.f32 %v5192, %v1433
    %v5195 = vmul.f32 %v5193, %v1433
    %v5196 = vmul.f32 %v5180, %v5194
    %v5197 = vmul.f32 %v5185, %v5195
    %s5198 = scalar_lea.vmem %s7, 64
    %v5199 = vld [vmem:[%s5198] sm:$0xff]
    %v5200 = vld [vmem:[%s5198 + $0x8] sm:$0xff]
    %v5201 = vld [vmem:[%s5198 + $0x10] sm:$0xff]
    %v5202 = vld [vmem:[%s5198 + $0x18] sm:$0xff]
    %v5203 = vld [vmem:[%s5198 + $0x20] sm:$0xff]
    %v5204 = vld [vmem:[%s5198 + $0x28] sm:$0xff]
    %v5205 = vld [vmem:[%s5198 + $0x30] sm:$0xff]
    %v5206 = vld [vmem:[%s5198 + $0x38] sm:$0xff]
    %s5207 = scalar_lea.vmem %s8, 4
    %v5208 = vld [vmem:[%s5207] sm:$0xf]
    %v5210 = vlaneseq
    %v5211 = vshrl.u32 %v5210, 7
    %v5212 = vsub.s32 0, %v5211
    %v5213 = vrot.slane %v5208, %v5212
    %v5214 = vlaneseq
    %v5215 = vshrl.u32 %v5214, 7
    %v5216 = vsub.s32 1, %v5215
    %v5217 = vrot.slane %v5208, %v5216
    %v5218 = vlaneseq
    %v5219 = vshrl.u32 %v5218, 7
    %v5220 = vsub.s32 2, %v5219
    %v5221 = vrot.slane %v5208, %v5220
    %v5222 = vlaneseq
    %v5223 = vshrl.u32 %v5222, 7
    %v5224 = vsub.s32 3, %v5223
    %v5225 = vrot.slane %v5208, %v5224
    %v5231 = vsel %vm1905, %v4759, 0
    %v5234 = vsel %vm1905, %v4760, 0
    %5236 = vmatprep.subr.mxu0 0.0
    %5237 = vmatpush1.msra.mxu0 0.0
    %5238 = vmatprep.subr.mxu0 0.0
    %5239 = vmatpush1.msra.mxu0 0.0
    %5240 = vmatprep.subr.mxu0 0.0
    %5241 = vmatpush1.msra.mxu0 0.0
    %5242 = vmatprep.subr.mxu0 0.0
    %5243 = vmatpush1.msra.mxu0 0.0
    %5244 = vmatprep.subr.mxu0 0.0
    %5245 = vmatpush1.msra.mxu0 0.0
    %5246 = vmatprep.subr.mxu0 0.0
    %5247 = vmatpush1.msra.mxu0 0.0
    %5248 = vmatprep.subr.mxu0 0.0
    %5249 = vmatpush1.msra.mxu0 0.0
    %5250 = vmatprep.subr.mxu0 0.0
    %5251 = vmatpush1.msra.mxu0 0.0
    %5252 = vmatprep.subr.mxu0 0.0
    %5253 = vmatpush1.msra.mxu0 0.0
    %5254 = vmatprep.subr.mxu0 0.0
    %5255 = vmatpush1.msra.mxu0 0.0
    %5256 = vmatprep.subr.mxu0 0.0
    %5257 = vmatpush1.msra.mxu0 0.0
    %5258 = vmatprep.subr.mxu0 0.0
    %5259 = vmatpush1.msra.mxu0 0.0
    %5260 = vmatprep.subr.mxu0 0.0
    %5261 = vmatpush1.msra.mxu0 0.0
    %5262 = vmatprep.subr.mxu0 0.0
    %5263 = vmatpush1.msra.mxu0 0.0
    %5264 = vmatprep.subr.mxu0 %v5204
    %5265 = vmatpush1.msra.mxu0 %v5203
    %5266 = vmatprep.subr.mxu0 %v5200
    %5267 = vmatpush1.msra.mxu0 %v5199
    %5268 = vmatprep.subr.mxu0 0.0
    %5269 = vmatpush2.msra.mxu0 0.0
    %5270 = vmatprep.subr.mxu0 0.0
    %5271 = vmatpush2.msra.mxu0 0.0
    %5272 = vmatprep.subr.mxu0 0.0
    %5273 = vmatpush2.msra.mxu0 0.0
    %5274 = vmatprep.subr.mxu0 0.0
    %5275 = vmatpush2.msra.mxu0 0.0
    %5276 = vmatprep.subr.mxu0 0.0
    %5277 = vmatpush2.msra.mxu0 0.0
    %5278 = vmatprep.subr.mxu0 0.0
    %5279 = vmatpush2.msra.mxu0 0.0
    %5280 = vmatprep.subr.mxu0 0.0
    %5281 = vmatpush2.msra.mxu0 0.0
    %5282 = vmatprep.subr.mxu0 0.0
    %5283 = vmatpush2.msra.mxu0 0.0
    %5284 = vmatprep.subr.mxu0 0.0
    %5285 = vmatpush2.msra.mxu0 0.0
    %5286 = vmatprep.subr.mxu0 0.0
    %5287 = vmatpush2.msra.mxu0 0.0
    %5288 = vmatprep.subr.mxu0 0.0
    %5289 = vmatpush2.msra.mxu0 0.0
    %5290 = vmatprep.subr.mxu0 0.0
    %5291 = vmatpush2.msra.mxu0 0.0
    %5292 = vmatprep.subr.mxu0 0.0
    %5293 = vmatpush2.msra.mxu0 0.0
    %5294 = vmatprep.subr.mxu0 0.0
    %5295 = vmatpush2.msra.mxu0 0.0
    %5296 = vmatprep.subr.mxu0 0.0
    %5297 = vmatpush2.msra.mxu0 0.0
    %5298 = vmatprep.subr.mxu0 0.0
    %5299 = vmatpush2.msra.mxu0 0.0
    %5300 = vmatprep.mubr.f32.mxu0 0.0
    %5301 = vmatmul.mubr.f32.gmra.mxu0 %v5231
    %v5302 = vpop.f32.mrf.mxu0
    %v5303 = vadd.f32 %v5213, %v5302
    %v5304 = vpop.f32.mrf.mxu0
    %v5305 = vadd.f32 %v5217, %v5304
    %5306 = vmatprep.mubr.f32.mxu0 0.0
    %5307 = vmatmul.mubr.f32.gmra.mxu0 %v5234
    %v5308 = vpop.f32.mrf.mxu0
    %v5309 = vadd.f32 %v5213, %v5308
    %v5310 = vpop.f32.mrf.mxu0
    %v5311 = vadd.f32 %v5217, %v5310
    %5312 = vdwg.mxu0
    %5313 = vmatprep.subr.mxu0 0.0
    %5314 = vmatpush1.msra.mxu0 0.0
    %5315 = vmatprep.subr.mxu0 0.0
    %5316 = vmatpush1.msra.mxu0 0.0
    %5317 = vmatprep.subr.mxu0 0.0
    %5318 = vmatpush1.msra.mxu0 0.0
    %5319 = vmatprep.subr.mxu0 0.0
    %5320 = vmatpush1.msra.mxu0 0.0
    %5321 = vmatprep.subr.mxu0 0.0
    %5322 = vmatpush1.msra.mxu0 0.0
    %5323 = vmatprep.subr.mxu0 0.0
    %5324 = vmatpush1.msra.mxu0 0.0
    %5325 = vmatprep.subr.mxu0 0.0
    %5326 = vmatpush1.msra.mxu0 0.0
    %5327 = vmatprep.subr.mxu0 0.0
    %5328 = vmatpush1.msra.mxu0 0.0
    %5329 = vmatprep.subr.mxu0 0.0
    %5330 = vmatpush1.msra.mxu0 0.0
    %5331 = vmatprep.subr.mxu0 0.0
    %5332 = vmatpush1.msra.mxu0 0.0
    %5333 = vmatprep.subr.mxu0 0.0
    %5334 = vmatpush1.msra.mxu0 0.0
    %5335 = vmatprep.subr.mxu0 0.0
    %5336 = vmatpush1.msra.mxu0 0.0
    %5337 = vmatprep.subr.mxu0 0.0
    %5338 = vmatpush1.msra.mxu0 0.0
    %5339 = vmatprep.subr.mxu0 0.0
    %5340 = vmatpush1.msra.mxu0 0.0
    %5341 = vmatprep.subr.mxu0 %v5206
    %5342 = vmatpush1.msra.mxu0 %v5205
    %5343 = vmatprep.subr.mxu0 %v5202
    %5344 = vmatpush1.msra.mxu0 %v5201
    %5345 = vmatprep.subr.mxu0 0.0
    %5346 = vmatpush2.msra.mxu0 0.0
    %5347 = vmatprep.subr.mxu0 0.0
    %5348 = vmatpush2.msra.mxu0 0.0
    %5349 = vmatprep.subr.mxu0 0.0
    %5350 = vmatpush2.msra.mxu0 0.0
    %5351 = vmatprep.subr.mxu0 0.0
    %5352 = vmatpush2.msra.mxu0 0.0
    %5353 = vmatprep.subr.mxu0 0.0
    %5354 = vmatpush2.msra.mxu0 0.0
    %5355 = vmatprep.subr.mxu0 0.0
    %5356 = vmatpush2.msra.mxu0 0.0
    %5357 = vmatprep.subr.mxu0 0.0
    %5358 = vmatpush2.msra.mxu0 0.0
    %5359 = vmatprep.subr.mxu0 0.0
    %5360 = vmatpush2.msra.mxu0 0.0
    %5361 = vmatprep.subr.mxu0 0.0
    %5362 = vmatpush2.msra.mxu0 0.0
    %5363 = vmatprep.subr.mxu0 0.0
    %5364 = vmatpush2.msra.mxu0 0.0
    %5365 = vmatprep.subr.mxu0 0.0
    %5366 = vmatpush2.msra.mxu0 0.0
    %5367 = vmatprep.subr.mxu0 0.0
    %5368 = vmatpush2.msra.mxu0 0.0
    %5369 = vmatprep.subr.mxu0 0.0
    %5370 = vmatpush2.msra.mxu0 0.0
    %5371 = vmatprep.subr.mxu0 0.0
    %5372 = vmatpush2.msra.mxu0 0.0
    %5373 = vmatprep.subr.mxu0 0.0
    %5374 = vmatpush2.msra.mxu0 0.0
    %5375 = vmatprep.subr.mxu0 0.0
    %5376 = vmatpush2.msra.mxu0 0.0
    %5377 = vmatprep.mubr.f32.mxu0 0.0
    %5378 = vmatmul.mubr.f32.gmra.mxu0 %v5231
    %v5379 = vpop.f32.mrf.mxu0
    %v5380 = vadd.f32 %v5221, %v5379
    %v5381 = vpop.f32.mrf.mxu0
    %v5382 = vadd.f32 %v5225, %v5381
    %5383 = vmatprep.mubr.f32.mxu0 0.0
    %5384 = vmatmul.mubr.f32.gmra.mxu0 %v5234
    %v5385 = vpop.f32.mrf.mxu0
    %v5386 = vadd.f32 %v5221, %v5385
    %v5387 = vpop.f32.mrf.mxu0
    %v5388 = vadd.f32 %v5225, %v5387
    %5389 = vdwg.mxu0
    %v5390 = vxor.u32 %v5303, 2147483648
    %v5391 = vxor.u32 %v5305, 2147483648
    %v5392 = vxor.u32 %v5380, 2147483648
    %v5393 = vxor.u32 %v5382, 2147483648
    %v5394 = vxor.u32 %v5309, 2147483648
    %v5395 = vxor.u32 %v5311, 2147483648
    %v5396 = vxor.u32 %v5386, 2147483648
    %v5397 = vxor.u32 %v5388, 2147483648
    %v5398 = vmul.f32 %v5390, 1.442695
    %v5399 = vpow.pop %v5398
    %v5400 = vmul.f32 %v5391, 1.442695
    %v5401 = vpow.pop %v5400
    %v5402 = vmul.f32 %v5392, 1.442695
    %v5403 = vpow.pop %v5402
    %v5404 = vmul.f32 %v5393, 1.442695
    %v5405 = vpow.pop %v5404
    %v5406 = vmul.f32 %v5394, 1.442695
    %v5407 = vpow.pop %v5406
    %v5408 = vmul.f32 %v5395, 1.442695
    %v5409 = vpow.pop %v5408
    %v5410 = vmul.f32 %v5396, 1.442695
    %v5411 = vpow.pop %v5410
    %v5412 = vmul.f32 %v5397, 1.442695
    %v5413 = vpow.pop %v5412
    %v5414 = vadd.f32 %v5399, 1.0
    %v5415 = vadd.f32 %v5401, 1.0
    %v5416 = vadd.f32 %v5403, 1.0
    %v5417 = vadd.f32 %v5405, 1.0
    %v5418 = vadd.f32 %v5407, 1.0
    %v5419 = vadd.f32 %v5409, 1.0
    %v5420 = vadd.f32 %v5411, 1.0
    %v5421 = vadd.f32 %v5413, 1.0
    %v5422 = vrcp.pop %v5414
    %v5423 = vmul.f32 1.0, %v5422
    %v5424 = vrcp.pop %v5415
    %v5425 = vmul.f32 1.0, %v5424
    %v5426 = vrcp.pop %v5416
    %v5427 = vmul.f32 1.0, %v5426
    %v5428 = vrcp.pop %v5417
    %v5429 = vmul.f32 1.0, %v5428
    %v5430 = vrcp.pop %v5418
    %v5431 = vmul.f32 1.0, %v5430
    %v5432 = vrcp.pop %v5419
    %v5433 = vmul.f32 1.0, %v5432
    %v5434 = vrcp.pop %v5420
    %v5435 = vmul.f32 1.0, %v5434
    %v5436 = vrcp.pop %v5421
    %v5437 = vmul.f32 1.0, %v5436
    %s5438 = scalar_lea.vmem %s9, 64
    %v5439 = vld [vmem:[%s5438] sm:$0xff]
    %v5440 = vld [vmem:[%s5438 + $0x8] sm:$0xff]
    %v5441 = vld [vmem:[%s5438 + $0x10] sm:$0xff]
    %v5442 = vld [vmem:[%s5438 + $0x18] sm:$0xff]
    %v5443 = vld [vmem:[%s5438 + $0x20] sm:$0xff]
    %v5444 = vld [vmem:[%s5438 + $0x28] sm:$0xff]
    %v5445 = vld [vmem:[%s5438 + $0x30] sm:$0xff]
    %v5446 = vld [vmem:[%s5438 + $0x38] sm:$0xff]
    %s5447 = scalar_lea.vmem %s10, 4
    %v5448 = vld [vmem:[%s5447] sm:$0xf]
    %v5450 = vlaneseq
    %v5451 = vshrl.u32 %v5450, 7
    %v5452 = vsub.s32 0, %v5451
    %v5453 = vrot.slane %v5448, %v5452
    %v5454 = vlaneseq
    %v5455 = vshrl.u32 %v5454, 7
    %v5456 = vsub.s32 1, %v5455
    %v5457 = vrot.slane %v5448, %v5456
    %v5458 = vlaneseq
    %v5459 = vshrl.u32 %v5458, 7
    %v5460 = vsub.s32 2, %v5459
    %v5461 = vrot.slane %v5448, %v5460
    %v5462 = vlaneseq
    %v5463 = vshrl.u32 %v5462, 7
    %v5464 = vsub.s32 3, %v5463
    %v5465 = vrot.slane %v5448, %v5464
    %v5471 = vsel %vm1905, %v5196, 0
    %v5474 = vsel %vm1905, %v5197, 0
    %5476 = vmatprep.subr.mxu0 0.0
    %5477 = vmatpush1.msra.mxu0 0.0
    %5478 = vmatprep.subr.mxu0 0.0
    %5479 = vmatpush1.msra.mxu0 0.0
    %5480 = vmatprep.subr.mxu0 0.0
    %5481 = vmatpush1.msra.mxu0 0.0
    %5482 = vmatprep.subr.mxu0 0.0
    %5483 = vmatpush1.msra.mxu0 0.0
    %5484 = vmatprep.subr.mxu0 0.0
    %5485 = vmatpush1.msra.mxu0 0.0
    %5486 = vmatprep.subr.mxu0 0.0
    %5487 = vmatpush1.msra.mxu0 0.0
    %5488 = vmatprep.subr.mxu0 0.0
    %5489 = vmatpush1.msra.mxu0 0.0
    %5490 = vmatprep.subr.mxu0 0.0
    %5491 = vmatpush1.msra.mxu0 0.0
    %5492 = vmatprep.subr.mxu0 0.0
    %5493 = vmatpush1.msra.mxu0 0.0
    %5494 = vmatprep.subr.mxu0 0.0
    %5495 = vmatpush1.msra.mxu0 0.0
    %5496 = vmatprep.subr.mxu0 0.0
    %5497 = vmatpush1.msra.mxu0 0.0
    %5498 = vmatprep.subr.mxu0 0.0
    %5499 = vmatpush1.msra.mxu0 0.0
    %5500 = vmatprep.subr.mxu0 0.0
    %5501 = vmatpush1.msra.mxu0 0.0
    %5502 = vmatprep.subr.mxu0 0.0
    %5503 = vmatpush1.msra.mxu0 0.0
    %5504 = vmatprep.subr.mxu0 %v5444
    %5505 = vmatpush1.msra.mxu0 %v5443
    %5506 = vmatprep.subr.mxu0 %v5440
    %5507 = vmatpush1.msra.mxu0 %v5439
    %5508 = vmatprep.subr.mxu0 0.0
    %5509 = vmatpush2.msra.mxu0 0.0
    %5510 = vmatprep.subr.mxu0 0.0
    %5511 = vmatpush2.msra.mxu0 0.0
    %5512 = vmatprep.subr.mxu0 0.0
    %5513 = vmatpush2.msra.mxu0 0.0
    %5514 = vmatprep.subr.mxu0 0.0
    %5515 = vmatpush2.msra.mxu0 0.0
    %5516 = vmatprep.subr.mxu0 0.0
    %5517 = vmatpush2.msra.mxu0 0.0
    %5518 = vmatprep.subr.mxu0 0.0
    %5519 = vmatpush2.msra.mxu0 0.0
    %5520 = vmatprep.subr.mxu0 0.0
    %5521 = vmatpush2.msra.mxu0 0.0
    %5522 = vmatprep.subr.mxu0 0.0
    %5523 = vmatpush2.msra.mxu0 0.0
    %5524 = vmatprep.subr.mxu0 0.0
    %5525 = vmatpush2.msra.mxu0 0.0
    %5526 = vmatprep.subr.mxu0 0.0
    %5527 = vmatpush2.msra.mxu0 0.0
    %5528 = vmatprep.subr.mxu0 0.0
    %5529 = vmatpush2.msra.mxu0 0.0
    %5530 = vmatprep.subr.mxu0 0.0
    %5531 = vmatpush2.msra.mxu0 0.0
    %5532 = vmatprep.subr.mxu0 0.0
    %5533 = vmatpush2.msra.mxu0 0.0
    %5534 = vmatprep.subr.mxu0 0.0
    %5535 = vmatpush2.msra.mxu0 0.0
    %5536 = vmatprep.subr.mxu0 0.0
    %5537 = vmatpush2.msra.mxu0 0.0
    %5538 = vmatprep.subr.mxu0 0.0
    %5539 = vmatpush2.msra.mxu0 0.0
    %5540 = vmatprep.mubr.f32.mxu0 0.0
    %5541 = vmatmul.mubr.f32.gmra.mxu0 %v5471
    %v5542 = vpop.f32.mrf.mxu0
    %v5543 = vadd.f32 %v5453, %v5542
    %v5544 = vpop.f32.mrf.mxu0
    %v5545 = vadd.f32 %v5457, %v5544
    %5546 = vmatprep.mubr.f32.mxu0 0.0
    %5547 = vmatmul.mubr.f32.gmra.mxu0 %v5474
    %v5548 = vpop.f32.mrf.mxu0
    %v5549 = vadd.f32 %v5453, %v5548
    %v5550 = vpop.f32.mrf.mxu0
    %v5551 = vadd.f32 %v5457, %v5550
    %5552 = vdwg.mxu0
    %5553 = vmatprep.subr.mxu0 0.0
    %5554 = vmatpush1.msra.mxu0 0.0
    %5555 = vmatprep.subr.mxu0 0.0
    %5556 = vmatpush1.msra.mxu0 0.0
    %5557 = vmatprep.subr.mxu0 0.0
    %5558 = vmatpush1.msra.mxu0 0.0
    %5559 = vmatprep.subr.mxu0 0.0
    %5560 = vmatpush1.msra.mxu0 0.0
    %5561 = vmatprep.subr.mxu0 0.0
    %5562 = vmatpush1.msra.mxu0 0.0
    %5563 = vmatprep.subr.mxu0 0.0
    %5564 = vmatpush1.msra.mxu0 0.0
    %5565 = vmatprep.subr.mxu0 0.0
    %5566 = vmatpush1.msra.mxu0 0.0
    %5567 = vmatprep.subr.mxu0 0.0
    %5568 = vmatpush1.msra.mxu0 0.0
    %5569 = vmatprep.subr.mxu0 0.0
    %5570 = vmatpush1.msra.mxu0 0.0
    %5571 = vmatprep.subr.mxu0 0.0
    %5572 = vmatpush1.msra.mxu0 0.0
    %5573 = vmatprep.subr.mxu0 0.0
    %5574 = vmatpush1.msra.mxu0 0.0
    %5575 = vmatprep.subr.mxu0 0.0
    %5576 = vmatpush1.msra.mxu0 0.0
    %5577 = vmatprep.subr.mxu0 0.0
    %5578 = vmatpush1.msra.mxu0 0.0
    %5579 = vmatprep.subr.mxu0 0.0
    %5580 = vmatpush1.msra.mxu0 0.0
    %5581 = vmatprep.subr.mxu0 %v5446
    %5582 = vmatpush1.msra.mxu0 %v5445
    %5583 = vmatprep.subr.mxu0 %v5442
    %5584 = vmatpush1.msra.mxu0 %v5441
    %5585 = vmatprep.subr.mxu0 0.0
    %5586 = vmatpush2.msra.mxu0 0.0
    %5587 = vmatprep.subr.mxu0 0.0
    %5588 = vmatpush2.msra.mxu0 0.0
    %5589 = vmatprep.subr.mxu0 0.0
    %5590 = vmatpush2.msra.mxu0 0.0
    %5591 = vmatprep.subr.mxu0 0.0
    %5592 = vmatpush2.msra.mxu0 0.0
    %5593 = vmatprep.subr.mxu0 0.0
    %5594 = vmatpush2.msra.mxu0 0.0
    %5595 = vmatprep.subr.mxu0 0.0
    %5596 = vmatpush2.msra.mxu0 0.0
    %5597 = vmatprep.subr.mxu0 0.0
    %5598 = vmatpush2.msra.mxu0 0.0
    %5599 = vmatprep.subr.mxu0 0.0
    %5600 = vmatpush2.msra.mxu0 0.0
    %5601 = vmatprep.subr.mxu0 0.0
    %5602 = vmatpush2.msra.mxu0 0.0
    %5603 = vmatprep.subr.mxu0 0.0
    %5604 = vmatpush2.msra.mxu0 0.0
    %5605 = vmatprep.subr.mxu0 0.0
    %5606 = vmatpush2.msra.mxu0 0.0
    %5607 = vmatprep.subr.mxu0 0.0
    %5608 = vmatpush2.msra.mxu0 0.0
    %5609 = vmatprep.subr.mxu0 0.0
    %5610 = vmatpush2.msra.mxu0 0.0
    %5611 = vmatprep.subr.mxu0 0.0
    %5612 = vmatpush2.msra.mxu0 0.0
    %5613 = vmatprep.subr.mxu0 0.0
    %5614 = vmatpush2.msra.mxu0 0.0
    %5615 = vmatprep.subr.mxu0 0.0
    %5616 = vmatpush2.msra.mxu0 0.0
    %5617 = vmatprep.mubr.f32.mxu0 0.0
    %5618 = vmatmul.mubr.f32.gmra.mxu0 %v5471
    %v5619 = vpop.f32.mrf.mxu0
    %v5620 = vadd.f32 %v5461, %v5619
    %v5621 = vpop.f32.mrf.mxu0
    %v5622 = vadd.f32 %v5465, %v5621
    %5623 = vmatprep.mubr.f32.mxu0 0.0
    %5624 = vmatmul.mubr.f32.gmra.mxu0 %v5474
    %v5625 = vpop.f32.mrf.mxu0
    %v5626 = vadd.f32 %v5461, %v5625
    %v5627 = vpop.f32.mrf.mxu0
    %v5628 = vadd.f32 %v5465, %v5627
    %5629 = vdwg.mxu0
    %v5630 = vxor.u32 %v5543, 2147483648
    %v5631 = vxor.u32 %v5545, 2147483648
    %v5632 = vxor.u32 %v5620, 2147483648
    %v5633 = vxor.u32 %v5622, 2147483648
    %v5634 = vxor.u32 %v5549, 2147483648
    %v5635 = vxor.u32 %v5551, 2147483648
    %v5636 = vxor.u32 %v5626, 2147483648
    %v5637 = vxor.u32 %v5628, 2147483648
    %v5638 = vmul.f32 %v5630, 1.442695
    %v5639 = vpow.pop %v5638
    %v5640 = vmul.f32 %v5631, 1.442695
    %v5641 = vpow.pop %v5640
    %v5642 = vmul.f32 %v5632, 1.442695
    %v5643 = vpow.pop %v5642
    %v5644 = vmul.f32 %v5633, 1.442695
    %v5645 = vpow.pop %v5644
    %v5646 = vmul.f32 %v5634, 1.442695
    %v5647 = vpow.pop %v5646
    %v5648 = vmul.f32 %v5635, 1.442695
    %v5649 = vpow.pop %v5648
    %v5650 = vmul.f32 %v5636, 1.442695
    %v5651 = vpow.pop %v5650
    %v5652 = vmul.f32 %v5637, 1.442695
    %v5653 = vpow.pop %v5652
    %v5654 = vadd.f32 %v5639, 1.0
    %v5655 = vadd.f32 %v5641, 1.0
    %v5656 = vadd.f32 %v5643, 1.0
    %v5657 = vadd.f32 %v5645, 1.0
    %v5658 = vadd.f32 %v5647, 1.0
    %v5659 = vadd.f32 %v5649, 1.0
    %v5660 = vadd.f32 %v5651, 1.0
    %v5661 = vadd.f32 %v5653, 1.0
    %v5662 = vrcp.pop %v5654
    %v5663 = vmul.f32 1.0, %v5662
    %v5664 = vrcp.pop %v5655
    %v5665 = vmul.f32 1.0, %v5664
    %v5666 = vrcp.pop %v5656
    %v5667 = vmul.f32 1.0, %v5666
    %v5668 = vrcp.pop %v5657
    %v5669 = vmul.f32 1.0, %v5668
    %v5670 = vrcp.pop %v5658
    %v5671 = vmul.f32 1.0, %v5670
    %v5672 = vrcp.pop %v5659
    %v5673 = vmul.f32 1.0, %v5672
    %v5674 = vrcp.pop %v5660
    %v5675 = vmul.f32 1.0, %v5674
    %v5676 = vrcp.pop %v5661
    %v5677 = vmul.f32 1.0, %v5676
    %v5686 = vcombine.low %v5423, %v5425
    %v5687 = vcombine.high %v5423, %v5425
    %v5688 = vcombine.low %v5427, %v5429
    %v5689 = vcombine.high %v5427, %v5429
    %v5691 = vunpack.c.l.s4 1966171168
    %v5692 = vunpack.c.0.s8 %v5691
    %v5693 = vlaneseq
    %v5694 = vshrl.u32 %v5693, 7
    %v5695 = vsub.s32 %v5692, %v5694
    %v5696 = vrot.slane %v5686, %v5695
    %v5698 = vunpack.c.l.s4 1966171168
    %v5699 = vunpack.c.0.s8 %v5698
    %v5700 = vlaneseq
    %v5701 = vshrl.u32 %v5700, 7
    %v5702 = vsub.s32 %v5699, %v5701
    %v5703 = vrot.slane %v5687, %v5702
    %v5705 = vunpack.c.l.s4 1966171168
    %v5706 = vunpack.c.0.s8 %v5705
    %v5707 = vlaneseq
    %v5708 = vshrl.u32 %v5707, 7
    %v5709 = vsub.s32 %v5706, %v5708
    %v5710 = vrot.slane %v5688, %v5709
    %v5712 = vunpack.c.l.s4 1966171168
    %v5713 = vunpack.c.0.s8 %v5712
    %v5714 = vlaneseq
    %v5715 = vshrl.u32 %v5714, 7
    %v5716 = vsub.s32 %v5713, %v5715
    %v5717 = vrot.slane %v5689, %v5716
    %v5718 = vcombine.low %v5696, %v5710
    %v5719 = vcombine.high %v5696, %v5710
    %v5720 = vcombine.low %v5703, %v5717
    %v5721 = vcombine.high %v5703, %v5717
    %v5723 = vunpack.c.l.s4 1966171168
    %v5724 = vunpack.c.0.s8 %v5723
    %v5725 = vlaneseq
    %v5726 = vshrl.u32 %v5725, 7
    %v5727 = vsub.s32 %v5724, %v5726
    %v5728 = vrot.slane %v5718, %v5727
    %v5730 = vunpack.c.l.s4 1966171168
    %v5731 = vunpack.c.0.s8 %v5730
    %v5732 = vlaneseq
    %v5733 = vshrl.u32 %v5732, 7
    %v5734 = vsub.s32 %v5731, %v5733
    %v5735 = vrot.slane %v5720, %v5734
    %v5737 = vunpack.c.l.s4 1966171168
    %v5738 = vunpack.c.0.s8 %v5737
    %v5739 = vlaneseq
    %v5740 = vshrl.u32 %v5739, 7
    %v5741 = vsub.s32 %v5738, %v5740
    %v5742 = vrot.slane %v5719, %v5741
    %v5744 = vunpack.c.l.s4 1966171168
    %v5745 = vunpack.c.0.s8 %v5744
    %v5746 = vlaneseq
    %v5747 = vshrl.u32 %v5746, 7
    %v5748 = vsub.s32 %v5745, %v5747
    %v5749 = vrot.slane %v5721, %v5748
    %v5750 = vcombine.high %v5728, %v5728
    %v5751 = vcombine.high %v5735, %v5735
    %v5752 = vcombine.high %v5742, %v5742
    %v5753 = vcombine.high %v5749, %v5749
    %v5754 = vcombine.low %v5431, %v5433
    %v5755 = vcombine.high %v5431, %v5433
    %v5756 = vcombine.low %v5435, %v5437
    %v5757 = vcombine.high %v5435, %v5437
    %v5759 = vunpack.c.l.s4 1966171168
    %v5760 = vunpack.c.0.s8 %v5759
    %v5761 = vlaneseq
    %v5762 = vshrl.u32 %v5761, 7
    %v5763 = vsub.s32 %v5760, %v5762
    %v5764 = vrot.slane %v5754, %v5763
    %v5766 = vunpack.c.l.s4 1966171168
    %v5767 = vunpack.c.0.s8 %v5766
    %v5768 = vlaneseq
    %v5769 = vshrl.u32 %v5768, 7
    %v5770 = vsub.s32 %v5767, %v5769
    %v5771 = vrot.slane %v5755, %v5770
    %v5773 = vunpack.c.l.s4 1966171168
    %v5774 = vunpack.c.0.s8 %v5773
    %v5775 = vlaneseq
    %v5776 = vshrl.u32 %v5775, 7
    %v5777 = vsub.s32 %v5774, %v5776
    %v5778 = vrot.slane %v5756, %v5777
    %v5780 = vunpack.c.l.s4 1966171168
    %v5781 = vunpack.c.0.s8 %v5780
    %v5782 = vlaneseq
    %v5783 = vshrl.u32 %v5782, 7
    %v5784 = vsub.s32 %v5781, %v5783
    %v5785 = vrot.slane %v5757, %v5784
    %v5786 = vcombine.low %v5764, %v5778
    %v5787 = vcombine.high %v5764, %v5778
    %v5788 = vcombine.low %v5771, %v5785
    %v5789 = vcombine.high %v5771, %v5785
    %v5791 = vunpack.c.l.s4 1966171168
    %v5792 = vunpack.c.0.s8 %v5791
    %v5793 = vlaneseq
    %v5794 = vshrl.u32 %v5793, 7
    %v5795 = vsub.s32 %v5792, %v5794
    %v5796 = vrot.slane %v5786, %v5795
    %v5798 = vunpack.c.l.s4 1966171168
    %v5799 = vunpack.c.0.s8 %v5798
    %v5800 = vlaneseq
    %v5801 = vshrl.u32 %v5800, 7
    %v5802 = vsub.s32 %v5799, %v5801
    %v5803 = vrot.slane %v5788, %v5802
    %v5805 = vunpack.c.l.s4 1966171168
    %v5806 = vunpack.c.0.s8 %v5805
    %v5807 = vlaneseq
    %v5808 = vshrl.u32 %v5807, 7
    %v5809 = vsub.s32 %v5806, %v5808
    %v5810 = vrot.slane %v5787, %v5809
    %v5812 = vunpack.c.l.s4 1966171168
    %v5813 = vunpack.c.0.s8 %v5812
    %v5814 = vlaneseq
    %v5815 = vshrl.u32 %v5814, 7
    %v5816 = vsub.s32 %v5813, %v5815
    %v5817 = vrot.slane %v5789, %v5816
    %v5818 = vcombine.high %v5796, %v5796
    %v5819 = vcombine.high %v5810, %v5810
    %v5828 = vcombine.low %v5663, %v5665
    %v5829 = vcombine.high %v5663, %v5665
    %v5830 = vcombine.low %v5667, %v5669
    %v5831 = vcombine.high %v5667, %v5669
    %v5833 = vunpack.c.l.s4 1966171168
    %v5834 = vunpack.c.0.s8 %v5833
    %v5835 = vlaneseq
    %v5836 = vshrl.u32 %v5835, 7
    %v5837 = vsub.s32 %v5834, %v5836
    %v5838 = vrot.slane %v5828, %v5837
    %v5840 = vunpack.c.l.s4 1966171168
    %v5841 = vunpack.c.0.s8 %v5840
    %v5842 = vlaneseq
    %v5843 = vshrl.u32 %v5842, 7
    %v5844 = vsub.s32 %v5841, %v5843
    %v5845 = vrot.slane %v5829, %v5844
    %v5847 = vunpack.c.l.s4 1966171168
    %v5848 = vunpack.c.0.s8 %v5847
    %v5849 = vlaneseq
    %v5850 = vshrl.u32 %v5849, 7
    %v5851 = vsub.s32 %v5848, %v5850
    %v5852 = vrot.slane %v5830, %v5851
    %v5854 = vunpack.c.l.s4 1966171168
    %v5855 = vunpack.c.0.s8 %v5854
    %v5856 = vlaneseq
    %v5857 = vshrl.u32 %v5856, 7
    %v5858 = vsub.s32 %v5855, %v5857
    %v5859 = vrot.slane %v5831, %v5858
    %v5860 = vcombine.low %v5838, %v5852
    %v5861 = vcombine.high %v5838, %v5852
    %v5862 = vcombine.low %v5845, %v5859
    %v5863 = vcombine.high %v5845, %v5859
    %v5865 = vunpack.c.l.s4 1966171168
    %v5866 = vunpack.c.0.s8 %v5865
    %v5867 = vlaneseq
    %v5868 = vshrl.u32 %v5867, 7
    %v5869 = vsub.s32 %v5866, %v5868
    %v5870 = vrot.slane %v5860, %v5869
    %v5872 = vunpack.c.l.s4 1966171168
    %v5873 = vunpack.c.0.s8 %v5872
    %v5874 = vlaneseq
    %v5875 = vshrl.u32 %v5874, 7
    %v5876 = vsub.s32 %v5873, %v5875
    %v5877 = vrot.slane %v5862, %v5876
    %v5879 = vunpack.c.l.s4 1966171168
    %v5880 = vunpack.c.0.s8 %v5879
    %v5881 = vlaneseq
    %v5882 = vshrl.u32 %v5881, 7
    %v5883 = vsub.s32 %v5880, %v5882
    %v5884 = vrot.slane %v5861, %v5883
    %v5886 = vunpack.c.l.s4 1966171168
    %v5887 = vunpack.c.0.s8 %v5886
    %v5888 = vlaneseq
    %v5889 = vshrl.u32 %v5888, 7
    %v5890 = vsub.s32 %v5887, %v5889
    %v5891 = vrot.slane %v5863, %v5890
    %v5892 = vcombine.high %v5870, %v5870
    %v5893 = vcombine.high %v5877, %v5877
    %v5894 = vcombine.high %v5884, %v5884
    %v5895 = vcombine.high %v5891, %v5891
    %v5896 = vcombine.low %v5671, %v5673
    %v5897 = vcombine.high %v5671, %v5673
    %v5898 = vcombine.low %v5675, %v5677
    %v5899 = vcombine.high %v5675, %v5677
    %v5901 = vunpack.c.l.s4 1966171168
    %v5902 = vunpack.c.0.s8 %v5901
    %v5903 = vlaneseq
    %v5904 = vshrl.u32 %v5903, 7
    %v5905 = vsub.s32 %v5902, %v5904
    %v5906 = vrot.slane %v5896, %v5905
    %v5908 = vunpack.c.l.s4 1966171168
    %v5909 = vunpack.c.0.s8 %v5908
    %v5910 = vlaneseq
    %v5911 = vshrl.u32 %v5910, 7
    %v5912 = vsub.s32 %v5909, %v5911
    %v5913 = vrot.slane %v5897, %v5912
    %v5915 = vunpack.c.l.s4 1966171168
    %v5916 = vunpack.c.0.s8 %v5915
    %v5917 = vlaneseq
    %v5918 = vshrl.u32 %v5917, 7
    %v5919 = vsub.s32 %v5916, %v5918
    %v5920 = vrot.slane %v5898, %v5919
    %v5922 = vunpack.c.l.s4 1966171168
    %v5923 = vunpack.c.0.s8 %v5922
    %v5924 = vlaneseq
    %v5925 = vshrl.u32 %v5924, 7
    %v5926 = vsub.s32 %v5923, %v5925
    %v5927 = vrot.slane %v5899, %v5926
    %v5928 = vcombine.low %v5906, %v5920
    %v5929 = vcombine.high %v5906, %v5920
    %v5930 = vcombine.low %v5913, %v5927
    %v5931 = vcombine.high %v5913, %v5927
    %v5933 = vunpack.c.l.s4 1966171168
    %v5934 = vunpack.c.0.s8 %v5933
    %v5935 = vlaneseq
    %v5936 = vshrl.u32 %v5935, 7
    %v5937 = vsub.s32 %v5934, %v5936
    %v5938 = vrot.slane %v5928, %v5937
    %v5940 = vunpack.c.l.s4 1966171168
    %v5941 = vunpack.c.0.s8 %v5940
    %v5942 = vlaneseq
    %v5943 = vshrl.u32 %v5942, 7
    %v5944 = vsub.s32 %v5941, %v5943
    %v5945 = vrot.slane %v5930, %v5944
    %v5947 = vunpack.c.l.s4 1966171168
    %v5948 = vunpack.c.0.s8 %v5947
    %v5949 = vlaneseq
    %v5950 = vshrl.u32 %v5949, 7
    %v5951 = vsub.s32 %v5948, %v5950
    %v5952 = vrot.slane %v5929, %v5951
    %v5954 = vunpack.c.l.s4 1966171168
    %v5955 = vunpack.c.0.s8 %v5954
    %v5956 = vlaneseq
    %v5957 = vshrl.u32 %v5956, 7
    %v5958 = vsub.s32 %v5955, %v5957
    %v5959 = vrot.slane %v5931, %v5958
    %v5960 = vcombine.high %v5938, %v5938
    %v5961 = vcombine.high %v5952, %v5952
    %v5962 = vlaneseq
    %v5963 = vshrl.u32 %v5962, 7
    %v5964 = vsub.s32 0, %v5963
    %v5965 = vrot.slane %v5728, %v5964
    %v5966 = vlaneseq
    %v5967 = vshrl.u32 %v5966, 7
    %v5968 = vsub.s32 1, %v5967
    %v5969 = vrot.slane %v5728, %v5968
    %v5970 = vlaneseq
    %v5971 = vshrl.u32 %v5970, 7
    %v5972 = vsub.s32 2, %v5971
    %v5973 = vrot.slane %v5728, %v5972
    %v5974 = vlaneseq
    %v5975 = vshrl.u32 %v5974, 7
    %v5976 = vsub.s32 3, %v5975
    %v5977 = vrot.slane %v5728, %v5976
    %v5978 = vlaneseq
    %v5979 = vshrl.u32 %v5978, 7
    %v5980 = vsub.s32 0, %v5979
    %v5981 = vrot.slane %v5742, %v5980
    %v5982 = vlaneseq
    %v5983 = vshrl.u32 %v5982, 7
    %v5984 = vsub.s32 1, %v5983
    %v5985 = vrot.slane %v5742, %v5984
    %v5986 = vlaneseq
    %v5987 = vshrl.u32 %v5986, 7
    %v5988 = vsub.s32 2, %v5987
    %v5989 = vrot.slane %v5742, %v5988
    %v5990 = vlaneseq
    %v5991 = vshrl.u32 %v5990, 7
    %v5992 = vsub.s32 3, %v5991
    %v5993 = vrot.slane %v5742, %v5992
    %v5994 = vlaneseq
    %v5995 = vshrl.u32 %v5994, 7
    %v5996 = vsub.s32 0, %v5995
    %v5997 = vrot.slane %v5750, %v5996
    %v5998 = vlaneseq
    %v5999 = vshrl.u32 %v5998, 7
    %v6000 = vsub.s32 1, %v5999
    %v6001 = vrot.slane %v5750, %v6000
    %v6002 = vlaneseq
    %v6003 = vshrl.u32 %v6002, 7
    %v6004 = vsub.s32 2, %v6003
    %v6005 = vrot.slane %v5750, %v6004
    %v6006 = vlaneseq
    %v6007 = vshrl.u32 %v6006, 7
    %v6008 = vsub.s32 3, %v6007
    %v6009 = vrot.slane %v5750, %v6008
    %v6010 = vlaneseq
    %v6011 = vshrl.u32 %v6010, 7
    %v6012 = vsub.s32 0, %v6011
    %v6013 = vrot.slane %v5752, %v6012
    %v6014 = vlaneseq
    %v6015 = vshrl.u32 %v6014, 7
    %v6016 = vsub.s32 1, %v6015
    %v6017 = vrot.slane %v5752, %v6016
    %v6018 = vlaneseq
    %v6019 = vshrl.u32 %v6018, 7
    %v6020 = vsub.s32 2, %v6019
    %v6021 = vrot.slane %v5752, %v6020
    %v6022 = vlaneseq
    %v6023 = vshrl.u32 %v6022, 7
    %v6024 = vsub.s32 3, %v6023
    %v6025 = vrot.slane %v5752, %v6024
    %v6026 = vlaneseq
    %v6027 = vshrl.u32 %v6026, 7
    %v6028 = vsub.s32 0, %v6027
    %v6029 = vrot.slane %v5735, %v6028
    %v6030 = vlaneseq
    %v6031 = vshrl.u32 %v6030, 7
    %v6032 = vsub.s32 1, %v6031
    %v6033 = vrot.slane %v5735, %v6032
    %v6034 = vlaneseq
    %v6035 = vshrl.u32 %v6034, 7
    %v6036 = vsub.s32 2, %v6035
    %v6037 = vrot.slane %v5735, %v6036
    %v6038 = vlaneseq
    %v6039 = vshrl.u32 %v6038, 7
    %v6040 = vsub.s32 3, %v6039
    %v6041 = vrot.slane %v5735, %v6040
    %v6042 = vlaneseq
    %v6043 = vshrl.u32 %v6042, 7
    %v6044 = vsub.s32 0, %v6043
    %v6045 = vrot.slane %v5749, %v6044
    %v6046 = vlaneseq
    %v6047 = vshrl.u32 %v6046, 7
    %v6048 = vsub.s32 1, %v6047
    %v6049 = vrot.slane %v5749, %v6048
    %v6050 = vlaneseq
    %v6051 = vshrl.u32 %v6050, 7
    %v6052 = vsub.s32 2, %v6051
    %v6053 = vrot.slane %v5749, %v6052
    %v6054 = vlaneseq
    %v6055 = vshrl.u32 %v6054, 7
    %v6056 = vsub.s32 3, %v6055
    %v6057 = vrot.slane %v5749, %v6056
    %v6058 = vlaneseq
    %v6059 = vshrl.u32 %v6058, 7
    %v6060 = vsub.s32 0, %v6059
    %v6061 = vrot.slane %v5751, %v6060
    %v6062 = vlaneseq
    %v6063 = vshrl.u32 %v6062, 7
    %v6064 = vsub.s32 1, %v6063
    %v6065 = vrot.slane %v5751, %v6064
    %v6066 = vlaneseq
    %v6067 = vshrl.u32 %v6066, 7
    %v6068 = vsub.s32 2, %v6067
    %v6069 = vrot.slane %v5751, %v6068
    %v6070 = vlaneseq
    %v6071 = vshrl.u32 %v6070, 7
    %v6072 = vsub.s32 3, %v6071
    %v6073 = vrot.slane %v5751, %v6072
    %v6074 = vlaneseq
    %v6075 = vshrl.u32 %v6074, 7
    %v6076 = vsub.s32 0, %v6075
    %v6077 = vrot.slane %v5753, %v6076
    %v6078 = vlaneseq
    %v6079 = vshrl.u32 %v6078, 7
    %v6080 = vsub.s32 1, %v6079
    %v6081 = vrot.slane %v5753, %v6080
    %v6082 = vlaneseq
    %v6083 = vshrl.u32 %v6082, 7
    %v6084 = vsub.s32 2, %v6083
    %v6085 = vrot.slane %v5753, %v6084
    %v6086 = vlaneseq
    %v6087 = vshrl.u32 %v6086, 7
    %v6088 = vsub.s32 3, %v6087
    %v6089 = vrot.slane %v5753, %v6088
    %v6090 = vlaneseq
    %v6091 = vshrl.u32 %v6090, 7
    %v6092 = vsub.s32 0, %v6091
    %v6093 = vrot.slane %v5796, %v6092
    %v6094 = vlaneseq
    %v6095 = vshrl.u32 %v6094, 7
    %v6096 = vsub.s32 1, %v6095
    %v6097 = vrot.slane %v5796, %v6096
    %v6098 = vlaneseq
    %v6099 = vshrl.u32 %v6098, 7
    %v6100 = vsub.s32 2, %v6099
    %v6101 = vrot.slane %v5796, %v6100
    %v6102 = vlaneseq
    %v6103 = vshrl.u32 %v6102, 7
    %v6104 = vsub.s32 3, %v6103
    %v6105 = vrot.slane %v5796, %v6104
    %v6106 = vlaneseq
    %v6107 = vshrl.u32 %v6106, 7
    %v6108 = vsub.s32 0, %v6107
    %v6109 = vrot.slane %v5810, %v6108
    %v6110 = vlaneseq
    %v6111 = vshrl.u32 %v6110, 7
    %v6112 = vsub.s32 1, %v6111
    %v6113 = vrot.slane %v5810, %v6112
    %v6114 = vlaneseq
    %v6115 = vshrl.u32 %v6114, 7
    %v6116 = vsub.s32 2, %v6115
    %v6117 = vrot.slane %v5810, %v6116
    %v6118 = vlaneseq
    %v6119 = vshrl.u32 %v6118, 7
    %v6120 = vsub.s32 3, %v6119
    %v6121 = vrot.slane %v5810, %v6120
    %v6122 = vlaneseq
    %v6123 = vshrl.u32 %v6122, 7
    %v6124 = vsub.s32 0, %v6123
    %v6125 = vrot.slane %v5818, %v6124
    %v6126 = vlaneseq
    %v6127 = vshrl.u32 %v6126, 7
    %v6128 = vsub.s32 1, %v6127
    %v6129 = vrot.slane %v5818, %v6128
    %v6130 = vlaneseq
    %v6131 = vshrl.u32 %v6130, 7
    %v6132 = vsub.s32 2, %v6131
    %v6133 = vrot.slane %v5818, %v6132
    %v6134 = vlaneseq
    %v6135 = vshrl.u32 %v6134, 7
    %v6136 = vsub.s32 3, %v6135
    %v6137 = vrot.slane %v5818, %v6136
    %v6138 = vlaneseq
    %v6139 = vshrl.u32 %v6138, 7
    %v6140 = vsub.s32 0, %v6139
    %v6141 = vrot.slane %v5819, %v6140
    %v6142 = vlaneseq
    %v6143 = vshrl.u32 %v6142, 7
    %v6144 = vsub.s32 1, %v6143
    %v6145 = vrot.slane %v5819, %v6144
    %v6146 = vlaneseq
    %v6147 = vshrl.u32 %v6146, 7
    %v6148 = vsub.s32 2, %v6147
    %v6149 = vrot.slane %v5819, %v6148
    %v6150 = vlaneseq
    %v6151 = vshrl.u32 %v6150, 7
    %v6152 = vsub.s32 3, %v6151
    %v6153 = vrot.slane %v5819, %v6152
    %v6154 = vlaneseq
    %v6155 = vshrl.u32 %v6154, 7
    %v6156 = vsub.s32 0, %v6155
    %v6157 = vrot.slane %v5803, %v6156
    %v6158 = vlaneseq
    %v6159 = vshrl.u32 %v6158, 7
    %v6160 = vsub.s32 1, %v6159
    %v6161 = vrot.slane %v5803, %v6160
    %v6162 = vlaneseq
    %v6163 = vshrl.u32 %v6162, 7
    %v6164 = vsub.s32 2, %v6163
    %v6165 = vrot.slane %v5803, %v6164
    %v6166 = vlaneseq
    %v6167 = vshrl.u32 %v6166, 7
    %v6168 = vsub.s32 3, %v6167
    %v6169 = vrot.slane %v5803, %v6168
    %v6170 = vlaneseq
    %v6171 = vshrl.u32 %v6170, 7
    %v6172 = vsub.s32 0, %v6171
    %v6173 = vrot.slane %v5817, %v6172
    %v6174 = vlaneseq
    %v6175 = vshrl.u32 %v6174, 7
    %v6176 = vsub.s32 1, %v6175
    %v6177 = vrot.slane %v5817, %v6176
    %v6178 = vlaneseq
    %v6179 = vshrl.u32 %v6178, 7
    %v6180 = vsub.s32 2, %v6179
    %v6181 = vrot.slane %v5817, %v6180
    %v6182 = vlaneseq
    %v6183 = vshrl.u32 %v6182, 7
    %v6184 = vsub.s32 3, %v6183
    %v6185 = vrot.slane %v5817, %v6184
    %v6242 = vcombine.low %v5870, %v5884
    %v6243 = vcombine.low %v5892, %v5894
    %v6244 = vcombine.low %v5877, %v5891
    %v6246 = vunpack.c.l.s4 1966171168
    %v6247 = vunpack.c.0.s8 %v6246
    %v6248 = vlaneseq
    %v6249 = vshrl.u32 %v6248, 7
    %v6250 = vsub.s32 %v6247, %v6249
    %v6251 = vrot.slane %v6242, %v6250
    %v6253 = vunpack.c.l.s4 1966171168
    %v6254 = vunpack.c.0.s8 %v6253
    %v6255 = vlaneseq
    %v6256 = vshrl.u32 %v6255, 7
    %v6257 = vsub.s32 %v6254, %v6256
    %v6258 = vrot.slane %v6243, %v6257
    %v6260 = vunpack.c.l.s4 1966171168
    %v6261 = vunpack.c.0.s8 %v6260
    %v6262 = vlaneseq
    %v6263 = vshrl.u32 %v6262, 7
    %v6264 = vsub.s32 %v6261, %v6263
    %v6265 = vrot.slane %v6244, %v6264
    %v6267 = vunpack.c.l.s4 1966171168
    %v6268 = vunpack.c.0.s8 %v6267
    %v6269 = vlaneseq
    %v6270 = vshrl.u32 %v6269, 7
    %v6271 = vsub.s32 %v6268, %v6270
    %v6272 = vrot.slane %v5893, %v6271
    %v6273 = vcombine.low %v6251, %v6258
    %v6274 = vcombine.high %v6251, %v6258
    %v6275 = vcombine.low %v6265, %v6272
    %v6276 = vcombine.high %v6265, %v6272
    %v6278 = vunpack.c.l.s4 1966171168
    %v6279 = vunpack.c.0.s8 %v6278
    %v6280 = vlaneseq
    %v6281 = vshrl.u32 %v6280, 7
    %v6282 = vsub.s32 %v6279, %v6281
    %v6283 = vrot.slane %v6273, %v6282
    %v6285 = vunpack.c.l.s4 1966171168
    %v6286 = vunpack.c.0.s8 %v6285
    %v6287 = vlaneseq
    %v6288 = vshrl.u32 %v6287, 7
    %v6289 = vsub.s32 %v6286, %v6288
    %v6290 = vrot.slane %v6274, %v6289
    %v6292 = vunpack.c.l.s4 1966171168
    %v6293 = vunpack.c.0.s8 %v6292
    %v6294 = vlaneseq
    %v6295 = vshrl.u32 %v6294, 7
    %v6296 = vsub.s32 %v6293, %v6295
    %v6297 = vrot.slane %v6275, %v6296
    %v6299 = vunpack.c.l.s4 1966171168
    %v6300 = vunpack.c.0.s8 %v6299
    %v6301 = vlaneseq
    %v6302 = vshrl.u32 %v6301, 7
    %v6303 = vsub.s32 %v6300, %v6302
    %v6304 = vrot.slane %v6276, %v6303
    %v6305 = vcombine.low %v6283, %v6297
    %v6306 = vcombine.high %v6283, %v6297
    %v6307 = vcombine.low %v6290, %v6304
    %v6308 = vcombine.high %v6290, %v6304
    %v6309 = vcombine.low %v5895, %v5938
    %v6310 = vcombine.low %v5952, %v5960
    %v6311 = vcombine.low %v5961, %v5945
    %v6313 = vunpack.c.l.s4 1966171168
    %v6314 = vunpack.c.0.s8 %v6313
    %v6315 = vlaneseq
    %v6316 = vshrl.u32 %v6315, 7
    %v6317 = vsub.s32 %v6314, %v6316
    %v6318 = vrot.slane %v6309, %v6317
    %v6320 = vunpack.c.l.s4 1966171168
    %v6321 = vunpack.c.0.s8 %v6320
    %v6322 = vlaneseq
    %v6323 = vshrl.u32 %v6322, 7
    %v6324 = vsub.s32 %v6321, %v6323
    %v6325 = vrot.slane %v6310, %v6324
    %v6327 = vunpack.c.l.s4 1966171168
    %v6328 = vunpack.c.0.s8 %v6327
    %v6329 = vlaneseq
    %v6330 = vshrl.u32 %v6329, 7
    %v6331 = vsub.s32 %v6328, %v6330
    %v6332 = vrot.slane %v6311, %v6331
    %v6334 = vunpack.c.l.s4 1966171168
    %v6335 = vunpack.c.0.s8 %v6334
    %v6336 = vlaneseq
    %v6337 = vshrl.u32 %v6336, 7
    %v6338 = vsub.s32 %v6335, %v6337
    %v6339 = vrot.slane %v5959, %v6338
    %v6340 = vcombine.low %v6318, %v6325
    %v6341 = vcombine.high %v6318, %v6325
    %v6342 = vcombine.low %v6332, %v6339
    %v6343 = vcombine.high %v6332, %v6339
    %v6345 = vunpack.c.l.s4 1966171168
    %v6346 = vunpack.c.0.s8 %v6345
    %v6347 = vlaneseq
    %v6348 = vshrl.u32 %v6347, 7
    %v6349 = vsub.s32 %v6346, %v6348
    %v6350 = vrot.slane %v6340, %v6349
    %v6352 = vunpack.c.l.s4 1966171168
    %v6353 = vunpack.c.0.s8 %v6352
    %v6354 = vlaneseq
    %v6355 = vshrl.u32 %v6354, 7
    %v6356 = vsub.s32 %v6353, %v6355
    %v6357 = vrot.slane %v6341, %v6356
    %v6359 = vunpack.c.l.s4 1966171168
    %v6360 = vunpack.c.0.s8 %v6359
    %v6361 = vlaneseq
    %v6362 = vshrl.u32 %v6361, 7
    %v6363 = vsub.s32 %v6360, %v6362
    %v6364 = vrot.slane %v6342, %v6363
    %v6366 = vunpack.c.l.s4 1966171168
    %v6367 = vunpack.c.0.s8 %v6366
    %v6368 = vlaneseq
    %v6369 = vshrl.u32 %v6368, 7
    %v6370 = vsub.s32 %v6367, %v6369
    %v6371 = vrot.slane %v6343, %v6370
    %v6372 = vcombine.low %v6350, %v6364
    %v6373 = vcombine.high %v6350, %v6364
    %v6374 = vcombine.low %v6357, %v6371
    %v6375 = vcombine.high %v6357, %v6371
    %v6384 = vmul.f32 %v5965, %v6305
    %v6385 = vmul.f32 %v5969, %v6307
    %v6386 = vmul.f32 %v5973, %v6306
    %v6387 = vmul.f32 %v5977, %v6308
    %v6388 = vmul.f32 %v5981, %v6305
    %v6389 = vmul.f32 %v5985, %v6307
    %v6390 = vmul.f32 %v5989, %v6306
    %v6391 = vmul.f32 %v5993, %v6308
    %v6392 = vmul.f32 %v5997, %v6305
    %v6393 = vmul.f32 %v6001, %v6307
    %v6394 = vmul.f32 %v6005, %v6306
    %v6395 = vmul.f32 %v6009, %v6308
    %v6396 = vmul.f32 %v6013, %v6305
    %v6397 = vmul.f32 %v6017, %v6307
    %v6398 = vmul.f32 %v6021, %v6306
    %v6399 = vmul.f32 %v6025, %v6308
    %v6400 = vmul.f32 %v6029, %v6305
    %v6401 = vmul.f32 %v6033, %v6307
    %v6402 = vmul.f32 %v6037, %v6306
    %v6403 = vmul.f32 %v6041, %v6308
    %v6404 = vmul.f32 %v6045, %v6305
    %v6405 = vmul.f32 %v6049, %v6307
    %v6406 = vmul.f32 %v6053, %v6306
    %v6407 = vmul.f32 %v6057, %v6308
    %v6408 = vmul.f32 %v6061, %v6305
    %v6409 = vmul.f32 %v6065, %v6307
    %v6410 = vmul.f32 %v6069, %v6306
    %v6411 = vmul.f32 %v6073, %v6308
    %v6412 = vmul.f32 %v6077, %v6372
    %v6413 = vmul.f32 %v6081, %v6374
    %v6414 = vmul.f32 %v6085, %v6373
    %v6415 = vmul.f32 %v6089, %v6375
    %v6416 = vmul.f32 %v6093, %v6372
    %v6417 = vmul.f32 %v6097, %v6374
    %v6418 = vmul.f32 %v6101, %v6373
    %v6419 = vmul.f32 %v6105, %v6375
    %v6420 = vmul.f32 %v6109, %v6372
    %v6421 = vmul.f32 %v6113, %v6374
    %v6422 = vmul.f32 %v6117, %v6373
    %v6423 = vmul.f32 %v6121, %v6375
    %v6424 = vmul.f32 %v6125, %v6372
    %v6425 = vmul.f32 %v6129, %v6374
    %v6426 = vmul.f32 %v6133, %v6373
    %v6427 = vmul.f32 %v6137, %v6375
    %v6428 = vmul.f32 %v6141, %v6372
    %v6429 = vmul.f32 %v6145, %v6374
    %v6430 = vmul.f32 %v6149, %v6373
    %v6431 = vmul.f32 %v6153, %v6375
    %v6432 = vmul.f32 %v6157, %v6372
    %v6433 = vmul.f32 %v6161, %v6374
    %v6434 = vmul.f32 %v6165, %v6373
    %v6435 = vmul.f32 %v6169, %v6375
    %v6436 = vmul.f32 %v6173, %v6372
    %v6437 = vmul.f32 %v6177, %v6374
    %v6438 = vmul.f32 %v6181, %v6373
    %v6439 = vmul.f32 %v6185, %v6375
    %v6440 = vpack.c.bf16 %v6384, %v6384
    %v6441 = vpack.c.bf16 %v6385, %v6385
    %v6442 = vpack.c.bf16 %v6386, %v6386
    %v6443 = vpack.c.bf16 %v6387, %v6387
    %v6444 = vpack.c.bf16 %v6388, %v6388
    %v6445 = vpack.c.bf16 %v6389, %v6389
    %v6446 = vpack.c.bf16 %v6390, %v6390
    %v6447 = vpack.c.bf16 %v6391, %v6391
    %v6448 = vpack.c.bf16 %v6392, %v6392
    %v6449 = vpack.c.bf16 %v6393, %v6393
    %v6450 = vpack.c.bf16 %v6394, %v6394
    %v6451 = vpack.c.bf16 %v6395, %v6395
    %v6452 = vpack.c.bf16 %v6396, %v6396
    %v6453 = vpack.c.bf16 %v6397, %v6397
    %v6454 = vpack.c.bf16 %v6398, %v6398
    %v6455 = vpack.c.bf16 %v6399, %v6399
    %v6456 = vpack.c.bf16 %v6400, %v6400
    %v6457 = vpack.c.bf16 %v6401, %v6401
    %v6458 = vpack.c.bf16 %v6402, %v6402
    %v6459 = vpack.c.bf16 %v6403, %v6403
    %v6460 = vpack.c.bf16 %v6404, %v6404
    %v6461 = vpack.c.bf16 %v6405, %v6405
    %v6462 = vpack.c.bf16 %v6406, %v6406
    %v6463 = vpack.c.bf16 %v6407, %v6407
    %v6464 = vpack.c.bf16 %v6408, %v6408
    %v6465 = vpack.c.bf16 %v6409, %v6409
    %v6466 = vpack.c.bf16 %v6410, %v6410
    %v6467 = vpack.c.bf16 %v6411, %v6411
    %v6468 = vpack.c.bf16 %v6412, %v6412
    %v6469 = vpack.c.bf16 %v6413, %v6413
    %v6470 = vpack.c.bf16 %v6414, %v6414
    %v6471 = vpack.c.bf16 %v6415, %v6415
    %v6472 = vpack.c.bf16 %v6416, %v6416
    %v6473 = vpack.c.bf16 %v6417, %v6417
    %v6474 = vpack.c.bf16 %v6418, %v6418
    %v6475 = vpack.c.bf16 %v6419, %v6419
    %v6476 = vpack.c.bf16 %v6420, %v6420
    %v6477 = vpack.c.bf16 %v6421, %v6421
    %v6478 = vpack.c.bf16 %v6422, %v6422
    %v6479 = vpack.c.bf16 %v6423, %v6423
    %v6480 = vpack.c.bf16 %v6424, %v6424
    %v6481 = vpack.c.bf16 %v6425, %v6425
    %v6482 = vpack.c.bf16 %v6426, %v6426
    %v6483 = vpack.c.bf16 %v6427, %v6427
    %v6484 = vpack.c.bf16 %v6428, %v6428
    %v6485 = vpack.c.bf16 %v6429, %v6429
    %v6486 = vpack.c.bf16 %v6430, %v6430
    %v6487 = vpack.c.bf16 %v6431, %v6431
    %v6488 = vpack.c.bf16 %v6432, %v6432
    %v6489 = vpack.c.bf16 %v6433, %v6433
    %v6490 = vpack.c.bf16 %v6434, %v6434
    %v6491 = vpack.c.bf16 %v6435, %v6435
    %v6492 = vpack.c.bf16 %v6436, %v6436
    %v6493 = vpack.c.bf16 %v6437, %v6437
    %v6494 = vpack.c.bf16 %v6438, %v6438
    %v6495 = vpack.c.bf16 %v6439, %v6439
    %v6552 = vunpack.c.l.b16 %v6440
    %v6553 = vunpack.c.l.b16 %v6441
    %v6554 = vunpack.c.l.b16 %v6442
    %v6555 = vunpack.c.l.b16 %v6443
    %v6556 = vunpack.c.l.b16 %v6444
    %v6557 = vunpack.c.l.b16 %v6445
    %v6558 = vunpack.c.l.b16 %v6446
    %v6559 = vunpack.c.l.b16 %v6447
    %v6560 = vunpack.c.l.b16 %v6448
    %v6561 = vunpack.c.l.b16 %v6449
    %v6562 = vunpack.c.l.b16 %v6450
    %v6563 = vunpack.c.l.b16 %v6451
    %v6564 = vunpack.c.l.b16 %v6452
    %v6565 = vunpack.c.l.b16 %v6453
    %v6566 = vunpack.c.l.b16 %v6454
    %v6567 = vunpack.c.l.b16 %v6455
    %v6568 = vunpack.c.l.b16 %v6456
    %v6569 = vunpack.c.l.b16 %v6457
    %v6570 = vunpack.c.l.b16 %v6458
    %v6571 = vunpack.c.l.b16 %v6459
    %v6572 = vunpack.c.l.b16 %v6460
    %v6573 = vunpack.c.l.b16 %v6461
    %v6574 = vunpack.c.l.b16 %v6462
    %v6575 = vunpack.c.l.b16 %v6463
    %v6576 = vunpack.c.l.b16 %v6464
    %v6577 = vunpack.c.l.b16 %v6465
    %v6578 = vunpack.c.l.b16 %v6466
    %v6579 = vunpack.c.l.b16 %v6467
    %v6580 = vunpack.c.l.b16 %v6468
    %v6581 = vunpack.c.l.b16 %v6469
    %v6582 = vunpack.c.l.b16 %v6470
    %v6583 = vunpack.c.l.b16 %v6471
    %v6584 = vunpack.c.l.b16 %v6472
    %v6585 = vunpack.c.l.b16 %v6473
    %v6586 = vunpack.c.l.b16 %v6474
    %v6587 = vunpack.c.l.b16 %v6475
    %v6588 = vunpack.c.l.b16 %v6476
    %v6589 = vunpack.c.l.b16 %v6477
    %v6590 = vunpack.c.l.b16 %v6478
    %v6591 = vunpack.c.l.b16 %v6479
    %v6592 = vunpack.c.l.b16 %v6480
    %v6593 = vunpack.c.l.b16 %v6481
    %v6594 = vunpack.c.l.b16 %v6482
    %v6595 = vunpack.c.l.b16 %v6483
    %v6596 = vunpack.c.l.b16 %v6484
    %v6597 = vunpack.c.l.b16 %v6485
    %v6598 = vunpack.c.l.b16 %v6486
    %v6599 = vunpack.c.l.b16 %v6487
    %v6600 = vunpack.c.l.b16 %v6488
    %v6601 = vunpack.c.l.b16 %v6489
    %v6602 = vunpack.c.l.b16 %v6490
    %v6603 = vunpack.c.l.b16 %v6491
    %v6604 = vunpack.c.l.b16 %v6492
    %v6605 = vunpack.c.l.b16 %v6493
    %v6606 = vunpack.c.l.b16 %v6494
    %v6607 = vunpack.c.l.b16 %v6495
    %v6608 = vpack.c.b16 %v6553, %v6552
    %v6609 = vpack.c.b16 %v6555, %v6554
    %v6610 = vpack.c.b16 %v6557, %v6556
    %v6611 = vpack.c.b16 %v6559, %v6558
    %v6612 = vpack.c.b16 %v6561, %v6560
    %v6613 = vpack.c.b16 %v6563, %v6562
    %v6614 = vpack.c.b16 %v6565, %v6564
    %v6615 = vpack.c.b16 %v6567, %v6566
    %v6616 = vpack.c.b16 %v6569, %v6568
    %v6617 = vpack.c.b16 %v6571, %v6570
    %v6618 = vpack.c.b16 %v6573, %v6572
    %v6619 = vpack.c.b16 %v6575, %v6574
    %v6620 = vpack.c.b16 %v6577, %v6576
    %v6621 = vpack.c.b16 %v6579, %v6578
    %v6622 = vpack.c.b16 %v6581, %v6580
    %v6623 = vpack.c.b16 %v6583, %v6582
    %v6624 = vpack.c.b16 %v6585, %v6584
    %v6625 = vpack.c.b16 %v6587, %v6586
    %v6626 = vpack.c.b16 %v6589, %v6588
    %v6627 = vpack.c.b16 %v6591, %v6590
    %v6628 = vpack.c.b16 %v6593, %v6592
    %v6629 = vpack.c.b16 %v6595, %v6594
    %v6630 = vpack.c.b16 %v6597, %v6596
    %v6631 = vpack.c.b16 %v6599, %v6598
    %v6632 = vpack.c.b16 %v6601, %v6600
    %v6633 = vpack.c.b16 %v6603, %v6602
    %v6634 = vpack.c.b16 %v6605, %v6604
    %v6635 = vpack.c.b16 %v6607, %v6606
    %s6664 = scalar_lea.vmem %s13, 112
    %v6665 = vld [vmem:[%s6664] sm:$0xff]
    %v6666 = vsel %vm3344, %v6608, %v6665
    %6667 = vst [vmem:[%s6664] sm:$0xff] %v6666
    %v6668 = vld [vmem:[%s6664 + $0x8] sm:$0xff]
    %v6669 = vsel %vm3344, %v6609, %v6668
    %6670 = vst [vmem:[%s6664 + $0x8] sm:$0xff] %v6669
    %v6671 = vld [vmem:[%s6664 + $0x10] sm:$0xff]
    %v6672 = vsel %vm3344, %v6610, %v6671
    %6673 = vst [vmem:[%s6664 + $0x10] sm:$0xff] %v6672
    %v6674 = vld [vmem:[%s6664 + $0x18] sm:$0xff]
    %v6675 = vsel %vm3344, %v6611, %v6674
    %6676 = vst [vmem:[%s6664 + $0x18] sm:$0xff] %v6675
    %v6677 = vld [vmem:[%s6664 + $0x20] sm:$0xff]
    %v6678 = vsel %vm3344, %v6612, %v6677
    %6679 = vst [vmem:[%s6664 + $0x20] sm:$0xff] %v6678
    %v6680 = vld [vmem:[%s6664 + $0x28] sm:$0xff]
    %v6681 = vsel %vm3344, %v6613, %v6680
    %6682 = vst [vmem:[%s6664 + $0x28] sm:$0xff] %v6681
    %v6683 = vld [vmem:[%s6664 + $0x30] sm:$0xff]
    %v6684 = vsel %vm3344, %v6614, %v6683
    %6685 = vst [vmem:[%s6664 + $0x30] sm:$0xff] %v6684
    %v6686 = vld [vmem:[%s6664 + $0x38] sm:$0xff]
    %v6687 = vsel %vm3344, %v6615, %v6686
    %6688 = vst [vmem:[%s6664 + $0x38] sm:$0xff] %v6687
    %v6689 = vld [vmem:[%s6664 + $0x40] sm:$0xff]
    %v6690 = vsel %vm3344, %v6616, %v6689
    %6691 = vst [vmem:[%s6664 + $0x40] sm:$0xff] %v6690
    %v6692 = vld [vmem:[%s6664 + $0x48] sm:$0xff]
    %v6693 = vsel %vm3344, %v6617, %v6692
    %6694 = vst [vmem:[%s6664 + $0x48] sm:$0xff] %v6693
    %v6695 = vld [vmem:[%s6664 + $0x50] sm:$0xff]
    %v6696 = vsel %vm3344, %v6618, %v6695
    %6697 = vst [vmem:[%s6664 + $0x50] sm:$0xff] %v6696
    %v6698 = vld [vmem:[%s6664 + $0x58] sm:$0xff]
    %v6699 = vsel %vm3344, %v6619, %v6698
    %6700 = vst [vmem:[%s6664 + $0x58] sm:$0xff] %v6699
    %v6701 = vld [vmem:[%s6664 + $0x60] sm:$0xff]
    %v6702 = vsel %vm3344, %v6620, %v6701
    %6703 = vst [vmem:[%s6664 + $0x60] sm:$0xff] %v6702
    %v6704 = vld [vmem:[%s6664 + $0x68] sm:$0xff]
    %v6705 = vsel %vm3344, %v6621, %v6704
    %6706 = vst [vmem:[%s6664 + $0x68] sm:$0xff] %v6705
    %v6707 = vld [vmem:[%s6664 + $0xe0] sm:$0xff]
    %v6708 = vsel %vm3344, %v6622, %v6707
    %6709 = vst [vmem:[%s6664 + $0xe0] sm:$0xff] %v6708
    %v6710 = vld [vmem:[%s6664 + $0xe8] sm:$0xff]
    %v6711 = vsel %vm3344, %v6623, %v6710
    %6712 = vst [vmem:[%s6664 + $0xe8] sm:$0xff] %v6711
    %v6713 = vld [vmem:[%s6664 + $0xf0] sm:$0xff]
    %v6714 = vsel %vm3344, %v6624, %v6713
    %6715 = vst [vmem:[%s6664 + $0xf0] sm:$0xff] %v6714
    %v6716 = vld [vmem:[%s6664 + $0xf8] sm:$0xff]
    %v6717 = vsel %vm3344, %v6625, %v6716
    %6718 = vst [vmem:[%s6664 + $0xf8] sm:$0xff] %v6717
    %v6719 = vld [vmem:[%s6664 + $0x100] sm:$0xff]
    %v6720 = vsel %vm3344, %v6626, %v6719
    %6721 = vst [vmem:[%s6664 + $0x100] sm:$0xff] %v6720
    %v6722 = vld [vmem:[%s6664 + $0x108] sm:$0xff]
    %v6723 = vsel %vm3344, %v6627, %v6722
    %6724 = vst [vmem:[%s6664 + $0x108] sm:$0xff] %v6723
    %v6725 = vld [vmem:[%s6664 + $0x110] sm:$0xff]
    %v6726 = vsel %vm3344, %v6628, %v6725
    %6727 = vst [vmem:[%s6664 + $0x110] sm:$0xff] %v6726
    %v6728 = vld [vmem:[%s6664 + $0x118] sm:$0xff]
    %v6729 = vsel %vm3344, %v6629, %v6728
    %6730 = vst [vmem:[%s6664 + $0x118] sm:$0xff] %v6729
    %v6731 = vld [vmem:[%s6664 + $0x120] sm:$0xff]
    %v6732 = vsel %vm3344, %v6630, %v6731
    %6733 = vst [vmem:[%s6664 + $0x120] sm:$0xff] %v6732
    %v6734 = vld [vmem:[%s6664 + $0x128] sm:$0xff]
    %v6735 = vsel %vm3344, %v6631, %v6734
    %6736 = vst [vmem:[%s6664 + $0x128] sm:$0xff] %v6735
    %v6737 = vld [vmem:[%s6664 + $0x130] sm:$0xff]
    %v6738 = vsel %vm3344, %v6632, %v6737
    %6739 = vst [vmem:[%s6664 + $0x130] sm:$0xff] %v6738
    %v6740 = vld [vmem:[%s6664 + $0x138] sm:$0xff]
    %v6741 = vsel %vm3344, %v6633, %v6740
    %6742 = vst [vmem:[%s6664 + $0x138] sm:$0xff] %v6741
    %v6743 = vld [vmem:[%s6664 + $0x140] sm:$0xff]
    %v6744 = vsel %vm3344, %v6634, %v6743
    %6745 = vst [vmem:[%s6664 + $0x140] sm:$0xff] %v6744
    %v6746 = vld [vmem:[%s6664 + $0x148] sm:$0xff]
    %v6747 = vsel %vm3344, %v6635, %v6746
    %6748 = vst [vmem:[%s6664 + $0x148] sm:$0xff] %v6747
    %v6749 = vmax.f32 %v3058, %v6384
    %v6750 = vmax.f32 %v3059, %v6385
    %v6751 = vmax.f32 %v3060, %v6386
    %v6752 = vmax.f32 %v3061, %v6387
    %v6753 = vmax.f32 %v3062, %v6388
    %v6754 = vmax.f32 %v3063, %v6389
    %v6755 = vmax.f32 %v3064, %v6390
    %v6756 = vmax.f32 %v3065, %v6391
    %v6757 = vmax.f32 %v3066, %v6392
    %v6758 = vmax.f32 %v3067, %v6393
    %v6759 = vmax.f32 %v3068, %v6394
    %v6760 = vmax.f32 %v3069, %v6395
    %v6761 = vmax.f32 %v3070, %v6396
    %v6762 = vmax.f32 %v3071, %v6397
    %v6763 = vmax.f32 %v3072, %v6398
    %v6764 = vmax.f32 %v3073, %v6399
    %v6765 = vmax.f32 %v3074, %v6400
    %v6766 = vmax.f32 %v3075, %v6401
    %v6767 = vmax.f32 %v3076, %v6402
    %v6768 = vmax.f32 %v3077, %v6403
    %v6769 = vmax.f32 %v3078, %v6404
    %v6770 = vmax.f32 %v3079, %v6405
    %v6771 = vmax.f32 %v3080, %v6406
    %v6772 = vmax.f32 %v3081, %v6407
    %v6773 = vmax.f32 %v3082, %v6408
    %v6774 = vmax.f32 %v3083, %v6409
    %v6775 = vmax.f32 %v3084, %v6410
    %v6776 = vmax.f32 %v3085, %v6411
    %v6777 = vmax.f32 %v3086, %v6412
    %v6778 = vmax.f32 %v3087, %v6413
    %v6779 = vmax.f32 %v3088, %v6414
    %v6780 = vmax.f32 %v3089, %v6415
    %v6781 = vmax.f32 %v3090, %v6416
    %v6782 = vmax.f32 %v3091, %v6417
    %v6783 = vmax.f32 %v3092, %v6418
    %v6784 = vmax.f32 %v3093, %v6419
    %v6785 = vmax.f32 %v3094, %v6420
    %v6786 = vmax.f32 %v3095, %v6421
    %v6787 = vmax.f32 %v3096, %v6422
    %v6788 = vmax.f32 %v3097, %v6423
    %v6789 = vmax.f32 %v3098, %v6424
    %v6790 = vmax.f32 %v3099, %v6425
    %v6791 = vmax.f32 %v3100, %v6426
    %v6792 = vmax.f32 %v3101, %v6427
    %v6793 = vmax.f32 %v3102, %v6428
    %v6794 = vmax.f32 %v3103, %v6429
    %v6795 = vmax.f32 %v3104, %v6430
    %v6796 = vmax.f32 %v3105, %v6431
    %v6797 = vmax.f32 %v3106, %v6432
    %v6798 = vmax.f32 %v3107, %v6433
    %v6799 = vmax.f32 %v3108, %v6434
    %v6800 = vmax.f32 %v3109, %v6435
    %v6801 = vmax.f32 %v3110, %v6436
    %v6802 = vmax.f32 %v3111, %v6437
    %v6803 = vmax.f32 %v3112, %v6438
    %v6804 = vmax.f32 %v3113, %v6439
    %v6805 = vmul.f32 %v47, %v6749
    %v6806 = vmul.f32 %v48, %v6750
    %v6807 = vmul.f32 %v49, %v6751
    %v6808 = vmul.f32 %v50, %v6752
    %v6809 = vmul.f32 %v51, %v6753
    %v6810 = vmul.f32 %v52, %v6754
    %v6811 = vmul.f32 %v53, %v6755
    %v6812 = vmul.f32 %v54, %v6756
    %v6813 = vmul.f32 %v55, %v6757
    %v6814 = vmul.f32 %v56, %v6758
    %v6815 = vmul.f32 %v57, %v6759
    %v6816 = vmul.f32 %v58, %v6760
    %v6817 = vmul.f32 %v59, %v6761
    %v6818 = vmul.f32 %v60, %v6762
    %v6819 = vmul.f32 %v61, %v6763
    %v6820 = vmul.f32 %v62, %v6764
    %v6821 = vmul.f32 %v63, %v6765
    %v6822 = vmul.f32 %v64, %v6766
    %v6823 = vmul.f32 %v65, %v6767
    %v6824 = vmul.f32 %v66, %v6768
    %v6825 = vmul.f32 %v67, %v6769
    %v6826 = vmul.f32 %v68, %v6770
    %v6827 = vmul.f32 %v69, %v6771
    %v6828 = vmul.f32 %v70, %v6772
    %v6829 = vmul.f32 %v71, %v6773
    %v6830 = vmul.f32 %v72, %v6774
    %v6831 = vmul.f32 %v73, %v6775
    %v6832 = vmul.f32 %v74, %v6776
    %v6833 = vmul.f32 %v75, %v6777
    %v6834 = vmul.f32 %v76, %v6778
    %v6835 = vmul.f32 %v77, %v6779
    %v6836 = vmul.f32 %v78, %v6780
    %v6837 = vmul.f32 %v79, %v6781
    %v6838 = vmul.f32 %v80, %v6782
    %v6839 = vmul.f32 %v81, %v6783
    %v6840 = vmul.f32 %v82, %v6784
    %v6841 = vmul.f32 %v83, %v6785
    %v6842 = vmul.f32 %v84, %v6786
    %v6843 = vmul.f32 %v85, %v6787
    %v6844 = vmul.f32 %v86, %v6788
    %v6845 = vmul.f32 %v87, %v6789
    %v6846 = vmul.f32 %v88, %v6790
    %v6847 = vmul.f32 %v89, %v6791
    %v6848 = vmul.f32 %v90, %v6792
    %v6849 = vmul.f32 %v91, %v6793
    %v6850 = vmul.f32 %v92, %v6794
    %v6851 = vmul.f32 %v93, %v6795
    %v6852 = vmul.f32 %v94, %v6796
    %v6853 = vmul.f32 %v95, %v6797
    %v6854 = vmul.f32 %v96, %v6798
    %v6855 = vmul.f32 %v97, %v6799
    %v6856 = vmul.f32 %v98, %v6800
    %v6857 = vmul.f32 %v99, %v6801
    %v6858 = vmul.f32 %v100, %v6802
    %v6859 = vmul.f32 %v101, %v6803
    %v6860 = vmul.f32 %v102, %v6804
    %v6861 = vld [vmem:[%s11] sm:$0x7f]
    %v6862 = vld [vmem:[%s11 + $0x8] sm:$0x7f]
    %v6863 = vld [vmem:[%s11 + $0x10] sm:$0x7f]
    %v6864 = vld [vmem:[%s11 + $0x18] sm:$0x7f]
    %v6865 = vld [vmem:[%s11 + $0x20] sm:$0x7f]
    %v6866 = vld [vmem:[%s11 + $0x28] sm:$0x7f]
    %v6867 = vld [vmem:[%s11 + $0x30] sm:$0x7f]
    %v6868 = vld [vmem:[%s11 + $0x38] sm:$0x7f]
    %v6869 = vld [vmem:[%s11 + $0x40] sm:$0x7f]
    %v6870 = vld [vmem:[%s11 + $0x48] sm:$0x7f]
    %v6871 = vld [vmem:[%s11 + $0x50] sm:$0x7f]
    %v6872 = vld [vmem:[%s11 + $0x58] sm:$0x7f]
    %v6873 = vld [vmem:[%s11 + $0x60] sm:$0x7f]
    %v6874 = vld [vmem:[%s11 + $0x68] sm:$0x7f]
    %v6875 = vld [vmem:[%s11 + $0x70] sm:$0x7f]
    %v6876 = vld [vmem:[%s11 + $0x78] sm:$0x7f]
    %v6877 = vld [vmem:[%s11 + $0x80] sm:$0x7f]
    %v6878 = vld [vmem:[%s11 + $0x88] sm:$0x7f]
    %v6879 = vld [vmem:[%s11 + $0x90] sm:$0x7f]
    %v6880 = vld [vmem:[%s11 + $0x98] sm:$0x7f]
    %v6881 = vld [vmem:[%s11 + $0xa0] sm:$0x7f]
    %v6882 = vld [vmem:[%s11 + $0xa8] sm:$0x7f]
    %v6883 = vld [vmem:[%s11 + $0xb0] sm:$0x7f]
    %v6884 = vld [vmem:[%s11 + $0xb8] sm:$0x7f]
    %v6885 = vld [vmem:[%s11 + $0xc0] sm:$0x7f]
    %v6886 = vld [vmem:[%s11 + $0xc8] sm:$0x7f]
    %v6887 = vld [vmem:[%s11 + $0xd0] sm:$0x7f]
    %v6888 = vld [vmem:[%s11 + $0xd8] sm:$0x7f]
    %v6889 = vmul.f32 %v6805, %v6861
    %v6890 = vmul.f32 %v6806, %v6862
    %v6891 = vmul.f32 %v6807, %v6863
    %v6892 = vmul.f32 %v6808, %v6864
    %v6893 = vmul.f32 %v6809, %v6865
    %v6894 = vmul.f32 %v6810, %v6866
    %v6895 = vmul.f32 %v6811, %v6867
    %v6896 = vmul.f32 %v6812, %v6868
    %v6897 = vmul.f32 %v6813, %v6869
    %v6898 = vmul.f32 %v6814, %v6870
    %v6899 = vmul.f32 %v6815, %v6871
    %v6900 = vmul.f32 %v6816, %v6872
    %v6901 = vmul.f32 %v6817, %v6873
    %v6902 = vmul.f32 %v6818, %v6874
    %v6903 = vmul.f32 %v6819, %v6875
    %v6904 = vmul.f32 %v6820, %v6876
    %v6905 = vmul.f32 %v6821, %v6877
    %v6906 = vmul.f32 %v6822, %v6878
    %v6907 = vmul.f32 %v6823, %v6879
    %v6908 = vmul.f32 %v6824, %v6880
    %v6909 = vmul.f32 %v6825, %v6881
    %v6910 = vmul.f32 %v6826, %v6882
    %v6911 = vmul.f32 %v6827, %v6883
    %v6912 = vmul.f32 %v6828, %v6884
    %v6913 = vmul.f32 %v6829, %v6885
    %v6914 = vmul.f32 %v6830, %v6886
    %v6915 = vmul.f32 %v6831, %v6887
    %v6916 = vmul.f32 %v6832, %v6888
    %v6917 = vmul.f32 %v6833, %v6861
    %v6918 = vmul.f32 %v6834, %v6862
    %v6919 = vmul.f32 %v6835, %v6863
    %v6920 = vmul.f32 %v6836, %v6864
    %v6921 = vmul.f32 %v6837, %v6865
    %v6922 = vmul.f32 %v6838, %v6866
    %v6923 = vmul.f32 %v6839, %v6867
    %v6924 = vmul.f32 %v6840, %v6868
    %v6925 = vmul.f32 %v6841, %v6869
    %v6926 = vmul.f32 %v6842, %v6870
    %v6927 = vmul.f32 %v6843, %v6871
    %v6928 = vmul.f32 %v6844, %v6872
    %v6929 = vmul.f32 %v6845, %v6873
    %v6930 = vmul.f32 %v6846, %v6874
    %v6931 = vmul.f32 %v6847, %v6875
    %v6932 = vmul.f32 %v6848, %v6876
    %v6933 = vmul.f32 %v6849, %v6877
    %v6934 = vmul.f32 %v6850, %v6878
    %v6935 = vmul.f32 %v6851, %v6879
    %v6936 = vmul.f32 %v6852, %v6880
    %v6937 = vmul.f32 %v6853, %v6881
    %v6938 = vmul.f32 %v6854, %v6882
    %v6939 = vmul.f32 %v6855, %v6883
    %v6940 = vmul.f32 %v6856, %v6884
    %v6941 = vmul.f32 %v6857, %v6885
    %v6942 = vmul.f32 %v6858, %v6886
    %v6943 = vmul.f32 %v6859, %v6887
    %v6944 = vmul.f32 %v6860, %v6888
    %v6945 = vsel %vm167, %v6889, 0.0
    %v6946 = vsel %vm167, %v6893, 0.0
    %v6947 = vadd.f32 %v6945, %v6946
    %v6948 = vsel %vm167, %v6897, 0.0
    %v6949 = vadd.f32 %v6947, %v6948
    %v6950 = vsel %vm167, %v6901, 0.0
    %v6951 = vadd.f32 %v6949, %v6950
    %v6952 = vsel %vm167, %v6905, 0.0
    %v6953 = vadd.f32 %v6951, %v6952
    %v6954 = vsel %vm167, %v6909, 0.0
    %v6955 = vadd.f32 %v6953, %v6954
    %v6956 = vsel %vm167, %v6913, 0.0
    %v6957 = vadd.f32 %v6955, %v6956
    %v6958 = vrot.slane %v6957, 4
    %v6959 = vadd.f32 %v6957, %v6958
    %v6960 = vrot.slane %v6959, 2
    %v6961 = vadd.f32 %v6959, %v6960
    %v6962 = vrot.slane %v6961, 1
    %v6963 = vadd.f32 %v6961, %v6962
    %v6964 = vsel %vm167, %v6890, 0.0
    %v6965 = vsel %vm167, %v6894, 0.0
    %v6966 = vadd.f32 %v6964, %v6965
    %v6967 = vsel %vm167, %v6898, 0.0
    %v6968 = vadd.f32 %v6966, %v6967
    %v6969 = vsel %vm167, %v6902, 0.0
    %v6970 = vadd.f32 %v6968, %v6969
    %v6971 = vsel %vm167, %v6906, 0.0
    %v6972 = vadd.f32 %v6970, %v6971
    %v6973 = vsel %vm167, %v6910, 0.0
    %v6974 = vadd.f32 %v6972, %v6973
    %v6975 = vsel %vm167, %v6914, 0.0
    %v6976 = vadd.f32 %v6974, %v6975
    %v6977 = vrot.slane %v6976, 4
    %v6978 = vadd.f32 %v6976, %v6977
    %v6979 = vrot.slane %v6978, 2
    %v6980 = vadd.f32 %v6978, %v6979
    %v6981 = vrot.slane %v6980, 1
    %v6982 = vadd.f32 %v6980, %v6981
    %v6983 = vsel %vm167, %v6891, 0.0
    %v6984 = vsel %vm167, %v6895, 0.0
    %v6985 = vadd.f32 %v6983, %v6984
    %v6986 = vsel %vm167, %v6899, 0.0
    %v6987 = vadd.f32 %v6985, %v6986
    %v6988 = vsel %vm167, %v6903, 0.0
    %v6989 = vadd.f32 %v6987, %v6988
    %v6990 = vsel %vm167, %v6907, 0.0
    %v6991 = vadd.f32 %v6989, %v6990
    %v6992 = vsel %vm167, %v6911, 0.0
    %v6993 = vadd.f32 %v6991, %v6992
    %v6994 = vsel %vm167, %v6915, 0.0
    %v6995 = vadd.f32 %v6993, %v6994
    %v6996 = vrot.slane %v6995, 4
    %v6997 = vadd.f32 %v6995, %v6996
    %v6998 = vrot.slane %v6997, 2
    %v6999 = vadd.f32 %v6997, %v6998
    %v7000 = vrot.slane %v6999, 1
    %v7001 = vadd.f32 %v6999, %v7000
    %v7002 = vsel %vm167, %v6892, 0.0
    %v7003 = vsel %vm167, %v6896, 0.0
    %v7004 = vadd.f32 %v7002, %v7003
    %v7005 = vsel %vm167, %v6900, 0.0
    %v7006 = vadd.f32 %v7004, %v7005
    %v7007 = vsel %vm167, %v6904, 0.0
    %v7008 = vadd.f32 %v7006, %v7007
    %v7009 = vsel %vm167, %v6908, 0.0
    %v7010 = vadd.f32 %v7008, %v7009
    %v7011 = vsel %vm167, %v6912, 0.0
    %v7012 = vadd.f32 %v7010, %v7011
    %v7013 = vsel %vm167, %v6916, 0.0
    %v7014 = vadd.f32 %v7012, %v7013
    %v7015 = vrot.slane %v7014, 4
    %v7016 = vadd.f32 %v7014, %v7015
    %v7017 = vrot.slane %v7016, 2
    %v7018 = vadd.f32 %v7016, %v7017
    %v7019 = vrot.slane %v7018, 1
    %v7020 = vadd.f32 %v7018, %v7019
    %v7021 = vsel %vm167, %v6917, 0.0
    %v7022 = vsel %vm167, %v6921, 0.0
    %v7023 = vadd.f32 %v7021, %v7022
    %v7024 = vsel %vm167, %v6925, 0.0
    %v7025 = vadd.f32 %v7023, %v7024
    %v7026 = vsel %vm167, %v6929, 0.0
    %v7027 = vadd.f32 %v7025, %v7026
    %v7028 = vsel %vm167, %v6933, 0.0
    %v7029 = vadd.f32 %v7027, %v7028
    %v7030 = vsel %vm167, %v6937, 0.0
    %v7031 = vadd.f32 %v7029, %v7030
    %v7032 = vsel %vm167, %v6941, 0.0
    %v7033 = vadd.f32 %v7031, %v7032
    %v7034 = vrot.slane %v7033, 4
    %v7035 = vadd.f32 %v7033, %v7034
    %v7036 = vrot.slane %v7035, 2
    %v7037 = vadd.f32 %v7035, %v7036
    %v7038 = vrot.slane %v7037, 1
    %v7039 = vadd.f32 %v7037, %v7038
    %v7040 = vsel %vm167, %v6918, 0.0
    %v7041 = vsel %vm167, %v6922, 0.0
    %v7042 = vadd.f32 %v7040, %v7041
    %v7043 = vsel %vm167, %v6926, 0.0
    %v7044 = vadd.f32 %v7042, %v7043
    %v7045 = vsel %vm167, %v6930, 0.0
    %v7046 = vadd.f32 %v7044, %v7045
    %v7047 = vsel %vm167, %v6934, 0.0
    %v7048 = vadd.f32 %v7046, %v7047
    %v7049 = vsel %vm167, %v6938, 0.0
    %v7050 = vadd.f32 %v7048, %v7049
    %v7051 = vsel %vm167, %v6942, 0.0
    %v7052 = vadd.f32 %v7050, %v7051
    %v7053 = vrot.slane %v7052, 4
    %v7054 = vadd.f32 %v7052, %v7053
    %v7055 = vrot.slane %v7054, 2
    %v7056 = vadd.f32 %v7054, %v7055
    %v7057 = vrot.slane %v7056, 1
    %v7058 = vadd.f32 %v7056, %v7057
    %v7059 = vsel %vm167, %v6919, 0.0
    %v7060 = vsel %vm167, %v6923, 0.0
    %v7061 = vadd.f32 %v7059, %v7060
    %v7062 = vsel %vm167, %v6927, 0.0
    %v7063 = vadd.f32 %v7061, %v7062
    %v7064 = vsel %vm167, %v6931, 0.0
    %v7065 = vadd.f32 %v7063, %v7064
    %v7066 = vsel %vm167, %v6935, 0.0
    %v7067 = vadd.f32 %v7065, %v7066
    %v7068 = vsel %vm167, %v6939, 0.0
    %v7069 = vadd.f32 %v7067, %v7068
    %v7070 = vsel %vm167, %v6943, 0.0
    %v7071 = vadd.f32 %v7069, %v7070
    %v7072 = vrot.slane %v7071, 4
    %v7073 = vadd.f32 %v7071, %v7072
    %v7074 = vrot.slane %v7073, 2
    %v7075 = vadd.f32 %v7073, %v7074
    %v7076 = vrot.slane %v7075, 1
    %v7077 = vadd.f32 %v7075, %v7076
    %v7078 = vsel %vm167, %v6920, 0.0
    %v7079 = vsel %vm167, %v6924, 0.0
    %v7080 = vadd.f32 %v7078, %v7079
    %v7081 = vsel %vm167, %v6928, 0.0
    %v7082 = vadd.f32 %v7080, %v7081
    %v7083 = vsel %vm167, %v6932, 0.0
    %v7084 = vadd.f32 %v7082, %v7083
    %v7085 = vsel %vm167, %v6936, 0.0
    %v7086 = vadd.f32 %v7084, %v7085
    %v7087 = vsel %vm167, %v6940, 0.0
    %v7088 = vadd.f32 %v7086, %v7087
    %v7089 = vsel %vm167, %v6944, 0.0
    %v7090 = vadd.f32 %v7088, %v7089
    %v7091 = vrot.slane %v7090, 4
    %v7092 = vadd.f32 %v7090, %v7091
    %v7093 = vrot.slane %v7092, 2
    %v7094 = vadd.f32 %v7092, %v7093
    %v7095 = vrot.slane %v7094, 1
    %v7096 = vadd.f32 %v7094, %v7095
    %v7097 = vld [vmem:[%s12] sm:$0xf]
    %v7099 = vlaneseq
    %v7100 = vshrl.u32 %v7099, 7
    %v7101 = vsub.s32 0, %v7100
    %v7102 = vrot.slane %v7097, %v7101
    %v7103 = vlaneseq
    %v7104 = vshrl.u32 %v7103, 7
    %v7105 = vsub.s32 1, %v7104
    %v7106 = vrot.slane %v7097, %v7105
    %v7107 = vlaneseq
    %v7108 = vshrl.u32 %v7107, 7
    %v7109 = vsub.s32 2, %v7108
    %v7110 = vrot.slane %v7097, %v7109
    %v7111 = vlaneseq
    %v7112 = vshrl.u32 %v7111, 7
    %v7113 = vsub.s32 3, %v7112
    %v7114 = vrot.slane %v7097, %v7113
    %v7119 = vadd.f32 %v6963, %v7102
    %v7120 = vadd.f32 %v6982, %v7106
    %v7121 = vadd.f32 %v7001, %v7110
    %v7122 = vadd.f32 %v7020, %v7114
    %v7123 = vadd.f32 %v7039, %v7102
    %v7124 = vadd.f32 %v7058, %v7106
    %v7125 = vadd.f32 %v7077, %v7110
    %v7126 = vadd.f32 %v7096, %v7114
    %v7127 = vpack.c.bf16 %v7119, %v7119
    %v7128 = vpack.c.bf16 %v7120, %v7120
    %v7129 = vpack.c.bf16 %v7121, %v7121
    %v7130 = vpack.c.bf16 %v7122, %v7122
    %v7131 = vpack.c.bf16 %v7123, %v7123
    %v7132 = vpack.c.bf16 %v7124, %v7124
    %v7133 = vpack.c.bf16 %v7125, %v7125
    %v7134 = vpack.c.bf16 %v7126, %v7126
    %v7143 = vcombine.low %v7127, %v7128
    %v7144 = vcombine.low %v7129, %v7130
    %v7146 = vunpack.c.l.s4 1966171168
    %v7147 = vunpack.c.0.s8 %v7146
    %v7148 = vlaneseq
    %v7149 = vshrl.u32 %v7148, 7
    %v7150 = vsub.s32 %v7147, %v7149
    %v7151 = vrot.slane %v7143, %v7150
    %v7153 = vunpack.c.l.s4 1966171168
    %v7154 = vunpack.c.0.s8 %v7153
    %v7155 = vlaneseq
    %v7156 = vshrl.u32 %v7155, 7
    %v7157 = vsub.s32 %v7154, %v7156
    %v7158 = vrot.slane %v7144, %v7157
    %v7159 = vcombine.low %v7151, %v7158
    %v7161 = vunpack.c.l.s4 1966171168
    %v7162 = vunpack.c.0.s8 %v7161
    %v7163 = vlaneseq
    %v7164 = vshrl.u32 %v7163, 7
    %v7165 = vsub.s32 %v7162, %v7164
    %v7166 = vrot.slane %v7159, %v7165
    %v7167 = vcombine.low %v7131, %v7132
    %v7168 = vcombine.low %v7133, %v7134
    %v7170 = vunpack.c.l.s4 1966171168
    %v7171 = vunpack.c.0.s8 %v7170
    %v7172 = vlaneseq
    %v7173 = vshrl.u32 %v7172, 7
    %v7174 = vsub.s32 %v7171, %v7173
    %v7175 = vrot.slane %v7167, %v7174
    %v7177 = vunpack.c.l.s4 1966171168
    %v7178 = vunpack.c.0.s8 %v7177
    %v7179 = vlaneseq
    %v7180 = vshrl.u32 %v7179, 7
    %v7181 = vsub.s32 %v7178, %v7180
    %v7182 = vrot.slane %v7168, %v7181
    %v7183 = vcombine.low %v7175, %v7182
    %v7185 = vunpack.c.l.s4 1966171168
    %v7186 = vunpack.c.0.s8 %v7185
    %v7187 = vlaneseq
    %v7188 = vshrl.u32 %v7187, 7
    %v7189 = vsub.s32 %v7186, %v7188
    %v7190 = vrot.slane %v7183, %v7189
    %v7192 = vunpack.c.l.s4 1935823168
    %v7193 = vunpack.c.0.s8 %v7192
    %v7194 = vlaneseq
    %v7195 = vshrl.u32 %v7194, 7
    %v7196 = vsub.s32 %v7193, %v7195
    %v7197 = vrot.slane %v7166, %v7196
    %v7198 = vcombine.high %v7197, %v7197
    %v7200 = vunpack.c.l.s4 1935823168
    %v7201 = vunpack.c.0.s8 %v7200
    %v7202 = vlaneseq
    %v7203 = vshrl.u32 %v7202, 7
    %v7204 = vsub.s32 %v7201, %v7203
    %v7205 = vrot.slane %v7197, %v7204
    %v7207 = vunpack.c.l.s4 1935823168
    %v7208 = vunpack.c.0.s8 %v7207
    %v7209 = vlaneseq
    %v7210 = vshrl.u32 %v7209, 7
    %v7211 = vsub.s32 %v7208, %v7210
    %v7212 = vrot.slane %v7198, %v7211
    %v7214 = vunpack.c.l.s4 1935823168
    %v7215 = vunpack.c.0.s8 %v7214
    %v7216 = vlaneseq
    %v7217 = vshrl.u32 %v7216, 7
    %v7218 = vsub.s32 %v7215, %v7217
    %v7219 = vrot.slane %v7190, %v7218
    %v7220 = vcombine.high %v7219, %v7219
    %v7222 = vunpack.c.l.s4 1935823168
    %v7223 = vunpack.c.0.s8 %v7222
    %v7224 = vlaneseq
    %v7225 = vshrl.u32 %v7224, 7
    %v7226 = vsub.s32 %v7223, %v7225
    %v7227 = vrot.slane %v7219, %v7226
    %v7229 = vunpack.c.l.s4 1935823168
    %v7230 = vunpack.c.0.s8 %v7229
    %v7231 = vlaneseq
    %v7232 = vshrl.u32 %v7231, 7
    %v7233 = vsub.s32 %v7230, %v7232
    %v7234 = vrot.slane %v7220, %v7233
    %v7235 = vunpack.c.l.b16 %v7205
    %v7236 = vunpack.c.h.b16 %v7205
    %v7237 = vunpack.c.l.b16 %v7212
    %v7238 = vunpack.c.h.b16 %v7212
    %v7239 = vunpack.c.l.b16 %v7227
    %v7240 = vunpack.c.h.b16 %v7227
    %v7241 = vunpack.c.l.b16 %v7234
    %v7242 = vunpack.c.h.b16 %v7234
    %v7243 = vrot.slane %v7239, 7
    %v7244 = vsel %vm1167, %v7243, %v7235
    %v7245 = vrot.slane %v7240, 7
    %v7246 = vsel %vm1167, %v7245, %v7236
    %v7247 = vrot.slane %v7241, 7
    %v7248 = vsel %vm1167, %v7247, %v7237
    %v7249 = vrot.slane %v7242, 7
    %v7250 = vsel %vm1167, %v7249, %v7238
    %v7251 = vpack.c.b16 %v7246, %v7244
    %v7252 = vpack.c.b16 %v7250, %v7248
    %v7254 = vunpack.c.l.s4 1966171168
    %v7255 = vunpack.c.0.s8 %v7254
    %v7256 = vlaneseq
    %v7257 = vshrl.u32 %v7256, 7
    %v7258 = vsub.s32 %v7255, %v7257
    %v7259 = vrot.slane %v7251, %v7258
    %v7261 = vunpack.c.l.s4 1966171168
    %v7262 = vunpack.c.0.s8 %v7261
    %v7263 = vlaneseq
    %v7264 = vshrl.u32 %v7263, 7
    %v7265 = vsub.s32 %v7262, %v7264
    %v7266 = vrot.slane %v7252, %v7265
    %v7267 = vcombine.low %v7259, %v7266
    %v7269 = vunpack.c.l.s4 1966171168
    %v7270 = vunpack.c.0.s8 %v7269
    %v7271 = vlaneseq
    %v7272 = vshrl.u32 %v7271, 7
    %v7273 = vsub.s32 %v7270, %v7272
    %v7274 = vrot.slane %v7267, %v7273
    %7276 = vst [vmem:[#allocation2] sm:$0xf] %v7274
    // Predicated region
    $region54: #{tpu_custom_call.1} parent=1 // pred_check
      _
    $region55: #{tpu_custom_call.1} parent=1 // pred_check_branch
      %7278 = sbr.rel (0) target = $region57
    $region56: #{tpu_custom_call.1} parent=1 // pred_region
      _
    $region57: #{tpu_custom_call.1} parent=1 // pred_fallthru
      _
    // Predicated region
    $region58: #{tpu_custom_call.1} parent=1 // pred_check
      _
    $region59: #{tpu_custom_call.1} parent=1 // pred_check_branch
      %7280 = sbr.rel (0) target = $region61
    $region60: #{tpu_custom_call.1} parent=1 // pred_region
      %s7282 = ssub.s32 64, 64
      %7283 = vsyncadd [#allocation3], %s7282
      %s7285 = sshll.u32 [#allocation2], 4
      %s7286 = int_to_ptr.vmem [resolvable:$true] %s7285
      %7288 = dma.vmem_to_hbm [thread:$0]  %s7286, 64, %s14, [#allocation3]
    $region61: #{tpu_custom_call.1} parent=1 // pred_fallthru
      _
    // Predicated region
    $region62: #{tpu_custom_call.1} parent=1 // pred_check
      _
    $region63: #{tpu_custom_call.1} parent=1 // pred_check_branch
      %7290 = sbr.rel (0) target = $region65
    $region64: #{tpu_custom_call.1} parent=1 // pred_region
      _
    $region65: #{tpu_custom_call.1} parent=1 // pred_fallthru
      _
    // Predicated region
    $region66: #{tpu_custom_call.1} parent=1 // pred_check
      _
    $region67: #{tpu_custom_call.1} parent=1 // pred_check_branch
      %7292 = sbr.rel (0) target = $region69
    $region68: #{tpu_custom_call.1} parent=1 // pred_region
      %7293 = dma.done [#allocation3], 64
    $region69: #{tpu_custom_call.1} parent=1 // pred_fallthru
      _
    %7294 = vsyncpa [#allocation3], 1

</llo_original>
